<compile_context>
chip_gen: v5e
topology: v5e:2x2
jax: 0.10.0
libtpu: 0.0.40
codegen_flags: <defaults>
</compile_context>

<pallas_src>
import functools

import jax
import jax.numpy as jnp
from jax import lax
from jax.experimental import pallas as pl
from jax.experimental.pallas import tpu as pltpu


def _round_up(x, m):
    return (x + m - 1) // m * m


def _supcon_kernel(q_ref, kt_ref, rlab_ref, clab_ref, o_ref,
                   m_sc, l_sc, sp_sc, cp_sc, *,
                   tile_q, tile_k, n_anchor, n_contrast,
                   inv_temp, loss_scale):
    """One (anchor-tile, contrast-tile) step of the online SupCon reduction."""
    qi = pl.program_id(0)
    ki = pl.program_id(1)

    @pl.when(ki == 0)
    def _init():
        m_sc[...] = jnp.full_like(m_sc, -jnp.inf)
        l_sc[...] = jnp.zeros_like(l_sc)
        sp_sc[...] = jnp.zeros_like(sp_sc)
        cp_sc[...] = jnp.zeros_like(cp_sc)

    # Fold 1/temperature into the LHS tile (tq*D mults instead of tq*tk divides).
    q = q_ref[...] * inv_temp                                   # [tq, D]
    # [tq, D] x [D, tk] on the MXU, f32 accumulate, no RHS transpose needed.
    s = jnp.dot(q, kt_ref[...],
                preferred_element_type=jnp.float32,
                precision=lax.Precision.HIGHEST)                # [tq, tk]

    row_idx = qi * tile_q + lax.broadcasted_iota(jnp.int32, (tile_q, tile_k), 0)
    col_idx = ki * tile_k + lax.broadcasted_iota(jnp.int32, (tile_q, tile_k), 1)
    col_valid = col_idx < n_contrast            # mask padded contrast columns
    not_self = row_idx != col_idx               # self-contrast (diagonal) mask
    valid = jnp.logical_and(col_valid, not_self)

    # Positive mask built in-kernel from labels (never shipped through HBM).
    posf = jnp.logical_and(rlab_ref[...] == clab_ref[...], valid).astype(jnp.float32)

    # ---- online log-sum-exp across contrast tiles ---------------------------
    # Row max is over all *real* columns including the diagonal (as in PyTorch).
    m_prev = m_sc[...]
    m_new = jnp.maximum(
        m_prev,
        jnp.max(jnp.where(col_valid, s, -jnp.inf), axis=1, keepdims=True))
    alpha = jnp.exp(m_prev - m_new)
    p = jnp.where(valid, jnp.exp(s - m_new), 0.0)
    l_sc[...] = alpha * l_sc[...] + jnp.sum(p, axis=1, keepdims=True)
    m_sc[...] = m_new

    # sum_j pos*log_prob = sum_j pos*adc - (sum_j pos)*(m + log l)
    sp_sc[...] = sp_sc[...] + jnp.sum(posf * s, axis=1, keepdims=True)
    cp_sc[...] = cp_sc[...] + jnp.sum(posf, axis=1, keepdims=True)

    @pl.when(ki == pl.num_programs(1) - 1)
    def _finalize():
        m = m_sc[...]
        l = l_sc[...]
        sp = sp_sc[...]
        cp = cp_sc[...]
        mean_log_prob_pos = (sp - cp * (m + jnp.log(l))) / cp
        loss = -loss_scale * mean_log_prob_pos                  # [tq, 1]
        row = qi * tile_q + lax.broadcasted_iota(jnp.int32, (tile_q, 1), 0)
        o_ref[...] = jnp.where(row < n_anchor, loss, 0.0)       # zero padded rows


def supcon_loss(features, labels=None, mask=None, *,
                temperature=0.07, contrast_mode="all", base_temperature=0.07,
                tile_q=256, tile_k=512):
    """JAX/Pallas equivalent of SupConLoss.forward (contrast_mode 'all' or 'one')."""
    if features.ndim < 3:
        raise ValueError("`features` needs to be [bsz, n_views, ...]")
    if features.ndim > 3:
        features = features.reshape(features.shape[0], features.shape[1], -1)
    features = features.astype(jnp.float32)
    bsz, n_views, d = features.shape

    if labels is not None and mask is not None:
        raise ValueError("Cannot define both `labels` and `mask`")
    if mask is not None:
        # TODO(synk): arbitrary (possibly asymmetric) [bsz, bsz] masks would need a
        # tiled N x N mask input; only the labels / SimCLR paths are kernelized.
        raise NotImplementedError("explicit `mask` not supported; pass `labels`.")
    if labels is None:
        labels = jnp.arange(bsz, dtype=jnp.int32)     # eye(bsz) == unique labels
    else:
        labels = jnp.asarray(labels).reshape(-1).astype(jnp.int32)
        if labels.shape[0] != bsz:
            raise ValueError("Num of labels does not match num of features")

    contrast_count = n_views
    # torch.cat(torch.unbind(features, dim=1), dim=0) -> [n_views*bsz, D]
    contrast_feature = jnp.transpose(features, (1, 0, 2)).reshape(n_views * bsz, d)
    contrast_labels = jnp.tile(labels, n_views)

    if contrast_mode == "one":
        anchor_feature = features[:, 0]
        anchor_labels = labels
        anchor_count = 1
    elif contrast_mode == "all":
        anchor_feature = contrast_feature
        anchor_labels = contrast_labels
        anchor_count = contrast_count
    else:
        raise ValueError(f"Unknown mode: {contrast_mode}")

    n_anchor = anchor_count * bsz
    n_contrast = contrast_count * bsz
    nq_pad = _round_up(n_anchor, tile_q)
    nk_pad = _round_up(n_contrast, tile_k)

    anchor_p = jnp.zeros((nq_pad, d), jnp.float32).at[:n_anchor].set(anchor_feature)
    contrast_t = jnp.zeros((d, nk_pad), jnp.float32).at[:, :n_contrast].set(
        contrast_feature.T)
    # Distinct pad sentinels so padded rows never match padded columns.
    row_lab = jnp.full((nq_pad, 1), -2, jnp.int32).at[:n_anchor, 0].set(anchor_labels)
    col_lab = jnp.full((1, nk_pad), -1, jnp.int32).at[0, :n_contrast].set(contrast_labels)

    grid = (nq_pad // tile_q, nk_pad // tile_k)
    kernel = functools.partial(
        _supcon_kernel,
        tile_q=tile_q, tile_k=tile_k,
        n_anchor=n_anchor, n_contrast=n_contrast,
        inv_temp=float(1.0 / temperature),
        loss_scale=float(temperature / base_temperature))

    per_row = pl.pallas_call(
        kernel,
        out_shape=jax.ShapeDtypeStruct((nq_pad, 1), jnp.float32),
        grid_spec=pltpu.PrefetchScalarGridSpec(
            num_scalar_prefetch=0,
            grid=grid,
            in_specs=[
                pl.BlockSpec((tile_q, d), lambda qi, ki: (qi, 0)),   # anchor feats
                pl.BlockSpec((d, tile_k), lambda qi, ki: (0, ki)),   # contrast^T feats
                pl.BlockSpec((tile_q, 1), lambda qi, ki: (qi, 0)),   # row labels
                pl.BlockSpec((1, tile_k), lambda qi, ki: (0, ki)),   # col labels
            ],
            out_specs=pl.BlockSpec((tile_q, 1), lambda qi, ki: (qi, 0)),
            scratch_shapes=[pltpu.VMEM((tile_q, 1), jnp.float32)] * 4,
        ),
        compiler_params=pltpu.CompilerParams(
            dimension_semantics=("parallel", "arbitrary"),
            vmem_limit_bytes=64 * 1024 * 1024,
        ),
    )(anchor_p, contrast_t, row_lab, col_lab)

    # Per-anchor partial losses reduced outside the kernel (keeps the anchor grid
    # axis "parallel" and race-free across TensorCores).
    return jnp.sum(per_row) / jnp.float32(n_anchor)


def _reference_supcon(features, labels=None, temperature=0.07,
                      contrast_mode="all", base_temperature=0.07):
    """Pure-JAX reference mirroring the PyTorch code (for sanity check)."""
    bsz, n_views, d = features.shape
    if labels is None:
        base_mask = jnp.eye(bsz, dtype=jnp.float32)
    else:
        labels = labels.reshape(-1, 1)
        base_mask = (labels == labels.T).astype(jnp.float32)
    cf = jnp.transpose(features, (1, 0, 2)).reshape(n_views * bsz, d)
    if contrast_mode == "one":
        af = features[:, 0]
        anchor_count = 1
    else:
        af = cf
        anchor_count = n_views
    na = anchor_count * bsz
    nc = n_views * bsz
    adc = jnp.dot(af, cf.T, precision=lax.Precision.HIGHEST) / temperature
    logits = adc - jnp.max(adc, axis=1, keepdims=True)
    m = jnp.tile(base_mask, (anchor_count, n_views))
    logits_mask = jnp.ones((na, nc), jnp.float32).at[jnp.arange(na), jnp.arange(na)].set(0.0)
    m = m * logits_mask
    exp_logits = jnp.exp(logits) * logits_mask
    log_prob = logits - jnp.log(exp_logits.sum(1, keepdims=True))
    mlpp = (m * log_prob).sum(1) / m.sum(1)
    loss = -(temperature / base_temperature) * mlpp
    return loss.mean()


if __name__ == "__main__":
    key = jax.random.PRNGKey(0)
    k1, k2, k3 = jax.random.split(key, 3)

    # Small supervised example: bsz=8, n_views=2, feat_dim=32.
    bsz, n_views, feat_dim = 8, 2, 32
    feats = jax.random.normal(k1, (bsz, n_views, feat_dim), dtype=jnp.float32)
    feats = feats / jnp.linalg.norm(feats, axis=-1, keepdims=True)
    labels = jnp.array([0, 1, 2, 3, 0, 1, 2, 3], dtype=jnp.int32)

    out = jax.block_until_ready(supcon_loss(feats, labels=labels))
    ref = _reference_supcon(feats, labels=labels)
    assert jnp.allclose(out, ref, rtol=5e-5, atol=5e-5), (out, ref)

    # SimCLR (unsupervised) path: labels=None -> eye mask.
    out_u = jax.block_until_ready(supcon_loss(feats))
    ref_u = _reference_supcon(feats, labels=None)
    assert jnp.allclose(out_u, ref_u, rtol=5e-5, atol=5e-5), (out_u, ref_u)

    # contrast_mode='one' (asymmetric anchor/contrast counts).
    out_o = jax.block_until_ready(
        supcon_loss(feats, labels=labels, contrast_mode="one"))
    ref_o = _reference_supcon(feats, labels=labels, contrast_mode="one")
    assert jnp.allclose(out_o, ref_o, rtol=5e-5, atol=5e-5), (out_o, ref_o)

    # Multi-tile path: exercises online LSE across contrast tiles and padding.
    bsz2, nv2, d2 = 96, 2, 32                      # N = 192, tiles of 128 -> 2x2 grid
    feats2 = jax.random.normal(k2, (bsz2, nv2, d2), dtype=jnp.float32)
    feats2 = feats2 / jnp.linalg.norm(feats2, axis=-1, keepdims=True)
    labels2 = jax.random.randint(k3, (bsz2,), 0, 8, dtype=jnp.int32)
    out2 = jax.block_until_ready(
        supcon_loss(feats2, labels=labels2, tile_q=128, tile_k=128))
    ref2 = _reference_supcon(feats2, labels=labels2)
    assert jnp.allclose(out2, ref2, rtol=5e-5, atol=5e-5), (out2, ref2)

    print("KERNEL_OK")
</pallas_src>

<mosaic_0001>
module attributes {stable_mosaic.version = 11 : i64} {
  func.func @_supcon_kernel(%arg0: i32, %arg1: i32, %arg2: memref<256x32xf32, #tpu.memory_space<vmem>>, %arg3: memref<32x512xf32, #tpu.memory_space<vmem>>, %arg4: memref<256x1xi32, #tpu.memory_space<vmem>>, %arg5: memref<1x512xi32, #tpu.memory_space<vmem>>, %arg6: memref<256x1xf32, #tpu.memory_space<vmem>>, %arg7: memref<256x1xf32, #tpu.memory_space<vmem>>, %arg8: memref<256x1xf32, #tpu.memory_space<vmem>>, %arg9: memref<256x1xf32, #tpu.memory_space<vmem>>, %arg10: memref<256x1xf32, #tpu.memory_space<vmem>>) attributes {dimension_semantics = [#tpu.dimension_semantics<parallel>, #tpu.dimension_semantics<arbitrary>], iteration_bounds = array<i64: 1, 1>, scalar_prefetch = 0 : i64, scratch_operands = 4 : i64, tpu.core_type = #tpu.core_type<tc>, window_params = [{transform_indices = @transform_0, window_bounds = array<i64: 256, 32>}, {transform_indices = @transform_1, window_bounds = array<i64: 32, 512>}, {transform_indices = @transform_2, window_bounds = array<i64: 256, 1>}, {transform_indices = @transform_3, window_bounds = array<i64: 1, 512>}, {transform_indices = @transform_4, window_bounds = array<i64: 256, 1>}]} {
    %c0_i32 = arith.constant 0 : i32
    %0 = arith.cmpi eq, %arg1, %c0_i32 : i32
    %1 = arith.extui %0 : i1 to i32
    %c0_i32_0 = arith.constant 0 : i32
    %2 = arith.cmpi ne, %1, %c0_i32_0 : i32
    scf.if %2 {
      %cst_33 = arith.constant 0xFF800000 : f32
      %62 = vector.broadcast %cst_33 : f32 to vector<256x1xf32>
      %c0_34 = arith.constant 0 : index
      %c0_35 = arith.constant 0 : index
      %63 = vector.load %arg7[%c0_34, %c0_35] : memref<256x1xf32, #tpu.memory_space<vmem>>, vector<256x1xf32>
      tpu.vector_store %arg7[%c0_34, %c0_35], %62 {strides = array<i32>} : memref<256x1xf32, #tpu.memory_space<vmem>>, vector<256x1xf32>,
      %cst_36 = arith.constant 0.000000e+00 : f32
      %64 = vector.broadcast %cst_36 : f32 to vector<256x1xf32>
      %c0_37 = arith.constant 0 : index
      %c0_38 = arith.constant 0 : index
      %65 = vector.load %arg8[%c0_37, %c0_38] : memref<256x1xf32, #tpu.memory_space<vmem>>, vector<256x1xf32>
      tpu.vector_store %arg8[%c0_37, %c0_38], %64 {strides = array<i32>} : memref<256x1xf32, #tpu.memory_space<vmem>>, vector<256x1xf32>,
      %cst_39 = arith.constant 0.000000e+00 : f32
      %66 = vector.broadcast %cst_39 : f32 to vector<256x1xf32>
      %c0_40 = arith.constant 0 : index
      %c0_41 = arith.constant 0 : index
      %67 = vector.load %arg9[%c0_40, %c0_41] : memref<256x1xf32, #tpu.memory_space<vmem>>, vector<256x1xf32>
      tpu.vector_store %arg9[%c0_40, %c0_41], %66 {strides = array<i32>} : memref<256x1xf32, #tpu.memory_space<vmem>>, vector<256x1xf32>,
      %cst_42 = arith.constant 0.000000e+00 : f32
      %68 = vector.broadcast %cst_42 : f32 to vector<256x1xf32>
      %c0_43 = arith.constant 0 : index
      %c0_44 = arith.constant 0 : index
      %69 = vector.load %arg10[%c0_43, %c0_44] : memref<256x1xf32, #tpu.memory_space<vmem>>, vector<256x1xf32>
      tpu.vector_store %arg10[%c0_43, %c0_44], %68 {strides = array<i32>} : memref<256x1xf32, #tpu.memory_space<vmem>>, vector<256x1xf32>,
    } else {
    }
    %c0 = arith.constant 0 : index
    %c0_1 = arith.constant 0 : index
    %3 = vector.load %arg2[%c0, %c0_1] : memref<256x32xf32, #tpu.memory_space<vmem>>, vector<256x32xf32>
    %cst = arith.constant 14.2857141 : f32
    %4 = vector.broadcast %cst : f32 to vector<256x32xf32>
    %5 = arith.mulf %3, %4 : vector<256x32xf32>
    %c0_2 = arith.constant 0 : index
    %c0_3 = arith.constant 0 : index
    %6 = vector.load %arg3[%c0_2, %c0_3] : memref<32x512xf32, #tpu.memory_space<vmem>>, vector<32x512xf32>
    %cst_4 = arith.constant dense<0.000000e+00> : vector<256x512xf32>
    %7 = tpu.matmul %5, %6, %cst_4 {dimension_numbers = #tpu.dot_dimension_numbers<[1], [0], [0], [1], [0, 0, 1, 1], [], []>, precision = #tpu.contract_precision<fp32>} : vector<256x32xf32>, vector<32x512xf32>, vector<256x512xf32> -> vector<256x512xf32>
    %c256_i32 = arith.constant 256 : i32
    %8 = arith.muli %arg0, %c256_i32 : i32
    %9 = tpu.iota {dimensions = array<i32: 0>} : vector<256x512xi32>
    %10 = vector.broadcast %8 : i32 to vector<256x512xi32>
    %11 = arith.addi %10, %9 : vector<256x512xi32>
    %c512_i32 = arith.constant 512 : i32
    %12 = arith.muli %arg1, %c512_i32 : i32
    %13 = tpu.iota {dimensions = array<i32: 1>} : vector<256x512xi32>
    %14 = vector.broadcast %12 : i32 to vector<256x512xi32>
    %15 = arith.addi %14, %13 : vector<256x512xi32>
    %c16_i32 = arith.constant 16 : i32
    %16 = vector.broadcast %c16_i32 : i32 to vector<256x512xi32>
    %17 = arith.cmpi slt, %15, %16 : vector<256x512xi32>
    %18 = arith.cmpi ne, %11, %15 : vector<256x512xi32>
    %19 = arith.andi %17, %18 : vector<256x512xi1>
    %c0_5 = arith.constant 0 : index
    %c0_6 = arith.constant 0 : index
    %20 = vector.load %arg4[%c0_5, %c0_6] : memref<256x1xi32, #tpu.memory_space<vmem>>, vector<256x1xi32>
    %c0_7 = arith.constant 0 : index
    %c0_8 = arith.constant 0 : index
    %21 = vector.load %arg5[%c0_7, %c0_8] : memref<1x512xi32, #tpu.memory_space<vmem>>, vector<1x512xi32>
    %22 = vector.broadcast %20 : vector<256x1xi32> to vector<256x512xi32>
    %23 = vector.broadcast %21 : vector<1x512xi32> to vector<256x512xi32>
    %24 = arith.cmpi eq, %22, %23 : vector<256x512xi32>
    %25 = arith.andi %24, %19 : vector<256x512xi1>
    %26 = arith.extui %25 : vector<256x512xi1> to vector<256x512xi32>
    %27 = arith.sitofp %26 : vector<256x512xi32> to vector<256x512xf32>
    %c0_9 = arith.constant 0 : index
    %c0_10 = arith.constant 0 : index
    %28 = vector.load %arg7[%c0_9, %c0_10] : memref<256x1xf32, #tpu.memory_space<vmem>>, vector<256x1xf32>
    %cst_11 = arith.constant 0xFF800000 : f32
    %29 = vector.broadcast %cst_11 : f32 to vector<256x512xf32>
    %30 = arith.select %17, %7, %29 : vector<256x512xi1>, vector<256x512xf32>
    %cst_12 = arith.constant dense<0xFF800000> : vector<256xf32>
    %31 = vector.multi_reduction <maximumf>, %30, %cst_12 [1] : vector<256x512xf32> to vector<256xf32>
    %32 = vector.shape_cast %31 : vector<256xf32> to vector<256x1xf32>
    %33 = arith.maximumf %28, %32 : vector<256x1xf32>
    %34 = arith.subf %28, %33 : vector<256x1xf32>
    %35 = math.exp %34 : vector<256x1xf32>
    %36 = vector.broadcast %33 : vector<256x1xf32> to vector<256x512xf32>
    %37 = arith.subf %7, %36 : vector<256x512xf32>
    %38 = math.exp %37 : vector<256x512xf32>
    %cst_13 = arith.constant 0.000000e+00 : f32
    %39 = vector.broadcast %cst_13 : f32 to vector<256x512xf32>
    %40 = arith.select %19, %38, %39 : vector<256x512xi1>, vector<256x512xf32>
    %c0_14 = arith.constant 0 : index
    %c0_15 = arith.constant 0 : index
    %41 = vector.load %arg8[%c0_14, %c0_15] : memref<256x1xf32, #tpu.memory_space<vmem>>, vector<256x1xf32>
    %42 = arith.mulf %35, %41 : vector<256x1xf32>
    %cst_16 = arith.constant dense<0.000000e+00> : vector<256xf32>
    %43 = vector.multi_reduction <add>, %40, %cst_16 [1] : vector<256x512xf32> to vector<256xf32>
    %44 = vector.shape_cast %43 : vector<256xf32> to vector<256x1xf32>
    %45 = arith.addf %42, %44 : vector<256x1xf32>
    %c0_17 = arith.constant 0 : index
    %c0_18 = arith.constant 0 : index
    %46 = vector.load %arg8[%c0_17, %c0_18] : memref<256x1xf32, #tpu.memory_space<vmem>>, vector<256x1xf32>
    tpu.vector_store %arg8[%c0_17, %c0_18], %45 {strides = array<i32>} : memref<256x1xf32, #tpu.memory_space<vmem>>, vector<256x1xf32>,
    %c0_19 = arith.constant 0 : index
    %c0_20 = arith.constant 0 : index
    %47 = vector.load %arg7[%c0_19, %c0_20] : memref<256x1xf32, #tpu.memory_space<vmem>>, vector<256x1xf32>
    tpu.vector_store %arg7[%c0_19, %c0_20], %33 {strides = array<i32>} : memref<256x1xf32, #tpu.memory_space<vmem>>, vector<256x1xf32>,
    %c0_21 = arith.constant 0 : index
    %c0_22 = arith.constant 0 : index
    %48 = vector.load %arg9[%c0_21, %c0_22] : memref<256x1xf32, #tpu.memory_space<vmem>>, vector<256x1xf32>
    %49 = arith.mulf %27, %7 : vector<256x512xf32>
    %cst_23 = arith.constant dense<0.000000e+00> : vector<256xf32>
    %50 = vector.multi_reduction <add>, %49, %cst_23 [1] : vector<256x512xf32> to vector<256xf32>
    %51 = vector.shape_cast %50 : vector<256xf32> to vector<256x1xf32>
    %52 = arith.addf %48, %51 : vector<256x1xf32>
    %c0_24 = arith.constant 0 : index
    %c0_25 = arith.constant 0 : index
    %53 = vector.load %arg9[%c0_24, %c0_25] : memref<256x1xf32, #tpu.memory_space<vmem>>, vector<256x1xf32>
    tpu.vector_store %arg9[%c0_24, %c0_25], %52 {strides = array<i32>} : memref<256x1xf32, #tpu.memory_space<vmem>>, vector<256x1xf32>,
    %c0_26 = arith.constant 0 : index
    %c0_27 = arith.constant 0 : index
    %54 = vector.load %arg10[%c0_26, %c0_27] : memref<256x1xf32, #tpu.memory_space<vmem>>, vector<256x1xf32>
    %cst_28 = arith.constant dense<0.000000e+00> : vector<256xf32>
    %55 = vector.multi_reduction <add>, %27, %cst_28 [1] : vector<256x512xf32> to vector<256xf32>
    %56 = vector.shape_cast %55 : vector<256xf32> to vector<256x1xf32>
    %57 = arith.addf %54, %56 : vector<256x1xf32>
    %c0_29 = arith.constant 0 : index
    %c0_30 = arith.constant 0 : index
    %58 = vector.load %arg10[%c0_29, %c0_30] : memref<256x1xf32, #tpu.memory_space<vmem>>, vector<256x1xf32>
    tpu.vector_store %arg10[%c0_29, %c0_30], %57 {strides = array<i32>} : memref<256x1xf32, #tpu.memory_space<vmem>>, vector<256x1xf32>,
    %c0_i32_31 = arith.constant 0 : i32
    %59 = arith.cmpi eq, %arg1, %c0_i32_31 : i32
    %60 = arith.extui %59 : i1 to i32
    %c0_i32_32 = arith.constant 0 : i32
    %61 = arith.cmpi ne, %60, %c0_i32_32 : i32
    scf.if %61 {
      %c0_33 = arith.constant 0 : index
      %c0_34 = arith.constant 0 : index
      %62 = vector.load %arg7[%c0_33, %c0_34] : memref<256x1xf32, #tpu.memory_space<vmem>>, vector<256x1xf32>
      %c0_35 = arith.constant 0 : index
      %c0_36 = arith.constant 0 : index
      %63 = vector.load %arg8[%c0_35, %c0_36] : memref<256x1xf32, #tpu.memory_space<vmem>>, vector<256x1xf32>
      %c0_37 = arith.constant 0 : index
      %c0_38 = arith.constant 0 : index
      %64 = vector.load %arg9[%c0_37, %c0_38] : memref<256x1xf32, #tpu.memory_space<vmem>>, vector<256x1xf32>
      %c0_39 = arith.constant 0 : index
      %c0_40 = arith.constant 0 : index
      %65 = vector.load %arg10[%c0_39, %c0_40] : memref<256x1xf32, #tpu.memory_space<vmem>>, vector<256x1xf32>
      %66 = math.log %63 : vector<256x1xf32>
      %67 = arith.addf %62, %66 : vector<256x1xf32>
      %68 = arith.mulf %65, %67 : vector<256x1xf32>
      %69 = arith.subf %64, %68 : vector<256x1xf32>
      %70 = arith.divf %69, %65 : vector<256x1xf32>
      %cst_41 = arith.constant -1.000000e+00 : f32
      %71 = vector.broadcast %cst_41 : f32 to vector<256x1xf32>
      %72 = arith.mulf %71, %70 : vector<256x1xf32>
      %c256_i32_42 = arith.constant 256 : i32
      %73 = arith.muli %arg0, %c256_i32_42 : i32
      %74 = tpu.iota {dimensions = array<i32: 0>} : vector<256x1xi32>
      %75 = vector.broadcast %73 : i32 to vector<256x1xi32>
      %76 = arith.addi %75, %74 : vector<256x1xi32>
      %c16_i32_43 = arith.constant 16 : i32
      %77 = vector.broadcast %c16_i32_43 : i32 to vector<256x1xi32>
      %78 = arith.cmpi slt, %76, %77 : vector<256x1xi32>
      %cst_44 = arith.constant 0.000000e+00 : f32
      %79 = vector.broadcast %cst_44 : f32 to vector<256x1xf32>
      %80 = arith.select %78, %72, %79 : vector<256x1xi1>, vector<256x1xf32>
      %c0_45 = arith.constant 0 : index
      %c0_46 = arith.constant 0 : index
      %81 = vector.load %arg6[%c0_45, %c0_46] : memref<256x1xf32, #tpu.memory_space<vmem>>, vector<256x1xf32>
      tpu.vector_store %arg6[%c0_45, %c0_46], %80 {strides = array<i32>} : memref<256x1xf32, #tpu.memory_space<vmem>>, vector<256x1xf32>,
    } else {
    }
    return
  }
  func.func @transform_0(%arg0: i32, %arg1: i32) -> (i32, i32) {
    %c0_i32 = arith.constant 0 : i32
    %c0_i32_0 = arith.constant 0 : i32
    return %arg0, %c0_i32 : i32, i32
  }
  func.func @transform_1(%arg0: i32, %arg1: i32) -> (i32, i32) {
    %c0_i32 = arith.constant 0 : i32
    %c0_i32_0 = arith.constant 0 : i32
    return %c0_i32, %arg1 : i32, i32
  }
  func.func @transform_2(%arg0: i32, %arg1: i32) -> (i32, i32) {
    %c0_i32 = arith.constant 0 : i32
    %c0_i32_0 = arith.constant 0 : i32
    return %arg0, %c0_i32 : i32, i32
  }
  func.func @transform_3(%arg0: i32, %arg1: i32) -> (i32, i32) {
    %c0_i32 = arith.constant 0 : i32
    %c0_i32_0 = arith.constant 0 : i32
    return %c0_i32, %arg1 : i32, i32
  }
  func.func @transform_4(%arg0: i32, %arg1: i32) -> (i32, i32) {
    %c0_i32 = arith.constant 0 : i32
    %c0_i32_0 = arith.constant 0 : i32
    return %arg0, %c0_i32 : i32, i32
  }
}

</mosaic_0001>

<llo_original>
// kernel: tpu_custom_call.1
$region0: #{tpu_custom_call.1}
  #allocation0 [shape = 'u32[]', space=smem, size = 0x4, offset = 0x4, fixed_abs, tag = 'smem constant byte address 0x4 - core index']
  #allocation1 [shape = 'u32[72,128]{1,0:T(1,128)}', space=vmem, size = 0x9000, scoped, tag = 'internal scratch']
  #allocation2 [shape = 'f32[256,1]{1,0:T(8,128)}', space=vmem, size = 0x20000, scoped, tag = 'scratch operand']
  #allocation3 [shape = 'f32[256,1]{1,0:T(8,128)}', space=vmem, size = 0x20000, scoped, tag = 'scratch operand']
  #allocation4 [shape = 'f32[256,1]{1,0:T(8,128)}', space=vmem, size = 0x20000, scoped, tag = 'scratch operand']
  #allocation5 [shape = 'f32[256,1]{1,0:T(8,128)}', space=vmem, size = 0x20000, scoped, tag = 'scratch operand']
  %s0 = inlined_call_operand.vmem [shape: f32[256,32], index: 0, kind: input, shape index: {}]
  %s1 = inlined_call_operand.vmem [shape: f32[32,512], index: 1, kind: input, shape index: {}]
  %s2 = inlined_call_operand.vmem [shape: s32[256,1], index: 2, kind: input, shape index: {}]
  %s3 = inlined_call_operand.vmem [shape: s32[1,512], index: 3, kind: input, shape index: {}]
  %s4 = inlined_call_operand.vmem [shape: f32[256,1], index: 4, kind: output, shape index: {}]
  %s5 = sld [smem:[#allocation0]]
  $region34: #{tpu_custom_call.1} parent=0
    _
  %s7 = ssub.s32 1, %s5
  %s8 = scalar_select 0, %s7, %s5
  // Predicated region
  $region2: #{tpu_custom_call.1} parent=0 // pred_check
    _
  $region3: #{tpu_custom_call.1} parent=0 // pred_check_branch
    %10 = sbr.rel (0) target = $region5
  $region4: #{tpu_custom_call.1} parent=0 // pred_region
    _
  $region5: #{tpu_custom_call.1} parent=0 // pred_fallthru
    _
  // Predicated region
  $region6: #{tpu_custom_call.1} parent=0 // pred_check
    _
  $region7: #{tpu_custom_call.1} parent=0 // pred_check_branch
    %12 = sbr.rel (0) target = $region9
  $region8: #{tpu_custom_call.1} parent=0 // pred_region
    _
  $region9: #{tpu_custom_call.1} parent=0 // pred_fallthru
    _
  // Predicated region
  $region10: #{tpu_custom_call.1} parent=0 // pred_check
    _
  $region11: #{tpu_custom_call.1} parent=0 // pred_check_branch
    %14 = sbr.rel (0) target = $region13
  $region12: #{tpu_custom_call.1} parent=0 // pred_region
    _
  $region13: #{tpu_custom_call.1} parent=0 // pred_fallthru
    _
  // Predicated region
  $region14: #{tpu_custom_call.1} parent=0 // pred_check
    _
  $region15: #{tpu_custom_call.1} parent=0 // pred_check_branch
    %16 = sbr.rel (0) target = $region17
  $region16: #{tpu_custom_call.1} parent=0 // pred_region
    _
  $region17: #{tpu_custom_call.1} parent=0 // pred_fallthru
    _
  %p17 = scmp.eq.s32.totalorder 0, 0
  // Predicated region
  $region18: #{tpu_custom_call.1} parent=0 // pred_check
    %p18 = pneg %p17
  $region19: #{tpu_custom_call.1} parent=0 // pred_check_branch
    %20 = sbr.rel (%p18) target = $region21
  $region20: #{tpu_custom_call.1} parent=0 // pred_region
    %vm21 = vcmask 7168
    %22 = vst.msk [vmem:[#allocation2] sm:$0xff] %vm21, -inf
    %23 = vst.msk [vmem:[#allocation2 + $0x8] sm:$0xff] %vm21, -inf
    %24 = vst.msk [vmem:[#allocation2 + $0x10] sm:$0xff] %vm21, -inf
    %25 = vst.msk [vmem:[#allocation2 + $0x18] sm:$0xff] %vm21, -inf
    %26 = vst.msk [vmem:[#allocation2 + $0x20] sm:$0xff] %vm21, -inf
    %27 = vst.msk [vmem:[#allocation2 + $0x28] sm:$0xff] %vm21, -inf
    %28 = vst.msk [vmem:[#allocation2 + $0x30] sm:$0xff] %vm21, -inf
    %29 = vst.msk [vmem:[#allocation2 + $0x38] sm:$0xff] %vm21, -inf
    %30 = vst.msk [vmem:[#allocation2 + $0x40] sm:$0xff] %vm21, -inf
    %31 = vst.msk [vmem:[#allocation2 + $0x48] sm:$0xff] %vm21, -inf
    %32 = vst.msk [vmem:[#allocation2 + $0x50] sm:$0xff] %vm21, -inf
    %33 = vst.msk [vmem:[#allocation2 + $0x58] sm:$0xff] %vm21, -inf
    %34 = vst.msk [vmem:[#allocation2 + $0x60] sm:$0xff] %vm21, -inf
    %35 = vst.msk [vmem:[#allocation2 + $0x68] sm:$0xff] %vm21, -inf
    %36 = vst.msk [vmem:[#allocation2 + $0x70] sm:$0xff] %vm21, -inf
    %37 = vst.msk [vmem:[#allocation2 + $0x78] sm:$0xff] %vm21, -inf
    %38 = vst.msk [vmem:[#allocation2 + $0x80] sm:$0xff] %vm21, -inf
    %39 = vst.msk [vmem:[#allocation2 + $0x88] sm:$0xff] %vm21, -inf
    %40 = vst.msk [vmem:[#allocation2 + $0x90] sm:$0xff] %vm21, -inf
    %41 = vst.msk [vmem:[#allocation2 + $0x98] sm:$0xff] %vm21, -inf
    %42 = vst.msk [vmem:[#allocation2 + $0xa0] sm:$0xff] %vm21, -inf
    %43 = vst.msk [vmem:[#allocation2 + $0xa8] sm:$0xff] %vm21, -inf
    %44 = vst.msk [vmem:[#allocation2 + $0xb0] sm:$0xff] %vm21, -inf
    %45 = vst.msk [vmem:[#allocation2 + $0xb8] sm:$0xff] %vm21, -inf
    %46 = vst.msk [vmem:[#allocation2 + $0xc0] sm:$0xff] %vm21, -inf
    %47 = vst.msk [vmem:[#allocation2 + $0xc8] sm:$0xff] %vm21, -inf
    %48 = vst.msk [vmem:[#allocation2 + $0xd0] sm:$0xff] %vm21, -inf
    %49 = vst.msk [vmem:[#allocation2 + $0xd8] sm:$0xff] %vm21, -inf
    %50 = vst.msk [vmem:[#allocation2 + $0xe0] sm:$0xff] %vm21, -inf
    %51 = vst.msk [vmem:[#allocation2 + $0xe8] sm:$0xff] %vm21, -inf
    %52 = vst.msk [vmem:[#allocation2 + $0xf0] sm:$0xff] %vm21, -inf
    %53 = vst.msk [vmem:[#allocation2 + $0xf8] sm:$0xff] %vm21, -inf
    %54 = vst.msk [vmem:[#allocation3] sm:$0xff] %vm21, 0.0
    %55 = vst.msk [vmem:[#allocation3 + $0x8] sm:$0xff] %vm21, 0.0
    %56 = vst.msk [vmem:[#allocation3 + $0x10] sm:$0xff] %vm21, 0.0
    %57 = vst.msk [vmem:[#allocation3 + $0x18] sm:$0xff] %vm21, 0.0
    %58 = vst.msk [vmem:[#allocation3 + $0x20] sm:$0xff] %vm21, 0.0
    %59 = vst.msk [vmem:[#allocation3 + $0x28] sm:$0xff] %vm21, 0.0
    %60 = vst.msk [vmem:[#allocation3 + $0x30] sm:$0xff] %vm21, 0.0
    %61 = vst.msk [vmem:[#allocation3 + $0x38] sm:$0xff] %vm21, 0.0
    %62 = vst.msk [vmem:[#allocation3 + $0x40] sm:$0xff] %vm21, 0.0
    %63 = vst.msk [vmem:[#allocation3 + $0x48] sm:$0xff] %vm21, 0.0
    %64 = vst.msk [vmem:[#allocation3 + $0x50] sm:$0xff] %vm21, 0.0
    %65 = vst.msk [vmem:[#allocation3 + $0x58] sm:$0xff] %vm21, 0.0
    %66 = vst.msk [vmem:[#allocation3 + $0x60] sm:$0xff] %vm21, 0.0
    %67 = vst.msk [vmem:[#allocation3 + $0x68] sm:$0xff] %vm21, 0.0
    %68 = vst.msk [vmem:[#allocation3 + $0x70] sm:$0xff] %vm21, 0.0
    %69 = vst.msk [vmem:[#allocation3 + $0x78] sm:$0xff] %vm21, 0.0
    %70 = vst.msk [vmem:[#allocation3 + $0x80] sm:$0xff] %vm21, 0.0
    %71 = vst.msk [vmem:[#allocation3 + $0x88] sm:$0xff] %vm21, 0.0
    %72 = vst.msk [vmem:[#allocation3 + $0x90] sm:$0xff] %vm21, 0.0
    %73 = vst.msk [vmem:[#allocation3 + $0x98] sm:$0xff] %vm21, 0.0
    %74 = vst.msk [vmem:[#allocation3 + $0xa0] sm:$0xff] %vm21, 0.0
    %75 = vst.msk [vmem:[#allocation3 + $0xa8] sm:$0xff] %vm21, 0.0
    %76 = vst.msk [vmem:[#allocation3 + $0xb0] sm:$0xff] %vm21, 0.0
    %77 = vst.msk [vmem:[#allocation3 + $0xb8] sm:$0xff] %vm21, 0.0
    %78 = vst.msk [vmem:[#allocation3 + $0xc0] sm:$0xff] %vm21, 0.0
    %79 = vst.msk [vmem:[#allocation3 + $0xc8] sm:$0xff] %vm21, 0.0
    %80 = vst.msk [vmem:[#allocation3 + $0xd0] sm:$0xff] %vm21, 0.0
    %81 = vst.msk [vmem:[#allocation3 + $0xd8] sm:$0xff] %vm21, 0.0
    %82 = vst.msk [vmem:[#allocation3 + $0xe0] sm:$0xff] %vm21, 0.0
    %83 = vst.msk [vmem:[#allocation3 + $0xe8] sm:$0xff] %vm21, 0.0
    %84 = vst.msk [vmem:[#allocation3 + $0xf0] sm:$0xff] %vm21, 0.0
    %85 = vst.msk [vmem:[#allocation3 + $0xf8] sm:$0xff] %vm21, 0.0
    %86 = vst.msk [vmem:[#allocation4] sm:$0xff] %vm21, 0.0
    %87 = vst.msk [vmem:[#allocation4 + $0x8] sm:$0xff] %vm21, 0.0
    %88 = vst.msk [vmem:[#allocation4 + $0x10] sm:$0xff] %vm21, 0.0
    %89 = vst.msk [vmem:[#allocation4 + $0x18] sm:$0xff] %vm21, 0.0
    %90 = vst.msk [vmem:[#allocation4 + $0x20] sm:$0xff] %vm21, 0.0
    %91 = vst.msk [vmem:[#allocation4 + $0x28] sm:$0xff] %vm21, 0.0
    %92 = vst.msk [vmem:[#allocation4 + $0x30] sm:$0xff] %vm21, 0.0
    %93 = vst.msk [vmem:[#allocation4 + $0x38] sm:$0xff] %vm21, 0.0
    %94 = vst.msk [vmem:[#allocation4 + $0x40] sm:$0xff] %vm21, 0.0
    %95 = vst.msk [vmem:[#allocation4 + $0x48] sm:$0xff] %vm21, 0.0
    %96 = vst.msk [vmem:[#allocation4 + $0x50] sm:$0xff] %vm21, 0.0
    %97 = vst.msk [vmem:[#allocation4 + $0x58] sm:$0xff] %vm21, 0.0
    %98 = vst.msk [vmem:[#allocation4 + $0x60] sm:$0xff] %vm21, 0.0
    %99 = vst.msk [vmem:[#allocation4 + $0x68] sm:$0xff] %vm21, 0.0
    %100 = vst.msk [vmem:[#allocation4 + $0x70] sm:$0xff] %vm21, 0.0
    %101 = vst.msk [vmem:[#allocation4 + $0x78] sm:$0xff] %vm21, 0.0
    %102 = vst.msk [vmem:[#allocation4 + $0x80] sm:$0xff] %vm21, 0.0
    %103 = vst.msk [vmem:[#allocation4 + $0x88] sm:$0xff] %vm21, 0.0
    %104 = vst.msk [vmem:[#allocation4 + $0x90] sm:$0xff] %vm21, 0.0
    %105 = vst.msk [vmem:[#allocation4 + $0x98] sm:$0xff] %vm21, 0.0
    %106 = vst.msk [vmem:[#allocation4 + $0xa0] sm:$0xff] %vm21, 0.0
    %107 = vst.msk [vmem:[#allocation4 + $0xa8] sm:$0xff] %vm21, 0.0
    %108 = vst.msk [vmem:[#allocation4 + $0xb0] sm:$0xff] %vm21, 0.0
    %109 = vst.msk [vmem:[#allocation4 + $0xb8] sm:$0xff] %vm21, 0.0
    %110 = vst.msk [vmem:[#allocation4 + $0xc0] sm:$0xff] %vm21, 0.0
    %111 = vst.msk [vmem:[#allocation4 + $0xc8] sm:$0xff] %vm21, 0.0
    %112 = vst.msk [vmem:[#allocation4 + $0xd0] sm:$0xff] %vm21, 0.0
    %113 = vst.msk [vmem:[#allocation4 + $0xd8] sm:$0xff] %vm21, 0.0
    %114 = vst.msk [vmem:[#allocation4 + $0xe0] sm:$0xff] %vm21, 0.0
    %115 = vst.msk [vmem:[#allocation4 + $0xe8] sm:$0xff] %vm21, 0.0
    %116 = vst.msk [vmem:[#allocation4 + $0xf0] sm:$0xff] %vm21, 0.0
    %117 = vst.msk [vmem:[#allocation4 + $0xf8] sm:$0xff] %vm21, 0.0
    %118 = vst.msk [vmem:[#allocation5] sm:$0xff] %vm21, 0.0
    %119 = vst.msk [vmem:[#allocation5 + $0x8] sm:$0xff] %vm21, 0.0
    %120 = vst.msk [vmem:[#allocation5 + $0x10] sm:$0xff] %vm21, 0.0
    %121 = vst.msk [vmem:[#allocation5 + $0x18] sm:$0xff] %vm21, 0.0
    %122 = vst.msk [vmem:[#allocation5 + $0x20] sm:$0xff] %vm21, 0.0
    %123 = vst.msk [vmem:[#allocation5 + $0x28] sm:$0xff] %vm21, 0.0
    %124 = vst.msk [vmem:[#allocation5 + $0x30] sm:$0xff] %vm21, 0.0
    %125 = vst.msk [vmem:[#allocation5 + $0x38] sm:$0xff] %vm21, 0.0
    %126 = vst.msk [vmem:[#allocation5 + $0x40] sm:$0xff] %vm21, 0.0
    %127 = vst.msk [vmem:[#allocation5 + $0x48] sm:$0xff] %vm21, 0.0
    %128 = vst.msk [vmem:[#allocation5 + $0x50] sm:$0xff] %vm21, 0.0
    %129 = vst.msk [vmem:[#allocation5 + $0x58] sm:$0xff] %vm21, 0.0
    %130 = vst.msk [vmem:[#allocation5 + $0x60] sm:$0xff] %vm21, 0.0
    %131 = vst.msk [vmem:[#allocation5 + $0x68] sm:$0xff] %vm21, 0.0
    %132 = vst.msk [vmem:[#allocation5 + $0x70] sm:$0xff] %vm21, 0.0
    %133 = vst.msk [vmem:[#allocation5 + $0x78] sm:$0xff] %vm21, 0.0
    %134 = vst.msk [vmem:[#allocation5 + $0x80] sm:$0xff] %vm21, 0.0
    %135 = vst.msk [vmem:[#allocation5 + $0x88] sm:$0xff] %vm21, 0.0
    %136 = vst.msk [vmem:[#allocation5 + $0x90] sm:$0xff] %vm21, 0.0
    %137 = vst.msk [vmem:[#allocation5 + $0x98] sm:$0xff] %vm21, 0.0
    %138 = vst.msk [vmem:[#allocation5 + $0xa0] sm:$0xff] %vm21, 0.0
    %139 = vst.msk [vmem:[#allocation5 + $0xa8] sm:$0xff] %vm21, 0.0
    %140 = vst.msk [vmem:[#allocation5 + $0xb0] sm:$0xff] %vm21, 0.0
    %141 = vst.msk [vmem:[#allocation5 + $0xb8] sm:$0xff] %vm21, 0.0
    %142 = vst.msk [vmem:[#allocation5 + $0xc0] sm:$0xff] %vm21, 0.0
    %143 = vst.msk [vmem:[#allocation5 + $0xc8] sm:$0xff] %vm21, 0.0
    %144 = vst.msk [vmem:[#allocation5 + $0xd0] sm:$0xff] %vm21, 0.0
    %145 = vst.msk [vmem:[#allocation5 + $0xd8] sm:$0xff] %vm21, 0.0
    %146 = vst.msk [vmem:[#allocation5 + $0xe0] sm:$0xff] %vm21, 0.0
    %147 = vst.msk [vmem:[#allocation5 + $0xe8] sm:$0xff] %vm21, 0.0
    %148 = vst.msk [vmem:[#allocation5 + $0xf0] sm:$0xff] %vm21, 0.0
    %149 = vst.msk [vmem:[#allocation5 + $0xf8] sm:$0xff] %vm21, 0.0
  $region21: #{tpu_custom_call.1} parent=0 // pred_fallthru
    _
  %v150 = vld [vmem:[%s0] sm:$0xff]
  %v151 = vld [vmem:[%s0 + $0x8] sm:$0xff]
  %v152 = vld [vmem:[%s0 + $0x10] sm:$0xff]
  %v153 = vld [vmem:[%s0 + $0x18] sm:$0xff]
  %v154 = vld [vmem:[%s0 + $0x20] sm:$0xff]
  %v155 = vld [vmem:[%s0 + $0x28] sm:$0xff]
  %v156 = vld [vmem:[%s0 + $0x30] sm:$0xff]
  %v157 = vld [vmem:[%s0 + $0x38] sm:$0xff]
  %v158 = vld [vmem:[%s0 + $0x40] sm:$0xff]
  %v159 = vld [vmem:[%s0 + $0x48] sm:$0xff]
  %v160 = vld [vmem:[%s0 + $0x50] sm:$0xff]
  %v161 = vld [vmem:[%s0 + $0x58] sm:$0xff]
  %v162 = vld [vmem:[%s0 + $0x60] sm:$0xff]
  %v163 = vld [vmem:[%s0 + $0x68] sm:$0xff]
  %v164 = vld [vmem:[%s0 + $0x70] sm:$0xff]
  %v165 = vld [vmem:[%s0 + $0x78] sm:$0xff]
  %v166 = vld [vmem:[%s0 + $0x80] sm:$0xff]
  %v167 = vld [vmem:[%s0 + $0x88] sm:$0xff]
  %v168 = vld [vmem:[%s0 + $0x90] sm:$0xff]
  %v169 = vld [vmem:[%s0 + $0x98] sm:$0xff]
  %v170 = vld [vmem:[%s0 + $0xa0] sm:$0xff]
  %v171 = vld [vmem:[%s0 + $0xa8] sm:$0xff]
  %v172 = vld [vmem:[%s0 + $0xb0] sm:$0xff]
  %v173 = vld [vmem:[%s0 + $0xb8] sm:$0xff]
  %v174 = vld [vmem:[%s0 + $0xc0] sm:$0xff]
  %v175 = vld [vmem:[%s0 + $0xc8] sm:$0xff]
  %v176 = vld [vmem:[%s0 + $0xd0] sm:$0xff]
  %v177 = vld [vmem:[%s0 + $0xd8] sm:$0xff]
  %v178 = vld [vmem:[%s0 + $0xe0] sm:$0xff]
  %v179 = vld [vmem:[%s0 + $0xe8] sm:$0xff]
  %v180 = vld [vmem:[%s0 + $0xf0] sm:$0xff]
  %v181 = vld [vmem:[%s0 + $0xf8] sm:$0xff]
  %v182 = vmul.f32 %v150, 14.285714
  %v183 = vmul.f32 %v151, 14.285714
  %v184 = vmul.f32 %v152, 14.285714
  %v185 = vmul.f32 %v153, 14.285714
  %v186 = vmul.f32 %v154, 14.285714
  %v187 = vmul.f32 %v155, 14.285714
  %v188 = vmul.f32 %v156, 14.285714
  %v189 = vmul.f32 %v157, 14.285714
  %v190 = vmul.f32 %v158, 14.285714
  %v191 = vmul.f32 %v159, 14.285714
  %v192 = vmul.f32 %v160, 14.285714
  %v193 = vmul.f32 %v161, 14.285714
  %v194 = vmul.f32 %v162, 14.285714
  %v195 = vmul.f32 %v163, 14.285714
  %v196 = vmul.f32 %v164, 14.285714
  %v197 = vmul.f32 %v165, 14.285714
  %v198 = vmul.f32 %v166, 14.285714
  %v199 = vmul.f32 %v167, 14.285714
  %v200 = vmul.f32 %v168, 14.285714
  %v201 = vmul.f32 %v169, 14.285714
  %v202 = vmul.f32 %v170, 14.285714
  %v203 = vmul.f32 %v171, 14.285714
  %v204 = vmul.f32 %v172, 14.285714
  %v205 = vmul.f32 %v173, 14.285714
  %v206 = vmul.f32 %v174, 14.285714
  %v207 = vmul.f32 %v175, 14.285714
  %v208 = vmul.f32 %v176, 14.285714
  %v209 = vmul.f32 %v177, 14.285714
  %v210 = vmul.f32 %v178, 14.285714
  %v211 = vmul.f32 %v179, 14.285714
  %v212 = vmul.f32 %v180, 14.285714
  %v213 = vmul.f32 %v181, 14.285714
  %v214 = vld [vmem:[%s1] sm:$0xff]
  %v215 = vld [vmem:[%s1 + $0x8] sm:$0xff]
  %v216 = vld [vmem:[%s1 + $0x10] sm:$0xff]
  %v217 = vld [vmem:[%s1 + $0x18] sm:$0xff]
  %v218 = vld [vmem:[%s1 + $0x20] sm:$0xff]
  %v219 = vld [vmem:[%s1 + $0x28] sm:$0xff]
  %v220 = vld [vmem:[%s1 + $0x30] sm:$0xff]
  %v221 = vld [vmem:[%s1 + $0x38] sm:$0xff]
  %v222 = vld [vmem:[%s1 + $0x40] sm:$0xff]
  %v223 = vld [vmem:[%s1 + $0x48] sm:$0xff]
  %v224 = vld [vmem:[%s1 + $0x50] sm:$0xff]
  %v225 = vld [vmem:[%s1 + $0x58] sm:$0xff]
  %v226 = vld [vmem:[%s1 + $0x60] sm:$0xff]
  %v227 = vld [vmem:[%s1 + $0x68] sm:$0xff]
  %v228 = vld [vmem:[%s1 + $0x70] sm:$0xff]
  %v229 = vld [vmem:[%s1 + $0x78] sm:$0xff]
  %vm230 = vcmask 261120
  %v232 = vsel %vm230, %v182, 0
  %v235 = vsel %vm230, %v183, 0
  %v238 = vsel %vm230, %v184, 0
  %v241 = vsel %vm230, %v185, 0
  %v244 = vsel %vm230, %v186, 0
  %v247 = vsel %vm230, %v187, 0
  %v250 = vsel %vm230, %v188, 0
  %v253 = vsel %vm230, %v189, 0
  %v256 = vsel %vm230, %v190, 0
  %v259 = vsel %vm230, %v191, 0
  %v262 = vsel %vm230, %v192, 0
  %v265 = vsel %vm230, %v193, 0
  %v268 = vsel %vm230, %v194, 0
  %v271 = vsel %vm230, %v195, 0
  %v274 = vsel %vm230, %v196, 0
  %v277 = vsel %vm230, %v197, 0
  %v280 = vsel %vm230, %v198, 0
  %v283 = vsel %vm230, %v199, 0
  %v286 = vsel %vm230, %v200, 0
  %v289 = vsel %vm230, %v201, 0
  %v292 = vsel %vm230, %v202, 0
  %v295 = vsel %vm230, %v203, 0
  %v298 = vsel %vm230, %v204, 0
  %v301 = vsel %vm230, %v205, 0
  %v304 = vsel %vm230, %v206, 0
  %v307 = vsel %vm230, %v207, 0
  %v310 = vsel %vm230, %v208, 0
  %v313 = vsel %vm230, %v209, 0
  %v316 = vsel %vm230, %v210, 0
  %v319 = vsel %vm230, %v211, 0
  %v322 = vsel %vm230, %v212, 0
  %v325 = vsel %vm230, %v213, 0
  %327 = vmatpush.msra.mxu0 0.0
  %328 = vmatpush.msra.mxu0 0.0
  %329 = vmatpush.msra.mxu0 0.0
  %330 = vmatpush.msra.mxu0 0.0
  %331 = vmatpush.msra.mxu0 0.0
  %332 = vmatpush.msra.mxu0 0.0
  %333 = vmatpush.msra.mxu0 0.0
  %334 = vmatpush.msra.mxu0 0.0
  %335 = vmatpush.msra.mxu0 0.0
  %336 = vmatpush.msra.mxu0 0.0
  %337 = vmatpush.msra.mxu0 0.0
  %338 = vmatpush.msra.mxu0 0.0
  %v339 = vand.u32 %v226, 4294901760
  %340 = vmatpush.msra.mxu0 %v339
  %v341 = vand.u32 %v222, 4294901760
  %342 = vmatpush.msra.mxu0 %v341
  %v343 = vand.u32 %v218, 4294901760
  %344 = vmatpush.msra.mxu0 %v343
  %v345 = vand.u32 %v214, 4294901760
  %346 = vmatpush.msra.mxu0 %v345
  %v347 = vand.u32 %v232, 4294901760
  %v348 = vsub.f32 %v232, %v347
  %v349 = vand.u32 %v348, 4294901760
  %v350 = vsub.f32 %v348, %v349
  %v351 = vand.u32 %v350, 4294901760
  %352 = vmatmul.f32.gmra.mxu0 %v351
  %v353 = vpop.f32.mrf.mxu0
  %v354 = vadd.f32 0.0, %v353
  %v355 = vand.u32 %v235, 4294901760
  %v356 = vsub.f32 %v235, %v355
  %v357 = vand.u32 %v356, 4294901760
  %v358 = vsub.f32 %v356, %v357
  %v359 = vand.u32 %v358, 4294901760
  %360 = vmatmul.f32.gmra.mxu0 %v359
  %v361 = vpop.f32.mrf.mxu0
  %v362 = vadd.f32 0.0, %v361
  %v363 = vand.u32 %v238, 4294901760
  %v364 = vsub.f32 %v238, %v363
  %v365 = vand.u32 %v364, 4294901760
  %v366 = vsub.f32 %v364, %v365
  %v367 = vand.u32 %v366, 4294901760
  %368 = vmatmul.f32.gmra.mxu0 %v367
  %v369 = vpop.f32.mrf.mxu0
  %v370 = vadd.f32 0.0, %v369
  %v371 = vand.u32 %v241, 4294901760
  %v372 = vsub.f32 %v241, %v371
  %v373 = vand.u32 %v372, 4294901760
  %v374 = vsub.f32 %v372, %v373
  %v375 = vand.u32 %v374, 4294901760
  %376 = vmatmul.f32.gmra.mxu0 %v375
  %v377 = vpop.f32.mrf.mxu0
  %v378 = vadd.f32 0.0, %v377
  %v379 = vand.u32 %v244, 4294901760
  %v380 = vsub.f32 %v244, %v379
  %v381 = vand.u32 %v380, 4294901760
  %v382 = vsub.f32 %v380, %v381
  %v383 = vand.u32 %v382, 4294901760
  %384 = vmatmul.f32.gmra.mxu0 %v383
  %v385 = vpop.f32.mrf.mxu0
  %v386 = vadd.f32 0.0, %v385
  %v387 = vand.u32 %v247, 4294901760
  %v388 = vsub.f32 %v247, %v387
  %v389 = vand.u32 %v388, 4294901760
  %v390 = vsub.f32 %v388, %v389
  %v391 = vand.u32 %v390, 4294901760
  %392 = vmatmul.f32.gmra.mxu0 %v391
  %v393 = vpop.f32.mrf.mxu0
  %v394 = vadd.f32 0.0, %v393
  %v395 = vand.u32 %v250, 4294901760
  %v396 = vsub.f32 %v250, %v395
  %v397 = vand.u32 %v396, 4294901760
  %v398 = vsub.f32 %v396, %v397
  %v399 = vand.u32 %v398, 4294901760
  %400 = vmatmul.f32.gmra.mxu0 %v399
  %v401 = vpop.f32.mrf.mxu0
  %v402 = vadd.f32 0.0, %v401
  %v403 = vand.u32 %v253, 4294901760
  %v404 = vsub.f32 %v253, %v403
  %v405 = vand.u32 %v404, 4294901760
  %v406 = vsub.f32 %v404, %v405
  %v407 = vand.u32 %v406, 4294901760
  %408 = vmatmul.f32.gmra.mxu0 %v407
  %v409 = vpop.f32.mrf.mxu0
  %v410 = vadd.f32 0.0, %v409
  %v411 = vand.u32 %v256, 4294901760
  %v412 = vsub.f32 %v256, %v411
  %v413 = vand.u32 %v412, 4294901760
  %v414 = vsub.f32 %v412, %v413
  %v415 = vand.u32 %v414, 4294901760
  %416 = vmatmul.f32.gmra.mxu0 %v415
  %v417 = vpop.f32.mrf.mxu0
  %v418 = vadd.f32 0.0, %v417
  %v419 = vand.u32 %v259, 4294901760
  %v420 = vsub.f32 %v259, %v419
  %v421 = vand.u32 %v420, 4294901760
  %v422 = vsub.f32 %v420, %v421
  %v423 = vand.u32 %v422, 4294901760
  %424 = vmatmul.f32.gmra.mxu0 %v423
  %v425 = vpop.f32.mrf.mxu0
  %v426 = vadd.f32 0.0, %v425
  %v427 = vand.u32 %v262, 4294901760
  %v428 = vsub.f32 %v262, %v427
  %v429 = vand.u32 %v428, 4294901760
  %v430 = vsub.f32 %v428, %v429
  %v431 = vand.u32 %v430, 4294901760
  %432 = vmatmul.f32.gmra.mxu0 %v431
  %v433 = vpop.f32.mrf.mxu0
  %v434 = vadd.f32 0.0, %v433
  %v435 = vand.u32 %v265, 4294901760
  %v436 = vsub.f32 %v265, %v435
  %v437 = vand.u32 %v436, 4294901760
  %v438 = vsub.f32 %v436, %v437
  %v439 = vand.u32 %v438, 4294901760
  %440 = vmatmul.f32.gmra.mxu0 %v439
  %v441 = vpop.f32.mrf.mxu0
  %v442 = vadd.f32 0.0, %v441
  %v443 = vand.u32 %v268, 4294901760
  %v444 = vsub.f32 %v268, %v443
  %v445 = vand.u32 %v444, 4294901760
  %v446 = vsub.f32 %v444, %v445
  %v447 = vand.u32 %v446, 4294901760
  %448 = vmatmul.f32.gmra.mxu0 %v447
  %v449 = vpop.f32.mrf.mxu0
  %v450 = vadd.f32 0.0, %v449
  %v451 = vand.u32 %v271, 4294901760
  %v452 = vsub.f32 %v271, %v451
  %v453 = vand.u32 %v452, 4294901760
  %v454 = vsub.f32 %v452, %v453
  %v455 = vand.u32 %v454, 4294901760
  %456 = vmatmul.f32.gmra.mxu0 %v455
  %v457 = vpop.f32.mrf.mxu0
  %v458 = vadd.f32 0.0, %v457
  %v459 = vand.u32 %v274, 4294901760
  %v460 = vsub.f32 %v274, %v459
  %v461 = vand.u32 %v460, 4294901760
  %v462 = vsub.f32 %v460, %v461
  %v463 = vand.u32 %v462, 4294901760
  %464 = vmatmul.f32.gmra.mxu0 %v463
  %v465 = vpop.f32.mrf.mxu0
  %v466 = vadd.f32 0.0, %v465
  %v467 = vand.u32 %v277, 4294901760
  %v468 = vsub.f32 %v277, %v467
  %v469 = vand.u32 %v468, 4294901760
  %v470 = vsub.f32 %v468, %v469
  %v471 = vand.u32 %v470, 4294901760
  %472 = vmatmul.f32.gmra.mxu0 %v471
  %v473 = vpop.f32.mrf.mxu0
  %v474 = vadd.f32 0.0, %v473
  %v475 = vand.u32 %v280, 4294901760
  %v476 = vsub.f32 %v280, %v475
  %v477 = vand.u32 %v476, 4294901760
  %v478 = vsub.f32 %v476, %v477
  %v479 = vand.u32 %v478, 4294901760
  %480 = vmatmul.f32.gmra.mxu0 %v479
  %v481 = vpop.f32.mrf.mxu0
  %v482 = vadd.f32 0.0, %v481
  %v483 = vand.u32 %v283, 4294901760
  %v484 = vsub.f32 %v283, %v483
  %v485 = vand.u32 %v484, 4294901760
  %v486 = vsub.f32 %v484, %v485
  %v487 = vand.u32 %v486, 4294901760
  %488 = vmatmul.f32.gmra.mxu0 %v487
  %v489 = vpop.f32.mrf.mxu0
  %v490 = vadd.f32 0.0, %v489
  %v491 = vand.u32 %v286, 4294901760
  %v492 = vsub.f32 %v286, %v491
  %v493 = vand.u32 %v492, 4294901760
  %v494 = vsub.f32 %v492, %v493
  %v495 = vand.u32 %v494, 4294901760
  %496 = vmatmul.f32.gmra.mxu0 %v495
  %v497 = vpop.f32.mrf.mxu0
  %v498 = vadd.f32 0.0, %v497
  %v499 = vand.u32 %v289, 4294901760
  %v500 = vsub.f32 %v289, %v499
  %v501 = vand.u32 %v500, 4294901760
  %v502 = vsub.f32 %v500, %v501
  %v503 = vand.u32 %v502, 4294901760
  %504 = vmatmul.f32.gmra.mxu0 %v503
  %v505 = vpop.f32.mrf.mxu0
  %v506 = vadd.f32 0.0, %v505
  %v507 = vand.u32 %v292, 4294901760
  %v508 = vsub.f32 %v292, %v507
  %v509 = vand.u32 %v508, 4294901760
  %v510 = vsub.f32 %v508, %v509
  %v511 = vand.u32 %v510, 4294901760
  %512 = vmatmul.f32.gmra.mxu0 %v511
  %v513 = vpop.f32.mrf.mxu0
  %v514 = vadd.f32 0.0, %v513
  %v515 = vand.u32 %v295, 4294901760
  %v516 = vsub.f32 %v295, %v515
  %v517 = vand.u32 %v516, 4294901760
  %v518 = vsub.f32 %v516, %v517
  %v519 = vand.u32 %v518, 4294901760
  %520 = vmatmul.f32.gmra.mxu0 %v519
  %v521 = vpop.f32.mrf.mxu0
  %v522 = vadd.f32 0.0, %v521
  %v523 = vand.u32 %v298, 4294901760
  %v524 = vsub.f32 %v298, %v523
  %v525 = vand.u32 %v524, 4294901760
  %v526 = vsub.f32 %v524, %v525
  %v527 = vand.u32 %v526, 4294901760
  %528 = vmatmul.f32.gmra.mxu0 %v527
  %v529 = vpop.f32.mrf.mxu0
  %v530 = vadd.f32 0.0, %v529
  %v531 = vand.u32 %v301, 4294901760
  %v532 = vsub.f32 %v301, %v531
  %v533 = vand.u32 %v532, 4294901760
  %v534 = vsub.f32 %v532, %v533
  %v535 = vand.u32 %v534, 4294901760
  %536 = vmatmul.f32.gmra.mxu0 %v535
  %v537 = vpop.f32.mrf.mxu0
  %v538 = vadd.f32 0.0, %v537
  %v539 = vand.u32 %v304, 4294901760
  %v540 = vsub.f32 %v304, %v539
  %v541 = vand.u32 %v540, 4294901760
  %v542 = vsub.f32 %v540, %v541
  %v543 = vand.u32 %v542, 4294901760
  %544 = vmatmul.f32.gmra.mxu0 %v543
  %v545 = vpop.f32.mrf.mxu0
  %v546 = vadd.f32 0.0, %v545
  %v547 = vand.u32 %v307, 4294901760
  %v548 = vsub.f32 %v307, %v547
  %v549 = vand.u32 %v548, 4294901760
  %v550 = vsub.f32 %v548, %v549
  %v551 = vand.u32 %v550, 4294901760
  %552 = vmatmul.f32.gmra.mxu0 %v551
  %v553 = vpop.f32.mrf.mxu0
  %v554 = vadd.f32 0.0, %v553
  %v555 = vand.u32 %v310, 4294901760
  %v556 = vsub.f32 %v310, %v555
  %v557 = vand.u32 %v556, 4294901760
  %v558 = vsub.f32 %v556, %v557
  %v559 = vand.u32 %v558, 4294901760
  %560 = vmatmul.f32.gmra.mxu0 %v559
  %v561 = vpop.f32.mrf.mxu0
  %v562 = vadd.f32 0.0, %v561
  %v563 = vand.u32 %v313, 4294901760
  %v564 = vsub.f32 %v313, %v563
  %v565 = vand.u32 %v564, 4294901760
  %v566 = vsub.f32 %v564, %v565
  %v567 = vand.u32 %v566, 4294901760
  %568 = vmatmul.f32.gmra.mxu0 %v567
  %v569 = vpop.f32.mrf.mxu0
  %v570 = vadd.f32 0.0, %v569
  %v571 = vand.u32 %v316, 4294901760
  %v572 = vsub.f32 %v316, %v571
  %v573 = vand.u32 %v572, 4294901760
  %v574 = vsub.f32 %v572, %v573
  %v575 = vand.u32 %v574, 4294901760
  %576 = vmatmul.f32.gmra.mxu0 %v575
  %v577 = vpop.f32.mrf.mxu0
  %v578 = vadd.f32 0.0, %v577
  %v579 = vand.u32 %v319, 4294901760
  %v580 = vsub.f32 %v319, %v579
  %v581 = vand.u32 %v580, 4294901760
  %v582 = vsub.f32 %v580, %v581
  %v583 = vand.u32 %v582, 4294901760
  %584 = vmatmul.f32.gmra.mxu0 %v583
  %v585 = vpop.f32.mrf.mxu0
  %v586 = vadd.f32 0.0, %v585
  %v587 = vand.u32 %v322, 4294901760
  %v588 = vsub.f32 %v322, %v587
  %v589 = vand.u32 %v588, 4294901760
  %v590 = vsub.f32 %v588, %v589
  %v591 = vand.u32 %v590, 4294901760
  %592 = vmatmul.f32.gmra.mxu0 %v591
  %v593 = vpop.f32.mrf.mxu0
  %v594 = vadd.f32 0.0, %v593
  %v595 = vand.u32 %v325, 4294901760
  %v596 = vsub.f32 %v325, %v595
  %v597 = vand.u32 %v596, 4294901760
  %v598 = vsub.f32 %v596, %v597
  %v599 = vand.u32 %v598, 4294901760
  %600 = vmatmul.f32.gmra.mxu0 %v599
  %v601 = vpop.f32.mrf.mxu0
  %v602 = vadd.f32 0.0, %v601
  %603 = vdwg.mxu0
  %604 = vmatpush.msra.mxu0 0.0
  %605 = vmatpush.msra.mxu0 0.0
  %606 = vmatpush.msra.mxu0 0.0
  %607 = vmatpush.msra.mxu0 0.0
  %608 = vmatpush.msra.mxu0 0.0
  %609 = vmatpush.msra.mxu0 0.0
  %610 = vmatpush.msra.mxu0 0.0
  %611 = vmatpush.msra.mxu0 0.0
  %612 = vmatpush.msra.mxu0 0.0
  %613 = vmatpush.msra.mxu0 0.0
  %614 = vmatpush.msra.mxu0 0.0
  %615 = vmatpush.msra.mxu0 0.0
  %v616 = vand.u32 %v226, 4294901760
  %v617 = vsub.f32 %v226, %v616
  %v618 = vand.u32 %v617, 4294901760
  %v619 = vsub.f32 %v617, %v618
  %v620 = vand.u32 %v619, 4294901760
  %621 = vmatpush.msra.mxu0 %v620
  %v622 = vand.u32 %v222, 4294901760
  %v623 = vsub.f32 %v222, %v622
  %v624 = vand.u32 %v623, 4294901760
  %v625 = vsub.f32 %v623, %v624
  %v626 = vand.u32 %v625, 4294901760
  %627 = vmatpush.msra.mxu0 %v626
  %v628 = vand.u32 %v218, 4294901760
  %v629 = vsub.f32 %v218, %v628
  %v630 = vand.u32 %v629, 4294901760
  %v631 = vsub.f32 %v629, %v630
  %v632 = vand.u32 %v631, 4294901760
  %633 = vmatpush.msra.mxu0 %v632
  %v634 = vand.u32 %v214, 4294901760
  %v635 = vsub.f32 %v214, %v634
  %v636 = vand.u32 %v635, 4294901760
  %v637 = vsub.f32 %v635, %v636
  %v638 = vand.u32 %v637, 4294901760
  %639 = vmatpush.msra.mxu0 %v638
  %v640 = vand.u32 %v232, 4294901760
  %641 = vmatmul.f32.gmra.mxu0 %v640
  %v642 = vpop.f32.mrf.mxu0
  %v643 = vadd.f32 %v354, %v642
  %v644 = vand.u32 %v235, 4294901760
  %645 = vmatmul.f32.gmra.mxu0 %v644
  %v646 = vpop.f32.mrf.mxu0
  %v647 = vadd.f32 %v362, %v646
  %v648 = vand.u32 %v238, 4294901760
  %649 = vmatmul.f32.gmra.mxu0 %v648
  %v650 = vpop.f32.mrf.mxu0
  %v651 = vadd.f32 %v370, %v650
  %v652 = vand.u32 %v241, 4294901760
  %653 = vmatmul.f32.gmra.mxu0 %v652
  %v654 = vpop.f32.mrf.mxu0
  %v655 = vadd.f32 %v378, %v654
  %v656 = vand.u32 %v244, 4294901760
  %657 = vmatmul.f32.gmra.mxu0 %v656
  %v658 = vpop.f32.mrf.mxu0
  %v659 = vadd.f32 %v386, %v658
  %v660 = vand.u32 %v247, 4294901760
  %661 = vmatmul.f32.gmra.mxu0 %v660
  %v662 = vpop.f32.mrf.mxu0
  %v663 = vadd.f32 %v394, %v662
  %v664 = vand.u32 %v250, 4294901760
  %665 = vmatmul.f32.gmra.mxu0 %v664
  %v666 = vpop.f32.mrf.mxu0
  %v667 = vadd.f32 %v402, %v666
  %v668 = vand.u32 %v253, 4294901760
  %669 = vmatmul.f32.gmra.mxu0 %v668
  %v670 = vpop.f32.mrf.mxu0
  %v671 = vadd.f32 %v410, %v670
  %v672 = vand.u32 %v256, 4294901760
  %673 = vmatmul.f32.gmra.mxu0 %v672
  %v674 = vpop.f32.mrf.mxu0
  %v675 = vadd.f32 %v418, %v674
  %v676 = vand.u32 %v259, 4294901760
  %677 = vmatmul.f32.gmra.mxu0 %v676
  %v678 = vpop.f32.mrf.mxu0
  %v679 = vadd.f32 %v426, %v678
  %v680 = vand.u32 %v262, 4294901760
  %681 = vmatmul.f32.gmra.mxu0 %v680
  %v682 = vpop.f32.mrf.mxu0
  %v683 = vadd.f32 %v434, %v682
  %v684 = vand.u32 %v265, 4294901760
  %685 = vmatmul.f32.gmra.mxu0 %v684
  %v686 = vpop.f32.mrf.mxu0
  %v687 = vadd.f32 %v442, %v686
  %v688 = vand.u32 %v268, 4294901760
  %689 = vmatmul.f32.gmra.mxu0 %v688
  %v690 = vpop.f32.mrf.mxu0
  %v691 = vadd.f32 %v450, %v690
  %v692 = vand.u32 %v271, 4294901760
  %693 = vmatmul.f32.gmra.mxu0 %v692
  %v694 = vpop.f32.mrf.mxu0
  %v695 = vadd.f32 %v458, %v694
  %v696 = vand.u32 %v274, 4294901760
  %697 = vmatmul.f32.gmra.mxu0 %v696
  %v698 = vpop.f32.mrf.mxu0
  %v699 = vadd.f32 %v466, %v698
  %v700 = vand.u32 %v277, 4294901760
  %701 = vmatmul.f32.gmra.mxu0 %v700
  %v702 = vpop.f32.mrf.mxu0
  %v703 = vadd.f32 %v474, %v702
  %v704 = vand.u32 %v280, 4294901760
  %705 = vmatmul.f32.gmra.mxu0 %v704
  %v706 = vpop.f32.mrf.mxu0
  %v707 = vadd.f32 %v482, %v706
  %v708 = vand.u32 %v283, 4294901760
  %709 = vmatmul.f32.gmra.mxu0 %v708
  %v710 = vpop.f32.mrf.mxu0
  %v711 = vadd.f32 %v490, %v710
  %v712 = vand.u32 %v286, 4294901760
  %713 = vmatmul.f32.gmra.mxu0 %v712
  %v714 = vpop.f32.mrf.mxu0
  %v715 = vadd.f32 %v498, %v714
  %v716 = vand.u32 %v289, 4294901760
  %717 = vmatmul.f32.gmra.mxu0 %v716
  %v718 = vpop.f32.mrf.mxu0
  %v719 = vadd.f32 %v506, %v718
  %v720 = vand.u32 %v292, 4294901760
  %721 = vmatmul.f32.gmra.mxu0 %v720
  %v722 = vpop.f32.mrf.mxu0
  %v723 = vadd.f32 %v514, %v722
  %v724 = vand.u32 %v295, 4294901760
  %725 = vmatmul.f32.gmra.mxu0 %v724
  %v726 = vpop.f32.mrf.mxu0
  %v727 = vadd.f32 %v522, %v726
  %v728 = vand.u32 %v298, 4294901760
  %729 = vmatmul.f32.gmra.mxu0 %v728
  %v730 = vpop.f32.mrf.mxu0
  %v731 = vadd.f32 %v530, %v730
  %v732 = vand.u32 %v301, 4294901760
  %733 = vmatmul.f32.gmra.mxu0 %v732
  %v734 = vpop.f32.mrf.mxu0
  %v735 = vadd.f32 %v538, %v734
  %v736 = vand.u32 %v304, 4294901760
  %737 = vmatmul.f32.gmra.mxu0 %v736
  %v738 = vpop.f32.mrf.mxu0
  %v739 = vadd.f32 %v546, %v738
  %v740 = vand.u32 %v307, 4294901760
  %741 = vmatmul.f32.gmra.mxu0 %v740
  %v742 = vpop.f32.mrf.mxu0
  %v743 = vadd.f32 %v554, %v742
  %v744 = vand.u32 %v310, 4294901760
  %745 = vmatmul.f32.gmra.mxu0 %v744
  %v746 = vpop.f32.mrf.mxu0
  %v747 = vadd.f32 %v562, %v746
  %v748 = vand.u32 %v313, 4294901760
  %749 = vmatmul.f32.gmra.mxu0 %v748
  %v750 = vpop.f32.mrf.mxu0
  %v751 = vadd.f32 %v570, %v750
  %v752 = vand.u32 %v316, 4294901760
  %753 = vmatmul.f32.gmra.mxu0 %v752
  %v754 = vpop.f32.mrf.mxu0
  %v755 = vadd.f32 %v578, %v754
  %v756 = vand.u32 %v319, 4294901760
  %757 = vmatmul.f32.gmra.mxu0 %v756
  %v758 = vpop.f32.mrf.mxu0
  %v759 = vadd.f32 %v586, %v758
  %v760 = vand.u32 %v322, 4294901760
  %761 = vmatmul.f32.gmra.mxu0 %v760
  %v762 = vpop.f32.mrf.mxu0
  %v763 = vadd.f32 %v594, %v762
  %v764 = vand.u32 %v325, 4294901760
  %765 = vmatmul.f32.gmra.mxu0 %v764
  %v766 = vpop.f32.mrf.mxu0
  %v767 = vadd.f32 %v602, %v766
  %768 = vdwg.mxu0
  %769 = vmatpush.msra.mxu0 0.0
  %770 = vmatpush.msra.mxu0 0.0
  %771 = vmatpush.msra.mxu0 0.0
  %772 = vmatpush.msra.mxu0 0.0
  %773 = vmatpush.msra.mxu0 0.0
  %774 = vmatpush.msra.mxu0 0.0
  %775 = vmatpush.msra.mxu0 0.0
  %776 = vmatpush.msra.mxu0 0.0
  %777 = vmatpush.msra.mxu0 0.0
  %778 = vmatpush.msra.mxu0 0.0
  %779 = vmatpush.msra.mxu0 0.0
  %780 = vmatpush.msra.mxu0 0.0
  %v781 = vand.u32 %v226, 4294901760
  %v782 = vsub.f32 %v226, %v781
  %783 = vmatpush.msra.mxu0 %v782
  %v784 = vand.u32 %v222, 4294901760
  %v785 = vsub.f32 %v222, %v784
  %786 = vmatpush.msra.mxu0 %v785
  %v787 = vand.u32 %v218, 4294901760
  %v788 = vsub.f32 %v218, %v787
  %789 = vmatpush.msra.mxu0 %v788
  %v790 = vand.u32 %v214, 4294901760
  %v791 = vsub.f32 %v214, %v790
  %792 = vmatpush.msra.mxu0 %v791
  %v793 = vand.u32 %v232, 4294901760
  %v794 = vsub.f32 %v232, %v793
  %795 = vmatmul.f32.gmra.mxu0 %v794
  %v796 = vpop.f32.mrf.mxu0
  %v797 = vadd.f32 %v643, %v796
  %v798 = vand.u32 %v235, 4294901760
  %v799 = vsub.f32 %v235, %v798
  %800 = vmatmul.f32.gmra.mxu0 %v799
  %v801 = vpop.f32.mrf.mxu0
  %v802 = vadd.f32 %v647, %v801
  %v803 = vand.u32 %v238, 4294901760
  %v804 = vsub.f32 %v238, %v803
  %805 = vmatmul.f32.gmra.mxu0 %v804
  %v806 = vpop.f32.mrf.mxu0
  %v807 = vadd.f32 %v651, %v806
  %v808 = vand.u32 %v241, 4294901760
  %v809 = vsub.f32 %v241, %v808
  %810 = vmatmul.f32.gmra.mxu0 %v809
  %v811 = vpop.f32.mrf.mxu0
  %v812 = vadd.f32 %v655, %v811
  %v813 = vand.u32 %v244, 4294901760
  %v814 = vsub.f32 %v244, %v813
  %815 = vmatmul.f32.gmra.mxu0 %v814
  %v816 = vpop.f32.mrf.mxu0
  %v817 = vadd.f32 %v659, %v816
  %v818 = vand.u32 %v247, 4294901760
  %v819 = vsub.f32 %v247, %v818
  %820 = vmatmul.f32.gmra.mxu0 %v819
  %v821 = vpop.f32.mrf.mxu0
  %v822 = vadd.f32 %v663, %v821
  %v823 = vand.u32 %v250, 4294901760
  %v824 = vsub.f32 %v250, %v823
  %825 = vmatmul.f32.gmra.mxu0 %v824
  %v826 = vpop.f32.mrf.mxu0
  %v827 = vadd.f32 %v667, %v826
  %v828 = vand.u32 %v253, 4294901760
  %v829 = vsub.f32 %v253, %v828
  %830 = vmatmul.f32.gmra.mxu0 %v829
  %v831 = vpop.f32.mrf.mxu0
  %v832 = vadd.f32 %v671, %v831
  %v833 = vand.u32 %v256, 4294901760
  %v834 = vsub.f32 %v256, %v833
  %835 = vmatmul.f32.gmra.mxu0 %v834
  %v836 = vpop.f32.mrf.mxu0
  %v837 = vadd.f32 %v675, %v836
  %v838 = vand.u32 %v259, 4294901760
  %v839 = vsub.f32 %v259, %v838
  %840 = vmatmul.f32.gmra.mxu0 %v839
  %v841 = vpop.f32.mrf.mxu0
  %v842 = vadd.f32 %v679, %v841
  %v843 = vand.u32 %v262, 4294901760
  %v844 = vsub.f32 %v262, %v843
  %845 = vmatmul.f32.gmra.mxu0 %v844
  %v846 = vpop.f32.mrf.mxu0
  %v847 = vadd.f32 %v683, %v846
  %v848 = vand.u32 %v265, 4294901760
  %v849 = vsub.f32 %v265, %v848
  %850 = vmatmul.f32.gmra.mxu0 %v849
  %v851 = vpop.f32.mrf.mxu0
  %v852 = vadd.f32 %v687, %v851
  %v853 = vand.u32 %v268, 4294901760
  %v854 = vsub.f32 %v268, %v853
  %855 = vmatmul.f32.gmra.mxu0 %v854
  %v856 = vpop.f32.mrf.mxu0
  %v857 = vadd.f32 %v691, %v856
  %v858 = vand.u32 %v271, 4294901760
  %v859 = vsub.f32 %v271, %v858
  %860 = vmatmul.f32.gmra.mxu0 %v859
  %v861 = vpop.f32.mrf.mxu0
  %v862 = vadd.f32 %v695, %v861
  %v863 = vand.u32 %v274, 4294901760
  %v864 = vsub.f32 %v274, %v863
  %865 = vmatmul.f32.gmra.mxu0 %v864
  %v866 = vpop.f32.mrf.mxu0
  %v867 = vadd.f32 %v699, %v866
  %v868 = vand.u32 %v277, 4294901760
  %v869 = vsub.f32 %v277, %v868
  %870 = vmatmul.f32.gmra.mxu0 %v869
  %v871 = vpop.f32.mrf.mxu0
  %v872 = vadd.f32 %v703, %v871
  %v873 = vand.u32 %v280, 4294901760
  %v874 = vsub.f32 %v280, %v873
  %875 = vmatmul.f32.gmra.mxu0 %v874
  %v876 = vpop.f32.mrf.mxu0
  %v877 = vadd.f32 %v707, %v876
  %v878 = vand.u32 %v283, 4294901760
  %v879 = vsub.f32 %v283, %v878
  %880 = vmatmul.f32.gmra.mxu0 %v879
  %v881 = vpop.f32.mrf.mxu0
  %v882 = vadd.f32 %v711, %v881
  %v883 = vand.u32 %v286, 4294901760
  %v884 = vsub.f32 %v286, %v883
  %885 = vmatmul.f32.gmra.mxu0 %v884
  %v886 = vpop.f32.mrf.mxu0
  %v887 = vadd.f32 %v715, %v886
  %v888 = vand.u32 %v289, 4294901760
  %v889 = vsub.f32 %v289, %v888
  %890 = vmatmul.f32.gmra.mxu0 %v889
  %v891 = vpop.f32.mrf.mxu0
  %v892 = vadd.f32 %v719, %v891
  %v893 = vand.u32 %v292, 4294901760
  %v894 = vsub.f32 %v292, %v893
  %895 = vmatmul.f32.gmra.mxu0 %v894
  %v896 = vpop.f32.mrf.mxu0
  %v897 = vadd.f32 %v723, %v896
  %v898 = vand.u32 %v295, 4294901760
  %v899 = vsub.f32 %v295, %v898
  %900 = vmatmul.f32.gmra.mxu0 %v899
  %v901 = vpop.f32.mrf.mxu0
  %v902 = vadd.f32 %v727, %v901
  %v903 = vand.u32 %v298, 4294901760
  %v904 = vsub.f32 %v298, %v903
  %905 = vmatmul.f32.gmra.mxu0 %v904
  %v906 = vpop.f32.mrf.mxu0
  %v907 = vadd.f32 %v731, %v906
  %v908 = vand.u32 %v301, 4294901760
  %v909 = vsub.f32 %v301, %v908
  %910 = vmatmul.f32.gmra.mxu0 %v909
  %v911 = vpop.f32.mrf.mxu0
  %v912 = vadd.f32 %v735, %v911
  %v913 = vand.u32 %v304, 4294901760
  %v914 = vsub.f32 %v304, %v913
  %915 = vmatmul.f32.gmra.mxu0 %v914
  %v916 = vpop.f32.mrf.mxu0
  %v917 = vadd.f32 %v739, %v916
  %v918 = vand.u32 %v307, 4294901760
  %v919 = vsub.f32 %v307, %v918
  %920 = vmatmul.f32.gmra.mxu0 %v919
  %v921 = vpop.f32.mrf.mxu0
  %v922 = vadd.f32 %v743, %v921
  %v923 = vand.u32 %v310, 4294901760
  %v924 = vsub.f32 %v310, %v923
  %925 = vmatmul.f32.gmra.mxu0 %v924
  %v926 = vpop.f32.mrf.mxu0
  %v927 = vadd.f32 %v747, %v926
  %v928 = vand.u32 %v313, 4294901760
  %v929 = vsub.f32 %v313, %v928
  %930 = vmatmul.f32.gmra.mxu0 %v929
  %v931 = vpop.f32.mrf.mxu0
  %v932 = vadd.f32 %v751, %v931
  %v933 = vand.u32 %v316, 4294901760
  %v934 = vsub.f32 %v316, %v933
  %935 = vmatmul.f32.gmra.mxu0 %v934
  %v936 = vpop.f32.mrf.mxu0
  %v937 = vadd.f32 %v755, %v936
  %v938 = vand.u32 %v319, 4294901760
  %v939 = vsub.f32 %v319, %v938
  %940 = vmatmul.f32.gmra.mxu0 %v939
  %v941 = vpop.f32.mrf.mxu0
  %v942 = vadd.f32 %v759, %v941
  %v943 = vand.u32 %v322, 4294901760
  %v944 = vsub.f32 %v322, %v943
  %945 = vmatmul.f32.gmra.mxu0 %v944
  %v946 = vpop.f32.mrf.mxu0
  %v947 = vadd.f32 %v763, %v946
  %v948 = vand.u32 %v325, 4294901760
  %v949 = vsub.f32 %v325, %v948
  %950 = vmatmul.f32.gmra.mxu0 %v949
  %v951 = vpop.f32.mrf.mxu0
  %v952 = vadd.f32 %v767, %v951
  %953 = vdwg.mxu0
  %954 = vmatpush.msra.mxu0 0.0
  %955 = vmatpush.msra.mxu0 0.0
  %956 = vmatpush.msra.mxu0 0.0
  %957 = vmatpush.msra.mxu0 0.0
  %958 = vmatpush.msra.mxu0 0.0
  %959 = vmatpush.msra.mxu0 0.0
  %960 = vmatpush.msra.mxu0 0.0
  %961 = vmatpush.msra.mxu0 0.0
  %962 = vmatpush.msra.mxu0 0.0
  %963 = vmatpush.msra.mxu0 0.0
  %964 = vmatpush.msra.mxu0 0.0
  %965 = vmatpush.msra.mxu0 0.0
  %v966 = vand.u32 %v226, 4294901760
  %967 = vmatpush.msra.mxu0 %v966
  %v968 = vand.u32 %v222, 4294901760
  %969 = vmatpush.msra.mxu0 %v968
  %v970 = vand.u32 %v218, 4294901760
  %971 = vmatpush.msra.mxu0 %v970
  %v972 = vand.u32 %v214, 4294901760
  %973 = vmatpush.msra.mxu0 %v972
  %v974 = vand.u32 %v232, 4294901760
  %v975 = vsub.f32 %v232, %v974
  %v976 = vand.u32 %v975, 4294901760
  %977 = vmatmul.f32.gmra.mxu0 %v976
  %v978 = vpop.f32.mrf.mxu0
  %v979 = vadd.f32 %v797, %v978
  %v980 = vand.u32 %v235, 4294901760
  %v981 = vsub.f32 %v235, %v980
  %v982 = vand.u32 %v981, 4294901760
  %983 = vmatmul.f32.gmra.mxu0 %v982
  %v984 = vpop.f32.mrf.mxu0
  %v985 = vadd.f32 %v802, %v984
  %v986 = vand.u32 %v238, 4294901760
  %v987 = vsub.f32 %v238, %v986
  %v988 = vand.u32 %v987, 4294901760
  %989 = vmatmul.f32.gmra.mxu0 %v988
  %v990 = vpop.f32.mrf.mxu0
  %v991 = vadd.f32 %v807, %v990
  %v992 = vand.u32 %v241, 4294901760
  %v993 = vsub.f32 %v241, %v992
  %v994 = vand.u32 %v993, 4294901760
  %995 = vmatmul.f32.gmra.mxu0 %v994
  %v996 = vpop.f32.mrf.mxu0
  %v997 = vadd.f32 %v812, %v996
  %v998 = vand.u32 %v244, 4294901760
  %v999 = vsub.f32 %v244, %v998
  %v1000 = vand.u32 %v999, 4294901760
  %1001 = vmatmul.f32.gmra.mxu0 %v1000
  %v1002 = vpop.f32.mrf.mxu0
  %v1003 = vadd.f32 %v817, %v1002
  %v1004 = vand.u32 %v247, 4294901760
  %v1005 = vsub.f32 %v247, %v1004
  %v1006 = vand.u32 %v1005, 4294901760
  %1007 = vmatmul.f32.gmra.mxu0 %v1006
  %v1008 = vpop.f32.mrf.mxu0
  %v1009 = vadd.f32 %v822, %v1008
  %v1010 = vand.u32 %v250, 4294901760
  %v1011 = vsub.f32 %v250, %v1010
  %v1012 = vand.u32 %v1011, 4294901760
  %1013 = vmatmul.f32.gmra.mxu0 %v1012
  %v1014 = vpop.f32.mrf.mxu0
  %v1015 = vadd.f32 %v827, %v1014
  %v1016 = vand.u32 %v253, 4294901760
  %v1017 = vsub.f32 %v253, %v1016
  %v1018 = vand.u32 %v1017, 4294901760
  %1019 = vmatmul.f32.gmra.mxu0 %v1018
  %v1020 = vpop.f32.mrf.mxu0
  %v1021 = vadd.f32 %v832, %v1020
  %v1022 = vand.u32 %v256, 4294901760
  %v1023 = vsub.f32 %v256, %v1022
  %v1024 = vand.u32 %v1023, 4294901760
  %1025 = vmatmul.f32.gmra.mxu0 %v1024
  %v1026 = vpop.f32.mrf.mxu0
  %v1027 = vadd.f32 %v837, %v1026
  %v1028 = vand.u32 %v259, 4294901760
  %v1029 = vsub.f32 %v259, %v1028
  %v1030 = vand.u32 %v1029, 4294901760
  %1031 = vmatmul.f32.gmra.mxu0 %v1030
  %v1032 = vpop.f32.mrf.mxu0
  %v1033 = vadd.f32 %v842, %v1032
  %v1034 = vand.u32 %v262, 4294901760
  %v1035 = vsub.f32 %v262, %v1034
  %v1036 = vand.u32 %v1035, 4294901760
  %1037 = vmatmul.f32.gmra.mxu0 %v1036
  %v1038 = vpop.f32.mrf.mxu0
  %v1039 = vadd.f32 %v847, %v1038
  %v1040 = vand.u32 %v265, 4294901760
  %v1041 = vsub.f32 %v265, %v1040
  %v1042 = vand.u32 %v1041, 4294901760
  %1043 = vmatmul.f32.gmra.mxu0 %v1042
  %v1044 = vpop.f32.mrf.mxu0
  %v1045 = vadd.f32 %v852, %v1044
  %v1046 = vand.u32 %v268, 4294901760
  %v1047 = vsub.f32 %v268, %v1046
  %v1048 = vand.u32 %v1047, 4294901760
  %1049 = vmatmul.f32.gmra.mxu0 %v1048
  %v1050 = vpop.f32.mrf.mxu0
  %v1051 = vadd.f32 %v857, %v1050
  %v1052 = vand.u32 %v271, 4294901760
  %v1053 = vsub.f32 %v271, %v1052
  %v1054 = vand.u32 %v1053, 4294901760
  %1055 = vmatmul.f32.gmra.mxu0 %v1054
  %v1056 = vpop.f32.mrf.mxu0
  %v1057 = vadd.f32 %v862, %v1056
  %v1058 = vand.u32 %v274, 4294901760
  %v1059 = vsub.f32 %v274, %v1058
  %v1060 = vand.u32 %v1059, 4294901760
  %1061 = vmatmul.f32.gmra.mxu0 %v1060
  %v1062 = vpop.f32.mrf.mxu0
  %v1063 = vadd.f32 %v867, %v1062
  %v1064 = vand.u32 %v277, 4294901760
  %v1065 = vsub.f32 %v277, %v1064
  %v1066 = vand.u32 %v1065, 4294901760
  %1067 = vmatmul.f32.gmra.mxu0 %v1066
  %v1068 = vpop.f32.mrf.mxu0
  %v1069 = vadd.f32 %v872, %v1068
  %v1070 = vand.u32 %v280, 4294901760
  %v1071 = vsub.f32 %v280, %v1070
  %v1072 = vand.u32 %v1071, 4294901760
  %1073 = vmatmul.f32.gmra.mxu0 %v1072
  %v1074 = vpop.f32.mrf.mxu0
  %v1075 = vadd.f32 %v877, %v1074
  %v1076 = vand.u32 %v283, 4294901760
  %v1077 = vsub.f32 %v283, %v1076
  %v1078 = vand.u32 %v1077, 4294901760
  %1079 = vmatmul.f32.gmra.mxu0 %v1078
  %v1080 = vpop.f32.mrf.mxu0
  %v1081 = vadd.f32 %v882, %v1080
  %v1082 = vand.u32 %v286, 4294901760
  %v1083 = vsub.f32 %v286, %v1082
  %v1084 = vand.u32 %v1083, 4294901760
  %1085 = vmatmul.f32.gmra.mxu0 %v1084
  %v1086 = vpop.f32.mrf.mxu0
  %v1087 = vadd.f32 %v887, %v1086
  %v1088 = vand.u32 %v289, 4294901760
  %v1089 = vsub.f32 %v289, %v1088
  %v1090 = vand.u32 %v1089, 4294901760
  %1091 = vmatmul.f32.gmra.mxu0 %v1090
  %v1092 = vpop.f32.mrf.mxu0
  %v1093 = vadd.f32 %v892, %v1092
  %v1094 = vand.u32 %v292, 4294901760
  %v1095 = vsub.f32 %v292, %v1094
  %v1096 = vand.u32 %v1095, 4294901760
  %1097 = vmatmul.f32.gmra.mxu0 %v1096
  %v1098 = vpop.f32.mrf.mxu0
  %v1099 = vadd.f32 %v897, %v1098
  %v1100 = vand.u32 %v295, 4294901760
  %v1101 = vsub.f32 %v295, %v1100
  %v1102 = vand.u32 %v1101, 4294901760
  %1103 = vmatmul.f32.gmra.mxu0 %v1102
  %v1104 = vpop.f32.mrf.mxu0
  %v1105 = vadd.f32 %v902, %v1104
  %v1106 = vand.u32 %v298, 4294901760
  %v1107 = vsub.f32 %v298, %v1106
  %v1108 = vand.u32 %v1107, 4294901760
  %1109 = vmatmul.f32.gmra.mxu0 %v1108
  %v1110 = vpop.f32.mrf.mxu0
  %v1111 = vadd.f32 %v907, %v1110
  %v1112 = vand.u32 %v301, 4294901760
  %v1113 = vsub.f32 %v301, %v1112
  %v1114 = vand.u32 %v1113, 4294901760
  %1115 = vmatmul.f32.gmra.mxu0 %v1114
  %v1116 = vpop.f32.mrf.mxu0
  %v1117 = vadd.f32 %v912, %v1116
  %v1118 = vand.u32 %v304, 4294901760
  %v1119 = vsub.f32 %v304, %v1118
  %v1120 = vand.u32 %v1119, 4294901760
  %1121 = vmatmul.f32.gmra.mxu0 %v1120
  %v1122 = vpop.f32.mrf.mxu0
  %v1123 = vadd.f32 %v917, %v1122
  %v1124 = vand.u32 %v307, 4294901760
  %v1125 = vsub.f32 %v307, %v1124
  %v1126 = vand.u32 %v1125, 4294901760
  %1127 = vmatmul.f32.gmra.mxu0 %v1126
  %v1128 = vpop.f32.mrf.mxu0
  %v1129 = vadd.f32 %v922, %v1128
  %v1130 = vand.u32 %v310, 4294901760
  %v1131 = vsub.f32 %v310, %v1130
  %v1132 = vand.u32 %v1131, 4294901760
  %1133 = vmatmul.f32.gmra.mxu0 %v1132
  %v1134 = vpop.f32.mrf.mxu0
  %v1135 = vadd.f32 %v927, %v1134
  %v1136 = vand.u32 %v313, 4294901760
  %v1137 = vsub.f32 %v313, %v1136
  %v1138 = vand.u32 %v1137, 4294901760
  %1139 = vmatmul.f32.gmra.mxu0 %v1138
  %v1140 = vpop.f32.mrf.mxu0
  %v1141 = vadd.f32 %v932, %v1140
  %v1142 = vand.u32 %v316, 4294901760
  %v1143 = vsub.f32 %v316, %v1142
  %v1144 = vand.u32 %v1143, 4294901760
  %1145 = vmatmul.f32.gmra.mxu0 %v1144
  %v1146 = vpop.f32.mrf.mxu0
  %v1147 = vadd.f32 %v937, %v1146
  %v1148 = vand.u32 %v319, 4294901760
  %v1149 = vsub.f32 %v319, %v1148
  %v1150 = vand.u32 %v1149, 4294901760
  %1151 = vmatmul.f32.gmra.mxu0 %v1150
  %v1152 = vpop.f32.mrf.mxu0
  %v1153 = vadd.f32 %v942, %v1152
  %v1154 = vand.u32 %v322, 4294901760
  %v1155 = vsub.f32 %v322, %v1154
  %v1156 = vand.u32 %v1155, 4294901760
  %1157 = vmatmul.f32.gmra.mxu0 %v1156
  %v1158 = vpop.f32.mrf.mxu0
  %v1159 = vadd.f32 %v947, %v1158
  %v1160 = vand.u32 %v325, 4294901760
  %v1161 = vsub.f32 %v325, %v1160
  %v1162 = vand.u32 %v1161, 4294901760
  %1163 = vmatmul.f32.gmra.mxu0 %v1162
  %v1164 = vpop.f32.mrf.mxu0
  %v1165 = vadd.f32 %v952, %v1164
  %1166 = vdwg.mxu0
  %1167 = vmatpush.msra.mxu0 0.0
  %1168 = vmatpush.msra.mxu0 0.0
  %1169 = vmatpush.msra.mxu0 0.0
  %1170 = vmatpush.msra.mxu0 0.0
  %1171 = vmatpush.msra.mxu0 0.0
  %1172 = vmatpush.msra.mxu0 0.0
  %1173 = vmatpush.msra.mxu0 0.0
  %1174 = vmatpush.msra.mxu0 0.0
  %1175 = vmatpush.msra.mxu0 0.0
  %1176 = vmatpush.msra.mxu0 0.0
  %1177 = vmatpush.msra.mxu0 0.0
  %1178 = vmatpush.msra.mxu0 0.0
  %v1179 = vand.u32 %v226, 4294901760
  %v1180 = vsub.f32 %v226, %v1179
  %v1181 = vand.u32 %v1180, 4294901760
  %1182 = vmatpush.msra.mxu0 %v1181
  %v1183 = vand.u32 %v222, 4294901760
  %v1184 = vsub.f32 %v222, %v1183
  %v1185 = vand.u32 %v1184, 4294901760
  %1186 = vmatpush.msra.mxu0 %v1185
  %v1187 = vand.u32 %v218, 4294901760
  %v1188 = vsub.f32 %v218, %v1187
  %v1189 = vand.u32 %v1188, 4294901760
  %1190 = vmatpush.msra.mxu0 %v1189
  %v1191 = vand.u32 %v214, 4294901760
  %v1192 = vsub.f32 %v214, %v1191
  %v1193 = vand.u32 %v1192, 4294901760
  %1194 = vmatpush.msra.mxu0 %v1193
  %v1195 = vand.u32 %v232, 4294901760
  %1196 = vmatmul.f32.gmra.mxu0 %v1195
  %v1197 = vpop.f32.mrf.mxu0
  %v1198 = vadd.f32 %v979, %v1197
  %v1199 = vand.u32 %v235, 4294901760
  %1200 = vmatmul.f32.gmra.mxu0 %v1199
  %v1201 = vpop.f32.mrf.mxu0
  %v1202 = vadd.f32 %v985, %v1201
  %v1203 = vand.u32 %v238, 4294901760
  %1204 = vmatmul.f32.gmra.mxu0 %v1203
  %v1205 = vpop.f32.mrf.mxu0
  %v1206 = vadd.f32 %v991, %v1205
  %v1207 = vand.u32 %v241, 4294901760
  %1208 = vmatmul.f32.gmra.mxu0 %v1207
  %v1209 = vpop.f32.mrf.mxu0
  %v1210 = vadd.f32 %v997, %v1209
  %v1211 = vand.u32 %v244, 4294901760
  %1212 = vmatmul.f32.gmra.mxu0 %v1211
  %v1213 = vpop.f32.mrf.mxu0
  %v1214 = vadd.f32 %v1003, %v1213
  %v1215 = vand.u32 %v247, 4294901760
  %1216 = vmatmul.f32.gmra.mxu0 %v1215
  %v1217 = vpop.f32.mrf.mxu0
  %v1218 = vadd.f32 %v1009, %v1217
  %v1219 = vand.u32 %v250, 4294901760
  %1220 = vmatmul.f32.gmra.mxu0 %v1219
  %v1221 = vpop.f32.mrf.mxu0
  %v1222 = vadd.f32 %v1015, %v1221
  %v1223 = vand.u32 %v253, 4294901760
  %1224 = vmatmul.f32.gmra.mxu0 %v1223
  %v1225 = vpop.f32.mrf.mxu0
  %v1226 = vadd.f32 %v1021, %v1225
  %v1227 = vand.u32 %v256, 4294901760
  %1228 = vmatmul.f32.gmra.mxu0 %v1227
  %v1229 = vpop.f32.mrf.mxu0
  %v1230 = vadd.f32 %v1027, %v1229
  %v1231 = vand.u32 %v259, 4294901760
  %1232 = vmatmul.f32.gmra.mxu0 %v1231
  %v1233 = vpop.f32.mrf.mxu0
  %v1234 = vadd.f32 %v1033, %v1233
  %v1235 = vand.u32 %v262, 4294901760
  %1236 = vmatmul.f32.gmra.mxu0 %v1235
  %v1237 = vpop.f32.mrf.mxu0
  %v1238 = vadd.f32 %v1039, %v1237
  %v1239 = vand.u32 %v265, 4294901760
  %1240 = vmatmul.f32.gmra.mxu0 %v1239
  %v1241 = vpop.f32.mrf.mxu0
  %v1242 = vadd.f32 %v1045, %v1241
  %v1243 = vand.u32 %v268, 4294901760
  %1244 = vmatmul.f32.gmra.mxu0 %v1243
  %v1245 = vpop.f32.mrf.mxu0
  %v1246 = vadd.f32 %v1051, %v1245
  %v1247 = vand.u32 %v271, 4294901760
  %1248 = vmatmul.f32.gmra.mxu0 %v1247
  %v1249 = vpop.f32.mrf.mxu0
  %v1250 = vadd.f32 %v1057, %v1249
  %v1251 = vand.u32 %v274, 4294901760
  %1252 = vmatmul.f32.gmra.mxu0 %v1251
  %v1253 = vpop.f32.mrf.mxu0
  %v1254 = vadd.f32 %v1063, %v1253
  %v1255 = vand.u32 %v277, 4294901760
  %1256 = vmatmul.f32.gmra.mxu0 %v1255
  %v1257 = vpop.f32.mrf.mxu0
  %v1258 = vadd.f32 %v1069, %v1257
  %v1259 = vand.u32 %v280, 4294901760
  %1260 = vmatmul.f32.gmra.mxu0 %v1259
  %v1261 = vpop.f32.mrf.mxu0
  %v1262 = vadd.f32 %v1075, %v1261
  %v1263 = vand.u32 %v283, 4294901760
  %1264 = vmatmul.f32.gmra.mxu0 %v1263
  %v1265 = vpop.f32.mrf.mxu0
  %v1266 = vadd.f32 %v1081, %v1265
  %v1267 = vand.u32 %v286, 4294901760
  %1268 = vmatmul.f32.gmra.mxu0 %v1267
  %v1269 = vpop.f32.mrf.mxu0
  %v1270 = vadd.f32 %v1087, %v1269
  %v1271 = vand.u32 %v289, 4294901760
  %1272 = vmatmul.f32.gmra.mxu0 %v1271
  %v1273 = vpop.f32.mrf.mxu0
  %v1274 = vadd.f32 %v1093, %v1273
  %v1275 = vand.u32 %v292, 4294901760
  %1276 = vmatmul.f32.gmra.mxu0 %v1275
  %v1277 = vpop.f32.mrf.mxu0
  %v1278 = vadd.f32 %v1099, %v1277
  %v1279 = vand.u32 %v295, 4294901760
  %1280 = vmatmul.f32.gmra.mxu0 %v1279
  %v1281 = vpop.f32.mrf.mxu0
  %v1282 = vadd.f32 %v1105, %v1281
  %v1283 = vand.u32 %v298, 4294901760
  %1284 = vmatmul.f32.gmra.mxu0 %v1283
  %v1285 = vpop.f32.mrf.mxu0
  %v1286 = vadd.f32 %v1111, %v1285
  %v1287 = vand.u32 %v301, 4294901760
  %1288 = vmatmul.f32.gmra.mxu0 %v1287
  %v1289 = vpop.f32.mrf.mxu0
  %v1290 = vadd.f32 %v1117, %v1289
  %v1291 = vand.u32 %v304, 4294901760
  %1292 = vmatmul.f32.gmra.mxu0 %v1291
  %v1293 = vpop.f32.mrf.mxu0
  %v1294 = vadd.f32 %v1123, %v1293
  %v1295 = vand.u32 %v307, 4294901760
  %1296 = vmatmul.f32.gmra.mxu0 %v1295
  %v1297 = vpop.f32.mrf.mxu0
  %v1298 = vadd.f32 %v1129, %v1297
  %v1299 = vand.u32 %v310, 4294901760
  %1300 = vmatmul.f32.gmra.mxu0 %v1299
  %v1301 = vpop.f32.mrf.mxu0
  %v1302 = vadd.f32 %v1135, %v1301
  %v1303 = vand.u32 %v313, 4294901760
  %1304 = vmatmul.f32.gmra.mxu0 %v1303
  %v1305 = vpop.f32.mrf.mxu0
  %v1306 = vadd.f32 %v1141, %v1305
  %v1307 = vand.u32 %v316, 4294901760
  %1308 = vmatmul.f32.gmra.mxu0 %v1307
  %v1309 = vpop.f32.mrf.mxu0
  %v1310 = vadd.f32 %v1147, %v1309
  %v1311 = vand.u32 %v319, 4294901760
  %1312 = vmatmul.f32.gmra.mxu0 %v1311
  %v1313 = vpop.f32.mrf.mxu0
  %v1314 = vadd.f32 %v1153, %v1313
  %v1315 = vand.u32 %v322, 4294901760
  %1316 = vmatmul.f32.gmra.mxu0 %v1315
  %v1317 = vpop.f32.mrf.mxu0
  %v1318 = vadd.f32 %v1159, %v1317
  %v1319 = vand.u32 %v325, 4294901760
  %1320 = vmatmul.f32.gmra.mxu0 %v1319
  %v1321 = vpop.f32.mrf.mxu0
  %v1322 = vadd.f32 %v1165, %v1321
  %1323 = vdwg.mxu0
  %1324 = vmatpush.msra.mxu0 0.0
  %1325 = vmatpush.msra.mxu0 0.0
  %1326 = vmatpush.msra.mxu0 0.0
  %1327 = vmatpush.msra.mxu0 0.0
  %1328 = vmatpush.msra.mxu0 0.0
  %1329 = vmatpush.msra.mxu0 0.0
  %1330 = vmatpush.msra.mxu0 0.0
  %1331 = vmatpush.msra.mxu0 0.0
  %1332 = vmatpush.msra.mxu0 0.0
  %1333 = vmatpush.msra.mxu0 0.0
  %1334 = vmatpush.msra.mxu0 0.0
  %1335 = vmatpush.msra.mxu0 0.0
  %v1336 = vand.u32 %v226, 4294901760
  %1337 = vmatpush.msra.mxu0 %v1336
  %v1338 = vand.u32 %v222, 4294901760
  %1339 = vmatpush.msra.mxu0 %v1338
  %v1340 = vand.u32 %v218, 4294901760
  %1341 = vmatpush.msra.mxu0 %v1340
  %v1342 = vand.u32 %v214, 4294901760
  %1343 = vmatpush.msra.mxu0 %v1342
  %v1344 = vand.u32 %v232, 4294901760
  %1345 = vmatmul.f32.gmra.mxu0 %v1344
  %v1346 = vpop.f32.mrf.mxu0
  %v1347 = vadd.f32 %v1198, %v1346
  %v1348 = vand.u32 %v235, 4294901760
  %1349 = vmatmul.f32.gmra.mxu0 %v1348
  %v1350 = vpop.f32.mrf.mxu0
  %v1351 = vadd.f32 %v1202, %v1350
  %v1352 = vand.u32 %v238, 4294901760
  %1353 = vmatmul.f32.gmra.mxu0 %v1352
  %v1354 = vpop.f32.mrf.mxu0
  %v1355 = vadd.f32 %v1206, %v1354
  %v1356 = vand.u32 %v241, 4294901760
  %1357 = vmatmul.f32.gmra.mxu0 %v1356
  %v1358 = vpop.f32.mrf.mxu0
  %v1359 = vadd.f32 %v1210, %v1358
  %v1360 = vand.u32 %v244, 4294901760
  %1361 = vmatmul.f32.gmra.mxu0 %v1360
  %v1362 = vpop.f32.mrf.mxu0
  %v1363 = vadd.f32 %v1214, %v1362
  %v1364 = vand.u32 %v247, 4294901760
  %1365 = vmatmul.f32.gmra.mxu0 %v1364
  %v1366 = vpop.f32.mrf.mxu0
  %v1367 = vadd.f32 %v1218, %v1366
  %v1368 = vand.u32 %v250, 4294901760
  %1369 = vmatmul.f32.gmra.mxu0 %v1368
  %v1370 = vpop.f32.mrf.mxu0
  %v1371 = vadd.f32 %v1222, %v1370
  %v1372 = vand.u32 %v253, 4294901760
  %1373 = vmatmul.f32.gmra.mxu0 %v1372
  %v1374 = vpop.f32.mrf.mxu0
  %v1375 = vadd.f32 %v1226, %v1374
  %v1376 = vand.u32 %v256, 4294901760
  %1377 = vmatmul.f32.gmra.mxu0 %v1376
  %v1378 = vpop.f32.mrf.mxu0
  %v1379 = vadd.f32 %v1230, %v1378
  %v1380 = vand.u32 %v259, 4294901760
  %1381 = vmatmul.f32.gmra.mxu0 %v1380
  %v1382 = vpop.f32.mrf.mxu0
  %v1383 = vadd.f32 %v1234, %v1382
  %v1384 = vand.u32 %v262, 4294901760
  %1385 = vmatmul.f32.gmra.mxu0 %v1384
  %v1386 = vpop.f32.mrf.mxu0
  %v1387 = vadd.f32 %v1238, %v1386
  %v1388 = vand.u32 %v265, 4294901760
  %1389 = vmatmul.f32.gmra.mxu0 %v1388
  %v1390 = vpop.f32.mrf.mxu0
  %v1391 = vadd.f32 %v1242, %v1390
  %v1392 = vand.u32 %v268, 4294901760
  %1393 = vmatmul.f32.gmra.mxu0 %v1392
  %v1394 = vpop.f32.mrf.mxu0
  %v1395 = vadd.f32 %v1246, %v1394
  %v1396 = vand.u32 %v271, 4294901760
  %1397 = vmatmul.f32.gmra.mxu0 %v1396
  %v1398 = vpop.f32.mrf.mxu0
  %v1399 = vadd.f32 %v1250, %v1398
  %v1400 = vand.u32 %v274, 4294901760
  %1401 = vmatmul.f32.gmra.mxu0 %v1400
  %v1402 = vpop.f32.mrf.mxu0
  %v1403 = vadd.f32 %v1254, %v1402
  %v1404 = vand.u32 %v277, 4294901760
  %1405 = vmatmul.f32.gmra.mxu0 %v1404
  %v1406 = vpop.f32.mrf.mxu0
  %v1407 = vadd.f32 %v1258, %v1406
  %v1408 = vand.u32 %v280, 4294901760
  %1409 = vmatmul.f32.gmra.mxu0 %v1408
  %v1410 = vpop.f32.mrf.mxu0
  %v1411 = vadd.f32 %v1262, %v1410
  %v1412 = vand.u32 %v283, 4294901760
  %1413 = vmatmul.f32.gmra.mxu0 %v1412
  %v1414 = vpop.f32.mrf.mxu0
  %v1415 = vadd.f32 %v1266, %v1414
  %v1416 = vand.u32 %v286, 4294901760
  %1417 = vmatmul.f32.gmra.mxu0 %v1416
  %v1418 = vpop.f32.mrf.mxu0
  %v1419 = vadd.f32 %v1270, %v1418
  %v1420 = vand.u32 %v289, 4294901760
  %1421 = vmatmul.f32.gmra.mxu0 %v1420
  %v1422 = vpop.f32.mrf.mxu0
  %v1423 = vadd.f32 %v1274, %v1422
  %v1424 = vand.u32 %v292, 4294901760
  %1425 = vmatmul.f32.gmra.mxu0 %v1424
  %v1426 = vpop.f32.mrf.mxu0
  %v1427 = vadd.f32 %v1278, %v1426
  %v1428 = vand.u32 %v295, 4294901760
  %1429 = vmatmul.f32.gmra.mxu0 %v1428
  %v1430 = vpop.f32.mrf.mxu0
  %v1431 = vadd.f32 %v1282, %v1430
  %v1432 = vand.u32 %v298, 4294901760
  %1433 = vmatmul.f32.gmra.mxu0 %v1432
  %v1434 = vpop.f32.mrf.mxu0
  %v1435 = vadd.f32 %v1286, %v1434
  %v1436 = vand.u32 %v301, 4294901760
  %1437 = vmatmul.f32.gmra.mxu0 %v1436
  %v1438 = vpop.f32.mrf.mxu0
  %v1439 = vadd.f32 %v1290, %v1438
  %v1440 = vand.u32 %v304, 4294901760
  %1441 = vmatmul.f32.gmra.mxu0 %v1440
  %v1442 = vpop.f32.mrf.mxu0
  %v1443 = vadd.f32 %v1294, %v1442
  %v1444 = vand.u32 %v307, 4294901760
  %1445 = vmatmul.f32.gmra.mxu0 %v1444
  %v1446 = vpop.f32.mrf.mxu0
  %v1447 = vadd.f32 %v1298, %v1446
  %v1448 = vand.u32 %v310, 4294901760
  %1449 = vmatmul.f32.gmra.mxu0 %v1448
  %v1450 = vpop.f32.mrf.mxu0
  %v1451 = vadd.f32 %v1302, %v1450
  %v1452 = vand.u32 %v313, 4294901760
  %1453 = vmatmul.f32.gmra.mxu0 %v1452
  %v1454 = vpop.f32.mrf.mxu0
  %v1455 = vadd.f32 %v1306, %v1454
  %v1456 = vand.u32 %v316, 4294901760
  %1457 = vmatmul.f32.gmra.mxu0 %v1456
  %v1458 = vpop.f32.mrf.mxu0
  %v1459 = vadd.f32 %v1310, %v1458
  %v1460 = vand.u32 %v319, 4294901760
  %1461 = vmatmul.f32.gmra.mxu0 %v1460
  %v1462 = vpop.f32.mrf.mxu0
  %v1463 = vadd.f32 %v1314, %v1462
  %v1464 = vand.u32 %v322, 4294901760
  %1465 = vmatmul.f32.gmra.mxu0 %v1464
  %v1466 = vpop.f32.mrf.mxu0
  %v1467 = vadd.f32 %v1318, %v1466
  %v1468 = vand.u32 %v325, 4294901760
  %1469 = vmatmul.f32.gmra.mxu0 %v1468
  %v1470 = vpop.f32.mrf.mxu0
  %v1471 = vadd.f32 %v1322, %v1470
  %1472 = vdwg.mxu0
  %1473 = vmatpush.msra.mxu0 0.0
  %1474 = vmatpush.msra.mxu0 0.0
  %1475 = vmatpush.msra.mxu0 0.0
  %1476 = vmatpush.msra.mxu0 0.0
  %1477 = vmatpush.msra.mxu0 0.0
  %1478 = vmatpush.msra.mxu0 0.0
  %1479 = vmatpush.msra.mxu0 0.0
  %1480 = vmatpush.msra.mxu0 0.0
  %1481 = vmatpush.msra.mxu0 0.0
  %1482 = vmatpush.msra.mxu0 0.0
  %1483 = vmatpush.msra.mxu0 0.0
  %1484 = vmatpush.msra.mxu0 0.0
  %v1485 = vand.u32 %v227, 4294901760
  %1486 = vmatpush.msra.mxu0 %v1485
  %v1487 = vand.u32 %v223, 4294901760
  %1488 = vmatpush.msra.mxu0 %v1487
  %v1489 = vand.u32 %v219, 4294901760
  %1490 = vmatpush.msra.mxu0 %v1489
  %v1491 = vand.u32 %v215, 4294901760
  %1492 = vmatpush.msra.mxu0 %v1491
  %v1493 = vand.u32 %v232, 4294901760
  %v1494 = vsub.f32 %v232, %v1493
  %v1495 = vand.u32 %v1494, 4294901760
  %v1496 = vsub.f32 %v1494, %v1495
  %v1497 = vand.u32 %v1496, 4294901760
  %1498 = vmatmul.f32.gmra.mxu0 %v1497
  %v1499 = vpop.f32.mrf.mxu0
  %v1500 = vadd.f32 0.0, %v1499
  %v1501 = vand.u32 %v235, 4294901760
  %v1502 = vsub.f32 %v235, %v1501
  %v1503 = vand.u32 %v1502, 4294901760
  %v1504 = vsub.f32 %v1502, %v1503
  %v1505 = vand.u32 %v1504, 4294901760
  %1506 = vmatmul.f32.gmra.mxu0 %v1505
  %v1507 = vpop.f32.mrf.mxu0
  %v1508 = vadd.f32 0.0, %v1507
  %v1509 = vand.u32 %v238, 4294901760
  %v1510 = vsub.f32 %v238, %v1509
  %v1511 = vand.u32 %v1510, 4294901760
  %v1512 = vsub.f32 %v1510, %v1511
  %v1513 = vand.u32 %v1512, 4294901760
  %1514 = vmatmul.f32.gmra.mxu0 %v1513
  %v1515 = vpop.f32.mrf.mxu0
  %v1516 = vadd.f32 0.0, %v1515
  %v1517 = vand.u32 %v241, 4294901760
  %v1518 = vsub.f32 %v241, %v1517
  %v1519 = vand.u32 %v1518, 4294901760
  %v1520 = vsub.f32 %v1518, %v1519
  %v1521 = vand.u32 %v1520, 4294901760
  %1522 = vmatmul.f32.gmra.mxu0 %v1521
  %v1523 = vpop.f32.mrf.mxu0
  %v1524 = vadd.f32 0.0, %v1523
  %v1525 = vand.u32 %v244, 4294901760
  %v1526 = vsub.f32 %v244, %v1525
  %v1527 = vand.u32 %v1526, 4294901760
  %v1528 = vsub.f32 %v1526, %v1527
  %v1529 = vand.u32 %v1528, 4294901760
  %1530 = vmatmul.f32.gmra.mxu0 %v1529
  %v1531 = vpop.f32.mrf.mxu0
  %v1532 = vadd.f32 0.0, %v1531
  %v1533 = vand.u32 %v247, 4294901760
  %v1534 = vsub.f32 %v247, %v1533
  %v1535 = vand.u32 %v1534, 4294901760
  %v1536 = vsub.f32 %v1534, %v1535
  %v1537 = vand.u32 %v1536, 4294901760
  %1538 = vmatmul.f32.gmra.mxu0 %v1537
  %v1539 = vpop.f32.mrf.mxu0
  %v1540 = vadd.f32 0.0, %v1539
  %v1541 = vand.u32 %v250, 4294901760
  %v1542 = vsub.f32 %v250, %v1541
  %v1543 = vand.u32 %v1542, 4294901760
  %v1544 = vsub.f32 %v1542, %v1543
  %v1545 = vand.u32 %v1544, 4294901760
  %1546 = vmatmul.f32.gmra.mxu0 %v1545
  %v1547 = vpop.f32.mrf.mxu0
  %v1548 = vadd.f32 0.0, %v1547
  %v1549 = vand.u32 %v253, 4294901760
  %v1550 = vsub.f32 %v253, %v1549
  %v1551 = vand.u32 %v1550, 4294901760
  %v1552 = vsub.f32 %v1550, %v1551
  %v1553 = vand.u32 %v1552, 4294901760
  %1554 = vmatmul.f32.gmra.mxu0 %v1553
  %v1555 = vpop.f32.mrf.mxu0
  %v1556 = vadd.f32 0.0, %v1555
  %v1557 = vand.u32 %v256, 4294901760
  %v1558 = vsub.f32 %v256, %v1557
  %v1559 = vand.u32 %v1558, 4294901760
  %v1560 = vsub.f32 %v1558, %v1559
  %v1561 = vand.u32 %v1560, 4294901760
  %1562 = vmatmul.f32.gmra.mxu0 %v1561
  %v1563 = vpop.f32.mrf.mxu0
  %v1564 = vadd.f32 0.0, %v1563
  %v1565 = vand.u32 %v259, 4294901760
  %v1566 = vsub.f32 %v259, %v1565
  %v1567 = vand.u32 %v1566, 4294901760
  %v1568 = vsub.f32 %v1566, %v1567
  %v1569 = vand.u32 %v1568, 4294901760
  %1570 = vmatmul.f32.gmra.mxu0 %v1569
  %v1571 = vpop.f32.mrf.mxu0
  %v1572 = vadd.f32 0.0, %v1571
  %v1573 = vand.u32 %v262, 4294901760
  %v1574 = vsub.f32 %v262, %v1573
  %v1575 = vand.u32 %v1574, 4294901760
  %v1576 = vsub.f32 %v1574, %v1575
  %v1577 = vand.u32 %v1576, 4294901760
  %1578 = vmatmul.f32.gmra.mxu0 %v1577
  %v1579 = vpop.f32.mrf.mxu0
  %v1580 = vadd.f32 0.0, %v1579
  %v1581 = vand.u32 %v265, 4294901760
  %v1582 = vsub.f32 %v265, %v1581
  %v1583 = vand.u32 %v1582, 4294901760
  %v1584 = vsub.f32 %v1582, %v1583
  %v1585 = vand.u32 %v1584, 4294901760
  %1586 = vmatmul.f32.gmra.mxu0 %v1585
  %v1587 = vpop.f32.mrf.mxu0
  %v1588 = vadd.f32 0.0, %v1587
  %v1589 = vand.u32 %v268, 4294901760
  %v1590 = vsub.f32 %v268, %v1589
  %v1591 = vand.u32 %v1590, 4294901760
  %v1592 = vsub.f32 %v1590, %v1591
  %v1593 = vand.u32 %v1592, 4294901760
  %1594 = vmatmul.f32.gmra.mxu0 %v1593
  %v1595 = vpop.f32.mrf.mxu0
  %v1596 = vadd.f32 0.0, %v1595
  %v1597 = vand.u32 %v271, 4294901760
  %v1598 = vsub.f32 %v271, %v1597
  %v1599 = vand.u32 %v1598, 4294901760
  %v1600 = vsub.f32 %v1598, %v1599
  %v1601 = vand.u32 %v1600, 4294901760
  %1602 = vmatmul.f32.gmra.mxu0 %v1601
  %v1603 = vpop.f32.mrf.mxu0
  %v1604 = vadd.f32 0.0, %v1603
  %v1605 = vand.u32 %v274, 4294901760
  %v1606 = vsub.f32 %v274, %v1605
  %v1607 = vand.u32 %v1606, 4294901760
  %v1608 = vsub.f32 %v1606, %v1607
  %v1609 = vand.u32 %v1608, 4294901760
  %1610 = vmatmul.f32.gmra.mxu0 %v1609
  %v1611 = vpop.f32.mrf.mxu0
  %v1612 = vadd.f32 0.0, %v1611
  %v1613 = vand.u32 %v277, 4294901760
  %v1614 = vsub.f32 %v277, %v1613
  %v1615 = vand.u32 %v1614, 4294901760
  %v1616 = vsub.f32 %v1614, %v1615
  %v1617 = vand.u32 %v1616, 4294901760
  %1618 = vmatmul.f32.gmra.mxu0 %v1617
  %v1619 = vpop.f32.mrf.mxu0
  %v1620 = vadd.f32 0.0, %v1619
  %v1621 = vand.u32 %v280, 4294901760
  %v1622 = vsub.f32 %v280, %v1621
  %v1623 = vand.u32 %v1622, 4294901760
  %v1624 = vsub.f32 %v1622, %v1623
  %v1625 = vand.u32 %v1624, 4294901760
  %1626 = vmatmul.f32.gmra.mxu0 %v1625
  %v1627 = vpop.f32.mrf.mxu0
  %v1628 = vadd.f32 0.0, %v1627
  %v1629 = vand.u32 %v283, 4294901760
  %v1630 = vsub.f32 %v283, %v1629
  %v1631 = vand.u32 %v1630, 4294901760
  %v1632 = vsub.f32 %v1630, %v1631
  %v1633 = vand.u32 %v1632, 4294901760
  %1634 = vmatmul.f32.gmra.mxu0 %v1633
  %v1635 = vpop.f32.mrf.mxu0
  %v1636 = vadd.f32 0.0, %v1635
  %v1637 = vand.u32 %v286, 4294901760
  %v1638 = vsub.f32 %v286, %v1637
  %v1639 = vand.u32 %v1638, 4294901760
  %v1640 = vsub.f32 %v1638, %v1639
  %v1641 = vand.u32 %v1640, 4294901760
  %1642 = vmatmul.f32.gmra.mxu0 %v1641
  %v1643 = vpop.f32.mrf.mxu0
  %v1644 = vadd.f32 0.0, %v1643
  %v1645 = vand.u32 %v289, 4294901760
  %v1646 = vsub.f32 %v289, %v1645
  %v1647 = vand.u32 %v1646, 4294901760
  %v1648 = vsub.f32 %v1646, %v1647
  %v1649 = vand.u32 %v1648, 4294901760
  %1650 = vmatmul.f32.gmra.mxu0 %v1649
  %v1651 = vpop.f32.mrf.mxu0
  %v1652 = vadd.f32 0.0, %v1651
  %v1653 = vand.u32 %v292, 4294901760
  %v1654 = vsub.f32 %v292, %v1653
  %v1655 = vand.u32 %v1654, 4294901760
  %v1656 = vsub.f32 %v1654, %v1655
  %v1657 = vand.u32 %v1656, 4294901760
  %1658 = vmatmul.f32.gmra.mxu0 %v1657
  %v1659 = vpop.f32.mrf.mxu0
  %v1660 = vadd.f32 0.0, %v1659
  %v1661 = vand.u32 %v295, 4294901760
  %v1662 = vsub.f32 %v295, %v1661
  %v1663 = vand.u32 %v1662, 4294901760
  %v1664 = vsub.f32 %v1662, %v1663
  %v1665 = vand.u32 %v1664, 4294901760
  %1666 = vmatmul.f32.gmra.mxu0 %v1665
  %v1667 = vpop.f32.mrf.mxu0
  %v1668 = vadd.f32 0.0, %v1667
  %v1669 = vand.u32 %v298, 4294901760
  %v1670 = vsub.f32 %v298, %v1669
  %v1671 = vand.u32 %v1670, 4294901760
  %v1672 = vsub.f32 %v1670, %v1671
  %v1673 = vand.u32 %v1672, 4294901760
  %1674 = vmatmul.f32.gmra.mxu0 %v1673
  %v1675 = vpop.f32.mrf.mxu0
  %v1676 = vadd.f32 0.0, %v1675
  %v1677 = vand.u32 %v301, 4294901760
  %v1678 = vsub.f32 %v301, %v1677
  %v1679 = vand.u32 %v1678, 4294901760
  %v1680 = vsub.f32 %v1678, %v1679
  %v1681 = vand.u32 %v1680, 4294901760
  %1682 = vmatmul.f32.gmra.mxu0 %v1681
  %v1683 = vpop.f32.mrf.mxu0
  %v1684 = vadd.f32 0.0, %v1683
  %v1685 = vand.u32 %v304, 4294901760
  %v1686 = vsub.f32 %v304, %v1685
  %v1687 = vand.u32 %v1686, 4294901760
  %v1688 = vsub.f32 %v1686, %v1687
  %v1689 = vand.u32 %v1688, 4294901760
  %1690 = vmatmul.f32.gmra.mxu0 %v1689
  %v1691 = vpop.f32.mrf.mxu0
  %v1692 = vadd.f32 0.0, %v1691
  %v1693 = vand.u32 %v307, 4294901760
  %v1694 = vsub.f32 %v307, %v1693
  %v1695 = vand.u32 %v1694, 4294901760
  %v1696 = vsub.f32 %v1694, %v1695
  %v1697 = vand.u32 %v1696, 4294901760
  %1698 = vmatmul.f32.gmra.mxu0 %v1697
  %v1699 = vpop.f32.mrf.mxu0
  %v1700 = vadd.f32 0.0, %v1699
  %v1701 = vand.u32 %v310, 4294901760
  %v1702 = vsub.f32 %v310, %v1701
  %v1703 = vand.u32 %v1702, 4294901760
  %v1704 = vsub.f32 %v1702, %v1703
  %v1705 = vand.u32 %v1704, 4294901760
  %1706 = vmatmul.f32.gmra.mxu0 %v1705
  %v1707 = vpop.f32.mrf.mxu0
  %v1708 = vadd.f32 0.0, %v1707
  %v1709 = vand.u32 %v313, 4294901760
  %v1710 = vsub.f32 %v313, %v1709
  %v1711 = vand.u32 %v1710, 4294901760
  %v1712 = vsub.f32 %v1710, %v1711
  %v1713 = vand.u32 %v1712, 4294901760
  %1714 = vmatmul.f32.gmra.mxu0 %v1713
  %v1715 = vpop.f32.mrf.mxu0
  %v1716 = vadd.f32 0.0, %v1715
  %v1717 = vand.u32 %v316, 4294901760
  %v1718 = vsub.f32 %v316, %v1717
  %v1719 = vand.u32 %v1718, 4294901760
  %v1720 = vsub.f32 %v1718, %v1719
  %v1721 = vand.u32 %v1720, 4294901760
  %1722 = vmatmul.f32.gmra.mxu0 %v1721
  %v1723 = vpop.f32.mrf.mxu0
  %v1724 = vadd.f32 0.0, %v1723
  %v1725 = vand.u32 %v319, 4294901760
  %v1726 = vsub.f32 %v319, %v1725
  %v1727 = vand.u32 %v1726, 4294901760
  %v1728 = vsub.f32 %v1726, %v1727
  %v1729 = vand.u32 %v1728, 4294901760
  %1730 = vmatmul.f32.gmra.mxu0 %v1729
  %v1731 = vpop.f32.mrf.mxu0
  %v1732 = vadd.f32 0.0, %v1731
  %v1733 = vand.u32 %v322, 4294901760
  %v1734 = vsub.f32 %v322, %v1733
  %v1735 = vand.u32 %v1734, 4294901760
  %v1736 = vsub.f32 %v1734, %v1735
  %v1737 = vand.u32 %v1736, 4294901760
  %1738 = vmatmul.f32.gmra.mxu0 %v1737
  %v1739 = vpop.f32.mrf.mxu0
  %v1740 = vadd.f32 0.0, %v1739
  %v1741 = vand.u32 %v325, 4294901760
  %v1742 = vsub.f32 %v325, %v1741
  %v1743 = vand.u32 %v1742, 4294901760
  %v1744 = vsub.f32 %v1742, %v1743
  %v1745 = vand.u32 %v1744, 4294901760
  %1746 = vmatmul.f32.gmra.mxu0 %v1745
  %v1747 = vpop.f32.mrf.mxu0
  %v1748 = vadd.f32 0.0, %v1747
  %1749 = vdwg.mxu0
  %1750 = vmatpush.msra.mxu0 0.0
  %1751 = vmatpush.msra.mxu0 0.0
  %1752 = vmatpush.msra.mxu0 0.0
  %1753 = vmatpush.msra.mxu0 0.0
  %1754 = vmatpush.msra.mxu0 0.0
  %1755 = vmatpush.msra.mxu0 0.0
  %1756 = vmatpush.msra.mxu0 0.0
  %1757 = vmatpush.msra.mxu0 0.0
  %1758 = vmatpush.msra.mxu0 0.0
  %1759 = vmatpush.msra.mxu0 0.0
  %1760 = vmatpush.msra.mxu0 0.0
  %1761 = vmatpush.msra.mxu0 0.0
  %v1762 = vand.u32 %v227, 4294901760
  %v1763 = vsub.f32 %v227, %v1762
  %v1764 = vand.u32 %v1763, 4294901760
  %v1765 = vsub.f32 %v1763, %v1764
  %v1766 = vand.u32 %v1765, 4294901760
  %1767 = vmatpush.msra.mxu0 %v1766
  %v1768 = vand.u32 %v223, 4294901760
  %v1769 = vsub.f32 %v223, %v1768
  %v1770 = vand.u32 %v1769, 4294901760
  %v1771 = vsub.f32 %v1769, %v1770
  %v1772 = vand.u32 %v1771, 4294901760
  %1773 = vmatpush.msra.mxu0 %v1772
  %v1774 = vand.u32 %v219, 4294901760
  %v1775 = vsub.f32 %v219, %v1774
  %v1776 = vand.u32 %v1775, 4294901760
  %v1777 = vsub.f32 %v1775, %v1776
  %v1778 = vand.u32 %v1777, 4294901760
  %1779 = vmatpush.msra.mxu0 %v1778
  %v1780 = vand.u32 %v215, 4294901760
  %v1781 = vsub.f32 %v215, %v1780
  %v1782 = vand.u32 %v1781, 4294901760
  %v1783 = vsub.f32 %v1781, %v1782
  %v1784 = vand.u32 %v1783, 4294901760
  %1785 = vmatpush.msra.mxu0 %v1784
  %v1786 = vand.u32 %v232, 4294901760
  %1787 = vmatmul.f32.gmra.mxu0 %v1786
  %v1788 = vpop.f32.mrf.mxu0
  %v1789 = vadd.f32 %v1500, %v1788
  %v1790 = vand.u32 %v235, 4294901760
  %1791 = vmatmul.f32.gmra.mxu0 %v1790
  %v1792 = vpop.f32.mrf.mxu0
  %v1793 = vadd.f32 %v1508, %v1792
  %v1794 = vand.u32 %v238, 4294901760
  %1795 = vmatmul.f32.gmra.mxu0 %v1794
  %v1796 = vpop.f32.mrf.mxu0
  %v1797 = vadd.f32 %v1516, %v1796
  %v1798 = vand.u32 %v241, 4294901760
  %1799 = vmatmul.f32.gmra.mxu0 %v1798
  %v1800 = vpop.f32.mrf.mxu0
  %v1801 = vadd.f32 %v1524, %v1800
  %v1802 = vand.u32 %v244, 4294901760
  %1803 = vmatmul.f32.gmra.mxu0 %v1802
  %v1804 = vpop.f32.mrf.mxu0
  %v1805 = vadd.f32 %v1532, %v1804
  %v1806 = vand.u32 %v247, 4294901760
  %1807 = vmatmul.f32.gmra.mxu0 %v1806
  %v1808 = vpop.f32.mrf.mxu0
  %v1809 = vadd.f32 %v1540, %v1808
  %v1810 = vand.u32 %v250, 4294901760
  %1811 = vmatmul.f32.gmra.mxu0 %v1810
  %v1812 = vpop.f32.mrf.mxu0
  %v1813 = vadd.f32 %v1548, %v1812
  %v1814 = vand.u32 %v253, 4294901760
  %1815 = vmatmul.f32.gmra.mxu0 %v1814
  %v1816 = vpop.f32.mrf.mxu0
  %v1817 = vadd.f32 %v1556, %v1816
  %v1818 = vand.u32 %v256, 4294901760
  %1819 = vmatmul.f32.gmra.mxu0 %v1818
  %v1820 = vpop.f32.mrf.mxu0
  %v1821 = vadd.f32 %v1564, %v1820
  %v1822 = vand.u32 %v259, 4294901760
  %1823 = vmatmul.f32.gmra.mxu0 %v1822
  %v1824 = vpop.f32.mrf.mxu0
  %v1825 = vadd.f32 %v1572, %v1824
  %v1826 = vand.u32 %v262, 4294901760
  %1827 = vmatmul.f32.gmra.mxu0 %v1826
  %v1828 = vpop.f32.mrf.mxu0
  %v1829 = vadd.f32 %v1580, %v1828
  %v1830 = vand.u32 %v265, 4294901760
  %1831 = vmatmul.f32.gmra.mxu0 %v1830
  %v1832 = vpop.f32.mrf.mxu0
  %v1833 = vadd.f32 %v1588, %v1832
  %v1834 = vand.u32 %v268, 4294901760
  %1835 = vmatmul.f32.gmra.mxu0 %v1834
  %v1836 = vpop.f32.mrf.mxu0
  %v1837 = vadd.f32 %v1596, %v1836
  %v1838 = vand.u32 %v271, 4294901760
  %1839 = vmatmul.f32.gmra.mxu0 %v1838
  %v1840 = vpop.f32.mrf.mxu0
  %v1841 = vadd.f32 %v1604, %v1840
  %v1842 = vand.u32 %v274, 4294901760
  %1843 = vmatmul.f32.gmra.mxu0 %v1842
  %v1844 = vpop.f32.mrf.mxu0
  %v1845 = vadd.f32 %v1612, %v1844
  %v1846 = vand.u32 %v277, 4294901760
  %1847 = vmatmul.f32.gmra.mxu0 %v1846
  %v1848 = vpop.f32.mrf.mxu0
  %v1849 = vadd.f32 %v1620, %v1848
  %v1850 = vand.u32 %v280, 4294901760
  %1851 = vmatmul.f32.gmra.mxu0 %v1850
  %v1852 = vpop.f32.mrf.mxu0
  %v1853 = vadd.f32 %v1628, %v1852
  %v1854 = vand.u32 %v283, 4294901760
  %1855 = vmatmul.f32.gmra.mxu0 %v1854
  %v1856 = vpop.f32.mrf.mxu0
  %v1857 = vadd.f32 %v1636, %v1856
  %v1858 = vand.u32 %v286, 4294901760
  %1859 = vmatmul.f32.gmra.mxu0 %v1858
  %v1860 = vpop.f32.mrf.mxu0
  %v1861 = vadd.f32 %v1644, %v1860
  %v1862 = vand.u32 %v289, 4294901760
  %1863 = vmatmul.f32.gmra.mxu0 %v1862
  %v1864 = vpop.f32.mrf.mxu0
  %v1865 = vadd.f32 %v1652, %v1864
  %v1866 = vand.u32 %v292, 4294901760
  %1867 = vmatmul.f32.gmra.mxu0 %v1866
  %v1868 = vpop.f32.mrf.mxu0
  %v1869 = vadd.f32 %v1660, %v1868
  %v1870 = vand.u32 %v295, 4294901760
  %1871 = vmatmul.f32.gmra.mxu0 %v1870
  %v1872 = vpop.f32.mrf.mxu0
  %v1873 = vadd.f32 %v1668, %v1872
  %v1874 = vand.u32 %v298, 4294901760
  %1875 = vmatmul.f32.gmra.mxu0 %v1874
  %v1876 = vpop.f32.mrf.mxu0
  %v1877 = vadd.f32 %v1676, %v1876
  %v1878 = vand.u32 %v301, 4294901760
  %1879 = vmatmul.f32.gmra.mxu0 %v1878
  %v1880 = vpop.f32.mrf.mxu0
  %v1881 = vadd.f32 %v1684, %v1880
  %v1882 = vand.u32 %v304, 4294901760
  %1883 = vmatmul.f32.gmra.mxu0 %v1882
  %v1884 = vpop.f32.mrf.mxu0
  %v1885 = vadd.f32 %v1692, %v1884
  %v1886 = vand.u32 %v307, 4294901760
  %1887 = vmatmul.f32.gmra.mxu0 %v1886
  %v1888 = vpop.f32.mrf.mxu0
  %v1889 = vadd.f32 %v1700, %v1888
  %v1890 = vand.u32 %v310, 4294901760
  %1891 = vmatmul.f32.gmra.mxu0 %v1890
  %v1892 = vpop.f32.mrf.mxu0
  %v1893 = vadd.f32 %v1708, %v1892
  %v1894 = vand.u32 %v313, 4294901760
  %1895 = vmatmul.f32.gmra.mxu0 %v1894
  %v1896 = vpop.f32.mrf.mxu0
  %v1897 = vadd.f32 %v1716, %v1896
  %v1898 = vand.u32 %v316, 4294901760
  %1899 = vmatmul.f32.gmra.mxu0 %v1898
  %v1900 = vpop.f32.mrf.mxu0
  %v1901 = vadd.f32 %v1724, %v1900
  %v1902 = vand.u32 %v319, 4294901760
  %1903 = vmatmul.f32.gmra.mxu0 %v1902
  %v1904 = vpop.f32.mrf.mxu0
  %v1905 = vadd.f32 %v1732, %v1904
  %v1906 = vand.u32 %v322, 4294901760
  %1907 = vmatmul.f32.gmra.mxu0 %v1906
  %v1908 = vpop.f32.mrf.mxu0
  %v1909 = vadd.f32 %v1740, %v1908
  %v1910 = vand.u32 %v325, 4294901760
  %1911 = vmatmul.f32.gmra.mxu0 %v1910
  %v1912 = vpop.f32.mrf.mxu0
  %v1913 = vadd.f32 %v1748, %v1912
  %1914 = vdwg.mxu0
  %1915 = vmatpush.msra.mxu0 0.0
  %1916 = vmatpush.msra.mxu0 0.0
  %1917 = vmatpush.msra.mxu0 0.0
  %1918 = vmatpush.msra.mxu0 0.0
  %1919 = vmatpush.msra.mxu0 0.0
  %1920 = vmatpush.msra.mxu0 0.0
  %1921 = vmatpush.msra.mxu0 0.0
  %1922 = vmatpush.msra.mxu0 0.0
  %1923 = vmatpush.msra.mxu0 0.0
  %1924 = vmatpush.msra.mxu0 0.0
  %1925 = vmatpush.msra.mxu0 0.0
  %1926 = vmatpush.msra.mxu0 0.0
  %v1927 = vand.u32 %v227, 4294901760
  %v1928 = vsub.f32 %v227, %v1927
  %1929 = vmatpush.msra.mxu0 %v1928
  %v1930 = vand.u32 %v223, 4294901760
  %v1931 = vsub.f32 %v223, %v1930
  %1932 = vmatpush.msra.mxu0 %v1931
  %v1933 = vand.u32 %v219, 4294901760
  %v1934 = vsub.f32 %v219, %v1933
  %1935 = vmatpush.msra.mxu0 %v1934
  %v1936 = vand.u32 %v215, 4294901760
  %v1937 = vsub.f32 %v215, %v1936
  %1938 = vmatpush.msra.mxu0 %v1937
  %v1939 = vand.u32 %v232, 4294901760
  %v1940 = vsub.f32 %v232, %v1939
  %1941 = vmatmul.f32.gmra.mxu0 %v1940
  %v1942 = vpop.f32.mrf.mxu0
  %v1943 = vadd.f32 %v1789, %v1942
  %v1944 = vand.u32 %v235, 4294901760
  %v1945 = vsub.f32 %v235, %v1944
  %1946 = vmatmul.f32.gmra.mxu0 %v1945
  %v1947 = vpop.f32.mrf.mxu0
  %v1948 = vadd.f32 %v1793, %v1947
  %v1949 = vand.u32 %v238, 4294901760
  %v1950 = vsub.f32 %v238, %v1949
  %1951 = vmatmul.f32.gmra.mxu0 %v1950
  %v1952 = vpop.f32.mrf.mxu0
  %v1953 = vadd.f32 %v1797, %v1952
  %v1954 = vand.u32 %v241, 4294901760
  %v1955 = vsub.f32 %v241, %v1954
  %1956 = vmatmul.f32.gmra.mxu0 %v1955
  %v1957 = vpop.f32.mrf.mxu0
  %v1958 = vadd.f32 %v1801, %v1957
  %v1959 = vand.u32 %v244, 4294901760
  %v1960 = vsub.f32 %v244, %v1959
  %1961 = vmatmul.f32.gmra.mxu0 %v1960
  %v1962 = vpop.f32.mrf.mxu0
  %v1963 = vadd.f32 %v1805, %v1962
  %v1964 = vand.u32 %v247, 4294901760
  %v1965 = vsub.f32 %v247, %v1964
  %1966 = vmatmul.f32.gmra.mxu0 %v1965
  %v1967 = vpop.f32.mrf.mxu0
  %v1968 = vadd.f32 %v1809, %v1967
  %v1969 = vand.u32 %v250, 4294901760
  %v1970 = vsub.f32 %v250, %v1969
  %1971 = vmatmul.f32.gmra.mxu0 %v1970
  %v1972 = vpop.f32.mrf.mxu0
  %v1973 = vadd.f32 %v1813, %v1972
  %v1974 = vand.u32 %v253, 4294901760
  %v1975 = vsub.f32 %v253, %v1974
  %1976 = vmatmul.f32.gmra.mxu0 %v1975
  %v1977 = vpop.f32.mrf.mxu0
  %v1978 = vadd.f32 %v1817, %v1977
  %v1979 = vand.u32 %v256, 4294901760
  %v1980 = vsub.f32 %v256, %v1979
  %1981 = vmatmul.f32.gmra.mxu0 %v1980
  %v1982 = vpop.f32.mrf.mxu0
  %v1983 = vadd.f32 %v1821, %v1982
  %v1984 = vand.u32 %v259, 4294901760
  %v1985 = vsub.f32 %v259, %v1984
  %1986 = vmatmul.f32.gmra.mxu0 %v1985
  %v1987 = vpop.f32.mrf.mxu0
  %v1988 = vadd.f32 %v1825, %v1987
  %v1989 = vand.u32 %v262, 4294901760
  %v1990 = vsub.f32 %v262, %v1989
  %1991 = vmatmul.f32.gmra.mxu0 %v1990
  %v1992 = vpop.f32.mrf.mxu0
  %v1993 = vadd.f32 %v1829, %v1992
  %v1994 = vand.u32 %v265, 4294901760
  %v1995 = vsub.f32 %v265, %v1994
  %1996 = vmatmul.f32.gmra.mxu0 %v1995
  %v1997 = vpop.f32.mrf.mxu0
  %v1998 = vadd.f32 %v1833, %v1997
  %v1999 = vand.u32 %v268, 4294901760
  %v2000 = vsub.f32 %v268, %v1999
  %2001 = vmatmul.f32.gmra.mxu0 %v2000
  %v2002 = vpop.f32.mrf.mxu0
  %v2003 = vadd.f32 %v1837, %v2002
  %v2004 = vand.u32 %v271, 4294901760
  %v2005 = vsub.f32 %v271, %v2004
  %2006 = vmatmul.f32.gmra.mxu0 %v2005
  %v2007 = vpop.f32.mrf.mxu0
  %v2008 = vadd.f32 %v1841, %v2007
  %v2009 = vand.u32 %v274, 4294901760
  %v2010 = vsub.f32 %v274, %v2009
  %2011 = vmatmul.f32.gmra.mxu0 %v2010
  %v2012 = vpop.f32.mrf.mxu0
  %v2013 = vadd.f32 %v1845, %v2012
  %v2014 = vand.u32 %v277, 4294901760
  %v2015 = vsub.f32 %v277, %v2014
  %2016 = vmatmul.f32.gmra.mxu0 %v2015
  %v2017 = vpop.f32.mrf.mxu0
  %v2018 = vadd.f32 %v1849, %v2017
  %v2019 = vand.u32 %v280, 4294901760
  %v2020 = vsub.f32 %v280, %v2019
  %2021 = vmatmul.f32.gmra.mxu0 %v2020
  %v2022 = vpop.f32.mrf.mxu0
  %v2023 = vadd.f32 %v1853, %v2022
  %v2024 = vand.u32 %v283, 4294901760
  %v2025 = vsub.f32 %v283, %v2024
  %2026 = vmatmul.f32.gmra.mxu0 %v2025
  %v2027 = vpop.f32.mrf.mxu0
  %v2028 = vadd.f32 %v1857, %v2027
  %v2029 = vand.u32 %v286, 4294901760
  %v2030 = vsub.f32 %v286, %v2029
  %2031 = vmatmul.f32.gmra.mxu0 %v2030
  %v2032 = vpop.f32.mrf.mxu0
  %v2033 = vadd.f32 %v1861, %v2032
  %v2034 = vand.u32 %v289, 4294901760
  %v2035 = vsub.f32 %v289, %v2034
  %2036 = vmatmul.f32.gmra.mxu0 %v2035
  %v2037 = vpop.f32.mrf.mxu0
  %v2038 = vadd.f32 %v1865, %v2037
  %v2039 = vand.u32 %v292, 4294901760
  %v2040 = vsub.f32 %v292, %v2039
  %2041 = vmatmul.f32.gmra.mxu0 %v2040
  %v2042 = vpop.f32.mrf.mxu0
  %v2043 = vadd.f32 %v1869, %v2042
  %v2044 = vand.u32 %v295, 4294901760
  %v2045 = vsub.f32 %v295, %v2044
  %2046 = vmatmul.f32.gmra.mxu0 %v2045
  %v2047 = vpop.f32.mrf.mxu0
  %v2048 = vadd.f32 %v1873, %v2047
  %v2049 = vand.u32 %v298, 4294901760
  %v2050 = vsub.f32 %v298, %v2049
  %2051 = vmatmul.f32.gmra.mxu0 %v2050
  %v2052 = vpop.f32.mrf.mxu0
  %v2053 = vadd.f32 %v1877, %v2052
  %v2054 = vand.u32 %v301, 4294901760
  %v2055 = vsub.f32 %v301, %v2054
  %2056 = vmatmul.f32.gmra.mxu0 %v2055
  %v2057 = vpop.f32.mrf.mxu0
  %v2058 = vadd.f32 %v1881, %v2057
  %v2059 = vand.u32 %v304, 4294901760
  %v2060 = vsub.f32 %v304, %v2059
  %2061 = vmatmul.f32.gmra.mxu0 %v2060
  %v2062 = vpop.f32.mrf.mxu0
  %v2063 = vadd.f32 %v1885, %v2062
  %v2064 = vand.u32 %v307, 4294901760
  %v2065 = vsub.f32 %v307, %v2064
  %2066 = vmatmul.f32.gmra.mxu0 %v2065
  %v2067 = vpop.f32.mrf.mxu0
  %v2068 = vadd.f32 %v1889, %v2067
  %v2069 = vand.u32 %v310, 4294901760
  %v2070 = vsub.f32 %v310, %v2069
  %2071 = vmatmul.f32.gmra.mxu0 %v2070
  %v2072 = vpop.f32.mrf.mxu0
  %v2073 = vadd.f32 %v1893, %v2072
  %v2074 = vand.u32 %v313, 4294901760
  %v2075 = vsub.f32 %v313, %v2074
  %2076 = vmatmul.f32.gmra.mxu0 %v2075
  %v2077 = vpop.f32.mrf.mxu0
  %v2078 = vadd.f32 %v1897, %v2077
  %v2079 = vand.u32 %v316, 4294901760
  %v2080 = vsub.f32 %v316, %v2079
  %2081 = vmatmul.f32.gmra.mxu0 %v2080
  %v2082 = vpop.f32.mrf.mxu0
  %v2083 = vadd.f32 %v1901, %v2082
  %v2084 = vand.u32 %v319, 4294901760
  %v2085 = vsub.f32 %v319, %v2084
  %2086 = vmatmul.f32.gmra.mxu0 %v2085
  %v2087 = vpop.f32.mrf.mxu0
  %v2088 = vadd.f32 %v1905, %v2087
  %v2089 = vand.u32 %v322, 4294901760
  %v2090 = vsub.f32 %v322, %v2089
  %2091 = vmatmul.f32.gmra.mxu0 %v2090
  %v2092 = vpop.f32.mrf.mxu0
  %v2093 = vadd.f32 %v1909, %v2092
  %v2094 = vand.u32 %v325, 4294901760
  %v2095 = vsub.f32 %v325, %v2094
  %2096 = vmatmul.f32.gmra.mxu0 %v2095
  %v2097 = vpop.f32.mrf.mxu0
  %v2098 = vadd.f32 %v1913, %v2097
  %2099 = vdwg.mxu0
  %2100 = vmatpush.msra.mxu0 0.0
  %2101 = vmatpush.msra.mxu0 0.0
  %2102 = vmatpush.msra.mxu0 0.0
  %2103 = vmatpush.msra.mxu0 0.0
  %2104 = vmatpush.msra.mxu0 0.0
  %2105 = vmatpush.msra.mxu0 0.0
  %2106 = vmatpush.msra.mxu0 0.0
  %2107 = vmatpush.msra.mxu0 0.0
  %2108 = vmatpush.msra.mxu0 0.0
  %2109 = vmatpush.msra.mxu0 0.0
  %2110 = vmatpush.msra.mxu0 0.0
  %2111 = vmatpush.msra.mxu0 0.0
  %v2112 = vand.u32 %v227, 4294901760
  %2113 = vmatpush.msra.mxu0 %v2112
  %v2114 = vand.u32 %v223, 4294901760
  %2115 = vmatpush.msra.mxu0 %v2114
  %v2116 = vand.u32 %v219, 4294901760
  %2117 = vmatpush.msra.mxu0 %v2116
  %v2118 = vand.u32 %v215, 4294901760
  %2119 = vmatpush.msra.mxu0 %v2118
  %v2120 = vand.u32 %v232, 4294901760
  %v2121 = vsub.f32 %v232, %v2120
  %v2122 = vand.u32 %v2121, 4294901760
  %2123 = vmatmul.f32.gmra.mxu0 %v2122
  %v2124 = vpop.f32.mrf.mxu0
  %v2125 = vadd.f32 %v1943, %v2124
  %v2126 = vand.u32 %v235, 4294901760
  %v2127 = vsub.f32 %v235, %v2126
  %v2128 = vand.u32 %v2127, 4294901760
  %2129 = vmatmul.f32.gmra.mxu0 %v2128
  %v2130 = vpop.f32.mrf.mxu0
  %v2131 = vadd.f32 %v1948, %v2130
  %v2132 = vand.u32 %v238, 4294901760
  %v2133 = vsub.f32 %v238, %v2132
  %v2134 = vand.u32 %v2133, 4294901760
  %2135 = vmatmul.f32.gmra.mxu0 %v2134
  %v2136 = vpop.f32.mrf.mxu0
  %v2137 = vadd.f32 %v1953, %v2136
  %v2138 = vand.u32 %v241, 4294901760
  %v2139 = vsub.f32 %v241, %v2138
  %v2140 = vand.u32 %v2139, 4294901760
  %2141 = vmatmul.f32.gmra.mxu0 %v2140
  %v2142 = vpop.f32.mrf.mxu0
  %v2143 = vadd.f32 %v1958, %v2142
  %v2144 = vand.u32 %v244, 4294901760
  %v2145 = vsub.f32 %v244, %v2144
  %v2146 = vand.u32 %v2145, 4294901760
  %2147 = vmatmul.f32.gmra.mxu0 %v2146
  %v2148 = vpop.f32.mrf.mxu0
  %v2149 = vadd.f32 %v1963, %v2148
  %v2150 = vand.u32 %v247, 4294901760
  %v2151 = vsub.f32 %v247, %v2150
  %v2152 = vand.u32 %v2151, 4294901760
  %2153 = vmatmul.f32.gmra.mxu0 %v2152
  %v2154 = vpop.f32.mrf.mxu0
  %v2155 = vadd.f32 %v1968, %v2154
  %v2156 = vand.u32 %v250, 4294901760
  %v2157 = vsub.f32 %v250, %v2156
  %v2158 = vand.u32 %v2157, 4294901760
  %2159 = vmatmul.f32.gmra.mxu0 %v2158
  %v2160 = vpop.f32.mrf.mxu0
  %v2161 = vadd.f32 %v1973, %v2160
  %v2162 = vand.u32 %v253, 4294901760
  %v2163 = vsub.f32 %v253, %v2162
  %v2164 = vand.u32 %v2163, 4294901760
  %2165 = vmatmul.f32.gmra.mxu0 %v2164
  %v2166 = vpop.f32.mrf.mxu0
  %v2167 = vadd.f32 %v1978, %v2166
  %v2168 = vand.u32 %v256, 4294901760
  %v2169 = vsub.f32 %v256, %v2168
  %v2170 = vand.u32 %v2169, 4294901760
  %2171 = vmatmul.f32.gmra.mxu0 %v2170
  %v2172 = vpop.f32.mrf.mxu0
  %v2173 = vadd.f32 %v1983, %v2172
  %v2174 = vand.u32 %v259, 4294901760
  %v2175 = vsub.f32 %v259, %v2174
  %v2176 = vand.u32 %v2175, 4294901760
  %2177 = vmatmul.f32.gmra.mxu0 %v2176
  %v2178 = vpop.f32.mrf.mxu0
  %v2179 = vadd.f32 %v1988, %v2178
  %v2180 = vand.u32 %v262, 4294901760
  %v2181 = vsub.f32 %v262, %v2180
  %v2182 = vand.u32 %v2181, 4294901760
  %2183 = vmatmul.f32.gmra.mxu0 %v2182
  %v2184 = vpop.f32.mrf.mxu0
  %v2185 = vadd.f32 %v1993, %v2184
  %v2186 = vand.u32 %v265, 4294901760
  %v2187 = vsub.f32 %v265, %v2186
  %v2188 = vand.u32 %v2187, 4294901760
  %2189 = vmatmul.f32.gmra.mxu0 %v2188
  %v2190 = vpop.f32.mrf.mxu0
  %v2191 = vadd.f32 %v1998, %v2190
  %v2192 = vand.u32 %v268, 4294901760
  %v2193 = vsub.f32 %v268, %v2192
  %v2194 = vand.u32 %v2193, 4294901760
  %2195 = vmatmul.f32.gmra.mxu0 %v2194
  %v2196 = vpop.f32.mrf.mxu0
  %v2197 = vadd.f32 %v2003, %v2196
  %v2198 = vand.u32 %v271, 4294901760
  %v2199 = vsub.f32 %v271, %v2198
  %v2200 = vand.u32 %v2199, 4294901760
  %2201 = vmatmul.f32.gmra.mxu0 %v2200
  %v2202 = vpop.f32.mrf.mxu0
  %v2203 = vadd.f32 %v2008, %v2202
  %v2204 = vand.u32 %v274, 4294901760
  %v2205 = vsub.f32 %v274, %v2204
  %v2206 = vand.u32 %v2205, 4294901760
  %2207 = vmatmul.f32.gmra.mxu0 %v2206
  %v2208 = vpop.f32.mrf.mxu0
  %v2209 = vadd.f32 %v2013, %v2208
  %v2210 = vand.u32 %v277, 4294901760
  %v2211 = vsub.f32 %v277, %v2210
  %v2212 = vand.u32 %v2211, 4294901760
  %2213 = vmatmul.f32.gmra.mxu0 %v2212
  %v2214 = vpop.f32.mrf.mxu0
  %v2215 = vadd.f32 %v2018, %v2214
  %v2216 = vand.u32 %v280, 4294901760
  %v2217 = vsub.f32 %v280, %v2216
  %v2218 = vand.u32 %v2217, 4294901760
  %2219 = vmatmul.f32.gmra.mxu0 %v2218
  %v2220 = vpop.f32.mrf.mxu0
  %v2221 = vadd.f32 %v2023, %v2220
  %v2222 = vand.u32 %v283, 4294901760
  %v2223 = vsub.f32 %v283, %v2222
  %v2224 = vand.u32 %v2223, 4294901760
  %2225 = vmatmul.f32.gmra.mxu0 %v2224
  %v2226 = vpop.f32.mrf.mxu0
  %v2227 = vadd.f32 %v2028, %v2226
  %v2228 = vand.u32 %v286, 4294901760
  %v2229 = vsub.f32 %v286, %v2228
  %v2230 = vand.u32 %v2229, 4294901760
  %2231 = vmatmul.f32.gmra.mxu0 %v2230
  %v2232 = vpop.f32.mrf.mxu0
  %v2233 = vadd.f32 %v2033, %v2232
  %v2234 = vand.u32 %v289, 4294901760
  %v2235 = vsub.f32 %v289, %v2234
  %v2236 = vand.u32 %v2235, 4294901760
  %2237 = vmatmul.f32.gmra.mxu0 %v2236
  %v2238 = vpop.f32.mrf.mxu0
  %v2239 = vadd.f32 %v2038, %v2238
  %v2240 = vand.u32 %v292, 4294901760
  %v2241 = vsub.f32 %v292, %v2240
  %v2242 = vand.u32 %v2241, 4294901760
  %2243 = vmatmul.f32.gmra.mxu0 %v2242
  %v2244 = vpop.f32.mrf.mxu0
  %v2245 = vadd.f32 %v2043, %v2244
  %v2246 = vand.u32 %v295, 4294901760
  %v2247 = vsub.f32 %v295, %v2246
  %v2248 = vand.u32 %v2247, 4294901760
  %2249 = vmatmul.f32.gmra.mxu0 %v2248
  %v2250 = vpop.f32.mrf.mxu0
  %v2251 = vadd.f32 %v2048, %v2250
  %v2252 = vand.u32 %v298, 4294901760
  %v2253 = vsub.f32 %v298, %v2252
  %v2254 = vand.u32 %v2253, 4294901760
  %2255 = vmatmul.f32.gmra.mxu0 %v2254
  %v2256 = vpop.f32.mrf.mxu0
  %v2257 = vadd.f32 %v2053, %v2256
  %v2258 = vand.u32 %v301, 4294901760
  %v2259 = vsub.f32 %v301, %v2258
  %v2260 = vand.u32 %v2259, 4294901760
  %2261 = vmatmul.f32.gmra.mxu0 %v2260
  %v2262 = vpop.f32.mrf.mxu0
  %v2263 = vadd.f32 %v2058, %v2262
  %v2264 = vand.u32 %v304, 4294901760
  %v2265 = vsub.f32 %v304, %v2264
  %v2266 = vand.u32 %v2265, 4294901760
  %2267 = vmatmul.f32.gmra.mxu0 %v2266
  %v2268 = vpop.f32.mrf.mxu0
  %v2269 = vadd.f32 %v2063, %v2268
  %v2270 = vand.u32 %v307, 4294901760
  %v2271 = vsub.f32 %v307, %v2270
  %v2272 = vand.u32 %v2271, 4294901760
  %2273 = vmatmul.f32.gmra.mxu0 %v2272
  %v2274 = vpop.f32.mrf.mxu0
  %v2275 = vadd.f32 %v2068, %v2274
  %v2276 = vand.u32 %v310, 4294901760
  %v2277 = vsub.f32 %v310, %v2276
  %v2278 = vand.u32 %v2277, 4294901760
  %2279 = vmatmul.f32.gmra.mxu0 %v2278
  %v2280 = vpop.f32.mrf.mxu0
  %v2281 = vadd.f32 %v2073, %v2280
  %v2282 = vand.u32 %v313, 4294901760
  %v2283 = vsub.f32 %v313, %v2282
  %v2284 = vand.u32 %v2283, 4294901760
  %2285 = vmatmul.f32.gmra.mxu0 %v2284
  %v2286 = vpop.f32.mrf.mxu0
  %v2287 = vadd.f32 %v2078, %v2286
  %v2288 = vand.u32 %v316, 4294901760
  %v2289 = vsub.f32 %v316, %v2288
  %v2290 = vand.u32 %v2289, 4294901760
  %2291 = vmatmul.f32.gmra.mxu0 %v2290
  %v2292 = vpop.f32.mrf.mxu0
  %v2293 = vadd.f32 %v2083, %v2292
  %v2294 = vand.u32 %v319, 4294901760
  %v2295 = vsub.f32 %v319, %v2294
  %v2296 = vand.u32 %v2295, 4294901760
  %2297 = vmatmul.f32.gmra.mxu0 %v2296
  %v2298 = vpop.f32.mrf.mxu0
  %v2299 = vadd.f32 %v2088, %v2298
  %v2300 = vand.u32 %v322, 4294901760
  %v2301 = vsub.f32 %v322, %v2300
  %v2302 = vand.u32 %v2301, 4294901760
  %2303 = vmatmul.f32.gmra.mxu0 %v2302
  %v2304 = vpop.f32.mrf.mxu0
  %v2305 = vadd.f32 %v2093, %v2304
  %v2306 = vand.u32 %v325, 4294901760
  %v2307 = vsub.f32 %v325, %v2306
  %v2308 = vand.u32 %v2307, 4294901760
  %2309 = vmatmul.f32.gmra.mxu0 %v2308
  %v2310 = vpop.f32.mrf.mxu0
  %v2311 = vadd.f32 %v2098, %v2310
  %2312 = vdwg.mxu0
  %2313 = vmatpush.msra.mxu0 0.0
  %2314 = vmatpush.msra.mxu0 0.0
  %2315 = vmatpush.msra.mxu0 0.0
  %2316 = vmatpush.msra.mxu0 0.0
  %2317 = vmatpush.msra.mxu0 0.0
  %2318 = vmatpush.msra.mxu0 0.0
  %2319 = vmatpush.msra.mxu0 0.0
  %2320 = vmatpush.msra.mxu0 0.0
  %2321 = vmatpush.msra.mxu0 0.0
  %2322 = vmatpush.msra.mxu0 0.0
  %2323 = vmatpush.msra.mxu0 0.0
  %2324 = vmatpush.msra.mxu0 0.0
  %v2325 = vand.u32 %v227, 4294901760
  %v2326 = vsub.f32 %v227, %v2325
  %v2327 = vand.u32 %v2326, 4294901760
  %2328 = vmatpush.msra.mxu0 %v2327
  %v2329 = vand.u32 %v223, 4294901760
  %v2330 = vsub.f32 %v223, %v2329
  %v2331 = vand.u32 %v2330, 4294901760
  %2332 = vmatpush.msra.mxu0 %v2331
  %v2333 = vand.u32 %v219, 4294901760
  %v2334 = vsub.f32 %v219, %v2333
  %v2335 = vand.u32 %v2334, 4294901760
  %2336 = vmatpush.msra.mxu0 %v2335
  %v2337 = vand.u32 %v215, 4294901760
  %v2338 = vsub.f32 %v215, %v2337
  %v2339 = vand.u32 %v2338, 4294901760
  %2340 = vmatpush.msra.mxu0 %v2339
  %v2341 = vand.u32 %v232, 4294901760
  %2342 = vmatmul.f32.gmra.mxu0 %v2341
  %v2343 = vpop.f32.mrf.mxu0
  %v2344 = vadd.f32 %v2125, %v2343
  %v2345 = vand.u32 %v235, 4294901760
  %2346 = vmatmul.f32.gmra.mxu0 %v2345
  %v2347 = vpop.f32.mrf.mxu0
  %v2348 = vadd.f32 %v2131, %v2347
  %v2349 = vand.u32 %v238, 4294901760
  %2350 = vmatmul.f32.gmra.mxu0 %v2349
  %v2351 = vpop.f32.mrf.mxu0
  %v2352 = vadd.f32 %v2137, %v2351
  %v2353 = vand.u32 %v241, 4294901760
  %2354 = vmatmul.f32.gmra.mxu0 %v2353
  %v2355 = vpop.f32.mrf.mxu0
  %v2356 = vadd.f32 %v2143, %v2355
  %v2357 = vand.u32 %v244, 4294901760
  %2358 = vmatmul.f32.gmra.mxu0 %v2357
  %v2359 = vpop.f32.mrf.mxu0
  %v2360 = vadd.f32 %v2149, %v2359
  %v2361 = vand.u32 %v247, 4294901760
  %2362 = vmatmul.f32.gmra.mxu0 %v2361
  %v2363 = vpop.f32.mrf.mxu0
  %v2364 = vadd.f32 %v2155, %v2363
  %v2365 = vand.u32 %v250, 4294901760
  %2366 = vmatmul.f32.gmra.mxu0 %v2365
  %v2367 = vpop.f32.mrf.mxu0
  %v2368 = vadd.f32 %v2161, %v2367
  %v2369 = vand.u32 %v253, 4294901760
  %2370 = vmatmul.f32.gmra.mxu0 %v2369
  %v2371 = vpop.f32.mrf.mxu0
  %v2372 = vadd.f32 %v2167, %v2371
  %v2373 = vand.u32 %v256, 4294901760
  %2374 = vmatmul.f32.gmra.mxu0 %v2373
  %v2375 = vpop.f32.mrf.mxu0
  %v2376 = vadd.f32 %v2173, %v2375
  %v2377 = vand.u32 %v259, 4294901760
  %2378 = vmatmul.f32.gmra.mxu0 %v2377
  %v2379 = vpop.f32.mrf.mxu0
  %v2380 = vadd.f32 %v2179, %v2379
  %v2381 = vand.u32 %v262, 4294901760
  %2382 = vmatmul.f32.gmra.mxu0 %v2381
  %v2383 = vpop.f32.mrf.mxu0
  %v2384 = vadd.f32 %v2185, %v2383
  %v2385 = vand.u32 %v265, 4294901760
  %2386 = vmatmul.f32.gmra.mxu0 %v2385
  %v2387 = vpop.f32.mrf.mxu0
  %v2388 = vadd.f32 %v2191, %v2387
  %v2389 = vand.u32 %v268, 4294901760
  %2390 = vmatmul.f32.gmra.mxu0 %v2389
  %v2391 = vpop.f32.mrf.mxu0
  %v2392 = vadd.f32 %v2197, %v2391
  %v2393 = vand.u32 %v271, 4294901760
  %2394 = vmatmul.f32.gmra.mxu0 %v2393
  %v2395 = vpop.f32.mrf.mxu0
  %v2396 = vadd.f32 %v2203, %v2395
  %v2397 = vand.u32 %v274, 4294901760
  %2398 = vmatmul.f32.gmra.mxu0 %v2397
  %v2399 = vpop.f32.mrf.mxu0
  %v2400 = vadd.f32 %v2209, %v2399
  %v2401 = vand.u32 %v277, 4294901760
  %2402 = vmatmul.f32.gmra.mxu0 %v2401
  %v2403 = vpop.f32.mrf.mxu0
  %v2404 = vadd.f32 %v2215, %v2403
  %v2405 = vand.u32 %v280, 4294901760
  %2406 = vmatmul.f32.gmra.mxu0 %v2405
  %v2407 = vpop.f32.mrf.mxu0
  %v2408 = vadd.f32 %v2221, %v2407
  %v2409 = vand.u32 %v283, 4294901760
  %2410 = vmatmul.f32.gmra.mxu0 %v2409
  %v2411 = vpop.f32.mrf.mxu0
  %v2412 = vadd.f32 %v2227, %v2411
  %v2413 = vand.u32 %v286, 4294901760
  %2414 = vmatmul.f32.gmra.mxu0 %v2413
  %v2415 = vpop.f32.mrf.mxu0
  %v2416 = vadd.f32 %v2233, %v2415
  %v2417 = vand.u32 %v289, 4294901760
  %2418 = vmatmul.f32.gmra.mxu0 %v2417
  %v2419 = vpop.f32.mrf.mxu0
  %v2420 = vadd.f32 %v2239, %v2419
  %v2421 = vand.u32 %v292, 4294901760
  %2422 = vmatmul.f32.gmra.mxu0 %v2421
  %v2423 = vpop.f32.mrf.mxu0
  %v2424 = vadd.f32 %v2245, %v2423
  %v2425 = vand.u32 %v295, 4294901760
  %2426 = vmatmul.f32.gmra.mxu0 %v2425
  %v2427 = vpop.f32.mrf.mxu0
  %v2428 = vadd.f32 %v2251, %v2427
  %v2429 = vand.u32 %v298, 4294901760
  %2430 = vmatmul.f32.gmra.mxu0 %v2429
  %v2431 = vpop.f32.mrf.mxu0
  %v2432 = vadd.f32 %v2257, %v2431
  %v2433 = vand.u32 %v301, 4294901760
  %2434 = vmatmul.f32.gmra.mxu0 %v2433
  %v2435 = vpop.f32.mrf.mxu0
  %v2436 = vadd.f32 %v2263, %v2435
  %v2437 = vand.u32 %v304, 4294901760
  %2438 = vmatmul.f32.gmra.mxu0 %v2437
  %v2439 = vpop.f32.mrf.mxu0
  %v2440 = vadd.f32 %v2269, %v2439
  %v2441 = vand.u32 %v307, 4294901760
  %2442 = vmatmul.f32.gmra.mxu0 %v2441
  %v2443 = vpop.f32.mrf.mxu0
  %v2444 = vadd.f32 %v2275, %v2443
  %v2445 = vand.u32 %v310, 4294901760
  %2446 = vmatmul.f32.gmra.mxu0 %v2445
  %v2447 = vpop.f32.mrf.mxu0
  %v2448 = vadd.f32 %v2281, %v2447
  %v2449 = vand.u32 %v313, 4294901760
  %2450 = vmatmul.f32.gmra.mxu0 %v2449
  %v2451 = vpop.f32.mrf.mxu0
  %v2452 = vadd.f32 %v2287, %v2451
  %v2453 = vand.u32 %v316, 4294901760
  %2454 = vmatmul.f32.gmra.mxu0 %v2453
  %v2455 = vpop.f32.mrf.mxu0
  %v2456 = vadd.f32 %v2293, %v2455
  %v2457 = vand.u32 %v319, 4294901760
  %2458 = vmatmul.f32.gmra.mxu0 %v2457
  %v2459 = vpop.f32.mrf.mxu0
  %v2460 = vadd.f32 %v2299, %v2459
  %v2461 = vand.u32 %v322, 4294901760
  %2462 = vmatmul.f32.gmra.mxu0 %v2461
  %v2463 = vpop.f32.mrf.mxu0
  %v2464 = vadd.f32 %v2305, %v2463
  %v2465 = vand.u32 %v325, 4294901760
  %2466 = vmatmul.f32.gmra.mxu0 %v2465
  %v2467 = vpop.f32.mrf.mxu0
  %v2468 = vadd.f32 %v2311, %v2467
  %2469 = vdwg.mxu0
  %2470 = vmatpush.msra.mxu0 0.0
  %2471 = vmatpush.msra.mxu0 0.0
  %2472 = vmatpush.msra.mxu0 0.0
  %2473 = vmatpush.msra.mxu0 0.0
  %2474 = vmatpush.msra.mxu0 0.0
  %2475 = vmatpush.msra.mxu0 0.0
  %2476 = vmatpush.msra.mxu0 0.0
  %2477 = vmatpush.msra.mxu0 0.0
  %2478 = vmatpush.msra.mxu0 0.0
  %2479 = vmatpush.msra.mxu0 0.0
  %2480 = vmatpush.msra.mxu0 0.0
  %2481 = vmatpush.msra.mxu0 0.0
  %v2482 = vand.u32 %v227, 4294901760
  %2483 = vmatpush.msra.mxu0 %v2482
  %v2484 = vand.u32 %v223, 4294901760
  %2485 = vmatpush.msra.mxu0 %v2484
  %v2486 = vand.u32 %v219, 4294901760
  %2487 = vmatpush.msra.mxu0 %v2486
  %v2488 = vand.u32 %v215, 4294901760
  %2489 = vmatpush.msra.mxu0 %v2488
  %v2490 = vand.u32 %v232, 4294901760
  %2491 = vmatmul.f32.gmra.mxu0 %v2490
  %v2492 = vpop.f32.mrf.mxu0
  %v2493 = vadd.f32 %v2344, %v2492
  %v2494 = vand.u32 %v235, 4294901760
  %2495 = vmatmul.f32.gmra.mxu0 %v2494
  %v2496 = vpop.f32.mrf.mxu0
  %v2497 = vadd.f32 %v2348, %v2496
  %v2498 = vand.u32 %v238, 4294901760
  %2499 = vmatmul.f32.gmra.mxu0 %v2498
  %v2500 = vpop.f32.mrf.mxu0
  %v2501 = vadd.f32 %v2352, %v2500
  %v2502 = vand.u32 %v241, 4294901760
  %2503 = vmatmul.f32.gmra.mxu0 %v2502
  %v2504 = vpop.f32.mrf.mxu0
  %v2505 = vadd.f32 %v2356, %v2504
  %v2506 = vand.u32 %v244, 4294901760
  %2507 = vmatmul.f32.gmra.mxu0 %v2506
  %v2508 = vpop.f32.mrf.mxu0
  %v2509 = vadd.f32 %v2360, %v2508
  %v2510 = vand.u32 %v247, 4294901760
  %2511 = vmatmul.f32.gmra.mxu0 %v2510
  %v2512 = vpop.f32.mrf.mxu0
  %v2513 = vadd.f32 %v2364, %v2512
  %v2514 = vand.u32 %v250, 4294901760
  %2515 = vmatmul.f32.gmra.mxu0 %v2514
  %v2516 = vpop.f32.mrf.mxu0
  %v2517 = vadd.f32 %v2368, %v2516
  %v2518 = vand.u32 %v253, 4294901760
  %2519 = vmatmul.f32.gmra.mxu0 %v2518
  %v2520 = vpop.f32.mrf.mxu0
  %v2521 = vadd.f32 %v2372, %v2520
  %v2522 = vand.u32 %v256, 4294901760
  %2523 = vmatmul.f32.gmra.mxu0 %v2522
  %v2524 = vpop.f32.mrf.mxu0
  %v2525 = vadd.f32 %v2376, %v2524
  %v2526 = vand.u32 %v259, 4294901760
  %2527 = vmatmul.f32.gmra.mxu0 %v2526
  %v2528 = vpop.f32.mrf.mxu0
  %v2529 = vadd.f32 %v2380, %v2528
  %v2530 = vand.u32 %v262, 4294901760
  %2531 = vmatmul.f32.gmra.mxu0 %v2530
  %v2532 = vpop.f32.mrf.mxu0
  %v2533 = vadd.f32 %v2384, %v2532
  %v2534 = vand.u32 %v265, 4294901760
  %2535 = vmatmul.f32.gmra.mxu0 %v2534
  %v2536 = vpop.f32.mrf.mxu0
  %v2537 = vadd.f32 %v2388, %v2536
  %v2538 = vand.u32 %v268, 4294901760
  %2539 = vmatmul.f32.gmra.mxu0 %v2538
  %v2540 = vpop.f32.mrf.mxu0
  %v2541 = vadd.f32 %v2392, %v2540
  %v2542 = vand.u32 %v271, 4294901760
  %2543 = vmatmul.f32.gmra.mxu0 %v2542
  %v2544 = vpop.f32.mrf.mxu0
  %v2545 = vadd.f32 %v2396, %v2544
  %v2546 = vand.u32 %v274, 4294901760
  %2547 = vmatmul.f32.gmra.mxu0 %v2546
  %v2548 = vpop.f32.mrf.mxu0
  %v2549 = vadd.f32 %v2400, %v2548
  %v2550 = vand.u32 %v277, 4294901760
  %2551 = vmatmul.f32.gmra.mxu0 %v2550
  %v2552 = vpop.f32.mrf.mxu0
  %v2553 = vadd.f32 %v2404, %v2552
  %v2554 = vand.u32 %v280, 4294901760
  %2555 = vmatmul.f32.gmra.mxu0 %v2554
  %v2556 = vpop.f32.mrf.mxu0
  %v2557 = vadd.f32 %v2408, %v2556
  %v2558 = vand.u32 %v283, 4294901760
  %2559 = vmatmul.f32.gmra.mxu0 %v2558
  %v2560 = vpop.f32.mrf.mxu0
  %v2561 = vadd.f32 %v2412, %v2560
  %v2562 = vand.u32 %v286, 4294901760
  %2563 = vmatmul.f32.gmra.mxu0 %v2562
  %v2564 = vpop.f32.mrf.mxu0
  %v2565 = vadd.f32 %v2416, %v2564
  %v2566 = vand.u32 %v289, 4294901760
  %2567 = vmatmul.f32.gmra.mxu0 %v2566
  %v2568 = vpop.f32.mrf.mxu0
  %v2569 = vadd.f32 %v2420, %v2568
  %v2570 = vand.u32 %v292, 4294901760
  %2571 = vmatmul.f32.gmra.mxu0 %v2570
  %v2572 = vpop.f32.mrf.mxu0
  %v2573 = vadd.f32 %v2424, %v2572
  %v2574 = vand.u32 %v295, 4294901760
  %2575 = vmatmul.f32.gmra.mxu0 %v2574
  %v2576 = vpop.f32.mrf.mxu0
  %v2577 = vadd.f32 %v2428, %v2576
  %v2578 = vand.u32 %v298, 4294901760
  %2579 = vmatmul.f32.gmra.mxu0 %v2578
  %v2580 = vpop.f32.mrf.mxu0
  %v2581 = vadd.f32 %v2432, %v2580
  %v2582 = vand.u32 %v301, 4294901760
  %2583 = vmatmul.f32.gmra.mxu0 %v2582
  %v2584 = vpop.f32.mrf.mxu0
  %v2585 = vadd.f32 %v2436, %v2584
  %v2586 = vand.u32 %v304, 4294901760
  %2587 = vmatmul.f32.gmra.mxu0 %v2586
  %v2588 = vpop.f32.mrf.mxu0
  %v2589 = vadd.f32 %v2440, %v2588
  %v2590 = vand.u32 %v307, 4294901760
  %2591 = vmatmul.f32.gmra.mxu0 %v2590
  %v2592 = vpop.f32.mrf.mxu0
  %v2593 = vadd.f32 %v2444, %v2592
  %v2594 = vand.u32 %v310, 4294901760
  %2595 = vmatmul.f32.gmra.mxu0 %v2594
  %v2596 = vpop.f32.mrf.mxu0
  %v2597 = vadd.f32 %v2448, %v2596
  %v2598 = vand.u32 %v313, 4294901760
  %2599 = vmatmul.f32.gmra.mxu0 %v2598
  %v2600 = vpop.f32.mrf.mxu0
  %v2601 = vadd.f32 %v2452, %v2600
  %v2602 = vand.u32 %v316, 4294901760
  %2603 = vmatmul.f32.gmra.mxu0 %v2602
  %v2604 = vpop.f32.mrf.mxu0
  %v2605 = vadd.f32 %v2456, %v2604
  %v2606 = vand.u32 %v319, 4294901760
  %2607 = vmatmul.f32.gmra.mxu0 %v2606
  %v2608 = vpop.f32.mrf.mxu0
  %v2609 = vadd.f32 %v2460, %v2608
  %v2610 = vand.u32 %v322, 4294901760
  %2611 = vmatmul.f32.gmra.mxu0 %v2610
  %v2612 = vpop.f32.mrf.mxu0
  %v2613 = vadd.f32 %v2464, %v2612
  %v2614 = vand.u32 %v325, 4294901760
  %2615 = vmatmul.f32.gmra.mxu0 %v2614
  %v2616 = vpop.f32.mrf.mxu0
  %v2617 = vadd.f32 %v2468, %v2616
  %2618 = vdwg.mxu0
  %2619 = vmatpush.msra.mxu0 0.0
  %2620 = vmatpush.msra.mxu0 0.0
  %2621 = vmatpush.msra.mxu0 0.0
  %2622 = vmatpush.msra.mxu0 0.0
  %2623 = vmatpush.msra.mxu0 0.0
  %2624 = vmatpush.msra.mxu0 0.0
  %2625 = vmatpush.msra.mxu0 0.0
  %2626 = vmatpush.msra.mxu0 0.0
  %2627 = vmatpush.msra.mxu0 0.0
  %2628 = vmatpush.msra.mxu0 0.0
  %2629 = vmatpush.msra.mxu0 0.0
  %2630 = vmatpush.msra.mxu0 0.0
  %v2631 = vand.u32 %v228, 4294901760
  %2632 = vmatpush.msra.mxu0 %v2631
  %v2633 = vand.u32 %v224, 4294901760
  %2634 = vmatpush.msra.mxu0 %v2633
  %v2635 = vand.u32 %v220, 4294901760
  %2636 = vmatpush.msra.mxu0 %v2635
  %v2637 = vand.u32 %v216, 4294901760
  %2638 = vmatpush.msra.mxu0 %v2637
  %v2639 = vand.u32 %v232, 4294901760
  %v2640 = vsub.f32 %v232, %v2639
  %v2641 = vand.u32 %v2640, 4294901760
  %v2642 = vsub.f32 %v2640, %v2641
  %v2643 = vand.u32 %v2642, 4294901760
  %2644 = vmatmul.f32.gmra.mxu0 %v2643
  %v2645 = vpop.f32.mrf.mxu0
  %v2646 = vadd.f32 0.0, %v2645
  %v2647 = vand.u32 %v235, 4294901760
  %v2648 = vsub.f32 %v235, %v2647
  %v2649 = vand.u32 %v2648, 4294901760
  %v2650 = vsub.f32 %v2648, %v2649
  %v2651 = vand.u32 %v2650, 4294901760
  %2652 = vmatmul.f32.gmra.mxu0 %v2651
  %v2653 = vpop.f32.mrf.mxu0
  %v2654 = vadd.f32 0.0, %v2653
  %v2655 = vand.u32 %v238, 4294901760
  %v2656 = vsub.f32 %v238, %v2655
  %v2657 = vand.u32 %v2656, 4294901760
  %v2658 = vsub.f32 %v2656, %v2657
  %v2659 = vand.u32 %v2658, 4294901760
  %2660 = vmatmul.f32.gmra.mxu0 %v2659
  %v2661 = vpop.f32.mrf.mxu0
  %v2662 = vadd.f32 0.0, %v2661
  %v2663 = vand.u32 %v241, 4294901760
  %v2664 = vsub.f32 %v241, %v2663
  %v2665 = vand.u32 %v2664, 4294901760
  %v2666 = vsub.f32 %v2664, %v2665
  %v2667 = vand.u32 %v2666, 4294901760
  %2668 = vmatmul.f32.gmra.mxu0 %v2667
  %v2669 = vpop.f32.mrf.mxu0
  %v2670 = vadd.f32 0.0, %v2669
  %v2671 = vand.u32 %v244, 4294901760
  %v2672 = vsub.f32 %v244, %v2671
  %v2673 = vand.u32 %v2672, 4294901760
  %v2674 = vsub.f32 %v2672, %v2673
  %v2675 = vand.u32 %v2674, 4294901760
  %2676 = vmatmul.f32.gmra.mxu0 %v2675
  %v2677 = vpop.f32.mrf.mxu0
  %v2678 = vadd.f32 0.0, %v2677
  %v2679 = vand.u32 %v247, 4294901760
  %v2680 = vsub.f32 %v247, %v2679
  %v2681 = vand.u32 %v2680, 4294901760
  %v2682 = vsub.f32 %v2680, %v2681
  %v2683 = vand.u32 %v2682, 4294901760
  %2684 = vmatmul.f32.gmra.mxu0 %v2683
  %v2685 = vpop.f32.mrf.mxu0
  %v2686 = vadd.f32 0.0, %v2685
  %v2687 = vand.u32 %v250, 4294901760
  %v2688 = vsub.f32 %v250, %v2687
  %v2689 = vand.u32 %v2688, 4294901760
  %v2690 = vsub.f32 %v2688, %v2689
  %v2691 = vand.u32 %v2690, 4294901760
  %2692 = vmatmul.f32.gmra.mxu0 %v2691
  %v2693 = vpop.f32.mrf.mxu0
  %v2694 = vadd.f32 0.0, %v2693
  %v2695 = vand.u32 %v253, 4294901760
  %v2696 = vsub.f32 %v253, %v2695
  %v2697 = vand.u32 %v2696, 4294901760
  %v2698 = vsub.f32 %v2696, %v2697
  %v2699 = vand.u32 %v2698, 4294901760
  %2700 = vmatmul.f32.gmra.mxu0 %v2699
  %v2701 = vpop.f32.mrf.mxu0
  %v2702 = vadd.f32 0.0, %v2701
  %v2703 = vand.u32 %v256, 4294901760
  %v2704 = vsub.f32 %v256, %v2703
  %v2705 = vand.u32 %v2704, 4294901760
  %v2706 = vsub.f32 %v2704, %v2705
  %v2707 = vand.u32 %v2706, 4294901760
  %2708 = vmatmul.f32.gmra.mxu0 %v2707
  %v2709 = vpop.f32.mrf.mxu0
  %v2710 = vadd.f32 0.0, %v2709
  %v2711 = vand.u32 %v259, 4294901760
  %v2712 = vsub.f32 %v259, %v2711
  %v2713 = vand.u32 %v2712, 4294901760
  %v2714 = vsub.f32 %v2712, %v2713
  %v2715 = vand.u32 %v2714, 4294901760
  %2716 = vmatmul.f32.gmra.mxu0 %v2715
  %v2717 = vpop.f32.mrf.mxu0
  %v2718 = vadd.f32 0.0, %v2717
  %v2719 = vand.u32 %v262, 4294901760
  %v2720 = vsub.f32 %v262, %v2719
  %v2721 = vand.u32 %v2720, 4294901760
  %v2722 = vsub.f32 %v2720, %v2721
  %v2723 = vand.u32 %v2722, 4294901760
  %2724 = vmatmul.f32.gmra.mxu0 %v2723
  %v2725 = vpop.f32.mrf.mxu0
  %v2726 = vadd.f32 0.0, %v2725
  %v2727 = vand.u32 %v265, 4294901760
  %v2728 = vsub.f32 %v265, %v2727
  %v2729 = vand.u32 %v2728, 4294901760
  %v2730 = vsub.f32 %v2728, %v2729
  %v2731 = vand.u32 %v2730, 4294901760
  %2732 = vmatmul.f32.gmra.mxu0 %v2731
  %v2733 = vpop.f32.mrf.mxu0
  %v2734 = vadd.f32 0.0, %v2733
  %v2735 = vand.u32 %v268, 4294901760
  %v2736 = vsub.f32 %v268, %v2735
  %v2737 = vand.u32 %v2736, 4294901760
  %v2738 = vsub.f32 %v2736, %v2737
  %v2739 = vand.u32 %v2738, 4294901760
  %2740 = vmatmul.f32.gmra.mxu0 %v2739
  %v2741 = vpop.f32.mrf.mxu0
  %v2742 = vadd.f32 0.0, %v2741
  %v2743 = vand.u32 %v271, 4294901760
  %v2744 = vsub.f32 %v271, %v2743
  %v2745 = vand.u32 %v2744, 4294901760
  %v2746 = vsub.f32 %v2744, %v2745
  %v2747 = vand.u32 %v2746, 4294901760
  %2748 = vmatmul.f32.gmra.mxu0 %v2747
  %v2749 = vpop.f32.mrf.mxu0
  %v2750 = vadd.f32 0.0, %v2749
  %v2751 = vand.u32 %v274, 4294901760
  %v2752 = vsub.f32 %v274, %v2751
  %v2753 = vand.u32 %v2752, 4294901760
  %v2754 = vsub.f32 %v2752, %v2753
  %v2755 = vand.u32 %v2754, 4294901760
  %2756 = vmatmul.f32.gmra.mxu0 %v2755
  %v2757 = vpop.f32.mrf.mxu0
  %v2758 = vadd.f32 0.0, %v2757
  %v2759 = vand.u32 %v277, 4294901760
  %v2760 = vsub.f32 %v277, %v2759
  %v2761 = vand.u32 %v2760, 4294901760
  %v2762 = vsub.f32 %v2760, %v2761
  %v2763 = vand.u32 %v2762, 4294901760
  %2764 = vmatmul.f32.gmra.mxu0 %v2763
  %v2765 = vpop.f32.mrf.mxu0
  %v2766 = vadd.f32 0.0, %v2765
  %v2767 = vand.u32 %v280, 4294901760
  %v2768 = vsub.f32 %v280, %v2767
  %v2769 = vand.u32 %v2768, 4294901760
  %v2770 = vsub.f32 %v2768, %v2769
  %v2771 = vand.u32 %v2770, 4294901760
  %2772 = vmatmul.f32.gmra.mxu0 %v2771
  %v2773 = vpop.f32.mrf.mxu0
  %v2774 = vadd.f32 0.0, %v2773
  %v2775 = vand.u32 %v283, 4294901760
  %v2776 = vsub.f32 %v283, %v2775
  %v2777 = vand.u32 %v2776, 4294901760
  %v2778 = vsub.f32 %v2776, %v2777
  %v2779 = vand.u32 %v2778, 4294901760
  %2780 = vmatmul.f32.gmra.mxu0 %v2779
  %v2781 = vpop.f32.mrf.mxu0
  %v2782 = vadd.f32 0.0, %v2781
  %v2783 = vand.u32 %v286, 4294901760
  %v2784 = vsub.f32 %v286, %v2783
  %v2785 = vand.u32 %v2784, 4294901760
  %v2786 = vsub.f32 %v2784, %v2785
  %v2787 = vand.u32 %v2786, 4294901760
  %2788 = vmatmul.f32.gmra.mxu0 %v2787
  %v2789 = vpop.f32.mrf.mxu0
  %v2790 = vadd.f32 0.0, %v2789
  %v2791 = vand.u32 %v289, 4294901760
  %v2792 = vsub.f32 %v289, %v2791
  %v2793 = vand.u32 %v2792, 4294901760
  %v2794 = vsub.f32 %v2792, %v2793
  %v2795 = vand.u32 %v2794, 4294901760
  %2796 = vmatmul.f32.gmra.mxu0 %v2795
  %v2797 = vpop.f32.mrf.mxu0
  %v2798 = vadd.f32 0.0, %v2797
  %v2799 = vand.u32 %v292, 4294901760
  %v2800 = vsub.f32 %v292, %v2799
  %v2801 = vand.u32 %v2800, 4294901760
  %v2802 = vsub.f32 %v2800, %v2801
  %v2803 = vand.u32 %v2802, 4294901760
  %2804 = vmatmul.f32.gmra.mxu0 %v2803
  %v2805 = vpop.f32.mrf.mxu0
  %v2806 = vadd.f32 0.0, %v2805
  %v2807 = vand.u32 %v295, 4294901760
  %v2808 = vsub.f32 %v295, %v2807
  %v2809 = vand.u32 %v2808, 4294901760
  %v2810 = vsub.f32 %v2808, %v2809
  %v2811 = vand.u32 %v2810, 4294901760
  %2812 = vmatmul.f32.gmra.mxu0 %v2811
  %v2813 = vpop.f32.mrf.mxu0
  %v2814 = vadd.f32 0.0, %v2813
  %v2815 = vand.u32 %v298, 4294901760
  %v2816 = vsub.f32 %v298, %v2815
  %v2817 = vand.u32 %v2816, 4294901760
  %v2818 = vsub.f32 %v2816, %v2817
  %v2819 = vand.u32 %v2818, 4294901760
  %2820 = vmatmul.f32.gmra.mxu0 %v2819
  %v2821 = vpop.f32.mrf.mxu0
  %v2822 = vadd.f32 0.0, %v2821
  %v2823 = vand.u32 %v301, 4294901760
  %v2824 = vsub.f32 %v301, %v2823
  %v2825 = vand.u32 %v2824, 4294901760
  %v2826 = vsub.f32 %v2824, %v2825
  %v2827 = vand.u32 %v2826, 4294901760
  %2828 = vmatmul.f32.gmra.mxu0 %v2827
  %v2829 = vpop.f32.mrf.mxu0
  %v2830 = vadd.f32 0.0, %v2829
  %v2831 = vand.u32 %v304, 4294901760
  %v2832 = vsub.f32 %v304, %v2831
  %v2833 = vand.u32 %v2832, 4294901760
  %v2834 = vsub.f32 %v2832, %v2833
  %v2835 = vand.u32 %v2834, 4294901760
  %2836 = vmatmul.f32.gmra.mxu0 %v2835
  %v2837 = vpop.f32.mrf.mxu0
  %v2838 = vadd.f32 0.0, %v2837
  %v2839 = vand.u32 %v307, 4294901760
  %v2840 = vsub.f32 %v307, %v2839
  %v2841 = vand.u32 %v2840, 4294901760
  %v2842 = vsub.f32 %v2840, %v2841
  %v2843 = vand.u32 %v2842, 4294901760
  %2844 = vmatmul.f32.gmra.mxu0 %v2843
  %v2845 = vpop.f32.mrf.mxu0
  %v2846 = vadd.f32 0.0, %v2845
  %v2847 = vand.u32 %v310, 4294901760
  %v2848 = vsub.f32 %v310, %v2847
  %v2849 = vand.u32 %v2848, 4294901760
  %v2850 = vsub.f32 %v2848, %v2849
  %v2851 = vand.u32 %v2850, 4294901760
  %2852 = vmatmul.f32.gmra.mxu0 %v2851
  %v2853 = vpop.f32.mrf.mxu0
  %v2854 = vadd.f32 0.0, %v2853
  %v2855 = vand.u32 %v313, 4294901760
  %v2856 = vsub.f32 %v313, %v2855
  %v2857 = vand.u32 %v2856, 4294901760
  %v2858 = vsub.f32 %v2856, %v2857
  %v2859 = vand.u32 %v2858, 4294901760
  %2860 = vmatmul.f32.gmra.mxu0 %v2859
  %v2861 = vpop.f32.mrf.mxu0
  %v2862 = vadd.f32 0.0, %v2861
  %v2863 = vand.u32 %v316, 4294901760
  %v2864 = vsub.f32 %v316, %v2863
  %v2865 = vand.u32 %v2864, 4294901760
  %v2866 = vsub.f32 %v2864, %v2865
  %v2867 = vand.u32 %v2866, 4294901760
  %2868 = vmatmul.f32.gmra.mxu0 %v2867
  %v2869 = vpop.f32.mrf.mxu0
  %v2870 = vadd.f32 0.0, %v2869
  %v2871 = vand.u32 %v319, 4294901760
  %v2872 = vsub.f32 %v319, %v2871
  %v2873 = vand.u32 %v2872, 4294901760
  %v2874 = vsub.f32 %v2872, %v2873
  %v2875 = vand.u32 %v2874, 4294901760
  %2876 = vmatmul.f32.gmra.mxu0 %v2875
  %v2877 = vpop.f32.mrf.mxu0
  %v2878 = vadd.f32 0.0, %v2877
  %v2879 = vand.u32 %v322, 4294901760
  %v2880 = vsub.f32 %v322, %v2879
  %v2881 = vand.u32 %v2880, 4294901760
  %v2882 = vsub.f32 %v2880, %v2881
  %v2883 = vand.u32 %v2882, 4294901760
  %2884 = vmatmul.f32.gmra.mxu0 %v2883
  %v2885 = vpop.f32.mrf.mxu0
  %v2886 = vadd.f32 0.0, %v2885
  %v2887 = vand.u32 %v325, 4294901760
  %v2888 = vsub.f32 %v325, %v2887
  %v2889 = vand.u32 %v2888, 4294901760
  %v2890 = vsub.f32 %v2888, %v2889
  %v2891 = vand.u32 %v2890, 4294901760
  %2892 = vmatmul.f32.gmra.mxu0 %v2891
  %v2893 = vpop.f32.mrf.mxu0
  %v2894 = vadd.f32 0.0, %v2893
  %2895 = vdwg.mxu0
  %2896 = vmatpush.msra.mxu0 0.0
  %2897 = vmatpush.msra.mxu0 0.0
  %2898 = vmatpush.msra.mxu0 0.0
  %2899 = vmatpush.msra.mxu0 0.0
  %2900 = vmatpush.msra.mxu0 0.0
  %2901 = vmatpush.msra.mxu0 0.0
  %2902 = vmatpush.msra.mxu0 0.0
  %2903 = vmatpush.msra.mxu0 0.0
  %2904 = vmatpush.msra.mxu0 0.0
  %2905 = vmatpush.msra.mxu0 0.0
  %2906 = vmatpush.msra.mxu0 0.0
  %2907 = vmatpush.msra.mxu0 0.0
  %v2908 = vand.u32 %v228, 4294901760
  %v2909 = vsub.f32 %v228, %v2908
  %v2910 = vand.u32 %v2909, 4294901760
  %v2911 = vsub.f32 %v2909, %v2910
  %v2912 = vand.u32 %v2911, 4294901760
  %2913 = vmatpush.msra.mxu0 %v2912
  %v2914 = vand.u32 %v224, 4294901760
  %v2915 = vsub.f32 %v224, %v2914
  %v2916 = vand.u32 %v2915, 4294901760
  %v2917 = vsub.f32 %v2915, %v2916
  %v2918 = vand.u32 %v2917, 4294901760
  %2919 = vmatpush.msra.mxu0 %v2918
  %v2920 = vand.u32 %v220, 4294901760
  %v2921 = vsub.f32 %v220, %v2920
  %v2922 = vand.u32 %v2921, 4294901760
  %v2923 = vsub.f32 %v2921, %v2922
  %v2924 = vand.u32 %v2923, 4294901760
  %2925 = vmatpush.msra.mxu0 %v2924
  %v2926 = vand.u32 %v216, 4294901760
  %v2927 = vsub.f32 %v216, %v2926
  %v2928 = vand.u32 %v2927, 4294901760
  %v2929 = vsub.f32 %v2927, %v2928
  %v2930 = vand.u32 %v2929, 4294901760
  %2931 = vmatpush.msra.mxu0 %v2930
  %v2932 = vand.u32 %v232, 4294901760
  %2933 = vmatmul.f32.gmra.mxu0 %v2932
  %v2934 = vpop.f32.mrf.mxu0
  %v2935 = vadd.f32 %v2646, %v2934
  %v2936 = vand.u32 %v235, 4294901760
  %2937 = vmatmul.f32.gmra.mxu0 %v2936
  %v2938 = vpop.f32.mrf.mxu0
  %v2939 = vadd.f32 %v2654, %v2938
  %v2940 = vand.u32 %v238, 4294901760
  %2941 = vmatmul.f32.gmra.mxu0 %v2940
  %v2942 = vpop.f32.mrf.mxu0
  %v2943 = vadd.f32 %v2662, %v2942
  %v2944 = vand.u32 %v241, 4294901760
  %2945 = vmatmul.f32.gmra.mxu0 %v2944
  %v2946 = vpop.f32.mrf.mxu0
  %v2947 = vadd.f32 %v2670, %v2946
  %v2948 = vand.u32 %v244, 4294901760
  %2949 = vmatmul.f32.gmra.mxu0 %v2948
  %v2950 = vpop.f32.mrf.mxu0
  %v2951 = vadd.f32 %v2678, %v2950
  %v2952 = vand.u32 %v247, 4294901760
  %2953 = vmatmul.f32.gmra.mxu0 %v2952
  %v2954 = vpop.f32.mrf.mxu0
  %v2955 = vadd.f32 %v2686, %v2954
  %v2956 = vand.u32 %v250, 4294901760
  %2957 = vmatmul.f32.gmra.mxu0 %v2956
  %v2958 = vpop.f32.mrf.mxu0
  %v2959 = vadd.f32 %v2694, %v2958
  %v2960 = vand.u32 %v253, 4294901760
  %2961 = vmatmul.f32.gmra.mxu0 %v2960
  %v2962 = vpop.f32.mrf.mxu0
  %v2963 = vadd.f32 %v2702, %v2962
  %v2964 = vand.u32 %v256, 4294901760
  %2965 = vmatmul.f32.gmra.mxu0 %v2964
  %v2966 = vpop.f32.mrf.mxu0
  %v2967 = vadd.f32 %v2710, %v2966
  %v2968 = vand.u32 %v259, 4294901760
  %2969 = vmatmul.f32.gmra.mxu0 %v2968
  %v2970 = vpop.f32.mrf.mxu0
  %v2971 = vadd.f32 %v2718, %v2970
  %v2972 = vand.u32 %v262, 4294901760
  %2973 = vmatmul.f32.gmra.mxu0 %v2972
  %v2974 = vpop.f32.mrf.mxu0
  %v2975 = vadd.f32 %v2726, %v2974
  %v2976 = vand.u32 %v265, 4294901760
  %2977 = vmatmul.f32.gmra.mxu0 %v2976
  %v2978 = vpop.f32.mrf.mxu0
  %v2979 = vadd.f32 %v2734, %v2978
  %v2980 = vand.u32 %v268, 4294901760
  %2981 = vmatmul.f32.gmra.mxu0 %v2980
  %v2982 = vpop.f32.mrf.mxu0
  %v2983 = vadd.f32 %v2742, %v2982
  %v2984 = vand.u32 %v271, 4294901760
  %2985 = vmatmul.f32.gmra.mxu0 %v2984
  %v2986 = vpop.f32.mrf.mxu0
  %v2987 = vadd.f32 %v2750, %v2986
  %v2988 = vand.u32 %v274, 4294901760
  %2989 = vmatmul.f32.gmra.mxu0 %v2988
  %v2990 = vpop.f32.mrf.mxu0
  %v2991 = vadd.f32 %v2758, %v2990
  %v2992 = vand.u32 %v277, 4294901760
  %2993 = vmatmul.f32.gmra.mxu0 %v2992
  %v2994 = vpop.f32.mrf.mxu0
  %v2995 = vadd.f32 %v2766, %v2994
  %v2996 = vand.u32 %v280, 4294901760
  %2997 = vmatmul.f32.gmra.mxu0 %v2996
  %v2998 = vpop.f32.mrf.mxu0
  %v2999 = vadd.f32 %v2774, %v2998
  %v3000 = vand.u32 %v283, 4294901760
  %3001 = vmatmul.f32.gmra.mxu0 %v3000
  %v3002 = vpop.f32.mrf.mxu0
  %v3003 = vadd.f32 %v2782, %v3002
  %v3004 = vand.u32 %v286, 4294901760
  %3005 = vmatmul.f32.gmra.mxu0 %v3004
  %v3006 = vpop.f32.mrf.mxu0
  %v3007 = vadd.f32 %v2790, %v3006
  %v3008 = vand.u32 %v289, 4294901760
  %3009 = vmatmul.f32.gmra.mxu0 %v3008
  %v3010 = vpop.f32.mrf.mxu0
  %v3011 = vadd.f32 %v2798, %v3010
  %v3012 = vand.u32 %v292, 4294901760
  %3013 = vmatmul.f32.gmra.mxu0 %v3012
  %v3014 = vpop.f32.mrf.mxu0
  %v3015 = vadd.f32 %v2806, %v3014
  %v3016 = vand.u32 %v295, 4294901760
  %3017 = vmatmul.f32.gmra.mxu0 %v3016
  %v3018 = vpop.f32.mrf.mxu0
  %v3019 = vadd.f32 %v2814, %v3018
  %v3020 = vand.u32 %v298, 4294901760
  %3021 = vmatmul.f32.gmra.mxu0 %v3020
  %v3022 = vpop.f32.mrf.mxu0
  %v3023 = vadd.f32 %v2822, %v3022
  %v3024 = vand.u32 %v301, 4294901760
  %3025 = vmatmul.f32.gmra.mxu0 %v3024
  %v3026 = vpop.f32.mrf.mxu0
  %v3027 = vadd.f32 %v2830, %v3026
  %v3028 = vand.u32 %v304, 4294901760
  %3029 = vmatmul.f32.gmra.mxu0 %v3028
  %v3030 = vpop.f32.mrf.mxu0
  %v3031 = vadd.f32 %v2838, %v3030
  %v3032 = vand.u32 %v307, 4294901760
  %3033 = vmatmul.f32.gmra.mxu0 %v3032
  %v3034 = vpop.f32.mrf.mxu0
  %v3035 = vadd.f32 %v2846, %v3034
  %v3036 = vand.u32 %v310, 4294901760
  %3037 = vmatmul.f32.gmra.mxu0 %v3036
  %v3038 = vpop.f32.mrf.mxu0
  %v3039 = vadd.f32 %v2854, %v3038
  %v3040 = vand.u32 %v313, 4294901760
  %3041 = vmatmul.f32.gmra.mxu0 %v3040
  %v3042 = vpop.f32.mrf.mxu0
  %v3043 = vadd.f32 %v2862, %v3042
  %v3044 = vand.u32 %v316, 4294901760
  %3045 = vmatmul.f32.gmra.mxu0 %v3044
  %v3046 = vpop.f32.mrf.mxu0
  %v3047 = vadd.f32 %v2870, %v3046
  %v3048 = vand.u32 %v319, 4294901760
  %3049 = vmatmul.f32.gmra.mxu0 %v3048
  %v3050 = vpop.f32.mrf.mxu0
  %v3051 = vadd.f32 %v2878, %v3050
  %v3052 = vand.u32 %v322, 4294901760
  %3053 = vmatmul.f32.gmra.mxu0 %v3052
  %v3054 = vpop.f32.mrf.mxu0
  %v3055 = vadd.f32 %v2886, %v3054
  %v3056 = vand.u32 %v325, 4294901760
  %3057 = vmatmul.f32.gmra.mxu0 %v3056
  %v3058 = vpop.f32.mrf.mxu0
  %v3059 = vadd.f32 %v2894, %v3058
  %3060 = vdwg.mxu0
  %3061 = vmatpush.msra.mxu0 0.0
  %3062 = vmatpush.msra.mxu0 0.0
  %3063 = vmatpush.msra.mxu0 0.0
  %3064 = vmatpush.msra.mxu0 0.0
  %3065 = vmatpush.msra.mxu0 0.0
  %3066 = vmatpush.msra.mxu0 0.0
  %3067 = vmatpush.msra.mxu0 0.0
  %3068 = vmatpush.msra.mxu0 0.0
  %3069 = vmatpush.msra.mxu0 0.0
  %3070 = vmatpush.msra.mxu0 0.0
  %3071 = vmatpush.msra.mxu0 0.0
  %3072 = vmatpush.msra.mxu0 0.0
  %v3073 = vand.u32 %v228, 4294901760
  %v3074 = vsub.f32 %v228, %v3073
  %3075 = vmatpush.msra.mxu0 %v3074
  %v3076 = vand.u32 %v224, 4294901760
  %v3077 = vsub.f32 %v224, %v3076
  %3078 = vmatpush.msra.mxu0 %v3077
  %v3079 = vand.u32 %v220, 4294901760
  %v3080 = vsub.f32 %v220, %v3079
  %3081 = vmatpush.msra.mxu0 %v3080
  %v3082 = vand.u32 %v216, 4294901760
  %v3083 = vsub.f32 %v216, %v3082
  %3084 = vmatpush.msra.mxu0 %v3083
  %v3085 = vand.u32 %v232, 4294901760
  %v3086 = vsub.f32 %v232, %v3085
  %3087 = vmatmul.f32.gmra.mxu0 %v3086
  %v3088 = vpop.f32.mrf.mxu0
  %v3089 = vadd.f32 %v2935, %v3088
  %v3090 = vand.u32 %v235, 4294901760
  %v3091 = vsub.f32 %v235, %v3090
  %3092 = vmatmul.f32.gmra.mxu0 %v3091
  %v3093 = vpop.f32.mrf.mxu0
  %v3094 = vadd.f32 %v2939, %v3093
  %v3095 = vand.u32 %v238, 4294901760
  %v3096 = vsub.f32 %v238, %v3095
  %3097 = vmatmul.f32.gmra.mxu0 %v3096
  %v3098 = vpop.f32.mrf.mxu0
  %v3099 = vadd.f32 %v2943, %v3098
  %v3100 = vand.u32 %v241, 4294901760
  %v3101 = vsub.f32 %v241, %v3100
  %3102 = vmatmul.f32.gmra.mxu0 %v3101
  %v3103 = vpop.f32.mrf.mxu0
  %v3104 = vadd.f32 %v2947, %v3103
  %v3105 = vand.u32 %v244, 4294901760
  %v3106 = vsub.f32 %v244, %v3105
  %3107 = vmatmul.f32.gmra.mxu0 %v3106
  %v3108 = vpop.f32.mrf.mxu0
  %v3109 = vadd.f32 %v2951, %v3108
  %v3110 = vand.u32 %v247, 4294901760
  %v3111 = vsub.f32 %v247, %v3110
  %3112 = vmatmul.f32.gmra.mxu0 %v3111
  %v3113 = vpop.f32.mrf.mxu0
  %v3114 = vadd.f32 %v2955, %v3113
  %v3115 = vand.u32 %v250, 4294901760
  %v3116 = vsub.f32 %v250, %v3115
  %3117 = vmatmul.f32.gmra.mxu0 %v3116
  %v3118 = vpop.f32.mrf.mxu0
  %v3119 = vadd.f32 %v2959, %v3118
  %v3120 = vand.u32 %v253, 4294901760
  %v3121 = vsub.f32 %v253, %v3120
  %3122 = vmatmul.f32.gmra.mxu0 %v3121
  %v3123 = vpop.f32.mrf.mxu0
  %v3124 = vadd.f32 %v2963, %v3123
  %v3125 = vand.u32 %v256, 4294901760
  %v3126 = vsub.f32 %v256, %v3125
  %3127 = vmatmul.f32.gmra.mxu0 %v3126
  %v3128 = vpop.f32.mrf.mxu0
  %v3129 = vadd.f32 %v2967, %v3128
  %v3130 = vand.u32 %v259, 4294901760
  %v3131 = vsub.f32 %v259, %v3130
  %3132 = vmatmul.f32.gmra.mxu0 %v3131
  %v3133 = vpop.f32.mrf.mxu0
  %v3134 = vadd.f32 %v2971, %v3133
  %v3135 = vand.u32 %v262, 4294901760
  %v3136 = vsub.f32 %v262, %v3135
  %3137 = vmatmul.f32.gmra.mxu0 %v3136
  %v3138 = vpop.f32.mrf.mxu0
  %v3139 = vadd.f32 %v2975, %v3138
  %v3140 = vand.u32 %v265, 4294901760
  %v3141 = vsub.f32 %v265, %v3140
  %3142 = vmatmul.f32.gmra.mxu0 %v3141
  %v3143 = vpop.f32.mrf.mxu0
  %v3144 = vadd.f32 %v2979, %v3143
  %v3145 = vand.u32 %v268, 4294901760
  %v3146 = vsub.f32 %v268, %v3145
  %3147 = vmatmul.f32.gmra.mxu0 %v3146
  %v3148 = vpop.f32.mrf.mxu0
  %v3149 = vadd.f32 %v2983, %v3148
  %v3150 = vand.u32 %v271, 4294901760
  %v3151 = vsub.f32 %v271, %v3150
  %3152 = vmatmul.f32.gmra.mxu0 %v3151
  %v3153 = vpop.f32.mrf.mxu0
  %v3154 = vadd.f32 %v2987, %v3153
  %v3155 = vand.u32 %v274, 4294901760
  %v3156 = vsub.f32 %v274, %v3155
  %3157 = vmatmul.f32.gmra.mxu0 %v3156
  %v3158 = vpop.f32.mrf.mxu0
  %v3159 = vadd.f32 %v2991, %v3158
  %v3160 = vand.u32 %v277, 4294901760
  %v3161 = vsub.f32 %v277, %v3160
  %3162 = vmatmul.f32.gmra.mxu0 %v3161
  %v3163 = vpop.f32.mrf.mxu0
  %v3164 = vadd.f32 %v2995, %v3163
  %v3165 = vand.u32 %v280, 4294901760
  %v3166 = vsub.f32 %v280, %v3165
  %3167 = vmatmul.f32.gmra.mxu0 %v3166
  %v3168 = vpop.f32.mrf.mxu0
  %v3169 = vadd.f32 %v2999, %v3168
  %v3170 = vand.u32 %v283, 4294901760
  %v3171 = vsub.f32 %v283, %v3170
  %3172 = vmatmul.f32.gmra.mxu0 %v3171
  %v3173 = vpop.f32.mrf.mxu0
  %v3174 = vadd.f32 %v3003, %v3173
  %v3175 = vand.u32 %v286, 4294901760
  %v3176 = vsub.f32 %v286, %v3175
  %3177 = vmatmul.f32.gmra.mxu0 %v3176
  %v3178 = vpop.f32.mrf.mxu0
  %v3179 = vadd.f32 %v3007, %v3178
  %v3180 = vand.u32 %v289, 4294901760
  %v3181 = vsub.f32 %v289, %v3180
  %3182 = vmatmul.f32.gmra.mxu0 %v3181
  %v3183 = vpop.f32.mrf.mxu0
  %v3184 = vadd.f32 %v3011, %v3183
  %v3185 = vand.u32 %v292, 4294901760
  %v3186 = vsub.f32 %v292, %v3185
  %3187 = vmatmul.f32.gmra.mxu0 %v3186
  %v3188 = vpop.f32.mrf.mxu0
  %v3189 = vadd.f32 %v3015, %v3188
  %v3190 = vand.u32 %v295, 4294901760
  %v3191 = vsub.f32 %v295, %v3190
  %3192 = vmatmul.f32.gmra.mxu0 %v3191
  %v3193 = vpop.f32.mrf.mxu0
  %v3194 = vadd.f32 %v3019, %v3193
  %v3195 = vand.u32 %v298, 4294901760
  %v3196 = vsub.f32 %v298, %v3195
  %3197 = vmatmul.f32.gmra.mxu0 %v3196
  %v3198 = vpop.f32.mrf.mxu0
  %v3199 = vadd.f32 %v3023, %v3198
  %v3200 = vand.u32 %v301, 4294901760
  %v3201 = vsub.f32 %v301, %v3200
  %3202 = vmatmul.f32.gmra.mxu0 %v3201
  %v3203 = vpop.f32.mrf.mxu0
  %v3204 = vadd.f32 %v3027, %v3203
  %v3205 = vand.u32 %v304, 4294901760
  %v3206 = vsub.f32 %v304, %v3205
  %3207 = vmatmul.f32.gmra.mxu0 %v3206
  %v3208 = vpop.f32.mrf.mxu0
  %v3209 = vadd.f32 %v3031, %v3208
  %v3210 = vand.u32 %v307, 4294901760
  %v3211 = vsub.f32 %v307, %v3210
  %3212 = vmatmul.f32.gmra.mxu0 %v3211
  %v3213 = vpop.f32.mrf.mxu0
  %v3214 = vadd.f32 %v3035, %v3213
  %v3215 = vand.u32 %v310, 4294901760
  %v3216 = vsub.f32 %v310, %v3215
  %3217 = vmatmul.f32.gmra.mxu0 %v3216
  %v3218 = vpop.f32.mrf.mxu0
  %v3219 = vadd.f32 %v3039, %v3218
  %v3220 = vand.u32 %v313, 4294901760
  %v3221 = vsub.f32 %v313, %v3220
  %3222 = vmatmul.f32.gmra.mxu0 %v3221
  %v3223 = vpop.f32.mrf.mxu0
  %v3224 = vadd.f32 %v3043, %v3223
  %v3225 = vand.u32 %v316, 4294901760
  %v3226 = vsub.f32 %v316, %v3225
  %3227 = vmatmul.f32.gmra.mxu0 %v3226
  %v3228 = vpop.f32.mrf.mxu0
  %v3229 = vadd.f32 %v3047, %v3228
  %v3230 = vand.u32 %v319, 4294901760
  %v3231 = vsub.f32 %v319, %v3230
  %3232 = vmatmul.f32.gmra.mxu0 %v3231
  %v3233 = vpop.f32.mrf.mxu0
  %v3234 = vadd.f32 %v3051, %v3233
  %v3235 = vand.u32 %v322, 4294901760
  %v3236 = vsub.f32 %v322, %v3235
  %3237 = vmatmul.f32.gmra.mxu0 %v3236
  %v3238 = vpop.f32.mrf.mxu0
  %v3239 = vadd.f32 %v3055, %v3238
  %v3240 = vand.u32 %v325, 4294901760
  %v3241 = vsub.f32 %v325, %v3240
  %3242 = vmatmul.f32.gmra.mxu0 %v3241
  %v3243 = vpop.f32.mrf.mxu0
  %v3244 = vadd.f32 %v3059, %v3243
  %3245 = vdwg.mxu0
  %3246 = vmatpush.msra.mxu0 0.0
  %3247 = vmatpush.msra.mxu0 0.0
  %3248 = vmatpush.msra.mxu0 0.0
  %3249 = vmatpush.msra.mxu0 0.0
  %3250 = vmatpush.msra.mxu0 0.0
  %3251 = vmatpush.msra.mxu0 0.0
  %3252 = vmatpush.msra.mxu0 0.0
  %3253 = vmatpush.msra.mxu0 0.0
  %3254 = vmatpush.msra.mxu0 0.0
  %3255 = vmatpush.msra.mxu0 0.0
  %3256 = vmatpush.msra.mxu0 0.0
  %3257 = vmatpush.msra.mxu0 0.0
  %v3258 = vand.u32 %v228, 4294901760
  %3259 = vmatpush.msra.mxu0 %v3258
  %v3260 = vand.u32 %v224, 4294901760
  %3261 = vmatpush.msra.mxu0 %v3260
  %v3262 = vand.u32 %v220, 4294901760
  %3263 = vmatpush.msra.mxu0 %v3262
  %v3264 = vand.u32 %v216, 4294901760
  %3265 = vmatpush.msra.mxu0 %v3264
  %v3266 = vand.u32 %v232, 4294901760
  %v3267 = vsub.f32 %v232, %v3266
  %v3268 = vand.u32 %v3267, 4294901760
  %3269 = vmatmul.f32.gmra.mxu0 %v3268
  %v3270 = vpop.f32.mrf.mxu0
  %v3271 = vadd.f32 %v3089, %v3270
  %v3272 = vand.u32 %v235, 4294901760
  %v3273 = vsub.f32 %v235, %v3272
  %v3274 = vand.u32 %v3273, 4294901760
  %3275 = vmatmul.f32.gmra.mxu0 %v3274
  %v3276 = vpop.f32.mrf.mxu0
  %v3277 = vadd.f32 %v3094, %v3276
  %v3278 = vand.u32 %v238, 4294901760
  %v3279 = vsub.f32 %v238, %v3278
  %v3280 = vand.u32 %v3279, 4294901760
  %3281 = vmatmul.f32.gmra.mxu0 %v3280
  %v3282 = vpop.f32.mrf.mxu0
  %v3283 = vadd.f32 %v3099, %v3282
  %v3284 = vand.u32 %v241, 4294901760
  %v3285 = vsub.f32 %v241, %v3284
  %v3286 = vand.u32 %v3285, 4294901760
  %3287 = vmatmul.f32.gmra.mxu0 %v3286
  %v3288 = vpop.f32.mrf.mxu0
  %v3289 = vadd.f32 %v3104, %v3288
  %v3290 = vand.u32 %v244, 4294901760
  %v3291 = vsub.f32 %v244, %v3290
  %v3292 = vand.u32 %v3291, 4294901760
  %3293 = vmatmul.f32.gmra.mxu0 %v3292
  %v3294 = vpop.f32.mrf.mxu0
  %v3295 = vadd.f32 %v3109, %v3294
  %v3296 = vand.u32 %v247, 4294901760
  %v3297 = vsub.f32 %v247, %v3296
  %v3298 = vand.u32 %v3297, 4294901760
  %3299 = vmatmul.f32.gmra.mxu0 %v3298
  %v3300 = vpop.f32.mrf.mxu0
  %v3301 = vadd.f32 %v3114, %v3300
  %v3302 = vand.u32 %v250, 4294901760
  %v3303 = vsub.f32 %v250, %v3302
  %v3304 = vand.u32 %v3303, 4294901760
  %3305 = vmatmul.f32.gmra.mxu0 %v3304
  %v3306 = vpop.f32.mrf.mxu0
  %v3307 = vadd.f32 %v3119, %v3306
  %v3308 = vand.u32 %v253, 4294901760
  %v3309 = vsub.f32 %v253, %v3308
  %v3310 = vand.u32 %v3309, 4294901760
  %3311 = vmatmul.f32.gmra.mxu0 %v3310
  %v3312 = vpop.f32.mrf.mxu0
  %v3313 = vadd.f32 %v3124, %v3312
  %v3314 = vand.u32 %v256, 4294901760
  %v3315 = vsub.f32 %v256, %v3314
  %v3316 = vand.u32 %v3315, 4294901760
  %3317 = vmatmul.f32.gmra.mxu0 %v3316
  %v3318 = vpop.f32.mrf.mxu0
  %v3319 = vadd.f32 %v3129, %v3318
  %v3320 = vand.u32 %v259, 4294901760
  %v3321 = vsub.f32 %v259, %v3320
  %v3322 = vand.u32 %v3321, 4294901760
  %3323 = vmatmul.f32.gmra.mxu0 %v3322
  %v3324 = vpop.f32.mrf.mxu0
  %v3325 = vadd.f32 %v3134, %v3324
  %v3326 = vand.u32 %v262, 4294901760
  %v3327 = vsub.f32 %v262, %v3326
  %v3328 = vand.u32 %v3327, 4294901760
  %3329 = vmatmul.f32.gmra.mxu0 %v3328
  %v3330 = vpop.f32.mrf.mxu0
  %v3331 = vadd.f32 %v3139, %v3330
  %v3332 = vand.u32 %v265, 4294901760
  %v3333 = vsub.f32 %v265, %v3332
  %v3334 = vand.u32 %v3333, 4294901760
  %3335 = vmatmul.f32.gmra.mxu0 %v3334
  %v3336 = vpop.f32.mrf.mxu0
  %v3337 = vadd.f32 %v3144, %v3336
  %v3338 = vand.u32 %v268, 4294901760
  %v3339 = vsub.f32 %v268, %v3338
  %v3340 = vand.u32 %v3339, 4294901760
  %3341 = vmatmul.f32.gmra.mxu0 %v3340
  %v3342 = vpop.f32.mrf.mxu0
  %v3343 = vadd.f32 %v3149, %v3342
  %v3344 = vand.u32 %v271, 4294901760
  %v3345 = vsub.f32 %v271, %v3344
  %v3346 = vand.u32 %v3345, 4294901760
  %3347 = vmatmul.f32.gmra.mxu0 %v3346
  %v3348 = vpop.f32.mrf.mxu0
  %v3349 = vadd.f32 %v3154, %v3348
  %v3350 = vand.u32 %v274, 4294901760
  %v3351 = vsub.f32 %v274, %v3350
  %v3352 = vand.u32 %v3351, 4294901760
  %3353 = vmatmul.f32.gmra.mxu0 %v3352
  %v3354 = vpop.f32.mrf.mxu0
  %v3355 = vadd.f32 %v3159, %v3354
  %v3356 = vand.u32 %v277, 4294901760
  %v3357 = vsub.f32 %v277, %v3356
  %v3358 = vand.u32 %v3357, 4294901760
  %3359 = vmatmul.f32.gmra.mxu0 %v3358
  %v3360 = vpop.f32.mrf.mxu0
  %v3361 = vadd.f32 %v3164, %v3360
  %v3362 = vand.u32 %v280, 4294901760
  %v3363 = vsub.f32 %v280, %v3362
  %v3364 = vand.u32 %v3363, 4294901760
  %3365 = vmatmul.f32.gmra.mxu0 %v3364
  %v3366 = vpop.f32.mrf.mxu0
  %v3367 = vadd.f32 %v3169, %v3366
  %v3368 = vand.u32 %v283, 4294901760
  %v3369 = vsub.f32 %v283, %v3368
  %v3370 = vand.u32 %v3369, 4294901760
  %3371 = vmatmul.f32.gmra.mxu0 %v3370
  %v3372 = vpop.f32.mrf.mxu0
  %v3373 = vadd.f32 %v3174, %v3372
  %v3374 = vand.u32 %v286, 4294901760
  %v3375 = vsub.f32 %v286, %v3374
  %v3376 = vand.u32 %v3375, 4294901760
  %3377 = vmatmul.f32.gmra.mxu0 %v3376
  %v3378 = vpop.f32.mrf.mxu0
  %v3379 = vadd.f32 %v3179, %v3378
  %v3380 = vand.u32 %v289, 4294901760
  %v3381 = vsub.f32 %v289, %v3380
  %v3382 = vand.u32 %v3381, 4294901760
  %3383 = vmatmul.f32.gmra.mxu0 %v3382
  %v3384 = vpop.f32.mrf.mxu0
  %v3385 = vadd.f32 %v3184, %v3384
  %v3386 = vand.u32 %v292, 4294901760
  %v3387 = vsub.f32 %v292, %v3386
  %v3388 = vand.u32 %v3387, 4294901760
  %3389 = vmatmul.f32.gmra.mxu0 %v3388
  %v3390 = vpop.f32.mrf.mxu0
  %v3391 = vadd.f32 %v3189, %v3390
  %v3392 = vand.u32 %v295, 4294901760
  %v3393 = vsub.f32 %v295, %v3392
  %v3394 = vand.u32 %v3393, 4294901760
  %3395 = vmatmul.f32.gmra.mxu0 %v3394
  %v3396 = vpop.f32.mrf.mxu0
  %v3397 = vadd.f32 %v3194, %v3396
  %v3398 = vand.u32 %v298, 4294901760
  %v3399 = vsub.f32 %v298, %v3398
  %v3400 = vand.u32 %v3399, 4294901760
  %3401 = vmatmul.f32.gmra.mxu0 %v3400
  %v3402 = vpop.f32.mrf.mxu0
  %v3403 = vadd.f32 %v3199, %v3402
  %v3404 = vand.u32 %v301, 4294901760
  %v3405 = vsub.f32 %v301, %v3404
  %v3406 = vand.u32 %v3405, 4294901760
  %3407 = vmatmul.f32.gmra.mxu0 %v3406
  %v3408 = vpop.f32.mrf.mxu0
  %v3409 = vadd.f32 %v3204, %v3408
  %v3410 = vand.u32 %v304, 4294901760
  %v3411 = vsub.f32 %v304, %v3410
  %v3412 = vand.u32 %v3411, 4294901760
  %3413 = vmatmul.f32.gmra.mxu0 %v3412
  %v3414 = vpop.f32.mrf.mxu0
  %v3415 = vadd.f32 %v3209, %v3414
  %v3416 = vand.u32 %v307, 4294901760
  %v3417 = vsub.f32 %v307, %v3416
  %v3418 = vand.u32 %v3417, 4294901760
  %3419 = vmatmul.f32.gmra.mxu0 %v3418
  %v3420 = vpop.f32.mrf.mxu0
  %v3421 = vadd.f32 %v3214, %v3420
  %v3422 = vand.u32 %v310, 4294901760
  %v3423 = vsub.f32 %v310, %v3422
  %v3424 = vand.u32 %v3423, 4294901760
  %3425 = vmatmul.f32.gmra.mxu0 %v3424
  %v3426 = vpop.f32.mrf.mxu0
  %v3427 = vadd.f32 %v3219, %v3426
  %v3428 = vand.u32 %v313, 4294901760
  %v3429 = vsub.f32 %v313, %v3428
  %v3430 = vand.u32 %v3429, 4294901760
  %3431 = vmatmul.f32.gmra.mxu0 %v3430
  %v3432 = vpop.f32.mrf.mxu0
  %v3433 = vadd.f32 %v3224, %v3432
  %v3434 = vand.u32 %v316, 4294901760
  %v3435 = vsub.f32 %v316, %v3434
  %v3436 = vand.u32 %v3435, 4294901760
  %3437 = vmatmul.f32.gmra.mxu0 %v3436
  %v3438 = vpop.f32.mrf.mxu0
  %v3439 = vadd.f32 %v3229, %v3438
  %v3440 = vand.u32 %v319, 4294901760
  %v3441 = vsub.f32 %v319, %v3440
  %v3442 = vand.u32 %v3441, 4294901760
  %3443 = vmatmul.f32.gmra.mxu0 %v3442
  %v3444 = vpop.f32.mrf.mxu0
  %v3445 = vadd.f32 %v3234, %v3444
  %v3446 = vand.u32 %v322, 4294901760
  %v3447 = vsub.f32 %v322, %v3446
  %v3448 = vand.u32 %v3447, 4294901760
  %3449 = vmatmul.f32.gmra.mxu0 %v3448
  %v3450 = vpop.f32.mrf.mxu0
  %v3451 = vadd.f32 %v3239, %v3450
  %v3452 = vand.u32 %v325, 4294901760
  %v3453 = vsub.f32 %v325, %v3452
  %v3454 = vand.u32 %v3453, 4294901760
  %3455 = vmatmul.f32.gmra.mxu0 %v3454
  %v3456 = vpop.f32.mrf.mxu0
  %v3457 = vadd.f32 %v3244, %v3456
  %3458 = vdwg.mxu0
  %3459 = vmatpush.msra.mxu0 0.0
  %3460 = vmatpush.msra.mxu0 0.0
  %3461 = vmatpush.msra.mxu0 0.0
  %3462 = vmatpush.msra.mxu0 0.0
  %3463 = vmatpush.msra.mxu0 0.0
  %3464 = vmatpush.msra.mxu0 0.0
  %3465 = vmatpush.msra.mxu0 0.0
  %3466 = vmatpush.msra.mxu0 0.0
  %3467 = vmatpush.msra.mxu0 0.0
  %3468 = vmatpush.msra.mxu0 0.0
  %3469 = vmatpush.msra.mxu0 0.0
  %3470 = vmatpush.msra.mxu0 0.0
  %v3471 = vand.u32 %v228, 4294901760
  %v3472 = vsub.f32 %v228, %v3471
  %v3473 = vand.u32 %v3472, 4294901760
  %3474 = vmatpush.msra.mxu0 %v3473
  %v3475 = vand.u32 %v224, 4294901760
  %v3476 = vsub.f32 %v224, %v3475
  %v3477 = vand.u32 %v3476, 4294901760
  %3478 = vmatpush.msra.mxu0 %v3477
  %v3479 = vand.u32 %v220, 4294901760
  %v3480 = vsub.f32 %v220, %v3479
  %v3481 = vand.u32 %v3480, 4294901760
  %3482 = vmatpush.msra.mxu0 %v3481
  %v3483 = vand.u32 %v216, 4294901760
  %v3484 = vsub.f32 %v216, %v3483
  %v3485 = vand.u32 %v3484, 4294901760
  %3486 = vmatpush.msra.mxu0 %v3485
  %v3487 = vand.u32 %v232, 4294901760
  %3488 = vmatmul.f32.gmra.mxu0 %v3487
  %v3489 = vpop.f32.mrf.mxu0
  %v3490 = vadd.f32 %v3271, %v3489
  %v3491 = vand.u32 %v235, 4294901760
  %3492 = vmatmul.f32.gmra.mxu0 %v3491
  %v3493 = vpop.f32.mrf.mxu0
  %v3494 = vadd.f32 %v3277, %v3493
  %v3495 = vand.u32 %v238, 4294901760
  %3496 = vmatmul.f32.gmra.mxu0 %v3495
  %v3497 = vpop.f32.mrf.mxu0
  %v3498 = vadd.f32 %v3283, %v3497
  %v3499 = vand.u32 %v241, 4294901760
  %3500 = vmatmul.f32.gmra.mxu0 %v3499
  %v3501 = vpop.f32.mrf.mxu0
  %v3502 = vadd.f32 %v3289, %v3501
  %v3503 = vand.u32 %v244, 4294901760
  %3504 = vmatmul.f32.gmra.mxu0 %v3503
  %v3505 = vpop.f32.mrf.mxu0
  %v3506 = vadd.f32 %v3295, %v3505
  %v3507 = vand.u32 %v247, 4294901760
  %3508 = vmatmul.f32.gmra.mxu0 %v3507
  %v3509 = vpop.f32.mrf.mxu0
  %v3510 = vadd.f32 %v3301, %v3509
  %v3511 = vand.u32 %v250, 4294901760
  %3512 = vmatmul.f32.gmra.mxu0 %v3511
  %v3513 = vpop.f32.mrf.mxu0
  %v3514 = vadd.f32 %v3307, %v3513
  %v3515 = vand.u32 %v253, 4294901760
  %3516 = vmatmul.f32.gmra.mxu0 %v3515
  %v3517 = vpop.f32.mrf.mxu0
  %v3518 = vadd.f32 %v3313, %v3517
  %v3519 = vand.u32 %v256, 4294901760
  %3520 = vmatmul.f32.gmra.mxu0 %v3519
  %v3521 = vpop.f32.mrf.mxu0
  %v3522 = vadd.f32 %v3319, %v3521
  %v3523 = vand.u32 %v259, 4294901760
  %3524 = vmatmul.f32.gmra.mxu0 %v3523
  %v3525 = vpop.f32.mrf.mxu0
  %v3526 = vadd.f32 %v3325, %v3525
  %v3527 = vand.u32 %v262, 4294901760
  %3528 = vmatmul.f32.gmra.mxu0 %v3527
  %v3529 = vpop.f32.mrf.mxu0
  %v3530 = vadd.f32 %v3331, %v3529
  %v3531 = vand.u32 %v265, 4294901760
  %3532 = vmatmul.f32.gmra.mxu0 %v3531
  %v3533 = vpop.f32.mrf.mxu0
  %v3534 = vadd.f32 %v3337, %v3533
  %v3535 = vand.u32 %v268, 4294901760
  %3536 = vmatmul.f32.gmra.mxu0 %v3535
  %v3537 = vpop.f32.mrf.mxu0
  %v3538 = vadd.f32 %v3343, %v3537
  %v3539 = vand.u32 %v271, 4294901760
  %3540 = vmatmul.f32.gmra.mxu0 %v3539
  %v3541 = vpop.f32.mrf.mxu0
  %v3542 = vadd.f32 %v3349, %v3541
  %v3543 = vand.u32 %v274, 4294901760
  %3544 = vmatmul.f32.gmra.mxu0 %v3543
  %v3545 = vpop.f32.mrf.mxu0
  %v3546 = vadd.f32 %v3355, %v3545
  %v3547 = vand.u32 %v277, 4294901760
  %3548 = vmatmul.f32.gmra.mxu0 %v3547
  %v3549 = vpop.f32.mrf.mxu0
  %v3550 = vadd.f32 %v3361, %v3549
  %v3551 = vand.u32 %v280, 4294901760
  %3552 = vmatmul.f32.gmra.mxu0 %v3551
  %v3553 = vpop.f32.mrf.mxu0
  %v3554 = vadd.f32 %v3367, %v3553
  %v3555 = vand.u32 %v283, 4294901760
  %3556 = vmatmul.f32.gmra.mxu0 %v3555
  %v3557 = vpop.f32.mrf.mxu0
  %v3558 = vadd.f32 %v3373, %v3557
  %v3559 = vand.u32 %v286, 4294901760
  %3560 = vmatmul.f32.gmra.mxu0 %v3559
  %v3561 = vpop.f32.mrf.mxu0
  %v3562 = vadd.f32 %v3379, %v3561
  %v3563 = vand.u32 %v289, 4294901760
  %3564 = vmatmul.f32.gmra.mxu0 %v3563
  %v3565 = vpop.f32.mrf.mxu0
  %v3566 = vadd.f32 %v3385, %v3565
  %v3567 = vand.u32 %v292, 4294901760
  %3568 = vmatmul.f32.gmra.mxu0 %v3567
  %v3569 = vpop.f32.mrf.mxu0
  %v3570 = vadd.f32 %v3391, %v3569
  %v3571 = vand.u32 %v295, 4294901760
  %3572 = vmatmul.f32.gmra.mxu0 %v3571
  %v3573 = vpop.f32.mrf.mxu0
  %v3574 = vadd.f32 %v3397, %v3573
  %v3575 = vand.u32 %v298, 4294901760
  %3576 = vmatmul.f32.gmra.mxu0 %v3575
  %v3577 = vpop.f32.mrf.mxu0
  %v3578 = vadd.f32 %v3403, %v3577
  %v3579 = vand.u32 %v301, 4294901760
  %3580 = vmatmul.f32.gmra.mxu0 %v3579
  %v3581 = vpop.f32.mrf.mxu0
  %v3582 = vadd.f32 %v3409, %v3581
  %v3583 = vand.u32 %v304, 4294901760
  %3584 = vmatmul.f32.gmra.mxu0 %v3583
  %v3585 = vpop.f32.mrf.mxu0
  %v3586 = vadd.f32 %v3415, %v3585
  %v3587 = vand.u32 %v307, 4294901760
  %3588 = vmatmul.f32.gmra.mxu0 %v3587
  %v3589 = vpop.f32.mrf.mxu0
  %v3590 = vadd.f32 %v3421, %v3589
  %v3591 = vand.u32 %v310, 4294901760
  %3592 = vmatmul.f32.gmra.mxu0 %v3591
  %v3593 = vpop.f32.mrf.mxu0
  %v3594 = vadd.f32 %v3427, %v3593
  %v3595 = vand.u32 %v313, 4294901760
  %3596 = vmatmul.f32.gmra.mxu0 %v3595
  %v3597 = vpop.f32.mrf.mxu0
  %v3598 = vadd.f32 %v3433, %v3597
  %v3599 = vand.u32 %v316, 4294901760
  %3600 = vmatmul.f32.gmra.mxu0 %v3599
  %v3601 = vpop.f32.mrf.mxu0
  %v3602 = vadd.f32 %v3439, %v3601
  %v3603 = vand.u32 %v319, 4294901760
  %3604 = vmatmul.f32.gmra.mxu0 %v3603
  %v3605 = vpop.f32.mrf.mxu0
  %v3606 = vadd.f32 %v3445, %v3605
  %v3607 = vand.u32 %v322, 4294901760
  %3608 = vmatmul.f32.gmra.mxu0 %v3607
  %v3609 = vpop.f32.mrf.mxu0
  %v3610 = vadd.f32 %v3451, %v3609
  %v3611 = vand.u32 %v325, 4294901760
  %3612 = vmatmul.f32.gmra.mxu0 %v3611
  %v3613 = vpop.f32.mrf.mxu0
  %v3614 = vadd.f32 %v3457, %v3613
  %3615 = vdwg.mxu0
  %3616 = vmatpush.msra.mxu0 0.0
  %3617 = vmatpush.msra.mxu0 0.0
  %3618 = vmatpush.msra.mxu0 0.0
  %3619 = vmatpush.msra.mxu0 0.0
  %3620 = vmatpush.msra.mxu0 0.0
  %3621 = vmatpush.msra.mxu0 0.0
  %3622 = vmatpush.msra.mxu0 0.0
  %3623 = vmatpush.msra.mxu0 0.0
  %3624 = vmatpush.msra.mxu0 0.0
  %3625 = vmatpush.msra.mxu0 0.0
  %3626 = vmatpush.msra.mxu0 0.0
  %3627 = vmatpush.msra.mxu0 0.0
  %v3628 = vand.u32 %v228, 4294901760
  %3629 = vmatpush.msra.mxu0 %v3628
  %v3630 = vand.u32 %v224, 4294901760
  %3631 = vmatpush.msra.mxu0 %v3630
  %v3632 = vand.u32 %v220, 4294901760
  %3633 = vmatpush.msra.mxu0 %v3632
  %v3634 = vand.u32 %v216, 4294901760
  %3635 = vmatpush.msra.mxu0 %v3634
  %v3636 = vand.u32 %v232, 4294901760
  %3637 = vmatmul.f32.gmra.mxu0 %v3636
  %v3638 = vpop.f32.mrf.mxu0
  %v3639 = vadd.f32 %v3490, %v3638
  %v3640 = vand.u32 %v235, 4294901760
  %3641 = vmatmul.f32.gmra.mxu0 %v3640
  %v3642 = vpop.f32.mrf.mxu0
  %v3643 = vadd.f32 %v3494, %v3642
  %v3644 = vand.u32 %v238, 4294901760
  %3645 = vmatmul.f32.gmra.mxu0 %v3644
  %v3646 = vpop.f32.mrf.mxu0
  %v3647 = vadd.f32 %v3498, %v3646
  %v3648 = vand.u32 %v241, 4294901760
  %3649 = vmatmul.f32.gmra.mxu0 %v3648
  %v3650 = vpop.f32.mrf.mxu0
  %v3651 = vadd.f32 %v3502, %v3650
  %v3652 = vand.u32 %v244, 4294901760
  %3653 = vmatmul.f32.gmra.mxu0 %v3652
  %v3654 = vpop.f32.mrf.mxu0
  %v3655 = vadd.f32 %v3506, %v3654
  %v3656 = vand.u32 %v247, 4294901760
  %3657 = vmatmul.f32.gmra.mxu0 %v3656
  %v3658 = vpop.f32.mrf.mxu0
  %v3659 = vadd.f32 %v3510, %v3658
  %v3660 = vand.u32 %v250, 4294901760
  %3661 = vmatmul.f32.gmra.mxu0 %v3660
  %v3662 = vpop.f32.mrf.mxu0
  %v3663 = vadd.f32 %v3514, %v3662
  %v3664 = vand.u32 %v253, 4294901760
  %3665 = vmatmul.f32.gmra.mxu0 %v3664
  %v3666 = vpop.f32.mrf.mxu0
  %v3667 = vadd.f32 %v3518, %v3666
  %v3668 = vand.u32 %v256, 4294901760
  %3669 = vmatmul.f32.gmra.mxu0 %v3668
  %v3670 = vpop.f32.mrf.mxu0
  %v3671 = vadd.f32 %v3522, %v3670
  %v3672 = vand.u32 %v259, 4294901760
  %3673 = vmatmul.f32.gmra.mxu0 %v3672
  %v3674 = vpop.f32.mrf.mxu0
  %v3675 = vadd.f32 %v3526, %v3674
  %v3676 = vand.u32 %v262, 4294901760
  %3677 = vmatmul.f32.gmra.mxu0 %v3676
  %v3678 = vpop.f32.mrf.mxu0
  %v3679 = vadd.f32 %v3530, %v3678
  %v3680 = vand.u32 %v265, 4294901760
  %3681 = vmatmul.f32.gmra.mxu0 %v3680
  %v3682 = vpop.f32.mrf.mxu0
  %v3683 = vadd.f32 %v3534, %v3682
  %v3684 = vand.u32 %v268, 4294901760
  %3685 = vmatmul.f32.gmra.mxu0 %v3684
  %v3686 = vpop.f32.mrf.mxu0
  %v3687 = vadd.f32 %v3538, %v3686
  %v3688 = vand.u32 %v271, 4294901760
  %3689 = vmatmul.f32.gmra.mxu0 %v3688
  %v3690 = vpop.f32.mrf.mxu0
  %v3691 = vadd.f32 %v3542, %v3690
  %v3692 = vand.u32 %v274, 4294901760
  %3693 = vmatmul.f32.gmra.mxu0 %v3692
  %v3694 = vpop.f32.mrf.mxu0
  %v3695 = vadd.f32 %v3546, %v3694
  %v3696 = vand.u32 %v277, 4294901760
  %3697 = vmatmul.f32.gmra.mxu0 %v3696
  %v3698 = vpop.f32.mrf.mxu0
  %v3699 = vadd.f32 %v3550, %v3698
  %v3700 = vand.u32 %v280, 4294901760
  %3701 = vmatmul.f32.gmra.mxu0 %v3700
  %v3702 = vpop.f32.mrf.mxu0
  %v3703 = vadd.f32 %v3554, %v3702
  %v3704 = vand.u32 %v283, 4294901760
  %3705 = vmatmul.f32.gmra.mxu0 %v3704
  %v3706 = vpop.f32.mrf.mxu0
  %v3707 = vadd.f32 %v3558, %v3706
  %v3708 = vand.u32 %v286, 4294901760
  %3709 = vmatmul.f32.gmra.mxu0 %v3708
  %v3710 = vpop.f32.mrf.mxu0
  %v3711 = vadd.f32 %v3562, %v3710
  %v3712 = vand.u32 %v289, 4294901760
  %3713 = vmatmul.f32.gmra.mxu0 %v3712
  %v3714 = vpop.f32.mrf.mxu0
  %v3715 = vadd.f32 %v3566, %v3714
  %v3716 = vand.u32 %v292, 4294901760
  %3717 = vmatmul.f32.gmra.mxu0 %v3716
  %v3718 = vpop.f32.mrf.mxu0
  %v3719 = vadd.f32 %v3570, %v3718
  %v3720 = vand.u32 %v295, 4294901760
  %3721 = vmatmul.f32.gmra.mxu0 %v3720
  %v3722 = vpop.f32.mrf.mxu0
  %v3723 = vadd.f32 %v3574, %v3722
  %v3724 = vand.u32 %v298, 4294901760
  %3725 = vmatmul.f32.gmra.mxu0 %v3724
  %v3726 = vpop.f32.mrf.mxu0
  %v3727 = vadd.f32 %v3578, %v3726
  %v3728 = vand.u32 %v301, 4294901760
  %3729 = vmatmul.f32.gmra.mxu0 %v3728
  %v3730 = vpop.f32.mrf.mxu0
  %v3731 = vadd.f32 %v3582, %v3730
  %v3732 = vand.u32 %v304, 4294901760
  %3733 = vmatmul.f32.gmra.mxu0 %v3732
  %v3734 = vpop.f32.mrf.mxu0
  %v3735 = vadd.f32 %v3586, %v3734
  %v3736 = vand.u32 %v307, 4294901760
  %3737 = vmatmul.f32.gmra.mxu0 %v3736
  %v3738 = vpop.f32.mrf.mxu0
  %v3739 = vadd.f32 %v3590, %v3738
  %v3740 = vand.u32 %v310, 4294901760
  %3741 = vmatmul.f32.gmra.mxu0 %v3740
  %v3742 = vpop.f32.mrf.mxu0
  %v3743 = vadd.f32 %v3594, %v3742
  %v3744 = vand.u32 %v313, 4294901760
  %3745 = vmatmul.f32.gmra.mxu0 %v3744
  %v3746 = vpop.f32.mrf.mxu0
  %v3747 = vadd.f32 %v3598, %v3746
  %v3748 = vand.u32 %v316, 4294901760
  %3749 = vmatmul.f32.gmra.mxu0 %v3748
  %v3750 = vpop.f32.mrf.mxu0
  %v3751 = vadd.f32 %v3602, %v3750
  %v3752 = vand.u32 %v319, 4294901760
  %3753 = vmatmul.f32.gmra.mxu0 %v3752
  %v3754 = vpop.f32.mrf.mxu0
  %v3755 = vadd.f32 %v3606, %v3754
  %v3756 = vand.u32 %v322, 4294901760
  %3757 = vmatmul.f32.gmra.mxu0 %v3756
  %v3758 = vpop.f32.mrf.mxu0
  %v3759 = vadd.f32 %v3610, %v3758
  %v3760 = vand.u32 %v325, 4294901760
  %3761 = vmatmul.f32.gmra.mxu0 %v3760
  %v3762 = vpop.f32.mrf.mxu0
  %v3763 = vadd.f32 %v3614, %v3762
  %3764 = vdwg.mxu0
  %3765 = vmatpush.msra.mxu0 0.0
  %3766 = vmatpush.msra.mxu0 0.0
  %3767 = vmatpush.msra.mxu0 0.0
  %3768 = vmatpush.msra.mxu0 0.0
  %3769 = vmatpush.msra.mxu0 0.0
  %3770 = vmatpush.msra.mxu0 0.0
  %3771 = vmatpush.msra.mxu0 0.0
  %3772 = vmatpush.msra.mxu0 0.0
  %3773 = vmatpush.msra.mxu0 0.0
  %3774 = vmatpush.msra.mxu0 0.0
  %3775 = vmatpush.msra.mxu0 0.0
  %3776 = vmatpush.msra.mxu0 0.0
  %v3777 = vand.u32 %v229, 4294901760
  %3778 = vmatpush.msra.mxu0 %v3777
  %v3779 = vand.u32 %v225, 4294901760
  %3780 = vmatpush.msra.mxu0 %v3779
  %v3781 = vand.u32 %v221, 4294901760
  %3782 = vmatpush.msra.mxu0 %v3781
  %v3783 = vand.u32 %v217, 4294901760
  %3784 = vmatpush.msra.mxu0 %v3783
  %v3785 = vand.u32 %v232, 4294901760
  %v3786 = vsub.f32 %v232, %v3785
  %v3787 = vand.u32 %v3786, 4294901760
  %v3788 = vsub.f32 %v3786, %v3787
  %v3789 = vand.u32 %v3788, 4294901760
  %3790 = vmatmul.f32.gmra.mxu0 %v3789
  %v3791 = vpop.f32.mrf.mxu0
  %v3792 = vadd.f32 0.0, %v3791
  %v3793 = vand.u32 %v235, 4294901760
  %v3794 = vsub.f32 %v235, %v3793
  %v3795 = vand.u32 %v3794, 4294901760
  %v3796 = vsub.f32 %v3794, %v3795
  %v3797 = vand.u32 %v3796, 4294901760
  %3798 = vmatmul.f32.gmra.mxu0 %v3797
  %v3799 = vpop.f32.mrf.mxu0
  %v3800 = vadd.f32 0.0, %v3799
  %v3801 = vand.u32 %v238, 4294901760
  %v3802 = vsub.f32 %v238, %v3801
  %v3803 = vand.u32 %v3802, 4294901760
  %v3804 = vsub.f32 %v3802, %v3803
  %v3805 = vand.u32 %v3804, 4294901760
  %3806 = vmatmul.f32.gmra.mxu0 %v3805
  %v3807 = vpop.f32.mrf.mxu0
  %v3808 = vadd.f32 0.0, %v3807
  %v3809 = vand.u32 %v241, 4294901760
  %v3810 = vsub.f32 %v241, %v3809
  %v3811 = vand.u32 %v3810, 4294901760
  %v3812 = vsub.f32 %v3810, %v3811
  %v3813 = vand.u32 %v3812, 4294901760
  %3814 = vmatmul.f32.gmra.mxu0 %v3813
  %v3815 = vpop.f32.mrf.mxu0
  %v3816 = vadd.f32 0.0, %v3815
  %v3817 = vand.u32 %v244, 4294901760
  %v3818 = vsub.f32 %v244, %v3817
  %v3819 = vand.u32 %v3818, 4294901760
  %v3820 = vsub.f32 %v3818, %v3819
  %v3821 = vand.u32 %v3820, 4294901760
  %3822 = vmatmul.f32.gmra.mxu0 %v3821
  %v3823 = vpop.f32.mrf.mxu0
  %v3824 = vadd.f32 0.0, %v3823
  %v3825 = vand.u32 %v247, 4294901760
  %v3826 = vsub.f32 %v247, %v3825
  %v3827 = vand.u32 %v3826, 4294901760
  %v3828 = vsub.f32 %v3826, %v3827
  %v3829 = vand.u32 %v3828, 4294901760
  %3830 = vmatmul.f32.gmra.mxu0 %v3829
  %v3831 = vpop.f32.mrf.mxu0
  %v3832 = vadd.f32 0.0, %v3831
  %v3833 = vand.u32 %v250, 4294901760
  %v3834 = vsub.f32 %v250, %v3833
  %v3835 = vand.u32 %v3834, 4294901760
  %v3836 = vsub.f32 %v3834, %v3835
  %v3837 = vand.u32 %v3836, 4294901760
  %3838 = vmatmul.f32.gmra.mxu0 %v3837
  %v3839 = vpop.f32.mrf.mxu0
  %v3840 = vadd.f32 0.0, %v3839
  %v3841 = vand.u32 %v253, 4294901760
  %v3842 = vsub.f32 %v253, %v3841
  %v3843 = vand.u32 %v3842, 4294901760
  %v3844 = vsub.f32 %v3842, %v3843
  %v3845 = vand.u32 %v3844, 4294901760
  %3846 = vmatmul.f32.gmra.mxu0 %v3845
  %v3847 = vpop.f32.mrf.mxu0
  %v3848 = vadd.f32 0.0, %v3847
  %v3849 = vand.u32 %v256, 4294901760
  %v3850 = vsub.f32 %v256, %v3849
  %v3851 = vand.u32 %v3850, 4294901760
  %v3852 = vsub.f32 %v3850, %v3851
  %v3853 = vand.u32 %v3852, 4294901760
  %3854 = vmatmul.f32.gmra.mxu0 %v3853
  %v3855 = vpop.f32.mrf.mxu0
  %v3856 = vadd.f32 0.0, %v3855
  %v3857 = vand.u32 %v259, 4294901760
  %v3858 = vsub.f32 %v259, %v3857
  %v3859 = vand.u32 %v3858, 4294901760
  %v3860 = vsub.f32 %v3858, %v3859
  %v3861 = vand.u32 %v3860, 4294901760
  %3862 = vmatmul.f32.gmra.mxu0 %v3861
  %v3863 = vpop.f32.mrf.mxu0
  %v3864 = vadd.f32 0.0, %v3863
  %v3865 = vand.u32 %v262, 4294901760
  %v3866 = vsub.f32 %v262, %v3865
  %v3867 = vand.u32 %v3866, 4294901760
  %v3868 = vsub.f32 %v3866, %v3867
  %v3869 = vand.u32 %v3868, 4294901760
  %3870 = vmatmul.f32.gmra.mxu0 %v3869
  %v3871 = vpop.f32.mrf.mxu0
  %v3872 = vadd.f32 0.0, %v3871
  %v3873 = vand.u32 %v265, 4294901760
  %v3874 = vsub.f32 %v265, %v3873
  %v3875 = vand.u32 %v3874, 4294901760
  %v3876 = vsub.f32 %v3874, %v3875
  %v3877 = vand.u32 %v3876, 4294901760
  %3878 = vmatmul.f32.gmra.mxu0 %v3877
  %v3879 = vpop.f32.mrf.mxu0
  %v3880 = vadd.f32 0.0, %v3879
  %v3881 = vand.u32 %v268, 4294901760
  %v3882 = vsub.f32 %v268, %v3881
  %v3883 = vand.u32 %v3882, 4294901760
  %v3884 = vsub.f32 %v3882, %v3883
  %v3885 = vand.u32 %v3884, 4294901760
  %3886 = vmatmul.f32.gmra.mxu0 %v3885
  %v3887 = vpop.f32.mrf.mxu0
  %v3888 = vadd.f32 0.0, %v3887
  %v3889 = vand.u32 %v271, 4294901760
  %v3890 = vsub.f32 %v271, %v3889
  %v3891 = vand.u32 %v3890, 4294901760
  %v3892 = vsub.f32 %v3890, %v3891
  %v3893 = vand.u32 %v3892, 4294901760
  %3894 = vmatmul.f32.gmra.mxu0 %v3893
  %v3895 = vpop.f32.mrf.mxu0
  %v3896 = vadd.f32 0.0, %v3895
  %v3897 = vand.u32 %v274, 4294901760
  %v3898 = vsub.f32 %v274, %v3897
  %v3899 = vand.u32 %v3898, 4294901760
  %v3900 = vsub.f32 %v3898, %v3899
  %v3901 = vand.u32 %v3900, 4294901760
  %3902 = vmatmul.f32.gmra.mxu0 %v3901
  %v3903 = vpop.f32.mrf.mxu0
  %v3904 = vadd.f32 0.0, %v3903
  %v3905 = vand.u32 %v277, 4294901760
  %v3906 = vsub.f32 %v277, %v3905
  %v3907 = vand.u32 %v3906, 4294901760
  %v3908 = vsub.f32 %v3906, %v3907
  %v3909 = vand.u32 %v3908, 4294901760
  %3910 = vmatmul.f32.gmra.mxu0 %v3909
  %v3911 = vpop.f32.mrf.mxu0
  %v3912 = vadd.f32 0.0, %v3911
  %v3913 = vand.u32 %v280, 4294901760
  %v3914 = vsub.f32 %v280, %v3913
  %v3915 = vand.u32 %v3914, 4294901760
  %v3916 = vsub.f32 %v3914, %v3915
  %v3917 = vand.u32 %v3916, 4294901760
  %3918 = vmatmul.f32.gmra.mxu0 %v3917
  %v3919 = vpop.f32.mrf.mxu0
  %v3920 = vadd.f32 0.0, %v3919
  %v3921 = vand.u32 %v283, 4294901760
  %v3922 = vsub.f32 %v283, %v3921
  %v3923 = vand.u32 %v3922, 4294901760
  %v3924 = vsub.f32 %v3922, %v3923
  %v3925 = vand.u32 %v3924, 4294901760
  %3926 = vmatmul.f32.gmra.mxu0 %v3925
  %v3927 = vpop.f32.mrf.mxu0
  %v3928 = vadd.f32 0.0, %v3927
  %v3929 = vand.u32 %v286, 4294901760
  %v3930 = vsub.f32 %v286, %v3929
  %v3931 = vand.u32 %v3930, 4294901760
  %v3932 = vsub.f32 %v3930, %v3931
  %v3933 = vand.u32 %v3932, 4294901760
  %3934 = vmatmul.f32.gmra.mxu0 %v3933
  %v3935 = vpop.f32.mrf.mxu0
  %v3936 = vadd.f32 0.0, %v3935
  %v3937 = vand.u32 %v289, 4294901760
  %v3938 = vsub.f32 %v289, %v3937
  %v3939 = vand.u32 %v3938, 4294901760
  %v3940 = vsub.f32 %v3938, %v3939
  %v3941 = vand.u32 %v3940, 4294901760
  %3942 = vmatmul.f32.gmra.mxu0 %v3941
  %v3943 = vpop.f32.mrf.mxu0
  %v3944 = vadd.f32 0.0, %v3943
  %v3945 = vand.u32 %v292, 4294901760
  %v3946 = vsub.f32 %v292, %v3945
  %v3947 = vand.u32 %v3946, 4294901760
  %v3948 = vsub.f32 %v3946, %v3947
  %v3949 = vand.u32 %v3948, 4294901760
  %3950 = vmatmul.f32.gmra.mxu0 %v3949
  %v3951 = vpop.f32.mrf.mxu0
  %v3952 = vadd.f32 0.0, %v3951
  %v3953 = vand.u32 %v295, 4294901760
  %v3954 = vsub.f32 %v295, %v3953
  %v3955 = vand.u32 %v3954, 4294901760
  %v3956 = vsub.f32 %v3954, %v3955
  %v3957 = vand.u32 %v3956, 4294901760
  %3958 = vmatmul.f32.gmra.mxu0 %v3957
  %v3959 = vpop.f32.mrf.mxu0
  %v3960 = vadd.f32 0.0, %v3959
  %v3961 = vand.u32 %v298, 4294901760
  %v3962 = vsub.f32 %v298, %v3961
  %v3963 = vand.u32 %v3962, 4294901760
  %v3964 = vsub.f32 %v3962, %v3963
  %v3965 = vand.u32 %v3964, 4294901760
  %3966 = vmatmul.f32.gmra.mxu0 %v3965
  %v3967 = vpop.f32.mrf.mxu0
  %v3968 = vadd.f32 0.0, %v3967
  %v3969 = vand.u32 %v301, 4294901760
  %v3970 = vsub.f32 %v301, %v3969
  %v3971 = vand.u32 %v3970, 4294901760
  %v3972 = vsub.f32 %v3970, %v3971
  %v3973 = vand.u32 %v3972, 4294901760
  %3974 = vmatmul.f32.gmra.mxu0 %v3973
  %v3975 = vpop.f32.mrf.mxu0
  %v3976 = vadd.f32 0.0, %v3975
  %v3977 = vand.u32 %v304, 4294901760
  %v3978 = vsub.f32 %v304, %v3977
  %v3979 = vand.u32 %v3978, 4294901760
  %v3980 = vsub.f32 %v3978, %v3979
  %v3981 = vand.u32 %v3980, 4294901760
  %3982 = vmatmul.f32.gmra.mxu0 %v3981
  %v3983 = vpop.f32.mrf.mxu0
  %v3984 = vadd.f32 0.0, %v3983
  %v3985 = vand.u32 %v307, 4294901760
  %v3986 = vsub.f32 %v307, %v3985
  %v3987 = vand.u32 %v3986, 4294901760
  %v3988 = vsub.f32 %v3986, %v3987
  %v3989 = vand.u32 %v3988, 4294901760
  %3990 = vmatmul.f32.gmra.mxu0 %v3989
  %v3991 = vpop.f32.mrf.mxu0
  %v3992 = vadd.f32 0.0, %v3991
  %v3993 = vand.u32 %v310, 4294901760
  %v3994 = vsub.f32 %v310, %v3993
  %v3995 = vand.u32 %v3994, 4294901760
  %v3996 = vsub.f32 %v3994, %v3995
  %v3997 = vand.u32 %v3996, 4294901760
  %3998 = vmatmul.f32.gmra.mxu0 %v3997
  %v3999 = vpop.f32.mrf.mxu0
  %v4000 = vadd.f32 0.0, %v3999
  %v4001 = vand.u32 %v313, 4294901760
  %v4002 = vsub.f32 %v313, %v4001
  %v4003 = vand.u32 %v4002, 4294901760
  %v4004 = vsub.f32 %v4002, %v4003
  %v4005 = vand.u32 %v4004, 4294901760
  %4006 = vmatmul.f32.gmra.mxu0 %v4005
  %v4007 = vpop.f32.mrf.mxu0
  %v4008 = vadd.f32 0.0, %v4007
  %v4009 = vand.u32 %v316, 4294901760
  %v4010 = vsub.f32 %v316, %v4009
  %v4011 = vand.u32 %v4010, 4294901760
  %v4012 = vsub.f32 %v4010, %v4011
  %v4013 = vand.u32 %v4012, 4294901760
  %4014 = vmatmul.f32.gmra.mxu0 %v4013
  %v4015 = vpop.f32.mrf.mxu0
  %v4016 = vadd.f32 0.0, %v4015
  %v4017 = vand.u32 %v319, 4294901760
  %v4018 = vsub.f32 %v319, %v4017
  %v4019 = vand.u32 %v4018, 4294901760
  %v4020 = vsub.f32 %v4018, %v4019
  %v4021 = vand.u32 %v4020, 4294901760
  %4022 = vmatmul.f32.gmra.mxu0 %v4021
  %v4023 = vpop.f32.mrf.mxu0
  %v4024 = vadd.f32 0.0, %v4023
  %v4025 = vand.u32 %v322, 4294901760
  %v4026 = vsub.f32 %v322, %v4025
  %v4027 = vand.u32 %v4026, 4294901760
  %v4028 = vsub.f32 %v4026, %v4027
  %v4029 = vand.u32 %v4028, 4294901760
  %4030 = vmatmul.f32.gmra.mxu0 %v4029
  %v4031 = vpop.f32.mrf.mxu0
  %v4032 = vadd.f32 0.0, %v4031
  %v4033 = vand.u32 %v325, 4294901760
  %v4034 = vsub.f32 %v325, %v4033
  %v4035 = vand.u32 %v4034, 4294901760
  %v4036 = vsub.f32 %v4034, %v4035
  %v4037 = vand.u32 %v4036, 4294901760
  %4038 = vmatmul.f32.gmra.mxu0 %v4037
  %v4039 = vpop.f32.mrf.mxu0
  %v4040 = vadd.f32 0.0, %v4039
  %4041 = vdwg.mxu0
  %4042 = vmatpush.msra.mxu0 0.0
  %4043 = vmatpush.msra.mxu0 0.0
  %4044 = vmatpush.msra.mxu0 0.0
  %4045 = vmatpush.msra.mxu0 0.0
  %4046 = vmatpush.msra.mxu0 0.0
  %4047 = vmatpush.msra.mxu0 0.0
  %4048 = vmatpush.msra.mxu0 0.0
  %4049 = vmatpush.msra.mxu0 0.0
  %4050 = vmatpush.msra.mxu0 0.0
  %4051 = vmatpush.msra.mxu0 0.0
  %4052 = vmatpush.msra.mxu0 0.0
  %4053 = vmatpush.msra.mxu0 0.0
  %v4054 = vand.u32 %v229, 4294901760
  %v4055 = vsub.f32 %v229, %v4054
  %v4056 = vand.u32 %v4055, 4294901760
  %v4057 = vsub.f32 %v4055, %v4056
  %v4058 = vand.u32 %v4057, 4294901760
  %4059 = vmatpush.msra.mxu0 %v4058
  %v4060 = vand.u32 %v225, 4294901760
  %v4061 = vsub.f32 %v225, %v4060
  %v4062 = vand.u32 %v4061, 4294901760
  %v4063 = vsub.f32 %v4061, %v4062
  %v4064 = vand.u32 %v4063, 4294901760
  %4065 = vmatpush.msra.mxu0 %v4064
  %v4066 = vand.u32 %v221, 4294901760
  %v4067 = vsub.f32 %v221, %v4066
  %v4068 = vand.u32 %v4067, 4294901760
  %v4069 = vsub.f32 %v4067, %v4068
  %v4070 = vand.u32 %v4069, 4294901760
  %4071 = vmatpush.msra.mxu0 %v4070
  %v4072 = vand.u32 %v217, 4294901760
  %v4073 = vsub.f32 %v217, %v4072
  %v4074 = vand.u32 %v4073, 4294901760
  %v4075 = vsub.f32 %v4073, %v4074
  %v4076 = vand.u32 %v4075, 4294901760
  %4077 = vmatpush.msra.mxu0 %v4076
  %v4078 = vand.u32 %v232, 4294901760
  %4079 = vmatmul.f32.gmra.mxu0 %v4078
  %v4080 = vpop.f32.mrf.mxu0
  %v4081 = vadd.f32 %v3792, %v4080
  %v4082 = vand.u32 %v235, 4294901760
  %4083 = vmatmul.f32.gmra.mxu0 %v4082
  %v4084 = vpop.f32.mrf.mxu0
  %v4085 = vadd.f32 %v3800, %v4084
  %v4086 = vand.u32 %v238, 4294901760
  %4087 = vmatmul.f32.gmra.mxu0 %v4086
  %v4088 = vpop.f32.mrf.mxu0
  %v4089 = vadd.f32 %v3808, %v4088
  %v4090 = vand.u32 %v241, 4294901760
  %4091 = vmatmul.f32.gmra.mxu0 %v4090
  %v4092 = vpop.f32.mrf.mxu0
  %v4093 = vadd.f32 %v3816, %v4092
  %v4094 = vand.u32 %v244, 4294901760
  %4095 = vmatmul.f32.gmra.mxu0 %v4094
  %v4096 = vpop.f32.mrf.mxu0
  %v4097 = vadd.f32 %v3824, %v4096
  %v4098 = vand.u32 %v247, 4294901760
  %4099 = vmatmul.f32.gmra.mxu0 %v4098
  %v4100 = vpop.f32.mrf.mxu0
  %v4101 = vadd.f32 %v3832, %v4100
  %v4102 = vand.u32 %v250, 4294901760
  %4103 = vmatmul.f32.gmra.mxu0 %v4102
  %v4104 = vpop.f32.mrf.mxu0
  %v4105 = vadd.f32 %v3840, %v4104
  %v4106 = vand.u32 %v253, 4294901760
  %4107 = vmatmul.f32.gmra.mxu0 %v4106
  %v4108 = vpop.f32.mrf.mxu0
  %v4109 = vadd.f32 %v3848, %v4108
  %v4110 = vand.u32 %v256, 4294901760
  %4111 = vmatmul.f32.gmra.mxu0 %v4110
  %v4112 = vpop.f32.mrf.mxu0
  %v4113 = vadd.f32 %v3856, %v4112
  %v4114 = vand.u32 %v259, 4294901760
  %4115 = vmatmul.f32.gmra.mxu0 %v4114
  %v4116 = vpop.f32.mrf.mxu0
  %v4117 = vadd.f32 %v3864, %v4116
  %v4118 = vand.u32 %v262, 4294901760
  %4119 = vmatmul.f32.gmra.mxu0 %v4118
  %v4120 = vpop.f32.mrf.mxu0
  %v4121 = vadd.f32 %v3872, %v4120
  %v4122 = vand.u32 %v265, 4294901760
  %4123 = vmatmul.f32.gmra.mxu0 %v4122
  %v4124 = vpop.f32.mrf.mxu0
  %v4125 = vadd.f32 %v3880, %v4124
  %v4126 = vand.u32 %v268, 4294901760
  %4127 = vmatmul.f32.gmra.mxu0 %v4126
  %v4128 = vpop.f32.mrf.mxu0
  %v4129 = vadd.f32 %v3888, %v4128
  %v4130 = vand.u32 %v271, 4294901760
  %4131 = vmatmul.f32.gmra.mxu0 %v4130
  %v4132 = vpop.f32.mrf.mxu0
  %v4133 = vadd.f32 %v3896, %v4132
  %v4134 = vand.u32 %v274, 4294901760
  %4135 = vmatmul.f32.gmra.mxu0 %v4134
  %v4136 = vpop.f32.mrf.mxu0
  %v4137 = vadd.f32 %v3904, %v4136
  %v4138 = vand.u32 %v277, 4294901760
  %4139 = vmatmul.f32.gmra.mxu0 %v4138
  %v4140 = vpop.f32.mrf.mxu0
  %v4141 = vadd.f32 %v3912, %v4140
  %v4142 = vand.u32 %v280, 4294901760
  %4143 = vmatmul.f32.gmra.mxu0 %v4142
  %v4144 = vpop.f32.mrf.mxu0
  %v4145 = vadd.f32 %v3920, %v4144
  %v4146 = vand.u32 %v283, 4294901760
  %4147 = vmatmul.f32.gmra.mxu0 %v4146
  %v4148 = vpop.f32.mrf.mxu0
  %v4149 = vadd.f32 %v3928, %v4148
  %v4150 = vand.u32 %v286, 4294901760
  %4151 = vmatmul.f32.gmra.mxu0 %v4150
  %v4152 = vpop.f32.mrf.mxu0
  %v4153 = vadd.f32 %v3936, %v4152
  %v4154 = vand.u32 %v289, 4294901760
  %4155 = vmatmul.f32.gmra.mxu0 %v4154
  %v4156 = vpop.f32.mrf.mxu0
  %v4157 = vadd.f32 %v3944, %v4156
  %v4158 = vand.u32 %v292, 4294901760
  %4159 = vmatmul.f32.gmra.mxu0 %v4158
  %v4160 = vpop.f32.mrf.mxu0
  %v4161 = vadd.f32 %v3952, %v4160
  %v4162 = vand.u32 %v295, 4294901760
  %4163 = vmatmul.f32.gmra.mxu0 %v4162
  %v4164 = vpop.f32.mrf.mxu0
  %v4165 = vadd.f32 %v3960, %v4164
  %v4166 = vand.u32 %v298, 4294901760
  %4167 = vmatmul.f32.gmra.mxu0 %v4166
  %v4168 = vpop.f32.mrf.mxu0
  %v4169 = vadd.f32 %v3968, %v4168
  %v4170 = vand.u32 %v301, 4294901760
  %4171 = vmatmul.f32.gmra.mxu0 %v4170
  %v4172 = vpop.f32.mrf.mxu0
  %v4173 = vadd.f32 %v3976, %v4172
  %v4174 = vand.u32 %v304, 4294901760
  %4175 = vmatmul.f32.gmra.mxu0 %v4174
  %v4176 = vpop.f32.mrf.mxu0
  %v4177 = vadd.f32 %v3984, %v4176
  %v4178 = vand.u32 %v307, 4294901760
  %4179 = vmatmul.f32.gmra.mxu0 %v4178
  %v4180 = vpop.f32.mrf.mxu0
  %v4181 = vadd.f32 %v3992, %v4180
  %v4182 = vand.u32 %v310, 4294901760
  %4183 = vmatmul.f32.gmra.mxu0 %v4182
  %v4184 = vpop.f32.mrf.mxu0
  %v4185 = vadd.f32 %v4000, %v4184
  %v4186 = vand.u32 %v313, 4294901760
  %4187 = vmatmul.f32.gmra.mxu0 %v4186
  %v4188 = vpop.f32.mrf.mxu0
  %v4189 = vadd.f32 %v4008, %v4188
  %v4190 = vand.u32 %v316, 4294901760
  %4191 = vmatmul.f32.gmra.mxu0 %v4190
  %v4192 = vpop.f32.mrf.mxu0
  %v4193 = vadd.f32 %v4016, %v4192
  %v4194 = vand.u32 %v319, 4294901760
  %4195 = vmatmul.f32.gmra.mxu0 %v4194
  %v4196 = vpop.f32.mrf.mxu0
  %v4197 = vadd.f32 %v4024, %v4196
  %v4198 = vand.u32 %v322, 4294901760
  %4199 = vmatmul.f32.gmra.mxu0 %v4198
  %v4200 = vpop.f32.mrf.mxu0
  %v4201 = vadd.f32 %v4032, %v4200
  %v4202 = vand.u32 %v325, 4294901760
  %4203 = vmatmul.f32.gmra.mxu0 %v4202
  %v4204 = vpop.f32.mrf.mxu0
  %v4205 = vadd.f32 %v4040, %v4204
  %4206 = vdwg.mxu0
  %4207 = vmatpush.msra.mxu0 0.0
  %4208 = vmatpush.msra.mxu0 0.0
  %4209 = vmatpush.msra.mxu0 0.0
  %4210 = vmatpush.msra.mxu0 0.0
  %4211 = vmatpush.msra.mxu0 0.0
  %4212 = vmatpush.msra.mxu0 0.0
  %4213 = vmatpush.msra.mxu0 0.0
  %4214 = vmatpush.msra.mxu0 0.0
  %4215 = vmatpush.msra.mxu0 0.0
  %4216 = vmatpush.msra.mxu0 0.0
  %4217 = vmatpush.msra.mxu0 0.0
  %4218 = vmatpush.msra.mxu0 0.0
  %v4219 = vand.u32 %v229, 4294901760
  %v4220 = vsub.f32 %v229, %v4219
  %4221 = vmatpush.msra.mxu0 %v4220
  %v4222 = vand.u32 %v225, 4294901760
  %v4223 = vsub.f32 %v225, %v4222
  %4224 = vmatpush.msra.mxu0 %v4223
  %v4225 = vand.u32 %v221, 4294901760
  %v4226 = vsub.f32 %v221, %v4225
  %4227 = vmatpush.msra.mxu0 %v4226
  %v4228 = vand.u32 %v217, 4294901760
  %v4229 = vsub.f32 %v217, %v4228
  %4230 = vmatpush.msra.mxu0 %v4229
  %v4231 = vand.u32 %v232, 4294901760
  %v4232 = vsub.f32 %v232, %v4231
  %4233 = vmatmul.f32.gmra.mxu0 %v4232
  %v4234 = vpop.f32.mrf.mxu0
  %v4235 = vadd.f32 %v4081, %v4234
  %v4236 = vand.u32 %v235, 4294901760
  %v4237 = vsub.f32 %v235, %v4236
  %4238 = vmatmul.f32.gmra.mxu0 %v4237
  %v4239 = vpop.f32.mrf.mxu0
  %v4240 = vadd.f32 %v4085, %v4239
  %v4241 = vand.u32 %v238, 4294901760
  %v4242 = vsub.f32 %v238, %v4241
  %4243 = vmatmul.f32.gmra.mxu0 %v4242
  %v4244 = vpop.f32.mrf.mxu0
  %v4245 = vadd.f32 %v4089, %v4244
  %v4246 = vand.u32 %v241, 4294901760
  %v4247 = vsub.f32 %v241, %v4246
  %4248 = vmatmul.f32.gmra.mxu0 %v4247
  %v4249 = vpop.f32.mrf.mxu0
  %v4250 = vadd.f32 %v4093, %v4249
  %v4251 = vand.u32 %v244, 4294901760
  %v4252 = vsub.f32 %v244, %v4251
  %4253 = vmatmul.f32.gmra.mxu0 %v4252
  %v4254 = vpop.f32.mrf.mxu0
  %v4255 = vadd.f32 %v4097, %v4254
  %v4256 = vand.u32 %v247, 4294901760
  %v4257 = vsub.f32 %v247, %v4256
  %4258 = vmatmul.f32.gmra.mxu0 %v4257
  %v4259 = vpop.f32.mrf.mxu0
  %v4260 = vadd.f32 %v4101, %v4259
  %v4261 = vand.u32 %v250, 4294901760
  %v4262 = vsub.f32 %v250, %v4261
  %4263 = vmatmul.f32.gmra.mxu0 %v4262
  %v4264 = vpop.f32.mrf.mxu0
  %v4265 = vadd.f32 %v4105, %v4264
  %v4266 = vand.u32 %v253, 4294901760
  %v4267 = vsub.f32 %v253, %v4266
  %4268 = vmatmul.f32.gmra.mxu0 %v4267
  %v4269 = vpop.f32.mrf.mxu0
  %v4270 = vadd.f32 %v4109, %v4269
  %v4271 = vand.u32 %v256, 4294901760
  %v4272 = vsub.f32 %v256, %v4271
  %4273 = vmatmul.f32.gmra.mxu0 %v4272
  %v4274 = vpop.f32.mrf.mxu0
  %v4275 = vadd.f32 %v4113, %v4274
  %v4276 = vand.u32 %v259, 4294901760
  %v4277 = vsub.f32 %v259, %v4276
  %4278 = vmatmul.f32.gmra.mxu0 %v4277
  %v4279 = vpop.f32.mrf.mxu0
  %v4280 = vadd.f32 %v4117, %v4279
  %v4281 = vand.u32 %v262, 4294901760
  %v4282 = vsub.f32 %v262, %v4281
  %4283 = vmatmul.f32.gmra.mxu0 %v4282
  %v4284 = vpop.f32.mrf.mxu0
  %v4285 = vadd.f32 %v4121, %v4284
  %v4286 = vand.u32 %v265, 4294901760
  %v4287 = vsub.f32 %v265, %v4286
  %4288 = vmatmul.f32.gmra.mxu0 %v4287
  %v4289 = vpop.f32.mrf.mxu0
  %v4290 = vadd.f32 %v4125, %v4289
  %v4291 = vand.u32 %v268, 4294901760
  %v4292 = vsub.f32 %v268, %v4291
  %4293 = vmatmul.f32.gmra.mxu0 %v4292
  %v4294 = vpop.f32.mrf.mxu0
  %v4295 = vadd.f32 %v4129, %v4294
  %v4296 = vand.u32 %v271, 4294901760
  %v4297 = vsub.f32 %v271, %v4296
  %4298 = vmatmul.f32.gmra.mxu0 %v4297
  %v4299 = vpop.f32.mrf.mxu0
  %v4300 = vadd.f32 %v4133, %v4299
  %v4301 = vand.u32 %v274, 4294901760
  %v4302 = vsub.f32 %v274, %v4301
  %4303 = vmatmul.f32.gmra.mxu0 %v4302
  %v4304 = vpop.f32.mrf.mxu0
  %v4305 = vadd.f32 %v4137, %v4304
  %v4306 = vand.u32 %v277, 4294901760
  %v4307 = vsub.f32 %v277, %v4306
  %4308 = vmatmul.f32.gmra.mxu0 %v4307
  %v4309 = vpop.f32.mrf.mxu0
  %v4310 = vadd.f32 %v4141, %v4309
  %v4311 = vand.u32 %v280, 4294901760
  %v4312 = vsub.f32 %v280, %v4311
  %4313 = vmatmul.f32.gmra.mxu0 %v4312
  %v4314 = vpop.f32.mrf.mxu0
  %v4315 = vadd.f32 %v4145, %v4314
  %v4316 = vand.u32 %v283, 4294901760
  %v4317 = vsub.f32 %v283, %v4316
  %4318 = vmatmul.f32.gmra.mxu0 %v4317
  %v4319 = vpop.f32.mrf.mxu0
  %v4320 = vadd.f32 %v4149, %v4319
  %v4321 = vand.u32 %v286, 4294901760
  %v4322 = vsub.f32 %v286, %v4321
  %4323 = vmatmul.f32.gmra.mxu0 %v4322
  %v4324 = vpop.f32.mrf.mxu0
  %v4325 = vadd.f32 %v4153, %v4324
  %v4326 = vand.u32 %v289, 4294901760
  %v4327 = vsub.f32 %v289, %v4326
  %4328 = vmatmul.f32.gmra.mxu0 %v4327
  %v4329 = vpop.f32.mrf.mxu0
  %v4330 = vadd.f32 %v4157, %v4329
  %v4331 = vand.u32 %v292, 4294901760
  %v4332 = vsub.f32 %v292, %v4331
  %4333 = vmatmul.f32.gmra.mxu0 %v4332
  %v4334 = vpop.f32.mrf.mxu0
  %v4335 = vadd.f32 %v4161, %v4334
  %v4336 = vand.u32 %v295, 4294901760
  %v4337 = vsub.f32 %v295, %v4336
  %4338 = vmatmul.f32.gmra.mxu0 %v4337
  %v4339 = vpop.f32.mrf.mxu0
  %v4340 = vadd.f32 %v4165, %v4339
  %v4341 = vand.u32 %v298, 4294901760
  %v4342 = vsub.f32 %v298, %v4341
  %4343 = vmatmul.f32.gmra.mxu0 %v4342
  %v4344 = vpop.f32.mrf.mxu0
  %v4345 = vadd.f32 %v4169, %v4344
  %v4346 = vand.u32 %v301, 4294901760
  %v4347 = vsub.f32 %v301, %v4346
  %4348 = vmatmul.f32.gmra.mxu0 %v4347
  %v4349 = vpop.f32.mrf.mxu0
  %v4350 = vadd.f32 %v4173, %v4349
  %v4351 = vand.u32 %v304, 4294901760
  %v4352 = vsub.f32 %v304, %v4351
  %4353 = vmatmul.f32.gmra.mxu0 %v4352
  %v4354 = vpop.f32.mrf.mxu0
  %v4355 = vadd.f32 %v4177, %v4354
  %v4356 = vand.u32 %v307, 4294901760
  %v4357 = vsub.f32 %v307, %v4356
  %4358 = vmatmul.f32.gmra.mxu0 %v4357
  %v4359 = vpop.f32.mrf.mxu0
  %v4360 = vadd.f32 %v4181, %v4359
  %v4361 = vand.u32 %v310, 4294901760
  %v4362 = vsub.f32 %v310, %v4361
  %4363 = vmatmul.f32.gmra.mxu0 %v4362
  %v4364 = vpop.f32.mrf.mxu0
  %v4365 = vadd.f32 %v4185, %v4364
  %v4366 = vand.u32 %v313, 4294901760
  %v4367 = vsub.f32 %v313, %v4366
  %4368 = vmatmul.f32.gmra.mxu0 %v4367
  %v4369 = vpop.f32.mrf.mxu0
  %v4370 = vadd.f32 %v4189, %v4369
  %v4371 = vand.u32 %v316, 4294901760
  %v4372 = vsub.f32 %v316, %v4371
  %4373 = vmatmul.f32.gmra.mxu0 %v4372
  %v4374 = vpop.f32.mrf.mxu0
  %v4375 = vadd.f32 %v4193, %v4374
  %v4376 = vand.u32 %v319, 4294901760
  %v4377 = vsub.f32 %v319, %v4376
  %4378 = vmatmul.f32.gmra.mxu0 %v4377
  %v4379 = vpop.f32.mrf.mxu0
  %v4380 = vadd.f32 %v4197, %v4379
  %v4381 = vand.u32 %v322, 4294901760
  %v4382 = vsub.f32 %v322, %v4381
  %4383 = vmatmul.f32.gmra.mxu0 %v4382
  %v4384 = vpop.f32.mrf.mxu0
  %v4385 = vadd.f32 %v4201, %v4384
  %v4386 = vand.u32 %v325, 4294901760
  %v4387 = vsub.f32 %v325, %v4386
  %4388 = vmatmul.f32.gmra.mxu0 %v4387
  %v4389 = vpop.f32.mrf.mxu0
  %v4390 = vadd.f32 %v4205, %v4389
  %4391 = vdwg.mxu0
  %4392 = vmatpush.msra.mxu0 0.0
  %4393 = vmatpush.msra.mxu0 0.0
  %4394 = vmatpush.msra.mxu0 0.0
  %4395 = vmatpush.msra.mxu0 0.0
  %4396 = vmatpush.msra.mxu0 0.0
  %4397 = vmatpush.msra.mxu0 0.0
  %4398 = vmatpush.msra.mxu0 0.0
  %4399 = vmatpush.msra.mxu0 0.0
  %4400 = vmatpush.msra.mxu0 0.0
  %4401 = vmatpush.msra.mxu0 0.0
  %4402 = vmatpush.msra.mxu0 0.0
  %4403 = vmatpush.msra.mxu0 0.0
  %v4404 = vand.u32 %v229, 4294901760
  %4405 = vmatpush.msra.mxu0 %v4404
  %v4406 = vand.u32 %v225, 4294901760
  %4407 = vmatpush.msra.mxu0 %v4406
  %v4408 = vand.u32 %v221, 4294901760
  %4409 = vmatpush.msra.mxu0 %v4408
  %v4410 = vand.u32 %v217, 4294901760
  %4411 = vmatpush.msra.mxu0 %v4410
  %v4412 = vand.u32 %v232, 4294901760
  %v4413 = vsub.f32 %v232, %v4412
  %v4414 = vand.u32 %v4413, 4294901760
  %4415 = vmatmul.f32.gmra.mxu0 %v4414
  %v4416 = vpop.f32.mrf.mxu0
  %v4417 = vadd.f32 %v4235, %v4416
  %v4418 = vand.u32 %v235, 4294901760
  %v4419 = vsub.f32 %v235, %v4418
  %v4420 = vand.u32 %v4419, 4294901760
  %4421 = vmatmul.f32.gmra.mxu0 %v4420
  %v4422 = vpop.f32.mrf.mxu0
  %v4423 = vadd.f32 %v4240, %v4422
  %v4424 = vand.u32 %v238, 4294901760
  %v4425 = vsub.f32 %v238, %v4424
  %v4426 = vand.u32 %v4425, 4294901760
  %4427 = vmatmul.f32.gmra.mxu0 %v4426
  %v4428 = vpop.f32.mrf.mxu0
  %v4429 = vadd.f32 %v4245, %v4428
  %v4430 = vand.u32 %v241, 4294901760
  %v4431 = vsub.f32 %v241, %v4430
  %v4432 = vand.u32 %v4431, 4294901760
  %4433 = vmatmul.f32.gmra.mxu0 %v4432
  %v4434 = vpop.f32.mrf.mxu0
  %v4435 = vadd.f32 %v4250, %v4434
  %v4436 = vand.u32 %v244, 4294901760
  %v4437 = vsub.f32 %v244, %v4436
  %v4438 = vand.u32 %v4437, 4294901760
  %4439 = vmatmul.f32.gmra.mxu0 %v4438
  %v4440 = vpop.f32.mrf.mxu0
  %v4441 = vadd.f32 %v4255, %v4440
  %v4442 = vand.u32 %v247, 4294901760
  %v4443 = vsub.f32 %v247, %v4442
  %v4444 = vand.u32 %v4443, 4294901760
  %4445 = vmatmul.f32.gmra.mxu0 %v4444
  %v4446 = vpop.f32.mrf.mxu0
  %v4447 = vadd.f32 %v4260, %v4446
  %v4448 = vand.u32 %v250, 4294901760
  %v4449 = vsub.f32 %v250, %v4448
  %v4450 = vand.u32 %v4449, 4294901760
  %4451 = vmatmul.f32.gmra.mxu0 %v4450
  %v4452 = vpop.f32.mrf.mxu0
  %v4453 = vadd.f32 %v4265, %v4452
  %v4454 = vand.u32 %v253, 4294901760
  %v4455 = vsub.f32 %v253, %v4454
  %v4456 = vand.u32 %v4455, 4294901760
  %4457 = vmatmul.f32.gmra.mxu0 %v4456
  %v4458 = vpop.f32.mrf.mxu0
  %v4459 = vadd.f32 %v4270, %v4458
  %v4460 = vand.u32 %v256, 4294901760
  %v4461 = vsub.f32 %v256, %v4460
  %v4462 = vand.u32 %v4461, 4294901760
  %4463 = vmatmul.f32.gmra.mxu0 %v4462
  %v4464 = vpop.f32.mrf.mxu0
  %v4465 = vadd.f32 %v4275, %v4464
  %v4466 = vand.u32 %v259, 4294901760
  %v4467 = vsub.f32 %v259, %v4466
  %v4468 = vand.u32 %v4467, 4294901760
  %4469 = vmatmul.f32.gmra.mxu0 %v4468
  %v4470 = vpop.f32.mrf.mxu0
  %v4471 = vadd.f32 %v4280, %v4470
  %v4472 = vand.u32 %v262, 4294901760
  %v4473 = vsub.f32 %v262, %v4472
  %v4474 = vand.u32 %v4473, 4294901760
  %4475 = vmatmul.f32.gmra.mxu0 %v4474
  %v4476 = vpop.f32.mrf.mxu0
  %v4477 = vadd.f32 %v4285, %v4476
  %v4478 = vand.u32 %v265, 4294901760
  %v4479 = vsub.f32 %v265, %v4478
  %v4480 = vand.u32 %v4479, 4294901760
  %4481 = vmatmul.f32.gmra.mxu0 %v4480
  %v4482 = vpop.f32.mrf.mxu0
  %v4483 = vadd.f32 %v4290, %v4482
  %v4484 = vand.u32 %v268, 4294901760
  %v4485 = vsub.f32 %v268, %v4484
  %v4486 = vand.u32 %v4485, 4294901760
  %4487 = vmatmul.f32.gmra.mxu0 %v4486
  %v4488 = vpop.f32.mrf.mxu0
  %v4489 = vadd.f32 %v4295, %v4488
  %v4490 = vand.u32 %v271, 4294901760
  %v4491 = vsub.f32 %v271, %v4490
  %v4492 = vand.u32 %v4491, 4294901760
  %4493 = vmatmul.f32.gmra.mxu0 %v4492
  %v4494 = vpop.f32.mrf.mxu0
  %v4495 = vadd.f32 %v4300, %v4494
  %v4496 = vand.u32 %v274, 4294901760
  %v4497 = vsub.f32 %v274, %v4496
  %v4498 = vand.u32 %v4497, 4294901760
  %4499 = vmatmul.f32.gmra.mxu0 %v4498
  %v4500 = vpop.f32.mrf.mxu0
  %v4501 = vadd.f32 %v4305, %v4500
  %v4502 = vand.u32 %v277, 4294901760
  %v4503 = vsub.f32 %v277, %v4502
  %v4504 = vand.u32 %v4503, 4294901760
  %4505 = vmatmul.f32.gmra.mxu0 %v4504
  %v4506 = vpop.f32.mrf.mxu0
  %v4507 = vadd.f32 %v4310, %v4506
  %v4508 = vand.u32 %v280, 4294901760
  %v4509 = vsub.f32 %v280, %v4508
  %v4510 = vand.u32 %v4509, 4294901760
  %4511 = vmatmul.f32.gmra.mxu0 %v4510
  %v4512 = vpop.f32.mrf.mxu0
  %v4513 = vadd.f32 %v4315, %v4512
  %v4514 = vand.u32 %v283, 4294901760
  %v4515 = vsub.f32 %v283, %v4514
  %v4516 = vand.u32 %v4515, 4294901760
  %4517 = vmatmul.f32.gmra.mxu0 %v4516
  %v4518 = vpop.f32.mrf.mxu0
  %v4519 = vadd.f32 %v4320, %v4518
  %v4520 = vand.u32 %v286, 4294901760
  %v4521 = vsub.f32 %v286, %v4520
  %v4522 = vand.u32 %v4521, 4294901760
  %4523 = vmatmul.f32.gmra.mxu0 %v4522
  %v4524 = vpop.f32.mrf.mxu0
  %v4525 = vadd.f32 %v4325, %v4524
  %v4526 = vand.u32 %v289, 4294901760
  %v4527 = vsub.f32 %v289, %v4526
  %v4528 = vand.u32 %v4527, 4294901760
  %4529 = vmatmul.f32.gmra.mxu0 %v4528
  %v4530 = vpop.f32.mrf.mxu0
  %v4531 = vadd.f32 %v4330, %v4530
  %v4532 = vand.u32 %v292, 4294901760
  %v4533 = vsub.f32 %v292, %v4532
  %v4534 = vand.u32 %v4533, 4294901760
  %4535 = vmatmul.f32.gmra.mxu0 %v4534
  %v4536 = vpop.f32.mrf.mxu0
  %v4537 = vadd.f32 %v4335, %v4536
  %v4538 = vand.u32 %v295, 4294901760
  %v4539 = vsub.f32 %v295, %v4538
  %v4540 = vand.u32 %v4539, 4294901760
  %4541 = vmatmul.f32.gmra.mxu0 %v4540
  %v4542 = vpop.f32.mrf.mxu0
  %v4543 = vadd.f32 %v4340, %v4542
  %v4544 = vand.u32 %v298, 4294901760
  %v4545 = vsub.f32 %v298, %v4544
  %v4546 = vand.u32 %v4545, 4294901760
  %4547 = vmatmul.f32.gmra.mxu0 %v4546
  %v4548 = vpop.f32.mrf.mxu0
  %v4549 = vadd.f32 %v4345, %v4548
  %v4550 = vand.u32 %v301, 4294901760
  %v4551 = vsub.f32 %v301, %v4550
  %v4552 = vand.u32 %v4551, 4294901760
  %4553 = vmatmul.f32.gmra.mxu0 %v4552
  %v4554 = vpop.f32.mrf.mxu0
  %v4555 = vadd.f32 %v4350, %v4554
  %v4556 = vand.u32 %v304, 4294901760
  %v4557 = vsub.f32 %v304, %v4556
  %v4558 = vand.u32 %v4557, 4294901760
  %4559 = vmatmul.f32.gmra.mxu0 %v4558
  %v4560 = vpop.f32.mrf.mxu0
  %v4561 = vadd.f32 %v4355, %v4560
  %v4562 = vand.u32 %v307, 4294901760
  %v4563 = vsub.f32 %v307, %v4562
  %v4564 = vand.u32 %v4563, 4294901760
  %4565 = vmatmul.f32.gmra.mxu0 %v4564
  %v4566 = vpop.f32.mrf.mxu0
  %v4567 = vadd.f32 %v4360, %v4566
  %v4568 = vand.u32 %v310, 4294901760
  %v4569 = vsub.f32 %v310, %v4568
  %v4570 = vand.u32 %v4569, 4294901760
  %4571 = vmatmul.f32.gmra.mxu0 %v4570
  %v4572 = vpop.f32.mrf.mxu0
  %v4573 = vadd.f32 %v4365, %v4572
  %v4574 = vand.u32 %v313, 4294901760
  %v4575 = vsub.f32 %v313, %v4574
  %v4576 = vand.u32 %v4575, 4294901760
  %4577 = vmatmul.f32.gmra.mxu0 %v4576
  %v4578 = vpop.f32.mrf.mxu0
  %v4579 = vadd.f32 %v4370, %v4578
  %v4580 = vand.u32 %v316, 4294901760
  %v4581 = vsub.f32 %v316, %v4580
  %v4582 = vand.u32 %v4581, 4294901760
  %4583 = vmatmul.f32.gmra.mxu0 %v4582
  %v4584 = vpop.f32.mrf.mxu0
  %v4585 = vadd.f32 %v4375, %v4584
  %v4586 = vand.u32 %v319, 4294901760
  %v4587 = vsub.f32 %v319, %v4586
  %v4588 = vand.u32 %v4587, 4294901760
  %4589 = vmatmul.f32.gmra.mxu0 %v4588
  %v4590 = vpop.f32.mrf.mxu0
  %v4591 = vadd.f32 %v4380, %v4590
  %v4592 = vand.u32 %v322, 4294901760
  %v4593 = vsub.f32 %v322, %v4592
  %v4594 = vand.u32 %v4593, 4294901760
  %4595 = vmatmul.f32.gmra.mxu0 %v4594
  %v4596 = vpop.f32.mrf.mxu0
  %v4597 = vadd.f32 %v4385, %v4596
  %v4598 = vand.u32 %v325, 4294901760
  %v4599 = vsub.f32 %v325, %v4598
  %v4600 = vand.u32 %v4599, 4294901760
  %4601 = vmatmul.f32.gmra.mxu0 %v4600
  %v4602 = vpop.f32.mrf.mxu0
  %v4603 = vadd.f32 %v4390, %v4602
  %4604 = vdwg.mxu0
  %4605 = vmatpush.msra.mxu0 0.0
  %4606 = vmatpush.msra.mxu0 0.0
  %4607 = vmatpush.msra.mxu0 0.0
  %4608 = vmatpush.msra.mxu0 0.0
  %4609 = vmatpush.msra.mxu0 0.0
  %4610 = vmatpush.msra.mxu0 0.0
  %4611 = vmatpush.msra.mxu0 0.0
  %4612 = vmatpush.msra.mxu0 0.0
  %4613 = vmatpush.msra.mxu0 0.0
  %4614 = vmatpush.msra.mxu0 0.0
  %4615 = vmatpush.msra.mxu0 0.0
  %4616 = vmatpush.msra.mxu0 0.0
  %v4617 = vand.u32 %v229, 4294901760
  %v4618 = vsub.f32 %v229, %v4617
  %v4619 = vand.u32 %v4618, 4294901760
  %4620 = vmatpush.msra.mxu0 %v4619
  %v4621 = vand.u32 %v225, 4294901760
  %v4622 = vsub.f32 %v225, %v4621
  %v4623 = vand.u32 %v4622, 4294901760
  %4624 = vmatpush.msra.mxu0 %v4623
  %v4625 = vand.u32 %v221, 4294901760
  %v4626 = vsub.f32 %v221, %v4625
  %v4627 = vand.u32 %v4626, 4294901760
  %4628 = vmatpush.msra.mxu0 %v4627
  %v4629 = vand.u32 %v217, 4294901760
  %v4630 = vsub.f32 %v217, %v4629
  %v4631 = vand.u32 %v4630, 4294901760
  %4632 = vmatpush.msra.mxu0 %v4631
  %v4633 = vand.u32 %v232, 4294901760
  %4634 = vmatmul.f32.gmra.mxu0 %v4633
  %v4635 = vpop.f32.mrf.mxu0
  %v4636 = vadd.f32 %v4417, %v4635
  %v4637 = vand.u32 %v235, 4294901760
  %4638 = vmatmul.f32.gmra.mxu0 %v4637
  %v4639 = vpop.f32.mrf.mxu0
  %v4640 = vadd.f32 %v4423, %v4639
  %v4641 = vand.u32 %v238, 4294901760
  %4642 = vmatmul.f32.gmra.mxu0 %v4641
  %v4643 = vpop.f32.mrf.mxu0
  %v4644 = vadd.f32 %v4429, %v4643
  %v4645 = vand.u32 %v241, 4294901760
  %4646 = vmatmul.f32.gmra.mxu0 %v4645
  %v4647 = vpop.f32.mrf.mxu0
  %v4648 = vadd.f32 %v4435, %v4647
  %v4649 = vand.u32 %v244, 4294901760
  %4650 = vmatmul.f32.gmra.mxu0 %v4649
  %v4651 = vpop.f32.mrf.mxu0
  %v4652 = vadd.f32 %v4441, %v4651
  %v4653 = vand.u32 %v247, 4294901760
  %4654 = vmatmul.f32.gmra.mxu0 %v4653
  %v4655 = vpop.f32.mrf.mxu0
  %v4656 = vadd.f32 %v4447, %v4655
  %v4657 = vand.u32 %v250, 4294901760
  %4658 = vmatmul.f32.gmra.mxu0 %v4657
  %v4659 = vpop.f32.mrf.mxu0
  %v4660 = vadd.f32 %v4453, %v4659
  %v4661 = vand.u32 %v253, 4294901760
  %4662 = vmatmul.f32.gmra.mxu0 %v4661
  %v4663 = vpop.f32.mrf.mxu0
  %v4664 = vadd.f32 %v4459, %v4663
  %v4665 = vand.u32 %v256, 4294901760
  %4666 = vmatmul.f32.gmra.mxu0 %v4665
  %v4667 = vpop.f32.mrf.mxu0
  %v4668 = vadd.f32 %v4465, %v4667
  %v4669 = vand.u32 %v259, 4294901760
  %4670 = vmatmul.f32.gmra.mxu0 %v4669
  %v4671 = vpop.f32.mrf.mxu0
  %v4672 = vadd.f32 %v4471, %v4671
  %v4673 = vand.u32 %v262, 4294901760
  %4674 = vmatmul.f32.gmra.mxu0 %v4673
  %v4675 = vpop.f32.mrf.mxu0
  %v4676 = vadd.f32 %v4477, %v4675
  %v4677 = vand.u32 %v265, 4294901760
  %4678 = vmatmul.f32.gmra.mxu0 %v4677
  %v4679 = vpop.f32.mrf.mxu0
  %v4680 = vadd.f32 %v4483, %v4679
  %v4681 = vand.u32 %v268, 4294901760
  %4682 = vmatmul.f32.gmra.mxu0 %v4681
  %v4683 = vpop.f32.mrf.mxu0
  %v4684 = vadd.f32 %v4489, %v4683
  %v4685 = vand.u32 %v271, 4294901760
  %4686 = vmatmul.f32.gmra.mxu0 %v4685
  %v4687 = vpop.f32.mrf.mxu0
  %v4688 = vadd.f32 %v4495, %v4687
  %v4689 = vand.u32 %v274, 4294901760
  %4690 = vmatmul.f32.gmra.mxu0 %v4689
  %v4691 = vpop.f32.mrf.mxu0
  %v4692 = vadd.f32 %v4501, %v4691
  %v4693 = vand.u32 %v277, 4294901760
  %4694 = vmatmul.f32.gmra.mxu0 %v4693
  %v4695 = vpop.f32.mrf.mxu0
  %v4696 = vadd.f32 %v4507, %v4695
  %v4697 = vand.u32 %v280, 4294901760
  %4698 = vmatmul.f32.gmra.mxu0 %v4697
  %v4699 = vpop.f32.mrf.mxu0
  %v4700 = vadd.f32 %v4513, %v4699
  %v4701 = vand.u32 %v283, 4294901760
  %4702 = vmatmul.f32.gmra.mxu0 %v4701
  %v4703 = vpop.f32.mrf.mxu0
  %v4704 = vadd.f32 %v4519, %v4703
  %v4705 = vand.u32 %v286, 4294901760
  %4706 = vmatmul.f32.gmra.mxu0 %v4705
  %v4707 = vpop.f32.mrf.mxu0
  %v4708 = vadd.f32 %v4525, %v4707
  %v4709 = vand.u32 %v289, 4294901760
  %4710 = vmatmul.f32.gmra.mxu0 %v4709
  %v4711 = vpop.f32.mrf.mxu0
  %v4712 = vadd.f32 %v4531, %v4711
  %v4713 = vand.u32 %v292, 4294901760
  %4714 = vmatmul.f32.gmra.mxu0 %v4713
  %v4715 = vpop.f32.mrf.mxu0
  %v4716 = vadd.f32 %v4537, %v4715
  %v4717 = vand.u32 %v295, 4294901760
  %4718 = vmatmul.f32.gmra.mxu0 %v4717
  %v4719 = vpop.f32.mrf.mxu0
  %v4720 = vadd.f32 %v4543, %v4719
  %v4721 = vand.u32 %v298, 4294901760
  %4722 = vmatmul.f32.gmra.mxu0 %v4721
  %v4723 = vpop.f32.mrf.mxu0
  %v4724 = vadd.f32 %v4549, %v4723
  %v4725 = vand.u32 %v301, 4294901760
  %4726 = vmatmul.f32.gmra.mxu0 %v4725
  %v4727 = vpop.f32.mrf.mxu0
  %v4728 = vadd.f32 %v4555, %v4727
  %v4729 = vand.u32 %v304, 4294901760
  %4730 = vmatmul.f32.gmra.mxu0 %v4729
  %v4731 = vpop.f32.mrf.mxu0
  %v4732 = vadd.f32 %v4561, %v4731
  %v4733 = vand.u32 %v307, 4294901760
  %4734 = vmatmul.f32.gmra.mxu0 %v4733
  %v4735 = vpop.f32.mrf.mxu0
  %v4736 = vadd.f32 %v4567, %v4735
  %v4737 = vand.u32 %v310, 4294901760
  %4738 = vmatmul.f32.gmra.mxu0 %v4737
  %v4739 = vpop.f32.mrf.mxu0
  %v4740 = vadd.f32 %v4573, %v4739
  %v4741 = vand.u32 %v313, 4294901760
  %4742 = vmatmul.f32.gmra.mxu0 %v4741
  %v4743 = vpop.f32.mrf.mxu0
  %v4744 = vadd.f32 %v4579, %v4743
  %v4745 = vand.u32 %v316, 4294901760
  %4746 = vmatmul.f32.gmra.mxu0 %v4745
  %v4747 = vpop.f32.mrf.mxu0
  %v4748 = vadd.f32 %v4585, %v4747
  %v4749 = vand.u32 %v319, 4294901760
  %4750 = vmatmul.f32.gmra.mxu0 %v4749
  %v4751 = vpop.f32.mrf.mxu0
  %v4752 = vadd.f32 %v4591, %v4751
  %v4753 = vand.u32 %v322, 4294901760
  %4754 = vmatmul.f32.gmra.mxu0 %v4753
  %v4755 = vpop.f32.mrf.mxu0
  %v4756 = vadd.f32 %v4597, %v4755
  %v4757 = vand.u32 %v325, 4294901760
  %4758 = vmatmul.f32.gmra.mxu0 %v4757
  %v4759 = vpop.f32.mrf.mxu0
  %v4760 = vadd.f32 %v4603, %v4759
  %4761 = vdwg.mxu0
  %4762 = vmatpush.msra.mxu0 0.0
  %4763 = vmatpush.msra.mxu0 0.0
  %4764 = vmatpush.msra.mxu0 0.0
  %4765 = vmatpush.msra.mxu0 0.0
  %4766 = vmatpush.msra.mxu0 0.0
  %4767 = vmatpush.msra.mxu0 0.0
  %4768 = vmatpush.msra.mxu0 0.0
  %4769 = vmatpush.msra.mxu0 0.0
  %4770 = vmatpush.msra.mxu0 0.0
  %4771 = vmatpush.msra.mxu0 0.0
  %4772 = vmatpush.msra.mxu0 0.0
  %4773 = vmatpush.msra.mxu0 0.0
  %v4774 = vand.u32 %v229, 4294901760
  %4775 = vmatpush.msra.mxu0 %v4774
  %v4776 = vand.u32 %v225, 4294901760
  %4777 = vmatpush.msra.mxu0 %v4776
  %v4778 = vand.u32 %v221, 4294901760
  %4779 = vmatpush.msra.mxu0 %v4778
  %v4780 = vand.u32 %v217, 4294901760
  %4781 = vmatpush.msra.mxu0 %v4780
  %v4782 = vand.u32 %v232, 4294901760
  %4783 = vmatmul.f32.gmra.mxu0 %v4782
  %v4784 = vpop.f32.mrf.mxu0
  %v4785 = vadd.f32 %v4636, %v4784
  %v4786 = vand.u32 %v235, 4294901760
  %4787 = vmatmul.f32.gmra.mxu0 %v4786
  %v4788 = vpop.f32.mrf.mxu0
  %v4789 = vadd.f32 %v4640, %v4788
  %v4790 = vand.u32 %v238, 4294901760
  %4791 = vmatmul.f32.gmra.mxu0 %v4790
  %v4792 = vpop.f32.mrf.mxu0
  %v4793 = vadd.f32 %v4644, %v4792
  %v4794 = vand.u32 %v241, 4294901760
  %4795 = vmatmul.f32.gmra.mxu0 %v4794
  %v4796 = vpop.f32.mrf.mxu0
  %v4797 = vadd.f32 %v4648, %v4796
  %v4798 = vand.u32 %v244, 4294901760
  %4799 = vmatmul.f32.gmra.mxu0 %v4798
  %v4800 = vpop.f32.mrf.mxu0
  %v4801 = vadd.f32 %v4652, %v4800
  %v4802 = vand.u32 %v247, 4294901760
  %4803 = vmatmul.f32.gmra.mxu0 %v4802
  %v4804 = vpop.f32.mrf.mxu0
  %v4805 = vadd.f32 %v4656, %v4804
  %v4806 = vand.u32 %v250, 4294901760
  %4807 = vmatmul.f32.gmra.mxu0 %v4806
  %v4808 = vpop.f32.mrf.mxu0
  %v4809 = vadd.f32 %v4660, %v4808
  %v4810 = vand.u32 %v253, 4294901760
  %4811 = vmatmul.f32.gmra.mxu0 %v4810
  %v4812 = vpop.f32.mrf.mxu0
  %v4813 = vadd.f32 %v4664, %v4812
  %v4814 = vand.u32 %v256, 4294901760
  %4815 = vmatmul.f32.gmra.mxu0 %v4814
  %v4816 = vpop.f32.mrf.mxu0
  %v4817 = vadd.f32 %v4668, %v4816
  %v4818 = vand.u32 %v259, 4294901760
  %4819 = vmatmul.f32.gmra.mxu0 %v4818
  %v4820 = vpop.f32.mrf.mxu0
  %v4821 = vadd.f32 %v4672, %v4820
  %v4822 = vand.u32 %v262, 4294901760
  %4823 = vmatmul.f32.gmra.mxu0 %v4822
  %v4824 = vpop.f32.mrf.mxu0
  %v4825 = vadd.f32 %v4676, %v4824
  %v4826 = vand.u32 %v265, 4294901760
  %4827 = vmatmul.f32.gmra.mxu0 %v4826
  %v4828 = vpop.f32.mrf.mxu0
  %v4829 = vadd.f32 %v4680, %v4828
  %v4830 = vand.u32 %v268, 4294901760
  %4831 = vmatmul.f32.gmra.mxu0 %v4830
  %v4832 = vpop.f32.mrf.mxu0
  %v4833 = vadd.f32 %v4684, %v4832
  %v4834 = vand.u32 %v271, 4294901760
  %4835 = vmatmul.f32.gmra.mxu0 %v4834
  %v4836 = vpop.f32.mrf.mxu0
  %v4837 = vadd.f32 %v4688, %v4836
  %v4838 = vand.u32 %v274, 4294901760
  %4839 = vmatmul.f32.gmra.mxu0 %v4838
  %v4840 = vpop.f32.mrf.mxu0
  %v4841 = vadd.f32 %v4692, %v4840
  %v4842 = vand.u32 %v277, 4294901760
  %4843 = vmatmul.f32.gmra.mxu0 %v4842
  %v4844 = vpop.f32.mrf.mxu0
  %v4845 = vadd.f32 %v4696, %v4844
  %v4846 = vand.u32 %v280, 4294901760
  %4847 = vmatmul.f32.gmra.mxu0 %v4846
  %v4848 = vpop.f32.mrf.mxu0
  %v4849 = vadd.f32 %v4700, %v4848
  %v4850 = vand.u32 %v283, 4294901760
  %4851 = vmatmul.f32.gmra.mxu0 %v4850
  %v4852 = vpop.f32.mrf.mxu0
  %v4853 = vadd.f32 %v4704, %v4852
  %v4854 = vand.u32 %v286, 4294901760
  %4855 = vmatmul.f32.gmra.mxu0 %v4854
  %v4856 = vpop.f32.mrf.mxu0
  %v4857 = vadd.f32 %v4708, %v4856
  %v4858 = vand.u32 %v289, 4294901760
  %4859 = vmatmul.f32.gmra.mxu0 %v4858
  %v4860 = vpop.f32.mrf.mxu0
  %v4861 = vadd.f32 %v4712, %v4860
  %v4862 = vand.u32 %v292, 4294901760
  %4863 = vmatmul.f32.gmra.mxu0 %v4862
  %v4864 = vpop.f32.mrf.mxu0
  %v4865 = vadd.f32 %v4716, %v4864
  %v4866 = vand.u32 %v295, 4294901760
  %4867 = vmatmul.f32.gmra.mxu0 %v4866
  %v4868 = vpop.f32.mrf.mxu0
  %v4869 = vadd.f32 %v4720, %v4868
  %v4870 = vand.u32 %v298, 4294901760
  %4871 = vmatmul.f32.gmra.mxu0 %v4870
  %v4872 = vpop.f32.mrf.mxu0
  %v4873 = vadd.f32 %v4724, %v4872
  %v4874 = vand.u32 %v301, 4294901760
  %4875 = vmatmul.f32.gmra.mxu0 %v4874
  %v4876 = vpop.f32.mrf.mxu0
  %v4877 = vadd.f32 %v4728, %v4876
  %v4878 = vand.u32 %v304, 4294901760
  %4879 = vmatmul.f32.gmra.mxu0 %v4878
  %v4880 = vpop.f32.mrf.mxu0
  %v4881 = vadd.f32 %v4732, %v4880
  %v4882 = vand.u32 %v307, 4294901760
  %4883 = vmatmul.f32.gmra.mxu0 %v4882
  %v4884 = vpop.f32.mrf.mxu0
  %v4885 = vadd.f32 %v4736, %v4884
  %v4886 = vand.u32 %v310, 4294901760
  %4887 = vmatmul.f32.gmra.mxu0 %v4886
  %v4888 = vpop.f32.mrf.mxu0
  %v4889 = vadd.f32 %v4740, %v4888
  %v4890 = vand.u32 %v313, 4294901760
  %4891 = vmatmul.f32.gmra.mxu0 %v4890
  %v4892 = vpop.f32.mrf.mxu0
  %v4893 = vadd.f32 %v4744, %v4892
  %v4894 = vand.u32 %v316, 4294901760
  %4895 = vmatmul.f32.gmra.mxu0 %v4894
  %v4896 = vpop.f32.mrf.mxu0
  %v4897 = vadd.f32 %v4748, %v4896
  %v4898 = vand.u32 %v319, 4294901760
  %4899 = vmatmul.f32.gmra.mxu0 %v4898
  %v4900 = vpop.f32.mrf.mxu0
  %v4901 = vadd.f32 %v4752, %v4900
  %v4902 = vand.u32 %v322, 4294901760
  %4903 = vmatmul.f32.gmra.mxu0 %v4902
  %v4904 = vpop.f32.mrf.mxu0
  %v4905 = vadd.f32 %v4756, %v4904
  %v4906 = vand.u32 %v325, 4294901760
  %4907 = vmatmul.f32.gmra.mxu0 %v4906
  %v4908 = vpop.f32.mrf.mxu0
  %v4909 = vadd.f32 %v4760, %v4908
  %4910 = vdwg.mxu0
  %s4911 = smul.u32 0, 256
  %v4912 = vlaneseq
  %v4913 = vshrl.u32 %v4912, 7
  %v4914 = vadd.s32 %v4913, 8
  %v4915 = vadd.s32 %v4913, 16
  %v4916 = vadd.s32 %v4913, 24
  %v4917 = vadd.s32 %v4913, 32
  %v4918 = vadd.s32 %v4913, 40
  %v4919 = vadd.s32 %v4913, 48
  %v4920 = vadd.s32 %v4913, 56
  %v4921 = vadd.s32 %v4913, 64
  %v4922 = vadd.s32 %v4913, 72
  %v4923 = vadd.s32 %v4913, 80
  %v4924 = vadd.s32 %v4913, 88
  %v4925 = vadd.s32 %v4913, 96
  %v4926 = vadd.s32 %v4913, 104
  %v4927 = vadd.s32 %v4913, 112
  %v4928 = vadd.s32 %v4913, 120
  %v4929 = vadd.s32 %v4913, 128
  %v4930 = vadd.s32 %v4913, 136
  %v4931 = vadd.s32 %v4913, 144
  %v4932 = vadd.s32 %v4913, 152
  %v4933 = vadd.s32 %v4913, 160
  %v4934 = vadd.s32 %v4913, 168
  %v4935 = vadd.s32 %v4913, 176
  %v4936 = vadd.s32 %v4913, 184
  %v4937 = vadd.s32 %v4913, 192
  %v4938 = vadd.s32 %v4913, 200
  %v4939 = vadd.s32 %v4913, 208
  %v4940 = vadd.s32 %v4913, 216
  %v4941 = vadd.s32 %v4913, 224
  %v4942 = vadd.s32 %v4913, 232
  %v4943 = vadd.s32 %v4913, 240
  %v4944 = vadd.s32 %v4913, 248
  %v4945 = vstv %s4911
  %v4946 = vadd.s32 %v4945, %v4913
  %v4947 = vadd.s32 %v4945, %v4914
  %v4948 = vadd.s32 %v4945, %v4915
  %v4949 = vadd.s32 %v4945, %v4916
  %v4950 = vadd.s32 %v4945, %v4917
  %v4951 = vadd.s32 %v4945, %v4918
  %v4952 = vadd.s32 %v4945, %v4919
  %v4953 = vadd.s32 %v4945, %v4920
  %v4954 = vadd.s32 %v4945, %v4921
  %v4955 = vadd.s32 %v4945, %v4922
  %v4956 = vadd.s32 %v4945, %v4923
  %v4957 = vadd.s32 %v4945, %v4924
  %v4958 = vadd.s32 %v4945, %v4925
  %v4959 = vadd.s32 %v4945, %v4926
  %v4960 = vadd.s32 %v4945, %v4927
  %v4961 = vadd.s32 %v4945, %v4928
  %v4962 = vadd.s32 %v4945, %v4929
  %v4963 = vadd.s32 %v4945, %v4930
  %v4964 = vadd.s32 %v4945, %v4931
  %v4965 = vadd.s32 %v4945, %v4932
  %v4966 = vadd.s32 %v4945, %v4933
  %v4967 = vadd.s32 %v4945, %v4934
  %v4968 = vadd.s32 %v4945, %v4935
  %v4969 = vadd.s32 %v4945, %v4936
  %v4970 = vadd.s32 %v4945, %v4937
  %v4971 = vadd.s32 %v4945, %v4938
  %v4972 = vadd.s32 %v4945, %v4939
  %v4973 = vadd.s32 %v4945, %v4940
  %v4974 = vadd.s32 %v4945, %v4941
  %v4975 = vadd.s32 %v4945, %v4942
  %v4976 = vadd.s32 %v4945, %v4943
  %v4977 = vadd.s32 %v4945, %v4944
  %s4978 = smul.u32 0, 512
  %v4979 = vlaneseq
  %v4980 = vand.u32 %v4979, 127
  %v4981 = vadd.s32 %v4980, 128
  %v4982 = vadd.s32 %v4980, 256
  %v4983 = vadd.s32 %v4980, 384
  %v4984 = vstv %s4978
  %v4985 = vadd.s32 %v4984, %v4980
  %v4986 = vadd.s32 %v4984, %v4981
  %v4987 = vadd.s32 %v4984, %v4982
  %v4988 = vadd.s32 %v4984, %v4983
  %vm4989 = vcmp.lt.s32.totalorder %v4985, 16
  %vm4990 = vcmp.lt.s32.totalorder %v4986, 16
  %vm4991 = vcmp.lt.s32.totalorder %v4987, 16
  %vm4992 = vcmp.lt.s32.totalorder %v4988, 16
  %vm4993 = vcmp.ne.s32.totalorder %v4946, %v4985
  %vm4994 = vcmp.ne.s32.totalorder %v4946, %v4986
  %vm4995 = vcmp.ne.s32.totalorder %v4946, %v4987
  %vm4996 = vcmp.ne.s32.totalorder %v4946, %v4988
  %vm4997 = vcmp.ne.s32.totalorder %v4947, %v4985
  %vm4998 = vcmp.ne.s32.totalorder %v4947, %v4986
  %vm4999 = vcmp.ne.s32.totalorder %v4947, %v4987
  %vm5000 = vcmp.ne.s32.totalorder %v4947, %v4988
  %vm5001 = vcmp.ne.s32.totalorder %v4948, %v4985
  %vm5002 = vcmp.ne.s32.totalorder %v4948, %v4986
  %vm5003 = vcmp.ne.s32.totalorder %v4948, %v4987
  %vm5004 = vcmp.ne.s32.totalorder %v4948, %v4988
  %vm5005 = vcmp.ne.s32.totalorder %v4949, %v4985
  %vm5006 = vcmp.ne.s32.totalorder %v4949, %v4986
  %vm5007 = vcmp.ne.s32.totalorder %v4949, %v4987
  %vm5008 = vcmp.ne.s32.totalorder %v4949, %v4988
  %vm5009 = vcmp.ne.s32.totalorder %v4950, %v4985
  %vm5010 = vcmp.ne.s32.totalorder %v4950, %v4986
  %vm5011 = vcmp.ne.s32.totalorder %v4950, %v4987
  %vm5012 = vcmp.ne.s32.totalorder %v4950, %v4988
  %vm5013 = vcmp.ne.s32.totalorder %v4951, %v4985
  %vm5014 = vcmp.ne.s32.totalorder %v4951, %v4986
  %vm5015 = vcmp.ne.s32.totalorder %v4951, %v4987
  %vm5016 = vcmp.ne.s32.totalorder %v4951, %v4988
  %vm5017 = vcmp.ne.s32.totalorder %v4952, %v4985
  %vm5018 = vcmp.ne.s32.totalorder %v4952, %v4986
  %vm5019 = vcmp.ne.s32.totalorder %v4952, %v4987
  %vm5020 = vcmp.ne.s32.totalorder %v4952, %v4988
  %vm5021 = vcmp.ne.s32.totalorder %v4953, %v4985
  %vm5022 = vcmp.ne.s32.totalorder %v4953, %v4986
  %vm5023 = vcmp.ne.s32.totalorder %v4953, %v4987
  %vm5024 = vcmp.ne.s32.totalorder %v4953, %v4988
  %vm5025 = vcmp.ne.s32.totalorder %v4954, %v4985
  %vm5026 = vcmp.ne.s32.totalorder %v4954, %v4986
  %vm5027 = vcmp.ne.s32.totalorder %v4954, %v4987
  %vm5028 = vcmp.ne.s32.totalorder %v4954, %v4988
  %vm5029 = vcmp.ne.s32.totalorder %v4955, %v4985
  %vm5030 = vcmp.ne.s32.totalorder %v4955, %v4986
  %vm5031 = vcmp.ne.s32.totalorder %v4955, %v4987
  %vm5032 = vcmp.ne.s32.totalorder %v4955, %v4988
  %vm5033 = vcmp.ne.s32.totalorder %v4956, %v4985
  %vm5034 = vcmp.ne.s32.totalorder %v4956, %v4986
  %vm5035 = vcmp.ne.s32.totalorder %v4956, %v4987
  %vm5036 = vcmp.ne.s32.totalorder %v4956, %v4988
  %vm5037 = vcmp.ne.s32.totalorder %v4957, %v4985
  %vm5038 = vcmp.ne.s32.totalorder %v4957, %v4986
  %vm5039 = vcmp.ne.s32.totalorder %v4957, %v4987
  %vm5040 = vcmp.ne.s32.totalorder %v4957, %v4988
  %vm5041 = vcmp.ne.s32.totalorder %v4958, %v4985
  %vm5042 = vcmp.ne.s32.totalorder %v4958, %v4986
  %vm5043 = vcmp.ne.s32.totalorder %v4958, %v4987
  %vm5044 = vcmp.ne.s32.totalorder %v4958, %v4988
  %vm5045 = vcmp.ne.s32.totalorder %v4959, %v4985
  %vm5046 = vcmp.ne.s32.totalorder %v4959, %v4986
  %vm5047 = vcmp.ne.s32.totalorder %v4959, %v4987
  %vm5048 = vcmp.ne.s32.totalorder %v4959, %v4988
  %vm5049 = vcmp.ne.s32.totalorder %v4960, %v4985
  %vm5050 = vcmp.ne.s32.totalorder %v4960, %v4986
  %vm5051 = vcmp.ne.s32.totalorder %v4960, %v4987
  %vm5052 = vcmp.ne.s32.totalorder %v4960, %v4988
  %vm5053 = vcmp.ne.s32.totalorder %v4961, %v4985
  %vm5054 = vcmp.ne.s32.totalorder %v4961, %v4986
  %vm5055 = vcmp.ne.s32.totalorder %v4961, %v4987
  %vm5056 = vcmp.ne.s32.totalorder %v4961, %v4988
  %vm5057 = vcmp.ne.s32.totalorder %v4962, %v4985
  %vm5058 = vcmp.ne.s32.totalorder %v4962, %v4986
  %vm5059 = vcmp.ne.s32.totalorder %v4962, %v4987
  %vm5060 = vcmp.ne.s32.totalorder %v4962, %v4988
  %vm5061 = vcmp.ne.s32.totalorder %v4963, %v4985
  %vm5062 = vcmp.ne.s32.totalorder %v4963, %v4986
  %vm5063 = vcmp.ne.s32.totalorder %v4963, %v4987
  %vm5064 = vcmp.ne.s32.totalorder %v4963, %v4988
  %vm5065 = vcmp.ne.s32.totalorder %v4964, %v4985
  %vm5066 = vcmp.ne.s32.totalorder %v4964, %v4986
  %vm5067 = vcmp.ne.s32.totalorder %v4964, %v4987
  %vm5068 = vcmp.ne.s32.totalorder %v4964, %v4988
  %vm5069 = vcmp.ne.s32.totalorder %v4965, %v4985
  %vm5070 = vcmp.ne.s32.totalorder %v4965, %v4986
  %vm5071 = vcmp.ne.s32.totalorder %v4965, %v4987
  %vm5072 = vcmp.ne.s32.totalorder %v4965, %v4988
  %vm5073 = vcmp.ne.s32.totalorder %v4966, %v4985
  %vm5074 = vcmp.ne.s32.totalorder %v4966, %v4986
  %vm5075 = vcmp.ne.s32.totalorder %v4966, %v4987
  %vm5076 = vcmp.ne.s32.totalorder %v4966, %v4988
  %vm5077 = vcmp.ne.s32.totalorder %v4967, %v4985
  %vm5078 = vcmp.ne.s32.totalorder %v4967, %v4986
  %vm5079 = vcmp.ne.s32.totalorder %v4967, %v4987
  %vm5080 = vcmp.ne.s32.totalorder %v4967, %v4988
  %vm5081 = vcmp.ne.s32.totalorder %v4968, %v4985
  %vm5082 = vcmp.ne.s32.totalorder %v4968, %v4986
  %vm5083 = vcmp.ne.s32.totalorder %v4968, %v4987
  %vm5084 = vcmp.ne.s32.totalorder %v4968, %v4988
  %vm5085 = vcmp.ne.s32.totalorder %v4969, %v4985
  %vm5086 = vcmp.ne.s32.totalorder %v4969, %v4986
  %vm5087 = vcmp.ne.s32.totalorder %v4969, %v4987
  %vm5088 = vcmp.ne.s32.totalorder %v4969, %v4988
  %vm5089 = vcmp.ne.s32.totalorder %v4970, %v4985
  %vm5090 = vcmp.ne.s32.totalorder %v4970, %v4986
  %vm5091 = vcmp.ne.s32.totalorder %v4970, %v4987
  %vm5092 = vcmp.ne.s32.totalorder %v4970, %v4988
  %vm5093 = vcmp.ne.s32.totalorder %v4971, %v4985
  %vm5094 = vcmp.ne.s32.totalorder %v4971, %v4986
  %vm5095 = vcmp.ne.s32.totalorder %v4971, %v4987
  %vm5096 = vcmp.ne.s32.totalorder %v4971, %v4988
  %vm5097 = vcmp.ne.s32.totalorder %v4972, %v4985
  %vm5098 = vcmp.ne.s32.totalorder %v4972, %v4986
  %vm5099 = vcmp.ne.s32.totalorder %v4972, %v4987
  %vm5100 = vcmp.ne.s32.totalorder %v4972, %v4988
  %vm5101 = vcmp.ne.s32.totalorder %v4973, %v4985
  %vm5102 = vcmp.ne.s32.totalorder %v4973, %v4986
  %vm5103 = vcmp.ne.s32.totalorder %v4973, %v4987
  %vm5104 = vcmp.ne.s32.totalorder %v4973, %v4988
  %vm5105 = vcmp.ne.s32.totalorder %v4974, %v4985
  %vm5106 = vcmp.ne.s32.totalorder %v4974, %v4986
  %vm5107 = vcmp.ne.s32.totalorder %v4974, %v4987
  %vm5108 = vcmp.ne.s32.totalorder %v4974, %v4988
  %vm5109 = vcmp.ne.s32.totalorder %v4975, %v4985
  %vm5110 = vcmp.ne.s32.totalorder %v4975, %v4986
  %vm5111 = vcmp.ne.s32.totalorder %v4975, %v4987
  %vm5112 = vcmp.ne.s32.totalorder %v4975, %v4988
  %vm5113 = vcmp.ne.s32.totalorder %v4976, %v4985
  %vm5114 = vcmp.ne.s32.totalorder %v4976, %v4986
  %vm5115 = vcmp.ne.s32.totalorder %v4976, %v4987
  %vm5116 = vcmp.ne.s32.totalorder %v4976, %v4988
  %vm5117 = vcmp.ne.s32.totalorder %v4977, %v4985
  %vm5118 = vcmp.ne.s32.totalorder %v4977, %v4986
  %vm5119 = vcmp.ne.s32.totalorder %v4977, %v4987
  %vm5120 = vcmp.ne.s32.totalorder %v4977, %v4988
  %vm5121 = vmand %vm4989, %vm4993
  %vm5122 = vmand %vm4990, %vm4994
  %vm5123 = vmand %vm4991, %vm4995
  %vm5124 = vmand %vm4992, %vm4996
  %vm5125 = vmand %vm4989, %vm4997
  %vm5126 = vmand %vm4990, %vm4998
  %vm5127 = vmand %vm4991, %vm4999
  %vm5128 = vmand %vm4992, %vm5000
  %vm5129 = vmand %vm4989, %vm5001
  %vm5130 = vmand %vm4990, %vm5002
  %vm5131 = vmand %vm4991, %vm5003
  %vm5132 = vmand %vm4992, %vm5004
  %vm5133 = vmand %vm4989, %vm5005
  %vm5134 = vmand %vm4990, %vm5006
  %vm5135 = vmand %vm4991, %vm5007
  %vm5136 = vmand %vm4992, %vm5008
  %vm5137 = vmand %vm4989, %vm5009
  %vm5138 = vmand %vm4990, %vm5010
  %vm5139 = vmand %vm4991, %vm5011
  %vm5140 = vmand %vm4992, %vm5012
  %vm5141 = vmand %vm4989, %vm5013
  %vm5142 = vmand %vm4990, %vm5014
  %vm5143 = vmand %vm4991, %vm5015
  %vm5144 = vmand %vm4992, %vm5016
  %vm5145 = vmand %vm4989, %vm5017
  %vm5146 = vmand %vm4990, %vm5018
  %vm5147 = vmand %vm4991, %vm5019
  %vm5148 = vmand %vm4992, %vm5020
  %vm5149 = vmand %vm4989, %vm5021
  %vm5150 = vmand %vm4990, %vm5022
  %vm5151 = vmand %vm4991, %vm5023
  %vm5152 = vmand %vm4992, %vm5024
  %vm5153 = vmand %vm4989, %vm5025
  %vm5154 = vmand %vm4990, %vm5026
  %vm5155 = vmand %vm4991, %vm5027
  %vm5156 = vmand %vm4992, %vm5028
  %vm5157 = vmand %vm4989, %vm5029
  %vm5158 = vmand %vm4990, %vm5030
  %vm5159 = vmand %vm4991, %vm5031
  %vm5160 = vmand %vm4992, %vm5032
  %vm5161 = vmand %vm4989, %vm5033
  %vm5162 = vmand %vm4990, %vm5034
  %vm5163 = vmand %vm4991, %vm5035
  %vm5164 = vmand %vm4992, %vm5036
  %vm5165 = vmand %vm4989, %vm5037
  %vm5166 = vmand %vm4990, %vm5038
  %vm5167 = vmand %vm4991, %vm5039
  %vm5168 = vmand %vm4992, %vm5040
  %vm5169 = vmand %vm4989, %vm5041
  %vm5170 = vmand %vm4990, %vm5042
  %vm5171 = vmand %vm4991, %vm5043
  %vm5172 = vmand %vm4992, %vm5044
  %vm5173 = vmand %vm4989, %vm5045
  %vm5174 = vmand %vm4990, %vm5046
  %vm5175 = vmand %vm4991, %vm5047
  %vm5176 = vmand %vm4992, %vm5048
  %vm5177 = vmand %vm4989, %vm5049
  %vm5178 = vmand %vm4990, %vm5050
  %vm5179 = vmand %vm4991, %vm5051
  %vm5180 = vmand %vm4992, %vm5052
  %vm5181 = vmand %vm4989, %vm5053
  %vm5182 = vmand %vm4990, %vm5054
  %vm5183 = vmand %vm4991, %vm5055
  %vm5184 = vmand %vm4992, %vm5056
  %vm5185 = vmand %vm4989, %vm5057
  %vm5186 = vmand %vm4990, %vm5058
  %vm5187 = vmand %vm4991, %vm5059
  %vm5188 = vmand %vm4992, %vm5060
  %vm5189 = vmand %vm4989, %vm5061
  %vm5190 = vmand %vm4990, %vm5062
  %vm5191 = vmand %vm4991, %vm5063
  %vm5192 = vmand %vm4992, %vm5064
  %vm5193 = vmand %vm4989, %vm5065
  %vm5194 = vmand %vm4990, %vm5066
  %vm5195 = vmand %vm4991, %vm5067
  %vm5196 = vmand %vm4992, %vm5068
  %vm5197 = vmand %vm4989, %vm5069
  %vm5198 = vmand %vm4990, %vm5070
  %vm5199 = vmand %vm4991, %vm5071
  %vm5200 = vmand %vm4992, %vm5072
  %vm5201 = vmand %vm4989, %vm5073
  %vm5202 = vmand %vm4990, %vm5074
  %vm5203 = vmand %vm4991, %vm5075
  %vm5204 = vmand %vm4992, %vm5076
  %vm5205 = vmand %vm4989, %vm5077
  %vm5206 = vmand %vm4990, %vm5078
  %vm5207 = vmand %vm4991, %vm5079
  %vm5208 = vmand %vm4992, %vm5080
  %vm5209 = vmand %vm4989, %vm5081
  %vm5210 = vmand %vm4990, %vm5082
  %vm5211 = vmand %vm4991, %vm5083
  %vm5212 = vmand %vm4992, %vm5084
  %vm5213 = vmand %vm4989, %vm5085
  %vm5214 = vmand %vm4990, %vm5086
  %vm5215 = vmand %vm4991, %vm5087
  %vm5216 = vmand %vm4992, %vm5088
  %vm5217 = vmand %vm4989, %vm5089
  %vm5218 = vmand %vm4990, %vm5090
  %vm5219 = vmand %vm4991, %vm5091
  %vm5220 = vmand %vm4992, %vm5092
  %vm5221 = vmand %vm4989, %vm5093
  %vm5222 = vmand %vm4990, %vm5094
  %vm5223 = vmand %vm4991, %vm5095
  %vm5224 = vmand %vm4992, %vm5096
  %vm5225 = vmand %vm4989, %vm5097
  %vm5226 = vmand %vm4990, %vm5098
  %vm5227 = vmand %vm4991, %vm5099
  %vm5228 = vmand %vm4992, %vm5100
  %vm5229 = vmand %vm4989, %vm5101
  %vm5230 = vmand %vm4990, %vm5102
  %vm5231 = vmand %vm4991, %vm5103
  %vm5232 = vmand %vm4992, %vm5104
  %vm5233 = vmand %vm4989, %vm5105
  %vm5234 = vmand %vm4990, %vm5106
  %vm5235 = vmand %vm4991, %vm5107
  %vm5236 = vmand %vm4992, %vm5108
  %vm5237 = vmand %vm4989, %vm5109
  %vm5238 = vmand %vm4990, %vm5110
  %vm5239 = vmand %vm4991, %vm5111
  %vm5240 = vmand %vm4992, %vm5112
  %vm5241 = vmand %vm4989, %vm5113
  %vm5242 = vmand %vm4990, %vm5114
  %vm5243 = vmand %vm4991, %vm5115
  %vm5244 = vmand %vm4992, %vm5116
  %vm5245 = vmand %vm4989, %vm5117
  %vm5246 = vmand %vm4990, %vm5118
  %vm5247 = vmand %vm4991, %vm5119
  %vm5248 = vmand %vm4992, %vm5120
  %v5249 = vld [vmem:[%s2] sm:$0xff]
  %v5250 = vld [vmem:[%s2 + $0x8] sm:$0xff]
  %v5251 = vld [vmem:[%s2 + $0x10] sm:$0xff]
  %v5252 = vld [vmem:[%s2 + $0x18] sm:$0xff]
  %v5253 = vld [vmem:[%s2 + $0x20] sm:$0xff]
  %v5254 = vld [vmem:[%s2 + $0x28] sm:$0xff]
  %v5255 = vld [vmem:[%s2 + $0x30] sm:$0xff]
  %v5256 = vld [vmem:[%s2 + $0x38] sm:$0xff]
  %v5257 = vld [vmem:[%s2 + $0x40] sm:$0xff]
  %v5258 = vld [vmem:[%s2 + $0x48] sm:$0xff]
  %v5259 = vld [vmem:[%s2 + $0x50] sm:$0xff]
  %v5260 = vld [vmem:[%s2 + $0x58] sm:$0xff]
  %v5261 = vld [vmem:[%s2 + $0x60] sm:$0xff]
  %v5262 = vld [vmem:[%s2 + $0x68] sm:$0xff]
  %v5263 = vld [vmem:[%s2 + $0x70] sm:$0xff]
  %v5264 = vld [vmem:[%s2 + $0x78] sm:$0xff]
  %v5265 = vld [vmem:[%s2 + $0x80] sm:$0xff]
  %v5266 = vld [vmem:[%s2 + $0x88] sm:$0xff]
  %v5267 = vld [vmem:[%s2 + $0x90] sm:$0xff]
  %v5268 = vld [vmem:[%s2 + $0x98] sm:$0xff]
  %v5269 = vld [vmem:[%s2 + $0xa0] sm:$0xff]
  %v5270 = vld [vmem:[%s2 + $0xa8] sm:$0xff]
  %v5271 = vld [vmem:[%s2 + $0xb0] sm:$0xff]
  %v5272 = vld [vmem:[%s2 + $0xb8] sm:$0xff]
  %v5273 = vld [vmem:[%s2 + $0xc0] sm:$0xff]
  %v5274 = vld [vmem:[%s2 + $0xc8] sm:$0xff]
  %v5275 = vld [vmem:[%s2 + $0xd0] sm:$0xff]
  %v5276 = vld [vmem:[%s2 + $0xd8] sm:$0xff]
  %v5277 = vld [vmem:[%s2 + $0xe0] sm:$0xff]
  %v5278 = vld [vmem:[%s2 + $0xe8] sm:$0xff]
  %v5279 = vld [vmem:[%s2 + $0xf0] sm:$0xff]
  %v5280 = vld [vmem:[%s2 + $0xf8] sm:$0xff]
  %v5281 = vld [vmem:[%s3] sm:$0xf]
  %5282 = vset.pattern.permute.xlu0 0
  %5283 = vperm.xlu0 %5282, %v5249
  %v5284 = vpop.permute.xlu0 %5283
  %5285 = vset.pattern.permute.xlu0 0
  %5286 = vperm.xlu0 %5285, %v5250
  %v5287 = vpop.permute.xlu0 %5286
  %5288 = vset.pattern.permute.xlu0 0
  %5289 = vperm.xlu0 %5288, %v5251
  %v5290 = vpop.permute.xlu0 %5289
  %5291 = vset.pattern.permute.xlu0 0
  %5292 = vperm.xlu0 %5291, %v5252
  %v5293 = vpop.permute.xlu0 %5292
  %5294 = vset.pattern.permute.xlu0 0
  %5295 = vperm.xlu0 %5294, %v5253
  %v5296 = vpop.permute.xlu0 %5295
  %5297 = vset.pattern.permute.xlu0 0
  %5298 = vperm.xlu0 %5297, %v5254
  %v5299 = vpop.permute.xlu0 %5298
  %5300 = vset.pattern.permute.xlu0 0
  %5301 = vperm.xlu0 %5300, %v5255
  %v5302 = vpop.permute.xlu0 %5301
  %5303 = vset.pattern.permute.xlu0 0
  %5304 = vperm.xlu0 %5303, %v5256
  %v5305 = vpop.permute.xlu0 %5304
  %5306 = vset.pattern.permute.xlu0 0
  %5307 = vperm.xlu0 %5306, %v5257
  %v5308 = vpop.permute.xlu0 %5307
  %5309 = vset.pattern.permute.xlu0 0
  %5310 = vperm.xlu0 %5309, %v5258
  %v5311 = vpop.permute.xlu0 %5310
  %5312 = vset.pattern.permute.xlu0 0
  %5313 = vperm.xlu0 %5312, %v5259
  %v5314 = vpop.permute.xlu0 %5313
  %5315 = vset.pattern.permute.xlu0 0
  %5316 = vperm.xlu0 %5315, %v5260
  %v5317 = vpop.permute.xlu0 %5316
  %5318 = vset.pattern.permute.xlu0 0
  %5319 = vperm.xlu0 %5318, %v5261
  %v5320 = vpop.permute.xlu0 %5319
  %5321 = vset.pattern.permute.xlu0 0
  %5322 = vperm.xlu0 %5321, %v5262
  %v5323 = vpop.permute.xlu0 %5322
  %5324 = vset.pattern.permute.xlu0 0
  %5325 = vperm.xlu0 %5324, %v5263
  %v5326 = vpop.permute.xlu0 %5325
  %5327 = vset.pattern.permute.xlu0 0
  %5328 = vperm.xlu0 %5327, %v5264
  %v5329 = vpop.permute.xlu0 %5328
  %5330 = vset.pattern.permute.xlu0 0
  %5331 = vperm.xlu0 %5330, %v5265
  %v5332 = vpop.permute.xlu0 %5331
  %5333 = vset.pattern.permute.xlu0 0
  %5334 = vperm.xlu0 %5333, %v5266
  %v5335 = vpop.permute.xlu0 %5334
  %5336 = vset.pattern.permute.xlu0 0
  %5337 = vperm.xlu0 %5336, %v5267
  %v5338 = vpop.permute.xlu0 %5337
  %5339 = vset.pattern.permute.xlu0 0
  %5340 = vperm.xlu0 %5339, %v5268
  %v5341 = vpop.permute.xlu0 %5340
  %5342 = vset.pattern.permute.xlu0 0
  %5343 = vperm.xlu0 %5342, %v5269
  %v5344 = vpop.permute.xlu0 %5343
  %5345 = vset.pattern.permute.xlu0 0
  %5346 = vperm.xlu0 %5345, %v5270
  %v5347 = vpop.permute.xlu0 %5346
  %5348 = vset.pattern.permute.xlu0 0
  %5349 = vperm.xlu0 %5348, %v5271
  %v5350 = vpop.permute.xlu0 %5349
  %5351 = vset.pattern.permute.xlu0 0
  %5352 = vperm.xlu0 %5351, %v5272
  %v5353 = vpop.permute.xlu0 %5352
  %5354 = vset.pattern.permute.xlu0 0
  %5355 = vperm.xlu0 %5354, %v5273
  %v5356 = vpop.permute.xlu0 %5355
  %5357 = vset.pattern.permute.xlu0 0
  %5358 = vperm.xlu0 %5357, %v5274
  %v5359 = vpop.permute.xlu0 %5358
  %5360 = vset.pattern.permute.xlu0 0
  %5361 = vperm.xlu0 %5360, %v5275
  %v5362 = vpop.permute.xlu0 %5361
  %5363 = vset.pattern.permute.xlu0 0
  %5364 = vperm.xlu0 %5363, %v5276
  %v5365 = vpop.permute.xlu0 %5364
  %5366 = vset.pattern.permute.xlu0 0
  %5367 = vperm.xlu0 %5366, %v5277
  %v5368 = vpop.permute.xlu0 %5367
  %5369 = vset.pattern.permute.xlu0 0
  %5370 = vperm.xlu0 %5369, %v5278
  %v5371 = vpop.permute.xlu0 %5370
  %5372 = vset.pattern.permute.xlu0 0
  %5373 = vperm.xlu0 %5372, %v5279
  %v5374 = vpop.permute.xlu0 %5373
  %5375 = vset.pattern.permute.xlu0 0
  %5376 = vperm.xlu0 %5375, %v5280
  %v5377 = vpop.permute.xlu0 %5376
  %v5378 = vperm.slane %v5281, 0
  %v5379 = vperm.slane %v5281, 1
  %v5380 = vperm.slane %v5281, 2
  %v5381 = vperm.slane %v5281, 3
  %vm5382 = vcmp.eq.s32.totalorder %v5284, %v5378
  %vm5383 = vcmp.eq.s32.totalorder %v5284, %v5379
  %vm5384 = vcmp.eq.s32.totalorder %v5284, %v5380
  %vm5385 = vcmp.eq.s32.totalorder %v5284, %v5381
  %vm5386 = vcmp.eq.s32.totalorder %v5287, %v5378
  %vm5387 = vcmp.eq.s32.totalorder %v5287, %v5379
  %vm5388 = vcmp.eq.s32.totalorder %v5287, %v5380
  %vm5389 = vcmp.eq.s32.totalorder %v5287, %v5381
  %vm5390 = vcmp.eq.s32.totalorder %v5290, %v5378
  %vm5391 = vcmp.eq.s32.totalorder %v5290, %v5379
  %vm5392 = vcmp.eq.s32.totalorder %v5290, %v5380
  %vm5393 = vcmp.eq.s32.totalorder %v5290, %v5381
  %vm5394 = vcmp.eq.s32.totalorder %v5293, %v5378
  %vm5395 = vcmp.eq.s32.totalorder %v5293, %v5379
  %vm5396 = vcmp.eq.s32.totalorder %v5293, %v5380
  %vm5397 = vcmp.eq.s32.totalorder %v5293, %v5381
  %vm5398 = vcmp.eq.s32.totalorder %v5296, %v5378
  %vm5399 = vcmp.eq.s32.totalorder %v5296, %v5379
  %vm5400 = vcmp.eq.s32.totalorder %v5296, %v5380
  %vm5401 = vcmp.eq.s32.totalorder %v5296, %v5381
  %vm5402 = vcmp.eq.s32.totalorder %v5299, %v5378
  %vm5403 = vcmp.eq.s32.totalorder %v5299, %v5379
  %vm5404 = vcmp.eq.s32.totalorder %v5299, %v5380
  %vm5405 = vcmp.eq.s32.totalorder %v5299, %v5381
  %vm5406 = vcmp.eq.s32.totalorder %v5302, %v5378
  %vm5407 = vcmp.eq.s32.totalorder %v5302, %v5379
  %vm5408 = vcmp.eq.s32.totalorder %v5302, %v5380
  %vm5409 = vcmp.eq.s32.totalorder %v5302, %v5381
  %vm5410 = vcmp.eq.s32.totalorder %v5305, %v5378
  %vm5411 = vcmp.eq.s32.totalorder %v5305, %v5379
  %vm5412 = vcmp.eq.s32.totalorder %v5305, %v5380
  %vm5413 = vcmp.eq.s32.totalorder %v5305, %v5381
  %vm5414 = vcmp.eq.s32.totalorder %v5308, %v5378
  %vm5415 = vcmp.eq.s32.totalorder %v5308, %v5379
  %vm5416 = vcmp.eq.s32.totalorder %v5308, %v5380
  %vm5417 = vcmp.eq.s32.totalorder %v5308, %v5381
  %vm5418 = vcmp.eq.s32.totalorder %v5311, %v5378
  %vm5419 = vcmp.eq.s32.totalorder %v5311, %v5379
  %vm5420 = vcmp.eq.s32.totalorder %v5311, %v5380
  %vm5421 = vcmp.eq.s32.totalorder %v5311, %v5381
  %vm5422 = vcmp.eq.s32.totalorder %v5314, %v5378
  %vm5423 = vcmp.eq.s32.totalorder %v5314, %v5379
  %vm5424 = vcmp.eq.s32.totalorder %v5314, %v5380
  %vm5425 = vcmp.eq.s32.totalorder %v5314, %v5381
  %vm5426 = vcmp.eq.s32.totalorder %v5317, %v5378
  %vm5427 = vcmp.eq.s32.totalorder %v5317, %v5379
  %vm5428 = vcmp.eq.s32.totalorder %v5317, %v5380
  %vm5429 = vcmp.eq.s32.totalorder %v5317, %v5381
  %vm5430 = vcmp.eq.s32.totalorder %v5320, %v5378
  %vm5431 = vcmp.eq.s32.totalorder %v5320, %v5379
  %vm5432 = vcmp.eq.s32.totalorder %v5320, %v5380
  %vm5433 = vcmp.eq.s32.totalorder %v5320, %v5381
  %vm5434 = vcmp.eq.s32.totalorder %v5323, %v5378
  %vm5435 = vcmp.eq.s32.totalorder %v5323, %v5379
  %vm5436 = vcmp.eq.s32.totalorder %v5323, %v5380
  %vm5437 = vcmp.eq.s32.totalorder %v5323, %v5381
  %vm5438 = vcmp.eq.s32.totalorder %v5326, %v5378
  %vm5439 = vcmp.eq.s32.totalorder %v5326, %v5379
  %vm5440 = vcmp.eq.s32.totalorder %v5326, %v5380
  %vm5441 = vcmp.eq.s32.totalorder %v5326, %v5381
  %vm5442 = vcmp.eq.s32.totalorder %v5329, %v5378
  %vm5443 = vcmp.eq.s32.totalorder %v5329, %v5379
  %vm5444 = vcmp.eq.s32.totalorder %v5329, %v5380
  %vm5445 = vcmp.eq.s32.totalorder %v5329, %v5381
  %vm5446 = vcmp.eq.s32.totalorder %v5332, %v5378
  %vm5447 = vcmp.eq.s32.totalorder %v5332, %v5379
  %vm5448 = vcmp.eq.s32.totalorder %v5332, %v5380
  %vm5449 = vcmp.eq.s32.totalorder %v5332, %v5381
  %vm5450 = vcmp.eq.s32.totalorder %v5335, %v5378
  %vm5451 = vcmp.eq.s32.totalorder %v5335, %v5379
  %vm5452 = vcmp.eq.s32.totalorder %v5335, %v5380
  %vm5453 = vcmp.eq.s32.totalorder %v5335, %v5381
  %vm5454 = vcmp.eq.s32.totalorder %v5338, %v5378
  %vm5455 = vcmp.eq.s32.totalorder %v5338, %v5379
  %vm5456 = vcmp.eq.s32.totalorder %v5338, %v5380
  %vm5457 = vcmp.eq.s32.totalorder %v5338, %v5381
  %vm5458 = vcmp.eq.s32.totalorder %v5341, %v5378
  %vm5459 = vcmp.eq.s32.totalorder %v5341, %v5379
  %vm5460 = vcmp.eq.s32.totalorder %v5341, %v5380
  %vm5461 = vcmp.eq.s32.totalorder %v5341, %v5381
  %vm5462 = vcmp.eq.s32.totalorder %v5344, %v5378
  %vm5463 = vcmp.eq.s32.totalorder %v5344, %v5379
  %vm5464 = vcmp.eq.s32.totalorder %v5344, %v5380
  %vm5465 = vcmp.eq.s32.totalorder %v5344, %v5381
  %vm5466 = vcmp.eq.s32.totalorder %v5347, %v5378
  %vm5467 = vcmp.eq.s32.totalorder %v5347, %v5379
  %vm5468 = vcmp.eq.s32.totalorder %v5347, %v5380
  %vm5469 = vcmp.eq.s32.totalorder %v5347, %v5381
  %vm5470 = vcmp.eq.s32.totalorder %v5350, %v5378
  %vm5471 = vcmp.eq.s32.totalorder %v5350, %v5379
  %vm5472 = vcmp.eq.s32.totalorder %v5350, %v5380
  %vm5473 = vcmp.eq.s32.totalorder %v5350, %v5381
  %vm5474 = vcmp.eq.s32.totalorder %v5353, %v5378
  %vm5475 = vcmp.eq.s32.totalorder %v5353, %v5379
  %vm5476 = vcmp.eq.s32.totalorder %v5353, %v5380
  %vm5477 = vcmp.eq.s32.totalorder %v5353, %v5381
  %vm5478 = vcmp.eq.s32.totalorder %v5356, %v5378
  %vm5479 = vcmp.eq.s32.totalorder %v5356, %v5379
  %vm5480 = vcmp.eq.s32.totalorder %v5356, %v5380
  %vm5481 = vcmp.eq.s32.totalorder %v5356, %v5381
  %vm5482 = vcmp.eq.s32.totalorder %v5359, %v5378
  %vm5483 = vcmp.eq.s32.totalorder %v5359, %v5379
  %vm5484 = vcmp.eq.s32.totalorder %v5359, %v5380
  %vm5485 = vcmp.eq.s32.totalorder %v5359, %v5381
  %vm5486 = vcmp.eq.s32.totalorder %v5362, %v5378
  %vm5487 = vcmp.eq.s32.totalorder %v5362, %v5379
  %vm5488 = vcmp.eq.s32.totalorder %v5362, %v5380
  %vm5489 = vcmp.eq.s32.totalorder %v5362, %v5381
  %vm5490 = vcmp.eq.s32.totalorder %v5365, %v5378
  %vm5491 = vcmp.eq.s32.totalorder %v5365, %v5379
  %vm5492 = vcmp.eq.s32.totalorder %v5365, %v5380
  %vm5493 = vcmp.eq.s32.totalorder %v5365, %v5381
  %vm5494 = vcmp.eq.s32.totalorder %v5368, %v5378
  %vm5495 = vcmp.eq.s32.totalorder %v5368, %v5379
  %vm5496 = vcmp.eq.s32.totalorder %v5368, %v5380
  %vm5497 = vcmp.eq.s32.totalorder %v5368, %v5381
  %vm5498 = vcmp.eq.s32.totalorder %v5371, %v5378
  %vm5499 = vcmp.eq.s32.totalorder %v5371, %v5379
  %vm5500 = vcmp.eq.s32.totalorder %v5371, %v5380
  %vm5501 = vcmp.eq.s32.totalorder %v5371, %v5381
  %vm5502 = vcmp.eq.s32.totalorder %v5374, %v5378
  %vm5503 = vcmp.eq.s32.totalorder %v5374, %v5379
  %vm5504 = vcmp.eq.s32.totalorder %v5374, %v5380
  %vm5505 = vcmp.eq.s32.totalorder %v5374, %v5381
  %vm5506 = vcmp.eq.s32.totalorder %v5377, %v5378
  %vm5507 = vcmp.eq.s32.totalorder %v5377, %v5379
  %vm5508 = vcmp.eq.s32.totalorder %v5377, %v5380
  %vm5509 = vcmp.eq.s32.totalorder %v5377, %v5381
  %vm5510 = vmand %vm5382, %vm5121
  %vm5511 = vmand %vm5383, %vm5122
  %vm5512 = vmand %vm5384, %vm5123
  %vm5513 = vmand %vm5385, %vm5124
  %vm5514 = vmand %vm5386, %vm5125
  %vm5515 = vmand %vm5387, %vm5126
  %vm5516 = vmand %vm5388, %vm5127
  %vm5517 = vmand %vm5389, %vm5128
  %vm5518 = vmand %vm5390, %vm5129
  %vm5519 = vmand %vm5391, %vm5130
  %vm5520 = vmand %vm5392, %vm5131
  %vm5521 = vmand %vm5393, %vm5132
  %vm5522 = vmand %vm5394, %vm5133
  %vm5523 = vmand %vm5395, %vm5134
  %vm5524 = vmand %vm5396, %vm5135
  %vm5525 = vmand %vm5397, %vm5136
  %vm5526 = vmand %vm5398, %vm5137
  %vm5527 = vmand %vm5399, %vm5138
  %vm5528 = vmand %vm5400, %vm5139
  %vm5529 = vmand %vm5401, %vm5140
  %vm5530 = vmand %vm5402, %vm5141
  %vm5531 = vmand %vm5403, %vm5142
  %vm5532 = vmand %vm5404, %vm5143
  %vm5533 = vmand %vm5405, %vm5144
  %vm5534 = vmand %vm5406, %vm5145
  %vm5535 = vmand %vm5407, %vm5146
  %vm5536 = vmand %vm5408, %vm5147
  %vm5537 = vmand %vm5409, %vm5148
  %vm5538 = vmand %vm5410, %vm5149
  %vm5539 = vmand %vm5411, %vm5150
  %vm5540 = vmand %vm5412, %vm5151
  %vm5541 = vmand %vm5413, %vm5152
  %vm5542 = vmand %vm5414, %vm5153
  %vm5543 = vmand %vm5415, %vm5154
  %vm5544 = vmand %vm5416, %vm5155
  %vm5545 = vmand %vm5417, %vm5156
  %vm5546 = vmand %vm5418, %vm5157
  %vm5547 = vmand %vm5419, %vm5158
  %vm5548 = vmand %vm5420, %vm5159
  %vm5549 = vmand %vm5421, %vm5160
  %vm5550 = vmand %vm5422, %vm5161
  %vm5551 = vmand %vm5423, %vm5162
  %vm5552 = vmand %vm5424, %vm5163
  %vm5553 = vmand %vm5425, %vm5164
  %vm5554 = vmand %vm5426, %vm5165
  %vm5555 = vmand %vm5427, %vm5166
  %vm5556 = vmand %vm5428, %vm5167
  %vm5557 = vmand %vm5429, %vm5168
  %vm5558 = vmand %vm5430, %vm5169
  %vm5559 = vmand %vm5431, %vm5170
  %vm5560 = vmand %vm5432, %vm5171
  %vm5561 = vmand %vm5433, %vm5172
  %vm5562 = vmand %vm5434, %vm5173
  %vm5563 = vmand %vm5435, %vm5174
  %vm5564 = vmand %vm5436, %vm5175
  %vm5565 = vmand %vm5437, %vm5176
  %vm5566 = vmand %vm5438, %vm5177
  %vm5567 = vmand %vm5439, %vm5178
  %vm5568 = vmand %vm5440, %vm5179
  %vm5569 = vmand %vm5441, %vm5180
  %vm5570 = vmand %vm5442, %vm5181
  %vm5571 = vmand %vm5443, %vm5182
  %vm5572 = vmand %vm5444, %vm5183
  %vm5573 = vmand %vm5445, %vm5184
  %vm5574 = vmand %vm5446, %vm5185
  %vm5575 = vmand %vm5447, %vm5186
  %vm5576 = vmand %vm5448, %vm5187
  %vm5577 = vmand %vm5449, %vm5188
  %vm5578 = vmand %vm5450, %vm5189
  %vm5579 = vmand %vm5451, %vm5190
  %vm5580 = vmand %vm5452, %vm5191
  %vm5581 = vmand %vm5453, %vm5192
  %vm5582 = vmand %vm5454, %vm5193
  %vm5583 = vmand %vm5455, %vm5194
  %vm5584 = vmand %vm5456, %vm5195
  %vm5585 = vmand %vm5457, %vm5196
  %vm5586 = vmand %vm5458, %vm5197
  %vm5587 = vmand %vm5459, %vm5198
  %vm5588 = vmand %vm5460, %vm5199
  %vm5589 = vmand %vm5461, %vm5200
  %vm5590 = vmand %vm5462, %vm5201
  %vm5591 = vmand %vm5463, %vm5202
  %vm5592 = vmand %vm5464, %vm5203
  %vm5593 = vmand %vm5465, %vm5204
  %vm5594 = vmand %vm5466, %vm5205
  %vm5595 = vmand %vm5467, %vm5206
  %vm5596 = vmand %vm5468, %vm5207
  %vm5597 = vmand %vm5469, %vm5208
  %vm5598 = vmand %vm5470, %vm5209
  %vm5599 = vmand %vm5471, %vm5210
  %vm5600 = vmand %vm5472, %vm5211
  %vm5601 = vmand %vm5473, %vm5212
  %vm5602 = vmand %vm5474, %vm5213
  %vm5603 = vmand %vm5475, %vm5214
  %vm5604 = vmand %vm5476, %vm5215
  %vm5605 = vmand %vm5477, %vm5216
  %vm5606 = vmand %vm5478, %vm5217
  %vm5607 = vmand %vm5479, %vm5218
  %vm5608 = vmand %vm5480, %vm5219
  %vm5609 = vmand %vm5481, %vm5220
  %vm5610 = vmand %vm5482, %vm5221
  %vm5611 = vmand %vm5483, %vm5222
  %vm5612 = vmand %vm5484, %vm5223
  %vm5613 = vmand %vm5485, %vm5224
  %vm5614 = vmand %vm5486, %vm5225
  %vm5615 = vmand %vm5487, %vm5226
  %vm5616 = vmand %vm5488, %vm5227
  %vm5617 = vmand %vm5489, %vm5228
  %vm5618 = vmand %vm5490, %vm5229
  %vm5619 = vmand %vm5491, %vm5230
  %vm5620 = vmand %vm5492, %vm5231
  %vm5621 = vmand %vm5493, %vm5232
  %vm5622 = vmand %vm5494, %vm5233
  %vm5623 = vmand %vm5495, %vm5234
  %vm5624 = vmand %vm5496, %vm5235
  %vm5625 = vmand %vm5497, %vm5236
  %vm5626 = vmand %vm5498, %vm5237
  %vm5627 = vmand %vm5499, %vm5238
  %vm5628 = vmand %vm5500, %vm5239
  %vm5629 = vmand %vm5501, %vm5240
  %vm5630 = vmand %vm5502, %vm5241
  %vm5631 = vmand %vm5503, %vm5242
  %vm5632 = vmand %vm5504, %vm5243
  %vm5633 = vmand %vm5505, %vm5244
  %vm5634 = vmand %vm5506, %vm5245
  %vm5635 = vmand %vm5507, %vm5246
  %vm5636 = vmand %vm5508, %vm5247
  %vm5637 = vmand %vm5509, %vm5248
  %v5638 = vsel %vm5510, 1, 0
  %v5639 = vsel %vm5511, 1, 0
  %v5640 = vsel %vm5512, 1, 0
  %v5641 = vsel %vm5513, 1, 0
  %v5642 = vsel %vm5514, 1, 0
  %v5643 = vsel %vm5515, 1, 0
  %v5644 = vsel %vm5516, 1, 0
  %v5645 = vsel %vm5517, 1, 0
  %v5646 = vsel %vm5518, 1, 0
  %v5647 = vsel %vm5519, 1, 0
  %v5648 = vsel %vm5520, 1, 0
  %v5649 = vsel %vm5521, 1, 0
  %v5650 = vsel %vm5522, 1, 0
  %v5651 = vsel %vm5523, 1, 0
  %v5652 = vsel %vm5524, 1, 0
  %v5653 = vsel %vm5525, 1, 0
  %v5654 = vsel %vm5526, 1, 0
  %v5655 = vsel %vm5527, 1, 0
  %v5656 = vsel %vm5528, 1, 0
  %v5657 = vsel %vm5529, 1, 0
  %v5658 = vsel %vm5530, 1, 0
  %v5659 = vsel %vm5531, 1, 0
  %v5660 = vsel %vm5532, 1, 0
  %v5661 = vsel %vm5533, 1, 0
  %v5662 = vsel %vm5534, 1, 0
  %v5663 = vsel %vm5535, 1, 0
  %v5664 = vsel %vm5536, 1, 0
  %v5665 = vsel %vm5537, 1, 0
  %v5666 = vsel %vm5538, 1, 0
  %v5667 = vsel %vm5539, 1, 0
  %v5668 = vsel %vm5540, 1, 0
  %v5669 = vsel %vm5541, 1, 0
  %v5670 = vsel %vm5542, 1, 0
  %v5671 = vsel %vm5543, 1, 0
  %v5672 = vsel %vm5544, 1, 0
  %v5673 = vsel %vm5545, 1, 0
  %v5674 = vsel %vm5546, 1, 0
  %v5675 = vsel %vm5547, 1, 0
  %v5676 = vsel %vm5548, 1, 0
  %v5677 = vsel %vm5549, 1, 0
  %v5678 = vsel %vm5550, 1, 0
  %v5679 = vsel %vm5551, 1, 0
  %v5680 = vsel %vm5552, 1, 0
  %v5681 = vsel %vm5553, 1, 0
  %v5682 = vsel %vm5554, 1, 0
  %v5683 = vsel %vm5555, 1, 0
  %v5684 = vsel %vm5556, 1, 0
  %v5685 = vsel %vm5557, 1, 0
  %v5686 = vsel %vm5558, 1, 0
  %v5687 = vsel %vm5559, 1, 0
  %v5688 = vsel %vm5560, 1, 0
  %v5689 = vsel %vm5561, 1, 0
  %v5690 = vsel %vm5562, 1, 0
  %v5691 = vsel %vm5563, 1, 0
  %v5692 = vsel %vm5564, 1, 0
  %v5693 = vsel %vm5565, 1, 0
  %v5694 = vsel %vm5566, 1, 0
  %v5695 = vsel %vm5567, 1, 0
  %v5696 = vsel %vm5568, 1, 0
  %v5697 = vsel %vm5569, 1, 0
  %v5698 = vsel %vm5570, 1, 0
  %v5699 = vsel %vm5571, 1, 0
  %v5700 = vsel %vm5572, 1, 0
  %v5701 = vsel %vm5573, 1, 0
  %v5702 = vsel %vm5574, 1, 0
  %v5703 = vsel %vm5575, 1, 0
  %v5704 = vsel %vm5576, 1, 0
  %v5705 = vsel %vm5577, 1, 0
  %v5706 = vsel %vm5578, 1, 0
  %v5707 = vsel %vm5579, 1, 0
  %v5708 = vsel %vm5580, 1, 0
  %v5709 = vsel %vm5581, 1, 0
  %v5710 = vsel %vm5582, 1, 0
  %v5711 = vsel %vm5583, 1, 0
  %v5712 = vsel %vm5584, 1, 0
  %v5713 = vsel %vm5585, 1, 0
  %v5714 = vsel %vm5586, 1, 0
  %v5715 = vsel %vm5587, 1, 0
  %v5716 = vsel %vm5588, 1, 0
  %v5717 = vsel %vm5589, 1, 0
  %v5718 = vsel %vm5590, 1, 0
  %v5719 = vsel %vm5591, 1, 0
  %v5720 = vsel %vm5592, 1, 0
  %v5721 = vsel %vm5593, 1, 0
  %v5722 = vsel %vm5594, 1, 0
  %v5723 = vsel %vm5595, 1, 0
  %v5724 = vsel %vm5596, 1, 0
  %v5725 = vsel %vm5597, 1, 0
  %v5726 = vsel %vm5598, 1, 0
  %v5727 = vsel %vm5599, 1, 0
  %v5728 = vsel %vm5600, 1, 0
  %v5729 = vsel %vm5601, 1, 0
  %v5730 = vsel %vm5602, 1, 0
  %v5731 = vsel %vm5603, 1, 0
  %v5732 = vsel %vm5604, 1, 0
  %v5733 = vsel %vm5605, 1, 0
  %v5734 = vsel %vm5606, 1, 0
  %v5735 = vsel %vm5607, 1, 0
  %v5736 = vsel %vm5608, 1, 0
  %v5737 = vsel %vm5609, 1, 0
  %v5738 = vsel %vm5610, 1, 0
  %v5739 = vsel %vm5611, 1, 0
  %v5740 = vsel %vm5612, 1, 0
  %v5741 = vsel %vm5613, 1, 0
  %v5742 = vsel %vm5614, 1, 0
  %v5743 = vsel %vm5615, 1, 0
  %v5744 = vsel %vm5616, 1, 0
  %v5745 = vsel %vm5617, 1, 0
  %v5746 = vsel %vm5618, 1, 0
  %v5747 = vsel %vm5619, 1, 0
  %v5748 = vsel %vm5620, 1, 0
  %v5749 = vsel %vm5621, 1, 0
  %v5750 = vsel %vm5622, 1, 0
  %v5751 = vsel %vm5623, 1, 0
  %v5752 = vsel %vm5624, 1, 0
  %v5753 = vsel %vm5625, 1, 0
  %v5754 = vsel %vm5626, 1, 0
  %v5755 = vsel %vm5627, 1, 0
  %v5756 = vsel %vm5628, 1, 0
  %v5757 = vsel %vm5629, 1, 0
  %v5758 = vsel %vm5630, 1, 0
  %v5759 = vsel %vm5631, 1, 0
  %v5760 = vsel %vm5632, 1, 0
  %v5761 = vsel %vm5633, 1, 0
  %v5762 = vsel %vm5634, 1, 0
  %v5763 = vsel %vm5635, 1, 0
  %v5764 = vsel %vm5636, 1, 0
  %v5765 = vsel %vm5637, 1, 0
  %v5766 = vcvt.s32.f32 %v5638
  %v5767 = vcvt.s32.f32 %v5639
  %v5768 = vcvt.s32.f32 %v5640
  %v5769 = vcvt.s32.f32 %v5641
  %v5770 = vcvt.s32.f32 %v5642
  %v5771 = vcvt.s32.f32 %v5643
  %v5772 = vcvt.s32.f32 %v5644
  %v5773 = vcvt.s32.f32 %v5645
  %v5774 = vcvt.s32.f32 %v5646
  %v5775 = vcvt.s32.f32 %v5647
  %v5776 = vcvt.s32.f32 %v5648
  %v5777 = vcvt.s32.f32 %v5649
  %v5778 = vcvt.s32.f32 %v5650
  %v5779 = vcvt.s32.f32 %v5651
  %v5780 = vcvt.s32.f32 %v5652
  %v5781 = vcvt.s32.f32 %v5653
  %v5782 = vcvt.s32.f32 %v5654
  %v5783 = vcvt.s32.f32 %v5655
  %v5784 = vcvt.s32.f32 %v5656
  %v5785 = vcvt.s32.f32 %v5657
  %v5786 = vcvt.s32.f32 %v5658
  %v5787 = vcvt.s32.f32 %v5659
  %v5788 = vcvt.s32.f32 %v5660
  %v5789 = vcvt.s32.f32 %v5661
  %v5790 = vcvt.s32.f32 %v5662
  %v5791 = vcvt.s32.f32 %v5663
  %v5792 = vcvt.s32.f32 %v5664
  %v5793 = vcvt.s32.f32 %v5665
  %v5794 = vcvt.s32.f32 %v5666
  %v5795 = vcvt.s32.f32 %v5667
  %v5796 = vcvt.s32.f32 %v5668
  %v5797 = vcvt.s32.f32 %v5669
  %v5798 = vcvt.s32.f32 %v5670
  %v5799 = vcvt.s32.f32 %v5671
  %v5800 = vcvt.s32.f32 %v5672
  %v5801 = vcvt.s32.f32 %v5673
  %v5802 = vcvt.s32.f32 %v5674
  %v5803 = vcvt.s32.f32 %v5675
  %v5804 = vcvt.s32.f32 %v5676
  %v5805 = vcvt.s32.f32 %v5677
  %v5806 = vcvt.s32.f32 %v5678
  %v5807 = vcvt.s32.f32 %v5679
  %v5808 = vcvt.s32.f32 %v5680
  %v5809 = vcvt.s32.f32 %v5681
  %v5810 = vcvt.s32.f32 %v5682
  %v5811 = vcvt.s32.f32 %v5683
  %v5812 = vcvt.s32.f32 %v5684
  %v5813 = vcvt.s32.f32 %v5685
  %v5814 = vcvt.s32.f32 %v5686
  %v5815 = vcvt.s32.f32 %v5687
  %v5816 = vcvt.s32.f32 %v5688
  %v5817 = vcvt.s32.f32 %v5689
  %v5818 = vcvt.s32.f32 %v5690
  %v5819 = vcvt.s32.f32 %v5691
  %v5820 = vcvt.s32.f32 %v5692
  %v5821 = vcvt.s32.f32 %v5693
  %v5822 = vcvt.s32.f32 %v5694
  %v5823 = vcvt.s32.f32 %v5695
  %v5824 = vcvt.s32.f32 %v5696
  %v5825 = vcvt.s32.f32 %v5697
  %v5826 = vcvt.s32.f32 %v5698
  %v5827 = vcvt.s32.f32 %v5699
  %v5828 = vcvt.s32.f32 %v5700
  %v5829 = vcvt.s32.f32 %v5701
  %v5830 = vcvt.s32.f32 %v5702
  %v5831 = vcvt.s32.f32 %v5703
  %v5832 = vcvt.s32.f32 %v5704
  %v5833 = vcvt.s32.f32 %v5705
  %v5834 = vcvt.s32.f32 %v5706
  %v5835 = vcvt.s32.f32 %v5707
  %v5836 = vcvt.s32.f32 %v5708
  %v5837 = vcvt.s32.f32 %v5709
  %v5838 = vcvt.s32.f32 %v5710
  %v5839 = vcvt.s32.f32 %v5711
  %v5840 = vcvt.s32.f32 %v5712
  %v5841 = vcvt.s32.f32 %v5713
  %v5842 = vcvt.s32.f32 %v5714
  %v5843 = vcvt.s32.f32 %v5715
  %v5844 = vcvt.s32.f32 %v5716
  %v5845 = vcvt.s32.f32 %v5717
  %v5846 = vcvt.s32.f32 %v5718
  %v5847 = vcvt.s32.f32 %v5719
  %v5848 = vcvt.s32.f32 %v5720
  %v5849 = vcvt.s32.f32 %v5721
  %v5850 = vcvt.s32.f32 %v5722
  %v5851 = vcvt.s32.f32 %v5723
  %v5852 = vcvt.s32.f32 %v5724
  %v5853 = vcvt.s32.f32 %v5725
  %v5854 = vcvt.s32.f32 %v5726
  %v5855 = vcvt.s32.f32 %v5727
  %v5856 = vcvt.s32.f32 %v5728
  %v5857 = vcvt.s32.f32 %v5729
  %v5858 = vcvt.s32.f32 %v5730
  %v5859 = vcvt.s32.f32 %v5731
  %v5860 = vcvt.s32.f32 %v5732
  %v5861 = vcvt.s32.f32 %v5733
  %v5862 = vcvt.s32.f32 %v5734
  %v5863 = vcvt.s32.f32 %v5735
  %v5864 = vcvt.s32.f32 %v5736
  %v5865 = vcvt.s32.f32 %v5737
  %v5866 = vcvt.s32.f32 %v5738
  %v5867 = vcvt.s32.f32 %v5739
  %v5868 = vcvt.s32.f32 %v5740
  %v5869 = vcvt.s32.f32 %v5741
  %v5870 = vcvt.s32.f32 %v5742
  %v5871 = vcvt.s32.f32 %v5743
  %v5872 = vcvt.s32.f32 %v5744
  %v5873 = vcvt.s32.f32 %v5745
  %v5874 = vcvt.s32.f32 %v5746
  %v5875 = vcvt.s32.f32 %v5747
  %v5876 = vcvt.s32.f32 %v5748
  %v5877 = vcvt.s32.f32 %v5749
  %v5878 = vcvt.s32.f32 %v5750
  %v5879 = vcvt.s32.f32 %v5751
  %v5880 = vcvt.s32.f32 %v5752
  %v5881 = vcvt.s32.f32 %v5753
  %v5882 = vcvt.s32.f32 %v5754
  %v5883 = vcvt.s32.f32 %v5755
  %v5884 = vcvt.s32.f32 %v5756
  %v5885 = vcvt.s32.f32 %v5757
  %v5886 = vcvt.s32.f32 %v5758
  %v5887 = vcvt.s32.f32 %v5759
  %v5888 = vcvt.s32.f32 %v5760
  %v5889 = vcvt.s32.f32 %v5761
  %v5890 = vcvt.s32.f32 %v5762
  %v5891 = vcvt.s32.f32 %v5763
  %v5892 = vcvt.s32.f32 %v5764
  %v5893 = vcvt.s32.f32 %v5765
  %v5894 = vld [vmem:[#allocation2] sm:$0xff]
  %v5895 = vld [vmem:[#allocation2 + $0x8] sm:$0xff]
  %v5896 = vld [vmem:[#allocation2 + $0x10] sm:$0xff]
  %v5897 = vld [vmem:[#allocation2 + $0x18] sm:$0xff]
  %v5898 = vld [vmem:[#allocation2 + $0x20] sm:$0xff]
  %v5899 = vld [vmem:[#allocation2 + $0x28] sm:$0xff]
  %v5900 = vld [vmem:[#allocation2 + $0x30] sm:$0xff]
  %v5901 = vld [vmem:[#allocation2 + $0x38] sm:$0xff]
  %v5902 = vld [vmem:[#allocation2 + $0x40] sm:$0xff]
  %v5903 = vld [vmem:[#allocation2 + $0x48] sm:$0xff]
  %v5904 = vld [vmem:[#allocation2 + $0x50] sm:$0xff]
  %v5905 = vld [vmem:[#allocation2 + $0x58] sm:$0xff]
  %v5906 = vld [vmem:[#allocation2 + $0x60] sm:$0xff]
  %v5907 = vld [vmem:[#allocation2 + $0x68] sm:$0xff]
  %v5908 = vld [vmem:[#allocation2 + $0x70] sm:$0xff]
  %v5909 = vld [vmem:[#allocation2 + $0x78] sm:$0xff]
  %v5910 = vld [vmem:[#allocation2 + $0x80] sm:$0xff]
  %v5911 = vld [vmem:[#allocation2 + $0x88] sm:$0xff]
  %v5912 = vld [vmem:[#allocation2 + $0x90] sm:$0xff]
  %v5913 = vld [vmem:[#allocation2 + $0x98] sm:$0xff]
  %v5914 = vld [vmem:[#allocation2 + $0xa0] sm:$0xff]
  %v5915 = vld [vmem:[#allocation2 + $0xa8] sm:$0xff]
  %v5916 = vld [vmem:[#allocation2 + $0xb0] sm:$0xff]
  %v5917 = vld [vmem:[#allocation2 + $0xb8] sm:$0xff]
  %v5918 = vld [vmem:[#allocation2 + $0xc0] sm:$0xff]
  %v5919 = vld [vmem:[#allocation2 + $0xc8] sm:$0xff]
  %v5920 = vld [vmem:[#allocation2 + $0xd0] sm:$0xff]
  %v5921 = vld [vmem:[#allocation2 + $0xd8] sm:$0xff]
  %v5922 = vld [vmem:[#allocation2 + $0xe0] sm:$0xff]
  %v5923 = vld [vmem:[#allocation2 + $0xe8] sm:$0xff]
  %v5924 = vld [vmem:[#allocation2 + $0xf0] sm:$0xff]
  %v5925 = vld [vmem:[#allocation2 + $0xf8] sm:$0xff]
  %v5926 = vsel %vm4989, %v1347, -inf
  %v5927 = vsel %vm4990, %v2493, -inf
  %v5928 = vsel %vm4991, %v3639, -inf
  %v5929 = vsel %vm4992, %v4785, -inf
  %v5930 = vsel %vm4989, %v1351, -inf
  %v5931 = vsel %vm4990, %v2497, -inf
  %v5932 = vsel %vm4991, %v3643, -inf
  %v5933 = vsel %vm4992, %v4789, -inf
  %v5934 = vsel %vm4989, %v1355, -inf
  %v5935 = vsel %vm4990, %v2501, -inf
  %v5936 = vsel %vm4991, %v3647, -inf
  %v5937 = vsel %vm4992, %v4793, -inf
  %v5938 = vsel %vm4989, %v1359, -inf
  %v5939 = vsel %vm4990, %v2505, -inf
  %v5940 = vsel %vm4991, %v3651, -inf
  %v5941 = vsel %vm4992, %v4797, -inf
  %v5942 = vsel %vm4989, %v1363, -inf
  %v5943 = vsel %vm4990, %v2509, -inf
  %v5944 = vsel %vm4991, %v3655, -inf
  %v5945 = vsel %vm4992, %v4801, -inf
  %v5946 = vsel %vm4989, %v1367, -inf
  %v5947 = vsel %vm4990, %v2513, -inf
  %v5948 = vsel %vm4991, %v3659, -inf
  %v5949 = vsel %vm4992, %v4805, -inf
  %v5950 = vsel %vm4989, %v1371, -inf
  %v5951 = vsel %vm4990, %v2517, -inf
  %v5952 = vsel %vm4991, %v3663, -inf
  %v5953 = vsel %vm4992, %v4809, -inf
  %v5954 = vsel %vm4989, %v1375, -inf
  %v5955 = vsel %vm4990, %v2521, -inf
  %v5956 = vsel %vm4991, %v3667, -inf
  %v5957 = vsel %vm4992, %v4813, -inf
  %v5958 = vsel %vm4989, %v1379, -inf
  %v5959 = vsel %vm4990, %v2525, -inf
  %v5960 = vsel %vm4991, %v3671, -inf
  %v5961 = vsel %vm4992, %v4817, -inf
  %v5962 = vsel %vm4989, %v1383, -inf
  %v5963 = vsel %vm4990, %v2529, -inf
  %v5964 = vsel %vm4991, %v3675, -inf
  %v5965 = vsel %vm4992, %v4821, -inf
  %v5966 = vsel %vm4989, %v1387, -inf
  %v5967 = vsel %vm4990, %v2533, -inf
  %v5968 = vsel %vm4991, %v3679, -inf
  %v5969 = vsel %vm4992, %v4825, -inf
  %v5970 = vsel %vm4989, %v1391, -inf
  %v5971 = vsel %vm4990, %v2537, -inf
  %v5972 = vsel %vm4991, %v3683, -inf
  %v5973 = vsel %vm4992, %v4829, -inf
  %v5974 = vsel %vm4989, %v1395, -inf
  %v5975 = vsel %vm4990, %v2541, -inf
  %v5976 = vsel %vm4991, %v3687, -inf
  %v5977 = vsel %vm4992, %v4833, -inf
  %v5978 = vsel %vm4989, %v1399, -inf
  %v5979 = vsel %vm4990, %v2545, -inf
  %v5980 = vsel %vm4991, %v3691, -inf
  %v5981 = vsel %vm4992, %v4837, -inf
  %v5982 = vsel %vm4989, %v1403, -inf
  %v5983 = vsel %vm4990, %v2549, -inf
  %v5984 = vsel %vm4991, %v3695, -inf
  %v5985 = vsel %vm4992, %v4841, -inf
  %v5986 = vsel %vm4989, %v1407, -inf
  %v5987 = vsel %vm4990, %v2553, -inf
  %v5988 = vsel %vm4991, %v3699, -inf
  %v5989 = vsel %vm4992, %v4845, -inf
  %v5990 = vsel %vm4989, %v1411, -inf
  %v5991 = vsel %vm4990, %v2557, -inf
  %v5992 = vsel %vm4991, %v3703, -inf
  %v5993 = vsel %vm4992, %v4849, -inf
  %v5994 = vsel %vm4989, %v1415, -inf
  %v5995 = vsel %vm4990, %v2561, -inf
  %v5996 = vsel %vm4991, %v3707, -inf
  %v5997 = vsel %vm4992, %v4853, -inf
  %v5998 = vsel %vm4989, %v1419, -inf
  %v5999 = vsel %vm4990, %v2565, -inf
  %v6000 = vsel %vm4991, %v3711, -inf
  %v6001 = vsel %vm4992, %v4857, -inf
  %v6002 = vsel %vm4989, %v1423, -inf
  %v6003 = vsel %vm4990, %v2569, -inf
  %v6004 = vsel %vm4991, %v3715, -inf
  %v6005 = vsel %vm4992, %v4861, -inf
  %v6006 = vsel %vm4989, %v1427, -inf
  %v6007 = vsel %vm4990, %v2573, -inf
  %v6008 = vsel %vm4991, %v3719, -inf
  %v6009 = vsel %vm4992, %v4865, -inf
  %v6010 = vsel %vm4989, %v1431, -inf
  %v6011 = vsel %vm4990, %v2577, -inf
  %v6012 = vsel %vm4991, %v3723, -inf
  %v6013 = vsel %vm4992, %v4869, -inf
  %v6014 = vsel %vm4989, %v1435, -inf
  %v6015 = vsel %vm4990, %v2581, -inf
  %v6016 = vsel %vm4991, %v3727, -inf
  %v6017 = vsel %vm4992, %v4873, -inf
  %v6018 = vsel %vm4989, %v1439, -inf
  %v6019 = vsel %vm4990, %v2585, -inf
  %v6020 = vsel %vm4991, %v3731, -inf
  %v6021 = vsel %vm4992, %v4877, -inf
  %v6022 = vsel %vm4989, %v1443, -inf
  %v6023 = vsel %vm4990, %v2589, -inf
  %v6024 = vsel %vm4991, %v3735, -inf
  %v6025 = vsel %vm4992, %v4881, -inf
  %v6026 = vsel %vm4989, %v1447, -inf
  %v6027 = vsel %vm4990, %v2593, -inf
  %v6028 = vsel %vm4991, %v3739, -inf
  %v6029 = vsel %vm4992, %v4885, -inf
  %v6030 = vsel %vm4989, %v1451, -inf
  %v6031 = vsel %vm4990, %v2597, -inf
  %v6032 = vsel %vm4991, %v3743, -inf
  %v6033 = vsel %vm4992, %v4889, -inf
  %v6034 = vsel %vm4989, %v1455, -inf
  %v6035 = vsel %vm4990, %v2601, -inf
  %v6036 = vsel %vm4991, %v3747, -inf
  %v6037 = vsel %vm4992, %v4893, -inf
  %v6038 = vsel %vm4989, %v1459, -inf
  %v6039 = vsel %vm4990, %v2605, -inf
  %v6040 = vsel %vm4991, %v3751, -inf
  %v6041 = vsel %vm4992, %v4897, -inf
  %v6042 = vsel %vm4989, %v1463, -inf
  %v6043 = vsel %vm4990, %v2609, -inf
  %v6044 = vsel %vm4991, %v3755, -inf
  %v6045 = vsel %vm4992, %v4901, -inf
  %v6046 = vsel %vm4989, %v1467, -inf
  %v6047 = vsel %vm4990, %v2613, -inf
  %v6048 = vsel %vm4991, %v3759, -inf
  %v6049 = vsel %vm4992, %v4905, -inf
  %v6050 = vsel %vm4989, %v1471, -inf
  %v6051 = vsel %vm4990, %v2617, -inf
  %v6052 = vsel %vm4991, %v3763, -inf
  %v6053 = vsel %vm4992, %v4909, -inf
  %v6054 = vmax.f32 %v5926, %v5927
  %v6055 = vmax.f32 %v6054, %v5928
  %v6056 = vmax.f32 %v6055, %v5929
  %6057 = vmax.xlane.f32.xlu0 %v6056
  %v6058 = vpop.xlane.xlu0 %6057
  %v6059 = vmax.f32 %v5930, %v5931
  %v6060 = vmax.f32 %v6059, %v5932
  %v6061 = vmax.f32 %v6060, %v5933
  %6062 = vmax.xlane.f32.xlu0 %v6061
  %v6063 = vpop.xlane.xlu0 %6062
  %v6064 = vmax.f32 %v5934, %v5935
  %v6065 = vmax.f32 %v6064, %v5936
  %v6066 = vmax.f32 %v6065, %v5937
  %6067 = vmax.xlane.f32.xlu0 %v6066
  %v6068 = vpop.xlane.xlu0 %6067
  %v6069 = vmax.f32 %v5938, %v5939
  %v6070 = vmax.f32 %v6069, %v5940
  %v6071 = vmax.f32 %v6070, %v5941
  %6072 = vmax.xlane.f32.xlu0 %v6071
  %v6073 = vpop.xlane.xlu0 %6072
  %v6074 = vmax.f32 %v5942, %v5943
  %v6075 = vmax.f32 %v6074, %v5944
  %v6076 = vmax.f32 %v6075, %v5945
  %6077 = vmax.xlane.f32.xlu0 %v6076
  %v6078 = vpop.xlane.xlu0 %6077
  %v6079 = vmax.f32 %v5946, %v5947
  %v6080 = vmax.f32 %v6079, %v5948
  %v6081 = vmax.f32 %v6080, %v5949
  %6082 = vmax.xlane.f32.xlu0 %v6081
  %v6083 = vpop.xlane.xlu0 %6082
  %v6084 = vmax.f32 %v5950, %v5951
  %v6085 = vmax.f32 %v6084, %v5952
  %v6086 = vmax.f32 %v6085, %v5953
  %6087 = vmax.xlane.f32.xlu0 %v6086
  %v6088 = vpop.xlane.xlu0 %6087
  %v6089 = vmax.f32 %v5954, %v5955
  %v6090 = vmax.f32 %v6089, %v5956
  %v6091 = vmax.f32 %v6090, %v5957
  %6092 = vmax.xlane.f32.xlu0 %v6091
  %v6093 = vpop.xlane.xlu0 %6092
  %v6094 = vmax.f32 %v5958, %v5959
  %v6095 = vmax.f32 %v6094, %v5960
  %v6096 = vmax.f32 %v6095, %v5961
  %6097 = vmax.xlane.f32.xlu0 %v6096
  %v6098 = vpop.xlane.xlu0 %6097
  %v6099 = vmax.f32 %v5962, %v5963
  %v6100 = vmax.f32 %v6099, %v5964
  %v6101 = vmax.f32 %v6100, %v5965
  %6102 = vmax.xlane.f32.xlu0 %v6101
  %v6103 = vpop.xlane.xlu0 %6102
  %v6104 = vmax.f32 %v5966, %v5967
  %v6105 = vmax.f32 %v6104, %v5968
  %v6106 = vmax.f32 %v6105, %v5969
  %6107 = vmax.xlane.f32.xlu0 %v6106
  %v6108 = vpop.xlane.xlu0 %6107
  %v6109 = vmax.f32 %v5970, %v5971
  %v6110 = vmax.f32 %v6109, %v5972
  %v6111 = vmax.f32 %v6110, %v5973
  %6112 = vmax.xlane.f32.xlu0 %v6111
  %v6113 = vpop.xlane.xlu0 %6112
  %v6114 = vmax.f32 %v5974, %v5975
  %v6115 = vmax.f32 %v6114, %v5976
  %v6116 = vmax.f32 %v6115, %v5977
  %6117 = vmax.xlane.f32.xlu0 %v6116
  %v6118 = vpop.xlane.xlu0 %6117
  %v6119 = vmax.f32 %v5978, %v5979
  %v6120 = vmax.f32 %v6119, %v5980
  %v6121 = vmax.f32 %v6120, %v5981
  %6122 = vmax.xlane.f32.xlu0 %v6121
  %v6123 = vpop.xlane.xlu0 %6122
  %v6124 = vmax.f32 %v5982, %v5983
  %v6125 = vmax.f32 %v6124, %v5984
  %v6126 = vmax.f32 %v6125, %v5985
  %6127 = vmax.xlane.f32.xlu0 %v6126
  %v6128 = vpop.xlane.xlu0 %6127
  %v6129 = vmax.f32 %v5986, %v5987
  %v6130 = vmax.f32 %v6129, %v5988
  %v6131 = vmax.f32 %v6130, %v5989
  %6132 = vmax.xlane.f32.xlu0 %v6131
  %v6133 = vpop.xlane.xlu0 %6132
  %v6134 = vmax.f32 %v5990, %v5991
  %v6135 = vmax.f32 %v6134, %v5992
  %v6136 = vmax.f32 %v6135, %v5993
  %6137 = vmax.xlane.f32.xlu0 %v6136
  %v6138 = vpop.xlane.xlu0 %6137
  %v6139 = vmax.f32 %v5994, %v5995
  %v6140 = vmax.f32 %v6139, %v5996
  %v6141 = vmax.f32 %v6140, %v5997
  %6142 = vmax.xlane.f32.xlu0 %v6141
  %v6143 = vpop.xlane.xlu0 %6142
  %v6144 = vmax.f32 %v5998, %v5999
  %v6145 = vmax.f32 %v6144, %v6000
  %v6146 = vmax.f32 %v6145, %v6001
  %6147 = vmax.xlane.f32.xlu0 %v6146
  %v6148 = vpop.xlane.xlu0 %6147
  %v6149 = vmax.f32 %v6002, %v6003
  %v6150 = vmax.f32 %v6149, %v6004
  %v6151 = vmax.f32 %v6150, %v6005
  %6152 = vmax.xlane.f32.xlu0 %v6151
  %v6153 = vpop.xlane.xlu0 %6152
  %v6154 = vmax.f32 %v6006, %v6007
  %v6155 = vmax.f32 %v6154, %v6008
  %v6156 = vmax.f32 %v6155, %v6009
  %6157 = vmax.xlane.f32.xlu0 %v6156
  %v6158 = vpop.xlane.xlu0 %6157
  %v6159 = vmax.f32 %v6010, %v6011
  %v6160 = vmax.f32 %v6159, %v6012
  %v6161 = vmax.f32 %v6160, %v6013
  %6162 = vmax.xlane.f32.xlu0 %v6161
  %v6163 = vpop.xlane.xlu0 %6162
  %v6164 = vmax.f32 %v6014, %v6015
  %v6165 = vmax.f32 %v6164, %v6016
  %v6166 = vmax.f32 %v6165, %v6017
  %6167 = vmax.xlane.f32.xlu0 %v6166
  %v6168 = vpop.xlane.xlu0 %6167
  %v6169 = vmax.f32 %v6018, %v6019
  %v6170 = vmax.f32 %v6169, %v6020
  %v6171 = vmax.f32 %v6170, %v6021
  %6172 = vmax.xlane.f32.xlu0 %v6171
  %v6173 = vpop.xlane.xlu0 %6172
  %v6174 = vmax.f32 %v6022, %v6023
  %v6175 = vmax.f32 %v6174, %v6024
  %v6176 = vmax.f32 %v6175, %v6025
  %6177 = vmax.xlane.f32.xlu0 %v6176
  %v6178 = vpop.xlane.xlu0 %6177
  %v6179 = vmax.f32 %v6026, %v6027
  %v6180 = vmax.f32 %v6179, %v6028
  %v6181 = vmax.f32 %v6180, %v6029
  %6182 = vmax.xlane.f32.xlu0 %v6181
  %v6183 = vpop.xlane.xlu0 %6182
  %v6184 = vmax.f32 %v6030, %v6031
  %v6185 = vmax.f32 %v6184, %v6032
  %v6186 = vmax.f32 %v6185, %v6033
  %6187 = vmax.xlane.f32.xlu0 %v6186
  %v6188 = vpop.xlane.xlu0 %6187
  %v6189 = vmax.f32 %v6034, %v6035
  %v6190 = vmax.f32 %v6189, %v6036
  %v6191 = vmax.f32 %v6190, %v6037
  %6192 = vmax.xlane.f32.xlu0 %v6191
  %v6193 = vpop.xlane.xlu0 %6192
  %v6194 = vmax.f32 %v6038, %v6039
  %v6195 = vmax.f32 %v6194, %v6040
  %v6196 = vmax.f32 %v6195, %v6041
  %6197 = vmax.xlane.f32.xlu0 %v6196
  %v6198 = vpop.xlane.xlu0 %6197
  %v6199 = vmax.f32 %v6042, %v6043
  %v6200 = vmax.f32 %v6199, %v6044
  %v6201 = vmax.f32 %v6200, %v6045
  %6202 = vmax.xlane.f32.xlu0 %v6201
  %v6203 = vpop.xlane.xlu0 %6202
  %v6204 = vmax.f32 %v6046, %v6047
  %v6205 = vmax.f32 %v6204, %v6048
  %v6206 = vmax.f32 %v6205, %v6049
  %6207 = vmax.xlane.f32.xlu0 %v6206
  %v6208 = vpop.xlane.xlu0 %6207
  %v6209 = vmax.f32 %v6050, %v6051
  %v6210 = vmax.f32 %v6209, %v6052
  %v6211 = vmax.f32 %v6210, %v6053
  %6212 = vmax.xlane.f32.xlu0 %v6211
  %v6213 = vpop.xlane.xlu0 %6212
  %v6214 = vmax.f32 %v5894, %v6058
  %v6215 = vmax.f32 %v5895, %v6063
  %v6216 = vmax.f32 %v5896, %v6068
  %v6217 = vmax.f32 %v5897, %v6073
  %v6218 = vmax.f32 %v5898, %v6078
  %v6219 = vmax.f32 %v5899, %v6083
  %v6220 = vmax.f32 %v5900, %v6088
  %v6221 = vmax.f32 %v5901, %v6093
  %v6222 = vmax.f32 %v5902, %v6098
  %v6223 = vmax.f32 %v5903, %v6103
  %v6224 = vmax.f32 %v5904, %v6108
  %v6225 = vmax.f32 %v5905, %v6113
  %v6226 = vmax.f32 %v5906, %v6118
  %v6227 = vmax.f32 %v5907, %v6123
  %v6228 = vmax.f32 %v5908, %v6128
  %v6229 = vmax.f32 %v5909, %v6133
  %v6230 = vmax.f32 %v5910, %v6138
  %v6231 = vmax.f32 %v5911, %v6143
  %v6232 = vmax.f32 %v5912, %v6148
  %v6233 = vmax.f32 %v5913, %v6153
  %v6234 = vmax.f32 %v5914, %v6158
  %v6235 = vmax.f32 %v5915, %v6163
  %v6236 = vmax.f32 %v5916, %v6168
  %v6237 = vmax.f32 %v5917, %v6173
  %v6238 = vmax.f32 %v5918, %v6178
  %v6239 = vmax.f32 %v5919, %v6183
  %v6240 = vmax.f32 %v5920, %v6188
  %v6241 = vmax.f32 %v5921, %v6193
  %v6242 = vmax.f32 %v5922, %v6198
  %v6243 = vmax.f32 %v5923, %v6203
  %v6244 = vmax.f32 %v5924, %v6208
  %v6245 = vmax.f32 %v5925, %v6213
  %v6246 = vsub.f32 %v5894, %v6214
  %v6247 = vsub.f32 %v5895, %v6215
  %v6248 = vsub.f32 %v5896, %v6216
  %v6249 = vsub.f32 %v5897, %v6217
  %v6250 = vsub.f32 %v5898, %v6218
  %v6251 = vsub.f32 %v5899, %v6219
  %v6252 = vsub.f32 %v5900, %v6220
  %v6253 = vsub.f32 %v5901, %v6221
  %v6254 = vsub.f32 %v5902, %v6222
  %v6255 = vsub.f32 %v5903, %v6223
  %v6256 = vsub.f32 %v5904, %v6224
  %v6257 = vsub.f32 %v5905, %v6225
  %v6258 = vsub.f32 %v5906, %v6226
  %v6259 = vsub.f32 %v5907, %v6227
  %v6260 = vsub.f32 %v5908, %v6228
  %v6261 = vsub.f32 %v5909, %v6229
  %v6262 = vsub.f32 %v5910, %v6230
  %v6263 = vsub.f32 %v5911, %v6231
  %v6264 = vsub.f32 %v5912, %v6232
  %v6265 = vsub.f32 %v5913, %v6233
  %v6266 = vsub.f32 %v5914, %v6234
  %v6267 = vsub.f32 %v5915, %v6235
  %v6268 = vsub.f32 %v5916, %v6236
  %v6269 = vsub.f32 %v5917, %v6237
  %v6270 = vsub.f32 %v5918, %v6238
  %v6271 = vsub.f32 %v5919, %v6239
  %v6272 = vsub.f32 %v5920, %v6240
  %v6273 = vsub.f32 %v5921, %v6241
  %v6274 = vsub.f32 %v5922, %v6242
  %v6275 = vsub.f32 %v5923, %v6243
  %v6276 = vsub.f32 %v5924, %v6244
  %v6277 = vsub.f32 %v5925, %v6245
  %v6278 = vmul.f32 %v6246, 1.442695
  %v6279 = vpow.pop %v6278
  %v6280 = vmul.f32 %v6247, 1.442695
  %v6281 = vpow.pop %v6280
  %v6282 = vmul.f32 %v6248, 1.442695
  %v6283 = vpow.pop %v6282
  %v6284 = vmul.f32 %v6249, 1.442695
  %v6285 = vpow.pop %v6284
  %v6286 = vmul.f32 %v6250, 1.442695
  %v6287 = vpow.pop %v6286
  %v6288 = vmul.f32 %v6251, 1.442695
  %v6289 = vpow.pop %v6288
  %v6290 = vmul.f32 %v6252, 1.442695
  %v6291 = vpow.pop %v6290
  %v6292 = vmul.f32 %v6253, 1.442695
  %v6293 = vpow.pop %v6292
  %v6294 = vmul.f32 %v6254, 1.442695
  %v6295 = vpow.pop %v6294
  %v6296 = vmul.f32 %v6255, 1.442695
  %v6297 = vpow.pop %v6296
  %v6298 = vmul.f32 %v6256, 1.442695
  %v6299 = vpow.pop %v6298
  %v6300 = vmul.f32 %v6257, 1.442695
  %v6301 = vpow.pop %v6300
  %v6302 = vmul.f32 %v6258, 1.442695
  %v6303 = vpow.pop %v6302
  %v6304 = vmul.f32 %v6259, 1.442695
  %v6305 = vpow.pop %v6304
  %v6306 = vmul.f32 %v6260, 1.442695
  %v6307 = vpow.pop %v6306
  %v6308 = vmul.f32 %v6261, 1.442695
  %v6309 = vpow.pop %v6308
  %v6310 = vmul.f32 %v6262, 1.442695
  %v6311 = vpow.pop %v6310
  %v6312 = vmul.f32 %v6263, 1.442695
  %v6313 = vpow.pop %v6312
  %v6314 = vmul.f32 %v6264, 1.442695
  %v6315 = vpow.pop %v6314
  %v6316 = vmul.f32 %v6265, 1.442695
  %v6317 = vpow.pop %v6316
  %v6318 = vmul.f32 %v6266, 1.442695
  %v6319 = vpow.pop %v6318
  %v6320 = vmul.f32 %v6267, 1.442695
  %v6321 = vpow.pop %v6320
  %v6322 = vmul.f32 %v6268, 1.442695
  %v6323 = vpow.pop %v6322
  %v6324 = vmul.f32 %v6269, 1.442695
  %v6325 = vpow.pop %v6324
  %v6326 = vmul.f32 %v6270, 1.442695
  %v6327 = vpow.pop %v6326
  %v6328 = vmul.f32 %v6271, 1.442695
  %v6329 = vpow.pop %v6328
  %v6330 = vmul.f32 %v6272, 1.442695
  %v6331 = vpow.pop %v6330
  %v6332 = vmul.f32 %v6273, 1.442695
  %v6333 = vpow.pop %v6332
  %v6334 = vmul.f32 %v6274, 1.442695
  %v6335 = vpow.pop %v6334
  %v6336 = vmul.f32 %v6275, 1.442695
  %v6337 = vpow.pop %v6336
  %v6338 = vmul.f32 %v6276, 1.442695
  %v6339 = vpow.pop %v6338
  %v6340 = vmul.f32 %v6277, 1.442695
  %v6341 = vpow.pop %v6340
  %6343 = vset.pattern.permute.xlu0 0
  %6344 = vperm.xlu0 %6343, %v6214
  %v6345 = vpop.permute.xlu0 %6344
  %6348 = vset.pattern.permute.xlu0 0
  %6349 = vperm.xlu0 %6348, %v6215
  %v6350 = vpop.permute.xlu0 %6349
  %6353 = vset.pattern.permute.xlu0 0
  %6354 = vperm.xlu0 %6353, %v6216
  %v6355 = vpop.permute.xlu0 %6354
  %6358 = vset.pattern.permute.xlu0 0
  %6359 = vperm.xlu0 %6358, %v6217
  %v6360 = vpop.permute.xlu0 %6359
  %6363 = vset.pattern.permute.xlu0 0
  %6364 = vperm.xlu0 %6363, %v6218
  %v6365 = vpop.permute.xlu0 %6364
  %6368 = vset.pattern.permute.xlu0 0
  %6369 = vperm.xlu0 %6368, %v6219
  %v6370 = vpop.permute.xlu0 %6369
  %6373 = vset.pattern.permute.xlu0 0
  %6374 = vperm.xlu0 %6373, %v6220
  %v6375 = vpop.permute.xlu0 %6374
  %6378 = vset.pattern.permute.xlu0 0
  %6379 = vperm.xlu0 %6378, %v6221
  %v6380 = vpop.permute.xlu0 %6379
  %6383 = vset.pattern.permute.xlu0 0
  %6384 = vperm.xlu0 %6383, %v6222
  %v6385 = vpop.permute.xlu0 %6384
  %6388 = vset.pattern.permute.xlu0 0
  %6389 = vperm.xlu0 %6388, %v6223
  %v6390 = vpop.permute.xlu0 %6389
  %6393 = vset.pattern.permute.xlu0 0
  %6394 = vperm.xlu0 %6393, %v6224
  %v6395 = vpop.permute.xlu0 %6394
  %6398 = vset.pattern.permute.xlu0 0
  %6399 = vperm.xlu0 %6398, %v6225
  %v6400 = vpop.permute.xlu0 %6399
  %6403 = vset.pattern.permute.xlu0 0
  %6404 = vperm.xlu0 %6403, %v6226
  %v6405 = vpop.permute.xlu0 %6404
  %6408 = vset.pattern.permute.xlu0 0
  %6409 = vperm.xlu0 %6408, %v6227
  %v6410 = vpop.permute.xlu0 %6409
  %6413 = vset.pattern.permute.xlu0 0
  %6414 = vperm.xlu0 %6413, %v6228
  %v6415 = vpop.permute.xlu0 %6414
  %6418 = vset.pattern.permute.xlu0 0
  %6419 = vperm.xlu0 %6418, %v6229
  %v6420 = vpop.permute.xlu0 %6419
  %6423 = vset.pattern.permute.xlu0 0
  %6424 = vperm.xlu0 %6423, %v6230
  %v6425 = vpop.permute.xlu0 %6424
  %6428 = vset.pattern.permute.xlu0 0
  %6429 = vperm.xlu0 %6428, %v6231
  %v6430 = vpop.permute.xlu0 %6429
  %6433 = vset.pattern.permute.xlu0 0
  %6434 = vperm.xlu0 %6433, %v6232
  %v6435 = vpop.permute.xlu0 %6434
  %6438 = vset.pattern.permute.xlu0 0
  %6439 = vperm.xlu0 %6438, %v6233
  %v6440 = vpop.permute.xlu0 %6439
  %6443 = vset.pattern.permute.xlu0 0
  %6444 = vperm.xlu0 %6443, %v6234
  %v6445 = vpop.permute.xlu0 %6444
  %6448 = vset.pattern.permute.xlu0 0
  %6449 = vperm.xlu0 %6448, %v6235
  %v6450 = vpop.permute.xlu0 %6449
  %6453 = vset.pattern.permute.xlu0 0
  %6454 = vperm.xlu0 %6453, %v6236
  %v6455 = vpop.permute.xlu0 %6454
  %6458 = vset.pattern.permute.xlu0 0
  %6459 = vperm.xlu0 %6458, %v6237
  %v6460 = vpop.permute.xlu0 %6459
  %6463 = vset.pattern.permute.xlu0 0
  %6464 = vperm.xlu0 %6463, %v6238
  %v6465 = vpop.permute.xlu0 %6464
  %6468 = vset.pattern.permute.xlu0 0
  %6469 = vperm.xlu0 %6468, %v6239
  %v6470 = vpop.permute.xlu0 %6469
  %6473 = vset.pattern.permute.xlu0 0
  %6474 = vperm.xlu0 %6473, %v6240
  %v6475 = vpop.permute.xlu0 %6474
  %6478 = vset.pattern.permute.xlu0 0
  %6479 = vperm.xlu0 %6478, %v6241
  %v6480 = vpop.permute.xlu0 %6479
  %6483 = vset.pattern.permute.xlu0 0
  %6484 = vperm.xlu0 %6483, %v6242
  %v6485 = vpop.permute.xlu0 %6484
  %6488 = vset.pattern.permute.xlu0 0
  %6489 = vperm.xlu0 %6488, %v6243
  %v6490 = vpop.permute.xlu0 %6489
  %6493 = vset.pattern.permute.xlu0 0
  %6494 = vperm.xlu0 %6493, %v6244
  %v6495 = vpop.permute.xlu0 %6494
  %6498 = vset.pattern.permute.xlu0 0
  %6499 = vperm.xlu0 %6498, %v6245
  %v6500 = vpop.permute.xlu0 %6499
  %v6502 = vsub.f32 %v1347, %v6345
  %v6503 = vsub.f32 %v2493, %v6345
  %v6504 = vsub.f32 %v3639, %v6345
  %v6505 = vsub.f32 %v4785, %v6345
  %v6506 = vsub.f32 %v1351, %v6350
  %v6507 = vsub.f32 %v2497, %v6350
  %v6508 = vsub.f32 %v3643, %v6350
  %v6509 = vsub.f32 %v4789, %v6350
  %v6510 = vsub.f32 %v1355, %v6355
  %v6511 = vsub.f32 %v2501, %v6355
  %v6512 = vsub.f32 %v3647, %v6355
  %v6513 = vsub.f32 %v4793, %v6355
  %v6514 = vsub.f32 %v1359, %v6360
  %v6515 = vsub.f32 %v2505, %v6360
  %v6516 = vsub.f32 %v3651, %v6360
  %v6517 = vsub.f32 %v4797, %v6360
  %v6518 = vsub.f32 %v1363, %v6365
  %v6519 = vsub.f32 %v2509, %v6365
  %v6520 = vsub.f32 %v3655, %v6365
  %v6521 = vsub.f32 %v4801, %v6365
  %v6522 = vsub.f32 %v1367, %v6370
  %v6523 = vsub.f32 %v2513, %v6370
  %v6524 = vsub.f32 %v3659, %v6370
  %v6525 = vsub.f32 %v4805, %v6370
  %v6526 = vsub.f32 %v1371, %v6375
  %v6527 = vsub.f32 %v2517, %v6375
  %v6528 = vsub.f32 %v3663, %v6375
  %v6529 = vsub.f32 %v4809, %v6375
  %v6530 = vsub.f32 %v1375, %v6380
  %v6531 = vsub.f32 %v2521, %v6380
  %v6532 = vsub.f32 %v3667, %v6380
  %v6533 = vsub.f32 %v4813, %v6380
  %v6534 = vsub.f32 %v1379, %v6385
  %v6535 = vsub.f32 %v2525, %v6385
  %v6536 = vsub.f32 %v3671, %v6385
  %v6537 = vsub.f32 %v4817, %v6385
  %v6538 = vsub.f32 %v1383, %v6390
  %v6539 = vsub.f32 %v2529, %v6390
  %v6540 = vsub.f32 %v3675, %v6390
  %v6541 = vsub.f32 %v4821, %v6390
  %v6542 = vsub.f32 %v1387, %v6395
  %v6543 = vsub.f32 %v2533, %v6395
  %v6544 = vsub.f32 %v3679, %v6395
  %v6545 = vsub.f32 %v4825, %v6395
  %v6546 = vsub.f32 %v1391, %v6400
  %v6547 = vsub.f32 %v2537, %v6400
  %v6548 = vsub.f32 %v3683, %v6400
  %v6549 = vsub.f32 %v4829, %v6400
  %v6550 = vsub.f32 %v1395, %v6405
  %v6551 = vsub.f32 %v2541, %v6405
  %v6552 = vsub.f32 %v3687, %v6405
  %v6553 = vsub.f32 %v4833, %v6405
  %v6554 = vsub.f32 %v1399, %v6410
  %v6555 = vsub.f32 %v2545, %v6410
  %v6556 = vsub.f32 %v3691, %v6410
  %v6557 = vsub.f32 %v4837, %v6410
  %v6558 = vsub.f32 %v1403, %v6415
  %v6559 = vsub.f32 %v2549, %v6415
  %v6560 = vsub.f32 %v3695, %v6415
  %v6561 = vsub.f32 %v4841, %v6415
  %v6562 = vsub.f32 %v1407, %v6420
  %v6563 = vsub.f32 %v2553, %v6420
  %v6564 = vsub.f32 %v3699, %v6420
  %v6565 = vsub.f32 %v4845, %v6420
  %v6566 = vsub.f32 %v1411, %v6425
  %v6567 = vsub.f32 %v2557, %v6425
  %v6568 = vsub.f32 %v3703, %v6425
  %v6569 = vsub.f32 %v4849, %v6425
  %v6570 = vsub.f32 %v1415, %v6430
  %v6571 = vsub.f32 %v2561, %v6430
  %v6572 = vsub.f32 %v3707, %v6430
  %v6573 = vsub.f32 %v4853, %v6430
  %v6574 = vsub.f32 %v1419, %v6435
  %v6575 = vsub.f32 %v2565, %v6435
  %v6576 = vsub.f32 %v3711, %v6435
  %v6577 = vsub.f32 %v4857, %v6435
  %v6578 = vsub.f32 %v1423, %v6440
  %v6579 = vsub.f32 %v2569, %v6440
  %v6580 = vsub.f32 %v3715, %v6440
  %v6581 = vsub.f32 %v4861, %v6440
  %v6582 = vsub.f32 %v1427, %v6445
  %v6583 = vsub.f32 %v2573, %v6445
  %v6584 = vsub.f32 %v3719, %v6445
  %v6585 = vsub.f32 %v4865, %v6445
  %v6586 = vsub.f32 %v1431, %v6450
  %v6587 = vsub.f32 %v2577, %v6450
  %v6588 = vsub.f32 %v3723, %v6450
  %v6589 = vsub.f32 %v4869, %v6450
  %v6590 = vsub.f32 %v1435, %v6455
  %v6591 = vsub.f32 %v2581, %v6455
  %v6592 = vsub.f32 %v3727, %v6455
  %v6593 = vsub.f32 %v4873, %v6455
  %v6594 = vsub.f32 %v1439, %v6460
  %v6595 = vsub.f32 %v2585, %v6460
  %v6596 = vsub.f32 %v3731, %v6460
  %v6597 = vsub.f32 %v4877, %v6460
  %v6598 = vsub.f32 %v1443, %v6465
  %v6599 = vsub.f32 %v2589, %v6465
  %v6600 = vsub.f32 %v3735, %v6465
  %v6601 = vsub.f32 %v4881, %v6465
  %v6602 = vsub.f32 %v1447, %v6470
  %v6603 = vsub.f32 %v2593, %v6470
  %v6604 = vsub.f32 %v3739, %v6470
  %v6605 = vsub.f32 %v4885, %v6470
  %v6606 = vsub.f32 %v1451, %v6475
  %v6607 = vsub.f32 %v2597, %v6475
  %v6608 = vsub.f32 %v3743, %v6475
  %v6609 = vsub.f32 %v4889, %v6475
  %v6610 = vsub.f32 %v1455, %v6480
  %v6611 = vsub.f32 %v2601, %v6480
  %v6612 = vsub.f32 %v3747, %v6480
  %v6613 = vsub.f32 %v4893, %v6480
  %v6614 = vsub.f32 %v1459, %v6485
  %v6615 = vsub.f32 %v2605, %v6485
  %v6616 = vsub.f32 %v3751, %v6485
  %v6617 = vsub.f32 %v4897, %v6485
  %v6618 = vsub.f32 %v1463, %v6490
  %v6619 = vsub.f32 %v2609, %v6490
  %v6620 = vsub.f32 %v3755, %v6490
  %v6621 = vsub.f32 %v4901, %v6490
  %v6622 = vsub.f32 %v1467, %v6495
  %v6623 = vsub.f32 %v2613, %v6495
  %v6624 = vsub.f32 %v3759, %v6495
  %v6625 = vsub.f32 %v4905, %v6495
  %v6626 = vsub.f32 %v1471, %v6500
  %v6627 = vsub.f32 %v2617, %v6500
  %v6628 = vsub.f32 %v3763, %v6500
  %v6629 = vsub.f32 %v4909, %v6500
  %v6630 = vmul.f32 %v6502, 1.442695
  %v6631 = vpow.pop %v6630
  %v6632 = vmul.f32 %v6503, 1.442695
  %v6633 = vpow.pop %v6632
  %v6634 = vmul.f32 %v6504, 1.442695
  %v6635 = vpow.pop %v6634
  %v6636 = vmul.f32 %v6505, 1.442695
  %v6637 = vpow.pop %v6636
  %v6638 = vmul.f32 %v6506, 1.442695
  %v6639 = vpow.pop %v6638
  %v6640 = vmul.f32 %v6507, 1.442695
  %v6641 = vpow.pop %v6640
  %v6642 = vmul.f32 %v6508, 1.442695
  %v6643 = vpow.pop %v6642
  %v6644 = vmul.f32 %v6509, 1.442695
  %v6645 = vpow.pop %v6644
  %v6646 = vmul.f32 %v6510, 1.442695
  %v6647 = vpow.pop %v6646
  %v6648 = vmul.f32 %v6511, 1.442695
  %v6649 = vpow.pop %v6648
  %v6650 = vmul.f32 %v6512, 1.442695
  %v6651 = vpow.pop %v6650
  %v6652 = vmul.f32 %v6513, 1.442695
  %v6653 = vpow.pop %v6652
  %v6654 = vmul.f32 %v6514, 1.442695
  %v6655 = vpow.pop %v6654
  %v6656 = vmul.f32 %v6515, 1.442695
  %v6657 = vpow.pop %v6656
  %v6658 = vmul.f32 %v6516, 1.442695
  %v6659 = vpow.pop %v6658
  %v6660 = vmul.f32 %v6517, 1.442695
  %v6661 = vpow.pop %v6660
  %v6662 = vmul.f32 %v6518, 1.442695
  %v6663 = vpow.pop %v6662
  %v6664 = vmul.f32 %v6519, 1.442695
  %v6665 = vpow.pop %v6664
  %v6666 = vmul.f32 %v6520, 1.442695
  %v6667 = vpow.pop %v6666
  %v6668 = vmul.f32 %v6521, 1.442695
  %v6669 = vpow.pop %v6668
  %v6670 = vmul.f32 %v6522, 1.442695
  %v6671 = vpow.pop %v6670
  %v6672 = vmul.f32 %v6523, 1.442695
  %v6673 = vpow.pop %v6672
  %v6674 = vmul.f32 %v6524, 1.442695
  %v6675 = vpow.pop %v6674
  %v6676 = vmul.f32 %v6525, 1.442695
  %v6677 = vpow.pop %v6676
  %v6678 = vmul.f32 %v6526, 1.442695
  %v6679 = vpow.pop %v6678
  %v6680 = vmul.f32 %v6527, 1.442695
  %v6681 = vpow.pop %v6680
  %v6682 = vmul.f32 %v6528, 1.442695
  %v6683 = vpow.pop %v6682
  %v6684 = vmul.f32 %v6529, 1.442695
  %v6685 = vpow.pop %v6684
  %v6686 = vmul.f32 %v6530, 1.442695
  %v6687 = vpow.pop %v6686
  %v6688 = vmul.f32 %v6531, 1.442695
  %v6689 = vpow.pop %v6688
  %v6690 = vmul.f32 %v6532, 1.442695
  %v6691 = vpow.pop %v6690
  %v6692 = vmul.f32 %v6533, 1.442695
  %v6693 = vpow.pop %v6692
  %v6694 = vmul.f32 %v6534, 1.442695
  %v6695 = vpow.pop %v6694
  %v6696 = vmul.f32 %v6535, 1.442695
  %v6697 = vpow.pop %v6696
  %v6698 = vmul.f32 %v6536, 1.442695
  %v6699 = vpow.pop %v6698
  %v6700 = vmul.f32 %v6537, 1.442695
  %v6701 = vpow.pop %v6700
  %v6702 = vmul.f32 %v6538, 1.442695
  %v6703 = vpow.pop %v6702
  %v6704 = vmul.f32 %v6539, 1.442695
  %v6705 = vpow.pop %v6704
  %v6706 = vmul.f32 %v6540, 1.442695
  %v6707 = vpow.pop %v6706
  %v6708 = vmul.f32 %v6541, 1.442695
  %v6709 = vpow.pop %v6708
  %v6710 = vmul.f32 %v6542, 1.442695
  %v6711 = vpow.pop %v6710
  %v6712 = vmul.f32 %v6543, 1.442695
  %v6713 = vpow.pop %v6712
  %v6714 = vmul.f32 %v6544, 1.442695
  %v6715 = vpow.pop %v6714
  %v6716 = vmul.f32 %v6545, 1.442695
  %v6717 = vpow.pop %v6716
  %v6718 = vmul.f32 %v6546, 1.442695
  %v6719 = vpow.pop %v6718
  %v6720 = vmul.f32 %v6547, 1.442695
  %v6721 = vpow.pop %v6720
  %v6722 = vmul.f32 %v6548, 1.442695
  %v6723 = vpow.pop %v6722
  %v6724 = vmul.f32 %v6549, 1.442695
  %v6725 = vpow.pop %v6724
  %v6726 = vmul.f32 %v6550, 1.442695
  %v6727 = vpow.pop %v6726
  %v6728 = vmul.f32 %v6551, 1.442695
  %v6729 = vpow.pop %v6728
  %v6730 = vmul.f32 %v6552, 1.442695
  %v6731 = vpow.pop %v6730
  %v6732 = vmul.f32 %v6553, 1.442695
  %v6733 = vpow.pop %v6732
  %v6734 = vmul.f32 %v6554, 1.442695
  %v6735 = vpow.pop %v6734
  %v6736 = vmul.f32 %v6555, 1.442695
  %v6737 = vpow.pop %v6736
  %v6738 = vmul.f32 %v6556, 1.442695
  %v6739 = vpow.pop %v6738
  %v6740 = vmul.f32 %v6557, 1.442695
  %v6741 = vpow.pop %v6740
  %v6742 = vmul.f32 %v6558, 1.442695
  %v6743 = vpow.pop %v6742
  %v6744 = vmul.f32 %v6559, 1.442695
  %v6745 = vpow.pop %v6744
  %v6746 = vmul.f32 %v6560, 1.442695
  %v6747 = vpow.pop %v6746
  %v6748 = vmul.f32 %v6561, 1.442695
  %v6749 = vpow.pop %v6748
  %v6750 = vmul.f32 %v6562, 1.442695
  %v6751 = vpow.pop %v6750
  %v6752 = vmul.f32 %v6563, 1.442695
  %v6753 = vpow.pop %v6752
  %v6754 = vmul.f32 %v6564, 1.442695
  %v6755 = vpow.pop %v6754
  %v6756 = vmul.f32 %v6565, 1.442695
  %v6757 = vpow.pop %v6756
  %v6758 = vmul.f32 %v6566, 1.442695
  %v6759 = vpow.pop %v6758
  %v6760 = vmul.f32 %v6567, 1.442695
  %v6761 = vpow.pop %v6760
  %v6762 = vmul.f32 %v6568, 1.442695
  %v6763 = vpow.pop %v6762
  %v6764 = vmul.f32 %v6569, 1.442695
  %v6765 = vpow.pop %v6764
  %v6766 = vmul.f32 %v6570, 1.442695
  %v6767 = vpow.pop %v6766
  %v6768 = vmul.f32 %v6571, 1.442695
  %v6769 = vpow.pop %v6768
  %v6770 = vmul.f32 %v6572, 1.442695
  %v6771 = vpow.pop %v6770
  %v6772 = vmul.f32 %v6573, 1.442695
  %v6773 = vpow.pop %v6772
  %v6774 = vmul.f32 %v6574, 1.442695
  %v6775 = vpow.pop %v6774
  %v6776 = vmul.f32 %v6575, 1.442695
  %v6777 = vpow.pop %v6776
  %v6778 = vmul.f32 %v6576, 1.442695
  %v6779 = vpow.pop %v6778
  %v6780 = vmul.f32 %v6577, 1.442695
  %v6781 = vpow.pop %v6780
  %v6782 = vmul.f32 %v6578, 1.442695
  %v6783 = vpow.pop %v6782
  %v6784 = vmul.f32 %v6579, 1.442695
  %v6785 = vpow.pop %v6784
  %v6786 = vmul.f32 %v6580, 1.442695
  %v6787 = vpow.pop %v6786
  %v6788 = vmul.f32 %v6581, 1.442695
  %v6789 = vpow.pop %v6788
  %v6790 = vmul.f32 %v6582, 1.442695
  %v6791 = vpow.pop %v6790
  %v6792 = vmul.f32 %v6583, 1.442695
  %v6793 = vpow.pop %v6792
  %v6794 = vmul.f32 %v6584, 1.442695
  %v6795 = vpow.pop %v6794
  %v6796 = vmul.f32 %v6585, 1.442695
  %v6797 = vpow.pop %v6796
  %v6798 = vmul.f32 %v6586, 1.442695
  %v6799 = vpow.pop %v6798
  %v6800 = vmul.f32 %v6587, 1.442695
  %v6801 = vpow.pop %v6800
  %v6802 = vmul.f32 %v6588, 1.442695
  %v6803 = vpow.pop %v6802
  %v6804 = vmul.f32 %v6589, 1.442695
  %v6805 = vpow.pop %v6804
  %v6806 = vmul.f32 %v6590, 1.442695
  %v6807 = vpow.pop %v6806
  %v6808 = vmul.f32 %v6591, 1.442695
  %v6809 = vpow.pop %v6808
  %v6810 = vmul.f32 %v6592, 1.442695
  %v6811 = vpow.pop %v6810
  %v6812 = vmul.f32 %v6593, 1.442695
  %v6813 = vpow.pop %v6812
  %v6814 = vmul.f32 %v6594, 1.442695
  %v6815 = vpow.pop %v6814
  %v6816 = vmul.f32 %v6595, 1.442695
  %v6817 = vpow.pop %v6816
  %v6818 = vmul.f32 %v6596, 1.442695
  %v6819 = vpow.pop %v6818
  %v6820 = vmul.f32 %v6597, 1.442695
  %v6821 = vpow.pop %v6820
  %v6822 = vmul.f32 %v6598, 1.442695
  %v6823 = vpow.pop %v6822
  %v6824 = vmul.f32 %v6599, 1.442695
  %v6825 = vpow.pop %v6824
  %v6826 = vmul.f32 %v6600, 1.442695
  %v6827 = vpow.pop %v6826
  %v6828 = vmul.f32 %v6601, 1.442695
  %v6829 = vpow.pop %v6828
  %v6830 = vmul.f32 %v6602, 1.442695
  %v6831 = vpow.pop %v6830
  %v6832 = vmul.f32 %v6603, 1.442695
  %v6833 = vpow.pop %v6832
  %v6834 = vmul.f32 %v6604, 1.442695
  %v6835 = vpow.pop %v6834
  %v6836 = vmul.f32 %v6605, 1.442695
  %v6837 = vpow.pop %v6836
  %v6838 = vmul.f32 %v6606, 1.442695
  %v6839 = vpow.pop %v6838
  %v6840 = vmul.f32 %v6607, 1.442695
  %v6841 = vpow.pop %v6840
  %v6842 = vmul.f32 %v6608, 1.442695
  %v6843 = vpow.pop %v6842
  %v6844 = vmul.f32 %v6609, 1.442695
  %v6845 = vpow.pop %v6844
  %v6846 = vmul.f32 %v6610, 1.442695
  %v6847 = vpow.pop %v6846
  %v6848 = vmul.f32 %v6611, 1.442695
  %v6849 = vpow.pop %v6848
  %v6850 = vmul.f32 %v6612, 1.442695
  %v6851 = vpow.pop %v6850
  %v6852 = vmul.f32 %v6613, 1.442695
  %v6853 = vpow.pop %v6852
  %v6854 = vmul.f32 %v6614, 1.442695
  %v6855 = vpow.pop %v6854
  %v6856 = vmul.f32 %v6615, 1.442695
  %v6857 = vpow.pop %v6856
  %v6858 = vmul.f32 %v6616, 1.442695
  %v6859 = vpow.pop %v6858
  %v6860 = vmul.f32 %v6617, 1.442695
  %v6861 = vpow.pop %v6860
  %v6862 = vmul.f32 %v6618, 1.442695
  %v6863 = vpow.pop %v6862
  %v6864 = vmul.f32 %v6619, 1.442695
  %v6865 = vpow.pop %v6864
  %v6866 = vmul.f32 %v6620, 1.442695
  %v6867 = vpow.pop %v6866
  %v6868 = vmul.f32 %v6621, 1.442695
  %v6869 = vpow.pop %v6868
  %v6870 = vmul.f32 %v6622, 1.442695
  %v6871 = vpow.pop %v6870
  %v6872 = vmul.f32 %v6623, 1.442695
  %v6873 = vpow.pop %v6872
  %v6874 = vmul.f32 %v6624, 1.442695
  %v6875 = vpow.pop %v6874
  %v6876 = vmul.f32 %v6625, 1.442695
  %v6877 = vpow.pop %v6876
  %v6878 = vmul.f32 %v6626, 1.442695
  %v6879 = vpow.pop %v6878
  %v6880 = vmul.f32 %v6627, 1.442695
  %v6881 = vpow.pop %v6880
  %v6882 = vmul.f32 %v6628, 1.442695
  %v6883 = vpow.pop %v6882
  %v6884 = vmul.f32 %v6629, 1.442695
  %v6885 = vpow.pop %v6884
  %v6886 = vsel %vm5121, %v6631, 0.0
  %v6887 = vsel %vm5122, %v6633, 0.0
  %v6888 = vsel %vm5123, %v6635, 0.0
  %v6889 = vsel %vm5124, %v6637, 0.0
  %v6890 = vsel %vm5125, %v6639, 0.0
  %v6891 = vsel %vm5126, %v6641, 0.0
  %v6892 = vsel %vm5127, %v6643, 0.0
  %v6893 = vsel %vm5128, %v6645, 0.0
  %v6894 = vsel %vm5129, %v6647, 0.0
  %v6895 = vsel %vm5130, %v6649, 0.0
  %v6896 = vsel %vm5131, %v6651, 0.0
  %v6897 = vsel %vm5132, %v6653, 0.0
  %v6898 = vsel %vm5133, %v6655, 0.0
  %v6899 = vsel %vm5134, %v6657, 0.0
  %v6900 = vsel %vm5135, %v6659, 0.0
  %v6901 = vsel %vm5136, %v6661, 0.0
  %v6902 = vsel %vm5137, %v6663, 0.0
  %v6903 = vsel %vm5138, %v6665, 0.0
  %v6904 = vsel %vm5139, %v6667, 0.0
  %v6905 = vsel %vm5140, %v6669, 0.0
  %v6906 = vsel %vm5141, %v6671, 0.0
  %v6907 = vsel %vm5142, %v6673, 0.0
  %v6908 = vsel %vm5143, %v6675, 0.0
  %v6909 = vsel %vm5144, %v6677, 0.0
  %v6910 = vsel %vm5145, %v6679, 0.0
  %v6911 = vsel %vm5146, %v6681, 0.0
  %v6912 = vsel %vm5147, %v6683, 0.0
  %v6913 = vsel %vm5148, %v6685, 0.0
  %v6914 = vsel %vm5149, %v6687, 0.0
  %v6915 = vsel %vm5150, %v6689, 0.0
  %v6916 = vsel %vm5151, %v6691, 0.0
  %v6917 = vsel %vm5152, %v6693, 0.0
  %v6918 = vsel %vm5153, %v6695, 0.0
  %v6919 = vsel %vm5154, %v6697, 0.0
  %v6920 = vsel %vm5155, %v6699, 0.0
  %v6921 = vsel %vm5156, %v6701, 0.0
  %v6922 = vsel %vm5157, %v6703, 0.0
  %v6923 = vsel %vm5158, %v6705, 0.0
  %v6924 = vsel %vm5159, %v6707, 0.0
  %v6925 = vsel %vm5160, %v6709, 0.0
  %v6926 = vsel %vm5161, %v6711, 0.0
  %v6927 = vsel %vm5162, %v6713, 0.0
  %v6928 = vsel %vm5163, %v6715, 0.0
  %v6929 = vsel %vm5164, %v6717, 0.0
  %v6930 = vsel %vm5165, %v6719, 0.0
  %v6931 = vsel %vm5166, %v6721, 0.0
  %v6932 = vsel %vm5167, %v6723, 0.0
  %v6933 = vsel %vm5168, %v6725, 0.0
  %v6934 = vsel %vm5169, %v6727, 0.0
  %v6935 = vsel %vm5170, %v6729, 0.0
  %v6936 = vsel %vm5171, %v6731, 0.0
  %v6937 = vsel %vm5172, %v6733, 0.0
  %v6938 = vsel %vm5173, %v6735, 0.0
  %v6939 = vsel %vm5174, %v6737, 0.0
  %v6940 = vsel %vm5175, %v6739, 0.0
  %v6941 = vsel %vm5176, %v6741, 0.0
  %v6942 = vsel %vm5177, %v6743, 0.0
  %v6943 = vsel %vm5178, %v6745, 0.0
  %v6944 = vsel %vm5179, %v6747, 0.0
  %v6945 = vsel %vm5180, %v6749, 0.0
  %v6946 = vsel %vm5181, %v6751, 0.0
  %v6947 = vsel %vm5182, %v6753, 0.0
  %v6948 = vsel %vm5183, %v6755, 0.0
  %v6949 = vsel %vm5184, %v6757, 0.0
  %v6950 = vsel %vm5185, %v6759, 0.0
  %v6951 = vsel %vm5186, %v6761, 0.0
  %v6952 = vsel %vm5187, %v6763, 0.0
  %v6953 = vsel %vm5188, %v6765, 0.0
  %v6954 = vsel %vm5189, %v6767, 0.0
  %v6955 = vsel %vm5190, %v6769, 0.0
  %v6956 = vsel %vm5191, %v6771, 0.0
  %v6957 = vsel %vm5192, %v6773, 0.0
  %v6958 = vsel %vm5193, %v6775, 0.0
  %v6959 = vsel %vm5194, %v6777, 0.0
  %v6960 = vsel %vm5195, %v6779, 0.0
  %v6961 = vsel %vm5196, %v6781, 0.0
  %v6962 = vsel %vm5197, %v6783, 0.0
  %v6963 = vsel %vm5198, %v6785, 0.0
  %v6964 = vsel %vm5199, %v6787, 0.0
  %v6965 = vsel %vm5200, %v6789, 0.0
  %v6966 = vsel %vm5201, %v6791, 0.0
  %v6967 = vsel %vm5202, %v6793, 0.0
  %v6968 = vsel %vm5203, %v6795, 0.0
  %v6969 = vsel %vm5204, %v6797, 0.0
  %v6970 = vsel %vm5205, %v6799, 0.0
  %v6971 = vsel %vm5206, %v6801, 0.0
  %v6972 = vsel %vm5207, %v6803, 0.0
  %v6973 = vsel %vm5208, %v6805, 0.0
  %v6974 = vsel %vm5209, %v6807, 0.0
  %v6975 = vsel %vm5210, %v6809, 0.0
  %v6976 = vsel %vm5211, %v6811, 0.0
  %v6977 = vsel %vm5212, %v6813, 0.0
  %v6978 = vsel %vm5213, %v6815, 0.0
  %v6979 = vsel %vm5214, %v6817, 0.0
  %v6980 = vsel %vm5215, %v6819, 0.0
  %v6981 = vsel %vm5216, %v6821, 0.0
  %v6982 = vsel %vm5217, %v6823, 0.0
  %v6983 = vsel %vm5218, %v6825, 0.0
  %v6984 = vsel %vm5219, %v6827, 0.0
  %v6985 = vsel %vm5220, %v6829, 0.0
  %v6986 = vsel %vm5221, %v6831, 0.0
  %v6987 = vsel %vm5222, %v6833, 0.0
  %v6988 = vsel %vm5223, %v6835, 0.0
  %v6989 = vsel %vm5224, %v6837, 0.0
  %v6990 = vsel %vm5225, %v6839, 0.0
  %v6991 = vsel %vm5226, %v6841, 0.0
  %v6992 = vsel %vm5227, %v6843, 0.0
  %v6993 = vsel %vm5228, %v6845, 0.0
  %v6994 = vsel %vm5229, %v6847, 0.0
  %v6995 = vsel %vm5230, %v6849, 0.0
  %v6996 = vsel %vm5231, %v6851, 0.0
  %v6997 = vsel %vm5232, %v6853, 0.0
  %v6998 = vsel %vm5233, %v6855, 0.0
  %v6999 = vsel %vm5234, %v6857, 0.0
  %v7000 = vsel %vm5235, %v6859, 0.0
  %v7001 = vsel %vm5236, %v6861, 0.0
  %v7002 = vsel %vm5237, %v6863, 0.0
  %v7003 = vsel %vm5238, %v6865, 0.0
  %v7004 = vsel %vm5239, %v6867, 0.0
  %v7005 = vsel %vm5240, %v6869, 0.0
  %v7006 = vsel %vm5241, %v6871, 0.0
  %v7007 = vsel %vm5242, %v6873, 0.0
  %v7008 = vsel %vm5243, %v6875, 0.0
  %v7009 = vsel %vm5244, %v6877, 0.0
  %v7010 = vsel %vm5245, %v6879, 0.0
  %v7011 = vsel %vm5246, %v6881, 0.0
  %v7012 = vsel %vm5247, %v6883, 0.0
  %v7013 = vsel %vm5248, %v6885, 0.0
  %v7014 = vld [vmem:[#allocation3] sm:$0xff]
  %v7015 = vld [vmem:[#allocation3 + $0x8] sm:$0xff]
  %v7016 = vld [vmem:[#allocation3 + $0x10] sm:$0xff]
  %v7017 = vld [vmem:[#allocation3 + $0x18] sm:$0xff]
  %v7018 = vld [vmem:[#allocation3 + $0x20] sm:$0xff]
  %v7019 = vld [vmem:[#allocation3 + $0x28] sm:$0xff]
  %v7020 = vld [vmem:[#allocation3 + $0x30] sm:$0xff]
  %v7021 = vld [vmem:[#allocation3 + $0x38] sm:$0xff]
  %v7022 = vld [vmem:[#allocation3 + $0x40] sm:$0xff]
  %v7023 = vld [vmem:[#allocation3 + $0x48] sm:$0xff]
  %v7024 = vld [vmem:[#allocation3 + $0x50] sm:$0xff]
  %v7025 = vld [vmem:[#allocation3 + $0x58] sm:$0xff]
  %v7026 = vld [vmem:[#allocation3 + $0x60] sm:$0xff]
  %v7027 = vld [vmem:[#allocation3 + $0x68] sm:$0xff]
  %v7028 = vld [vmem:[#allocation3 + $0x70] sm:$0xff]
  %v7029 = vld [vmem:[#allocation3 + $0x78] sm:$0xff]
  %v7030 = vld [vmem:[#allocation3 + $0x80] sm:$0xff]
  %v7031 = vld [vmem:[#allocation3 + $0x88] sm:$0xff]
  %v7032 = vld [vmem:[#allocation3 + $0x90] sm:$0xff]
  %v7033 = vld [vmem:[#allocation3 + $0x98] sm:$0xff]
  %v7034 = vld [vmem:[#allocation3 + $0xa0] sm:$0xff]
  %v7035 = vld [vmem:[#allocation3 + $0xa8] sm:$0xff]
  %v7036 = vld [vmem:[#allocation3 + $0xb0] sm:$0xff]
  %v7037 = vld [vmem:[#allocation3 + $0xb8] sm:$0xff]
  %v7038 = vld [vmem:[#allocation3 + $0xc0] sm:$0xff]
  %v7039 = vld [vmem:[#allocation3 + $0xc8] sm:$0xff]
  %v7040 = vld [vmem:[#allocation3 + $0xd0] sm:$0xff]
  %v7041 = vld [vmem:[#allocation3 + $0xd8] sm:$0xff]
  %v7042 = vld [vmem:[#allocation3 + $0xe0] sm:$0xff]
  %v7043 = vld [vmem:[#allocation3 + $0xe8] sm:$0xff]
  %v7044 = vld [vmem:[#allocation3 + $0xf0] sm:$0xff]
  %v7045 = vld [vmem:[#allocation3 + $0xf8] sm:$0xff]
  %v7046 = vmul.f32 %v6279, %v7014
  %v7047 = vmul.f32 %v6281, %v7015
  %v7048 = vmul.f32 %v6283, %v7016
  %v7049 = vmul.f32 %v6285, %v7017
  %v7050 = vmul.f32 %v6287, %v7018
  %v7051 = vmul.f32 %v6289, %v7019
  %v7052 = vmul.f32 %v6291, %v7020
  %v7053 = vmul.f32 %v6293, %v7021
  %v7054 = vmul.f32 %v6295, %v7022
  %v7055 = vmul.f32 %v6297, %v7023
  %v7056 = vmul.f32 %v6299, %v7024
  %v7057 = vmul.f32 %v6301, %v7025
  %v7058 = vmul.f32 %v6303, %v7026
  %v7059 = vmul.f32 %v6305, %v7027
  %v7060 = vmul.f32 %v6307, %v7028
  %v7061 = vmul.f32 %v6309, %v7029
  %v7062 = vmul.f32 %v6311, %v7030
  %v7063 = vmul.f32 %v6313, %v7031
  %v7064 = vmul.f32 %v6315, %v7032
  %v7065 = vmul.f32 %v6317, %v7033
  %v7066 = vmul.f32 %v6319, %v7034
  %v7067 = vmul.f32 %v6321, %v7035
  %v7068 = vmul.f32 %v6323, %v7036
  %v7069 = vmul.f32 %v6325, %v7037
  %v7070 = vmul.f32 %v6327, %v7038
  %v7071 = vmul.f32 %v6329, %v7039
  %v7072 = vmul.f32 %v6331, %v7040
  %v7073 = vmul.f32 %v6333, %v7041
  %v7074 = vmul.f32 %v6335, %v7042
  %v7075 = vmul.f32 %v6337, %v7043
  %v7076 = vmul.f32 %v6339, %v7044
  %v7077 = vmul.f32 %v6341, %v7045
  %v7078 = vadd.f32 %v6886, %v6887
  %v7079 = vadd.f32 %v7078, %v6888
  %v7080 = vadd.f32 %v7079, %v6889
  %7081 = vadd.xlane.f32.xlu0 %v7080
  %v7082 = vpop.xlane.xlu0 %7081
  %v7083 = vadd.f32 %v6890, %v6891
  %v7084 = vadd.f32 %v7083, %v6892
  %v7085 = vadd.f32 %v7084, %v6893
  %7086 = vadd.xlane.f32.xlu0 %v7085
  %v7087 = vpop.xlane.xlu0 %7086
  %v7088 = vadd.f32 %v6894, %v6895
  %v7089 = vadd.f32 %v7088, %v6896
  %v7090 = vadd.f32 %v7089, %v6897
  %7091 = vadd.xlane.f32.xlu0 %v7090
  %v7092 = vpop.xlane.xlu0 %7091
  %v7093 = vadd.f32 %v6898, %v6899
  %v7094 = vadd.f32 %v7093, %v6900
  %v7095 = vadd.f32 %v7094, %v6901
  %7096 = vadd.xlane.f32.xlu0 %v7095
  %v7097 = vpop.xlane.xlu0 %7096
  %v7098 = vadd.f32 %v6902, %v6903
  %v7099 = vadd.f32 %v7098, %v6904
  %v7100 = vadd.f32 %v7099, %v6905
  %7101 = vadd.xlane.f32.xlu0 %v7100
  %v7102 = vpop.xlane.xlu0 %7101
  %v7103 = vadd.f32 %v6906, %v6907
  %v7104 = vadd.f32 %v7103, %v6908
  %v7105 = vadd.f32 %v7104, %v6909
  %7106 = vadd.xlane.f32.xlu0 %v7105
  %v7107 = vpop.xlane.xlu0 %7106
  %v7108 = vadd.f32 %v6910, %v6911
  %v7109 = vadd.f32 %v7108, %v6912
  %v7110 = vadd.f32 %v7109, %v6913
  %7111 = vadd.xlane.f32.xlu0 %v7110
  %v7112 = vpop.xlane.xlu0 %7111
  %v7113 = vadd.f32 %v6914, %v6915
  %v7114 = vadd.f32 %v7113, %v6916
  %v7115 = vadd.f32 %v7114, %v6917
  %7116 = vadd.xlane.f32.xlu0 %v7115
  %v7117 = vpop.xlane.xlu0 %7116
  %v7118 = vadd.f32 %v6918, %v6919
  %v7119 = vadd.f32 %v7118, %v6920
  %v7120 = vadd.f32 %v7119, %v6921
  %7121 = vadd.xlane.f32.xlu0 %v7120
  %v7122 = vpop.xlane.xlu0 %7121
  %v7123 = vadd.f32 %v6922, %v6923
  %v7124 = vadd.f32 %v7123, %v6924
  %v7125 = vadd.f32 %v7124, %v6925
  %7126 = vadd.xlane.f32.xlu0 %v7125
  %v7127 = vpop.xlane.xlu0 %7126
  %v7128 = vadd.f32 %v6926, %v6927
  %v7129 = vadd.f32 %v7128, %v6928
  %v7130 = vadd.f32 %v7129, %v6929
  %7131 = vadd.xlane.f32.xlu0 %v7130
  %v7132 = vpop.xlane.xlu0 %7131
  %v7133 = vadd.f32 %v6930, %v6931
  %v7134 = vadd.f32 %v7133, %v6932
  %v7135 = vadd.f32 %v7134, %v6933
  %7136 = vadd.xlane.f32.xlu0 %v7135
  %v7137 = vpop.xlane.xlu0 %7136
  %v7138 = vadd.f32 %v6934, %v6935
  %v7139 = vadd.f32 %v7138, %v6936
  %v7140 = vadd.f32 %v7139, %v6937
  %7141 = vadd.xlane.f32.xlu0 %v7140
  %v7142 = vpop.xlane.xlu0 %7141
  %v7143 = vadd.f32 %v6938, %v6939
  %v7144 = vadd.f32 %v7143, %v6940
  %v7145 = vadd.f32 %v7144, %v6941
  %7146 = vadd.xlane.f32.xlu0 %v7145
  %v7147 = vpop.xlane.xlu0 %7146
  %v7148 = vadd.f32 %v6942, %v6943
  %v7149 = vadd.f32 %v7148, %v6944
  %v7150 = vadd.f32 %v7149, %v6945
  %7151 = vadd.xlane.f32.xlu0 %v7150
  %v7152 = vpop.xlane.xlu0 %7151
  %v7153 = vadd.f32 %v6946, %v6947
  %v7154 = vadd.f32 %v7153, %v6948
  %v7155 = vadd.f32 %v7154, %v6949
  %7156 = vadd.xlane.f32.xlu0 %v7155
  %v7157 = vpop.xlane.xlu0 %7156
  %v7158 = vadd.f32 %v6950, %v6951
  %v7159 = vadd.f32 %v7158, %v6952
  %v7160 = vadd.f32 %v7159, %v6953
  %7161 = vadd.xlane.f32.xlu0 %v7160
  %v7162 = vpop.xlane.xlu0 %7161
  %v7163 = vadd.f32 %v6954, %v6955
  %v7164 = vadd.f32 %v7163, %v6956
  %v7165 = vadd.f32 %v7164, %v6957
  %7166 = vadd.xlane.f32.xlu0 %v7165
  %v7167 = vpop.xlane.xlu0 %7166
  %v7168 = vadd.f32 %v6958, %v6959
  %v7169 = vadd.f32 %v7168, %v6960
  %v7170 = vadd.f32 %v7169, %v6961
  %7171 = vadd.xlane.f32.xlu0 %v7170
  %v7172 = vpop.xlane.xlu0 %7171
  %v7173 = vadd.f32 %v6962, %v6963
  %v7174 = vadd.f32 %v7173, %v6964
  %v7175 = vadd.f32 %v7174, %v6965
  %7176 = vadd.xlane.f32.xlu0 %v7175
  %v7177 = vpop.xlane.xlu0 %7176
  %v7178 = vadd.f32 %v6966, %v6967
  %v7179 = vadd.f32 %v7178, %v6968
  %v7180 = vadd.f32 %v7179, %v6969
  %7181 = vadd.xlane.f32.xlu0 %v7180
  %v7182 = vpop.xlane.xlu0 %7181
  %v7183 = vadd.f32 %v6970, %v6971
  %v7184 = vadd.f32 %v7183, %v6972
  %v7185 = vadd.f32 %v7184, %v6973
  %7186 = vadd.xlane.f32.xlu0 %v7185
  %v7187 = vpop.xlane.xlu0 %7186
  %v7188 = vadd.f32 %v6974, %v6975
  %v7189 = vadd.f32 %v7188, %v6976
  %v7190 = vadd.f32 %v7189, %v6977
  %7191 = vadd.xlane.f32.xlu0 %v7190
  %v7192 = vpop.xlane.xlu0 %7191
  %v7193 = vadd.f32 %v6978, %v6979
  %v7194 = vadd.f32 %v7193, %v6980
  %v7195 = vadd.f32 %v7194, %v6981
  %7196 = vadd.xlane.f32.xlu0 %v7195
  %v7197 = vpop.xlane.xlu0 %7196
  %v7198 = vadd.f32 %v6982, %v6983
  %v7199 = vadd.f32 %v7198, %v6984
  %v7200 = vadd.f32 %v7199, %v6985
  %7201 = vadd.xlane.f32.xlu0 %v7200
  %v7202 = vpop.xlane.xlu0 %7201
  %v7203 = vadd.f32 %v6986, %v6987
  %v7204 = vadd.f32 %v7203, %v6988
  %v7205 = vadd.f32 %v7204, %v6989
  %7206 = vadd.xlane.f32.xlu0 %v7205
  %v7207 = vpop.xlane.xlu0 %7206
  %v7208 = vadd.f32 %v6990, %v6991
  %v7209 = vadd.f32 %v7208, %v6992
  %v7210 = vadd.f32 %v7209, %v6993
  %7211 = vadd.xlane.f32.xlu0 %v7210
  %v7212 = vpop.xlane.xlu0 %7211
  %v7213 = vadd.f32 %v6994, %v6995
  %v7214 = vadd.f32 %v7213, %v6996
  %v7215 = vadd.f32 %v7214, %v6997
  %7216 = vadd.xlane.f32.xlu0 %v7215
  %v7217 = vpop.xlane.xlu0 %7216
  %v7218 = vadd.f32 %v6998, %v6999
  %v7219 = vadd.f32 %v7218, %v7000
  %v7220 = vadd.f32 %v7219, %v7001
  %7221 = vadd.xlane.f32.xlu0 %v7220
  %v7222 = vpop.xlane.xlu0 %7221
  %v7223 = vadd.f32 %v7002, %v7003
  %v7224 = vadd.f32 %v7223, %v7004
  %v7225 = vadd.f32 %v7224, %v7005
  %7226 = vadd.xlane.f32.xlu0 %v7225
  %v7227 = vpop.xlane.xlu0 %7226
  %v7228 = vadd.f32 %v7006, %v7007
  %v7229 = vadd.f32 %v7228, %v7008
  %v7230 = vadd.f32 %v7229, %v7009
  %7231 = vadd.xlane.f32.xlu0 %v7230
  %v7232 = vpop.xlane.xlu0 %7231
  %v7233 = vadd.f32 %v7010, %v7011
  %v7234 = vadd.f32 %v7233, %v7012
  %v7235 = vadd.f32 %v7234, %v7013
  %7236 = vadd.xlane.f32.xlu0 %v7235
  %v7237 = vpop.xlane.xlu0 %7236
  %v7238 = vadd.f32 %v7046, %v7082
  %v7239 = vadd.f32 %v7047, %v7087
  %v7240 = vadd.f32 %v7048, %v7092
  %v7241 = vadd.f32 %v7049, %v7097
  %v7242 = vadd.f32 %v7050, %v7102
  %v7243 = vadd.f32 %v7051, %v7107
  %v7244 = vadd.f32 %v7052, %v7112
  %v7245 = vadd.f32 %v7053, %v7117
  %v7246 = vadd.f32 %v7054, %v7122
  %v7247 = vadd.f32 %v7055, %v7127
  %v7248 = vadd.f32 %v7056, %v7132
  %v7249 = vadd.f32 %v7057, %v7137
  %v7250 = vadd.f32 %v7058, %v7142
  %v7251 = vadd.f32 %v7059, %v7147
  %v7252 = vadd.f32 %v7060, %v7152
  %v7253 = vadd.f32 %v7061, %v7157
  %v7254 = vadd.f32 %v7062, %v7162
  %v7255 = vadd.f32 %v7063, %v7167
  %v7256 = vadd.f32 %v7064, %v7172
  %v7257 = vadd.f32 %v7065, %v7177
  %v7258 = vadd.f32 %v7066, %v7182
  %v7259 = vadd.f32 %v7067, %v7187
  %v7260 = vadd.f32 %v7068, %v7192
  %v7261 = vadd.f32 %v7069, %v7197
  %v7262 = vadd.f32 %v7070, %v7202
  %v7263 = vadd.f32 %v7071, %v7207
  %v7264 = vadd.f32 %v7072, %v7212
  %v7265 = vadd.f32 %v7073, %v7217
  %v7266 = vadd.f32 %v7074, %v7222
  %v7267 = vadd.f32 %v7075, %v7227
  %v7268 = vadd.f32 %v7076, %v7232
  %v7269 = vadd.f32 %v7077, %v7237
  %vm7270 = vcmask 7168
  %7271 = vst.msk [vmem:[#allocation3] sm:$0xff] %vm7270, %v7238
  %7272 = vst.msk [vmem:[#allocation3 + $0x8] sm:$0xff] %vm7270, %v7239
  %7273 = vst.msk [vmem:[#allocation3 + $0x10] sm:$0xff] %vm7270, %v7240
  %7274 = vst.msk [vmem:[#allocation3 + $0x18] sm:$0xff] %vm7270, %v7241
  %7275 = vst.msk [vmem:[#allocation3 + $0x20] sm:$0xff] %vm7270, %v7242
  %7276 = vst.msk [vmem:[#allocation3 + $0x28] sm:$0xff] %vm7270, %v7243
  %7277 = vst.msk [vmem:[#allocation3 + $0x30] sm:$0xff] %vm7270, %v7244
  %7278 = vst.msk [vmem:[#allocation3 + $0x38] sm:$0xff] %vm7270, %v7245
  %7279 = vst.msk [vmem:[#allocation3 + $0x40] sm:$0xff] %vm7270, %v7246
  %7280 = vst.msk [vmem:[#allocation3 + $0x48] sm:$0xff] %vm7270, %v7247
  %7281 = vst.msk [vmem:[#allocation3 + $0x50] sm:$0xff] %vm7270, %v7248
  %7282 = vst.msk [vmem:[#allocation3 + $0x58] sm:$0xff] %vm7270, %v7249
  %7283 = vst.msk [vmem:[#allocation3 + $0x60] sm:$0xff] %vm7270, %v7250
  %7284 = vst.msk [vmem:[#allocation3 + $0x68] sm:$0xff] %vm7270, %v7251
  %7285 = vst.msk [vmem:[#allocation3 + $0x70] sm:$0xff] %vm7270, %v7252
  %7286 = vst.msk [vmem:[#allocation3 + $0x78] sm:$0xff] %vm7270, %v7253
  %7287 = vst.msk [vmem:[#allocation3 + $0x80] sm:$0xff] %vm7270, %v7254
  %7288 = vst.msk [vmem:[#allocation3 + $0x88] sm:$0xff] %vm7270, %v7255
  %7289 = vst.msk [vmem:[#allocation3 + $0x90] sm:$0xff] %vm7270, %v7256
  %7290 = vst.msk [vmem:[#allocation3 + $0x98] sm:$0xff] %vm7270, %v7257
  %7291 = vst.msk [vmem:[#allocation3 + $0xa0] sm:$0xff] %vm7270, %v7258
  %7292 = vst.msk [vmem:[#allocation3 + $0xa8] sm:$0xff] %vm7270, %v7259
  %7293 = vst.msk [vmem:[#allocation3 + $0xb0] sm:$0xff] %vm7270, %v7260
  %7294 = vst.msk [vmem:[#allocation3 + $0xb8] sm:$0xff] %vm7270, %v7261
  %7295 = vst.msk [vmem:[#allocation3 + $0xc0] sm:$0xff] %vm7270, %v7262
  %7296 = vst.msk [vmem:[#allocation3 + $0xc8] sm:$0xff] %vm7270, %v7263
  %7297 = vst.msk [vmem:[#allocation3 + $0xd0] sm:$0xff] %vm7270, %v7264
  %7298 = vst.msk [vmem:[#allocation3 + $0xd8] sm:$0xff] %vm7270, %v7265
  %7299 = vst.msk [vmem:[#allocation3 + $0xe0] sm:$0xff] %vm7270, %v7266
  %7300 = vst.msk [vmem:[#allocation3 + $0xe8] sm:$0xff] %vm7270, %v7267
  %7301 = vst.msk [vmem:[#allocation3 + $0xf0] sm:$0xff] %vm7270, %v7268
  %7302 = vst.msk [vmem:[#allocation3 + $0xf8] sm:$0xff] %vm7270, %v7269
  %7303 = vst.msk [vmem:[#allocation2] sm:$0xff] %vm7270, %v6214
  %7304 = vst.msk [vmem:[#allocation2 + $0x8] sm:$0xff] %vm7270, %v6215
  %7305 = vst.msk [vmem:[#allocation2 + $0x10] sm:$0xff] %vm7270, %v6216
  %7306 = vst.msk [vmem:[#allocation2 + $0x18] sm:$0xff] %vm7270, %v6217
  %7307 = vst.msk [vmem:[#allocation2 + $0x20] sm:$0xff] %vm7270, %v6218
  %7308 = vst.msk [vmem:[#allocation2 + $0x28] sm:$0xff] %vm7270, %v6219
  %7309 = vst.msk [vmem:[#allocation2 + $0x30] sm:$0xff] %vm7270, %v6220
  %7310 = vst.msk [vmem:[#allocation2 + $0x38] sm:$0xff] %vm7270, %v6221
  %7311 = vst.msk [vmem:[#allocation2 + $0x40] sm:$0xff] %vm7270, %v6222
  %7312 = vst.msk [vmem:[#allocation2 + $0x48] sm:$0xff] %vm7270, %v6223
  %7313 = vst.msk [vmem:[#allocation2 + $0x50] sm:$0xff] %vm7270, %v6224
  %7314 = vst.msk [vmem:[#allocation2 + $0x58] sm:$0xff] %vm7270, %v6225
  %7315 = vst.msk [vmem:[#allocation2 + $0x60] sm:$0xff] %vm7270, %v6226
  %7316 = vst.msk [vmem:[#allocation2 + $0x68] sm:$0xff] %vm7270, %v6227
  %7317 = vst.msk [vmem:[#allocation2 + $0x70] sm:$0xff] %vm7270, %v6228
  %7318 = vst.msk [vmem:[#allocation2 + $0x78] sm:$0xff] %vm7270, %v6229
  %7319 = vst.msk [vmem:[#allocation2 + $0x80] sm:$0xff] %vm7270, %v6230
  %7320 = vst.msk [vmem:[#allocation2 + $0x88] sm:$0xff] %vm7270, %v6231
  %7321 = vst.msk [vmem:[#allocation2 + $0x90] sm:$0xff] %vm7270, %v6232
  %7322 = vst.msk [vmem:[#allocation2 + $0x98] sm:$0xff] %vm7270, %v6233
  %7323 = vst.msk [vmem:[#allocation2 + $0xa0] sm:$0xff] %vm7270, %v6234
  %7324 = vst.msk [vmem:[#allocation2 + $0xa8] sm:$0xff] %vm7270, %v6235
  %7325 = vst.msk [vmem:[#allocation2 + $0xb0] sm:$0xff] %vm7270, %v6236
  %7326 = vst.msk [vmem:[#allocation2 + $0xb8] sm:$0xff] %vm7270, %v6237
  %7327 = vst.msk [vmem:[#allocation2 + $0xc0] sm:$0xff] %vm7270, %v6238
  %7328 = vst.msk [vmem:[#allocation2 + $0xc8] sm:$0xff] %vm7270, %v6239
  %7329 = vst.msk [vmem:[#allocation2 + $0xd0] sm:$0xff] %vm7270, %v6240
  %7330 = vst.msk [vmem:[#allocation2 + $0xd8] sm:$0xff] %vm7270, %v6241
  %7331 = vst.msk [vmem:[#allocation2 + $0xe0] sm:$0xff] %vm7270, %v6242
  %7332 = vst.msk [vmem:[#allocation2 + $0xe8] sm:$0xff] %vm7270, %v6243
  %7333 = vst.msk [vmem:[#allocation2 + $0xf0] sm:$0xff] %vm7270, %v6244
  %7334 = vst.msk [vmem:[#allocation2 + $0xf8] sm:$0xff] %vm7270, %v6245
  %v7335 = vld [vmem:[#allocation4] sm:$0xff]
  %v7336 = vld [vmem:[#allocation4 + $0x8] sm:$0xff]
  %v7337 = vld [vmem:[#allocation4 + $0x10] sm:$0xff]
  %v7338 = vld [vmem:[#allocation4 + $0x18] sm:$0xff]
  %v7339 = vld [vmem:[#allocation4 + $0x20] sm:$0xff]
  %v7340 = vld [vmem:[#allocation4 + $0x28] sm:$0xff]
  %v7341 = vld [vmem:[#allocation4 + $0x30] sm:$0xff]
  %v7342 = vld [vmem:[#allocation4 + $0x38] sm:$0xff]
  %v7343 = vld [vmem:[#allocation4 + $0x40] sm:$0xff]
  %v7344 = vld [vmem:[#allocation4 + $0x48] sm:$0xff]
  %v7345 = vld [vmem:[#allocation4 + $0x50] sm:$0xff]
  %v7346 = vld [vmem:[#allocation4 + $0x58] sm:$0xff]
  %v7347 = vld [vmem:[#allocation4 + $0x60] sm:$0xff]
  %v7348 = vld [vmem:[#allocation4 + $0x68] sm:$0xff]
  %v7349 = vld [vmem:[#allocation4 + $0x70] sm:$0xff]
  %v7350 = vld [vmem:[#allocation4 + $0x78] sm:$0xff]
  %v7351 = vld [vmem:[#allocation4 + $0x80] sm:$0xff]
  %v7352 = vld [vmem:[#allocation4 + $0x88] sm:$0xff]
  %v7353 = vld [vmem:[#allocation4 + $0x90] sm:$0xff]
  %v7354 = vld [vmem:[#allocation4 + $0x98] sm:$0xff]
  %v7355 = vld [vmem:[#allocation4 + $0xa0] sm:$0xff]
  %v7356 = vld [vmem:[#allocation4 + $0xa8] sm:$0xff]
  %v7357 = vld [vmem:[#allocation4 + $0xb0] sm:$0xff]
  %v7358 = vld [vmem:[#allocation4 + $0xb8] sm:$0xff]
  %v7359 = vld [vmem:[#allocation4 + $0xc0] sm:$0xff]
  %v7360 = vld [vmem:[#allocation4 + $0xc8] sm:$0xff]
  %v7361 = vld [vmem:[#allocation4 + $0xd0] sm:$0xff]
  %v7362 = vld [vmem:[#allocation4 + $0xd8] sm:$0xff]
  %v7363 = vld [vmem:[#allocation4 + $0xe0] sm:$0xff]
  %v7364 = vld [vmem:[#allocation4 + $0xe8] sm:$0xff]
  %v7365 = vld [vmem:[#allocation4 + $0xf0] sm:$0xff]
  %v7366 = vld [vmem:[#allocation4 + $0xf8] sm:$0xff]
  %v7367 = vmul.f32 %v5766, %v1347
  %v7368 = vmul.f32 %v5767, %v2493
  %v7369 = vmul.f32 %v5768, %v3639
  %v7370 = vmul.f32 %v5769, %v4785
  %v7371 = vmul.f32 %v5770, %v1351
  %v7372 = vmul.f32 %v5771, %v2497
  %v7373 = vmul.f32 %v5772, %v3643
  %v7374 = vmul.f32 %v5773, %v4789
  %v7375 = vmul.f32 %v5774, %v1355
  %v7376 = vmul.f32 %v5775, %v2501
  %v7377 = vmul.f32 %v5776, %v3647
  %v7378 = vmul.f32 %v5777, %v4793
  %v7379 = vmul.f32 %v5778, %v1359
  %v7380 = vmul.f32 %v5779, %v2505
  %v7381 = vmul.f32 %v5780, %v3651
  %v7382 = vmul.f32 %v5781, %v4797
  %v7383 = vmul.f32 %v5782, %v1363
  %v7384 = vmul.f32 %v5783, %v2509
  %v7385 = vmul.f32 %v5784, %v3655
  %v7386 = vmul.f32 %v5785, %v4801
  %v7387 = vmul.f32 %v5786, %v1367
  %v7388 = vmul.f32 %v5787, %v2513
  %v7389 = vmul.f32 %v5788, %v3659
  %v7390 = vmul.f32 %v5789, %v4805
  %v7391 = vmul.f32 %v5790, %v1371
  %v7392 = vmul.f32 %v5791, %v2517
  %v7393 = vmul.f32 %v5792, %v3663
  %v7394 = vmul.f32 %v5793, %v4809
  %v7395 = vmul.f32 %v5794, %v1375
  %v7396 = vmul.f32 %v5795, %v2521
  %v7397 = vmul.f32 %v5796, %v3667
  %v7398 = vmul.f32 %v5797, %v4813
  %v7399 = vmul.f32 %v5798, %v1379
  %v7400 = vmul.f32 %v5799, %v2525
  %v7401 = vmul.f32 %v5800, %v3671
  %v7402 = vmul.f32 %v5801, %v4817
  %v7403 = vmul.f32 %v5802, %v1383
  %v7404 = vmul.f32 %v5803, %v2529
  %v7405 = vmul.f32 %v5804, %v3675
  %v7406 = vmul.f32 %v5805, %v4821
  %v7407 = vmul.f32 %v5806, %v1387
  %v7408 = vmul.f32 %v5807, %v2533
  %v7409 = vmul.f32 %v5808, %v3679
  %v7410 = vmul.f32 %v5809, %v4825
  %v7411 = vmul.f32 %v5810, %v1391
  %v7412 = vmul.f32 %v5811, %v2537
  %v7413 = vmul.f32 %v5812, %v3683
  %v7414 = vmul.f32 %v5813, %v4829
  %v7415 = vmul.f32 %v5814, %v1395
  %v7416 = vmul.f32 %v5815, %v2541
  %v7417 = vmul.f32 %v5816, %v3687
  %v7418 = vmul.f32 %v5817, %v4833
  %v7419 = vmul.f32 %v5818, %v1399
  %v7420 = vmul.f32 %v5819, %v2545
  %v7421 = vmul.f32 %v5820, %v3691
  %v7422 = vmul.f32 %v5821, %v4837
  %v7423 = vmul.f32 %v5822, %v1403
  %v7424 = vmul.f32 %v5823, %v2549
  %v7425 = vmul.f32 %v5824, %v3695
  %v7426 = vmul.f32 %v5825, %v4841
  %v7427 = vmul.f32 %v5826, %v1407
  %v7428 = vmul.f32 %v5827, %v2553
  %v7429 = vmul.f32 %v5828, %v3699
  %v7430 = vmul.f32 %v5829, %v4845
  %v7431 = vmul.f32 %v5830, %v1411
  %v7432 = vmul.f32 %v5831, %v2557
  %v7433 = vmul.f32 %v5832, %v3703
  %v7434 = vmul.f32 %v5833, %v4849
  %v7435 = vmul.f32 %v5834, %v1415
  %v7436 = vmul.f32 %v5835, %v2561
  %v7437 = vmul.f32 %v5836, %v3707
  %v7438 = vmul.f32 %v5837, %v4853
  %v7439 = vmul.f32 %v5838, %v1419
  %v7440 = vmul.f32 %v5839, %v2565
  %v7441 = vmul.f32 %v5840, %v3711
  %v7442 = vmul.f32 %v5841, %v4857
  %v7443 = vmul.f32 %v5842, %v1423
  %v7444 = vmul.f32 %v5843, %v2569
  %v7445 = vmul.f32 %v5844, %v3715
  %v7446 = vmul.f32 %v5845, %v4861
  %v7447 = vmul.f32 %v5846, %v1427
  %v7448 = vmul.f32 %v5847, %v2573
  %v7449 = vmul.f32 %v5848, %v3719
  %v7450 = vmul.f32 %v5849, %v4865
  %v7451 = vmul.f32 %v5850, %v1431
  %v7452 = vmul.f32 %v5851, %v2577
  %v7453 = vmul.f32 %v5852, %v3723
  %v7454 = vmul.f32 %v5853, %v4869
  %v7455 = vmul.f32 %v5854, %v1435
  %v7456 = vmul.f32 %v5855, %v2581
  %v7457 = vmul.f32 %v5856, %v3727
  %v7458 = vmul.f32 %v5857, %v4873
  %v7459 = vmul.f32 %v5858, %v1439
  %v7460 = vmul.f32 %v5859, %v2585
  %v7461 = vmul.f32 %v5860, %v3731
  %v7462 = vmul.f32 %v5861, %v4877
  %v7463 = vmul.f32 %v5862, %v1443
  %v7464 = vmul.f32 %v5863, %v2589
  %v7465 = vmul.f32 %v5864, %v3735
  %v7466 = vmul.f32 %v5865, %v4881
  %v7467 = vmul.f32 %v5866, %v1447
  %v7468 = vmul.f32 %v5867, %v2593
  %v7469 = vmul.f32 %v5868, %v3739
  %v7470 = vmul.f32 %v5869, %v4885
  %v7471 = vmul.f32 %v5870, %v1451
  %v7472 = vmul.f32 %v5871, %v2597
  %v7473 = vmul.f32 %v5872, %v3743
  %v7474 = vmul.f32 %v5873, %v4889
  %v7475 = vmul.f32 %v5874, %v1455
  %v7476 = vmul.f32 %v5875, %v2601
  %v7477 = vmul.f32 %v5876, %v3747
  %v7478 = vmul.f32 %v5877, %v4893
  %v7479 = vmul.f32 %v5878, %v1459
  %v7480 = vmul.f32 %v5879, %v2605
  %v7481 = vmul.f32 %v5880, %v3751
  %v7482 = vmul.f32 %v5881, %v4897
  %v7483 = vmul.f32 %v5882, %v1463
  %v7484 = vmul.f32 %v5883, %v2609
  %v7485 = vmul.f32 %v5884, %v3755
  %v7486 = vmul.f32 %v5885, %v4901
  %v7487 = vmul.f32 %v5886, %v1467
  %v7488 = vmul.f32 %v5887, %v2613
  %v7489 = vmul.f32 %v5888, %v3759
  %v7490 = vmul.f32 %v5889, %v4905
  %v7491 = vmul.f32 %v5890, %v1471
  %v7492 = vmul.f32 %v5891, %v2617
  %v7493 = vmul.f32 %v5892, %v3763
  %v7494 = vmul.f32 %v5893, %v4909
  %v7495 = vadd.f32 %v7367, %v7368
  %v7496 = vadd.f32 %v7495, %v7369
  %v7497 = vadd.f32 %v7496, %v7370
  %7498 = vadd.xlane.f32.xlu0 %v7497
  %v7499 = vpop.xlane.xlu0 %7498
  %v7500 = vadd.f32 %v7371, %v7372
  %v7501 = vadd.f32 %v7500, %v7373
  %v7502 = vadd.f32 %v7501, %v7374
  %7503 = vadd.xlane.f32.xlu0 %v7502
  %v7504 = vpop.xlane.xlu0 %7503
  %v7505 = vadd.f32 %v7375, %v7376
  %v7506 = vadd.f32 %v7505, %v7377
  %v7507 = vadd.f32 %v7506, %v7378
  %7508 = vadd.xlane.f32.xlu0 %v7507
  %v7509 = vpop.xlane.xlu0 %7508
  %v7510 = vadd.f32 %v7379, %v7380
  %v7511 = vadd.f32 %v7510, %v7381
  %v7512 = vadd.f32 %v7511, %v7382
  %7513 = vadd.xlane.f32.xlu0 %v7512
  %v7514 = vpop.xlane.xlu0 %7513
  %v7515 = vadd.f32 %v7383, %v7384
  %v7516 = vadd.f32 %v7515, %v7385
  %v7517 = vadd.f32 %v7516, %v7386
  %7518 = vadd.xlane.f32.xlu0 %v7517
  %v7519 = vpop.xlane.xlu0 %7518
  %v7520 = vadd.f32 %v7387, %v7388
  %v7521 = vadd.f32 %v7520, %v7389
  %v7522 = vadd.f32 %v7521, %v7390
  %7523 = vadd.xlane.f32.xlu0 %v7522
  %v7524 = vpop.xlane.xlu0 %7523
  %v7525 = vadd.f32 %v7391, %v7392
  %v7526 = vadd.f32 %v7525, %v7393
  %v7527 = vadd.f32 %v7526, %v7394
  %7528 = vadd.xlane.f32.xlu0 %v7527
  %v7529 = vpop.xlane.xlu0 %7528
  %v7530 = vadd.f32 %v7395, %v7396
  %v7531 = vadd.f32 %v7530, %v7397
  %v7532 = vadd.f32 %v7531, %v7398
  %7533 = vadd.xlane.f32.xlu0 %v7532
  %v7534 = vpop.xlane.xlu0 %7533
  %v7535 = vadd.f32 %v7399, %v7400
  %v7536 = vadd.f32 %v7535, %v7401
  %v7537 = vadd.f32 %v7536, %v7402
  %7538 = vadd.xlane.f32.xlu0 %v7537
  %v7539 = vpop.xlane.xlu0 %7538
  %v7540 = vadd.f32 %v7403, %v7404
  %v7541 = vadd.f32 %v7540, %v7405
  %v7542 = vadd.f32 %v7541, %v7406
  %7543 = vadd.xlane.f32.xlu0 %v7542
  %v7544 = vpop.xlane.xlu0 %7543
  %v7545 = vadd.f32 %v7407, %v7408
  %v7546 = vadd.f32 %v7545, %v7409
  %v7547 = vadd.f32 %v7546, %v7410
  %7548 = vadd.xlane.f32.xlu0 %v7547
  %v7549 = vpop.xlane.xlu0 %7548
  %v7550 = vadd.f32 %v7411, %v7412
  %v7551 = vadd.f32 %v7550, %v7413
  %v7552 = vadd.f32 %v7551, %v7414
  %7553 = vadd.xlane.f32.xlu0 %v7552
  %v7554 = vpop.xlane.xlu0 %7553
  %v7555 = vadd.f32 %v7415, %v7416
  %v7556 = vadd.f32 %v7555, %v7417
  %v7557 = vadd.f32 %v7556, %v7418
  %7558 = vadd.xlane.f32.xlu0 %v7557
  %v7559 = vpop.xlane.xlu0 %7558
  %v7560 = vadd.f32 %v7419, %v7420
  %v7561 = vadd.f32 %v7560, %v7421
  %v7562 = vadd.f32 %v7561, %v7422
  %7563 = vadd.xlane.f32.xlu0 %v7562
  %v7564 = vpop.xlane.xlu0 %7563
  %v7565 = vadd.f32 %v7423, %v7424
  %v7566 = vadd.f32 %v7565, %v7425
  %v7567 = vadd.f32 %v7566, %v7426
  %7568 = vadd.xlane.f32.xlu0 %v7567
  %v7569 = vpop.xlane.xlu0 %7568
  %v7570 = vadd.f32 %v7427, %v7428
  %v7571 = vadd.f32 %v7570, %v7429
  %v7572 = vadd.f32 %v7571, %v7430
  %7573 = vadd.xlane.f32.xlu0 %v7572
  %v7574 = vpop.xlane.xlu0 %7573
  %v7575 = vadd.f32 %v7431, %v7432
  %v7576 = vadd.f32 %v7575, %v7433
  %v7577 = vadd.f32 %v7576, %v7434
  %7578 = vadd.xlane.f32.xlu0 %v7577
  %v7579 = vpop.xlane.xlu0 %7578
  %v7580 = vadd.f32 %v7435, %v7436
  %v7581 = vadd.f32 %v7580, %v7437
  %v7582 = vadd.f32 %v7581, %v7438
  %7583 = vadd.xlane.f32.xlu0 %v7582
  %v7584 = vpop.xlane.xlu0 %7583
  %v7585 = vadd.f32 %v7439, %v7440
  %v7586 = vadd.f32 %v7585, %v7441
  %v7587 = vadd.f32 %v7586, %v7442
  %7588 = vadd.xlane.f32.xlu0 %v7587
  %v7589 = vpop.xlane.xlu0 %7588
  %v7590 = vadd.f32 %v7443, %v7444
  %v7591 = vadd.f32 %v7590, %v7445
  %v7592 = vadd.f32 %v7591, %v7446
  %7593 = vadd.xlane.f32.xlu0 %v7592
  %v7594 = vpop.xlane.xlu0 %7593
  %v7595 = vadd.f32 %v7447, %v7448
  %v7596 = vadd.f32 %v7595, %v7449
  %v7597 = vadd.f32 %v7596, %v7450
  %7598 = vadd.xlane.f32.xlu0 %v7597
  %v7599 = vpop.xlane.xlu0 %7598
  %v7600 = vadd.f32 %v7451, %v7452
  %v7601 = vadd.f32 %v7600, %v7453
  %v7602 = vadd.f32 %v7601, %v7454
  %7603 = vadd.xlane.f32.xlu0 %v7602
  %v7604 = vpop.xlane.xlu0 %7603
  %v7605 = vadd.f32 %v7455, %v7456
  %v7606 = vadd.f32 %v7605, %v7457
  %v7607 = vadd.f32 %v7606, %v7458
  %7608 = vadd.xlane.f32.xlu0 %v7607
  %v7609 = vpop.xlane.xlu0 %7608
  %v7610 = vadd.f32 %v7459, %v7460
  %v7611 = vadd.f32 %v7610, %v7461
  %v7612 = vadd.f32 %v7611, %v7462
  %7613 = vadd.xlane.f32.xlu0 %v7612
  %v7614 = vpop.xlane.xlu0 %7613
  %v7615 = vadd.f32 %v7463, %v7464
  %v7616 = vadd.f32 %v7615, %v7465
  %v7617 = vadd.f32 %v7616, %v7466
  %7618 = vadd.xlane.f32.xlu0 %v7617
  %v7619 = vpop.xlane.xlu0 %7618
  %v7620 = vadd.f32 %v7467, %v7468
  %v7621 = vadd.f32 %v7620, %v7469
  %v7622 = vadd.f32 %v7621, %v7470
  %7623 = vadd.xlane.f32.xlu0 %v7622
  %v7624 = vpop.xlane.xlu0 %7623
  %v7625 = vadd.f32 %v7471, %v7472
  %v7626 = vadd.f32 %v7625, %v7473
  %v7627 = vadd.f32 %v7626, %v7474
  %7628 = vadd.xlane.f32.xlu0 %v7627
  %v7629 = vpop.xlane.xlu0 %7628
  %v7630 = vadd.f32 %v7475, %v7476
  %v7631 = vadd.f32 %v7630, %v7477
  %v7632 = vadd.f32 %v7631, %v7478
  %7633 = vadd.xlane.f32.xlu0 %v7632
  %v7634 = vpop.xlane.xlu0 %7633
  %v7635 = vadd.f32 %v7479, %v7480
  %v7636 = vadd.f32 %v7635, %v7481
  %v7637 = vadd.f32 %v7636, %v7482
  %7638 = vadd.xlane.f32.xlu0 %v7637
  %v7639 = vpop.xlane.xlu0 %7638
  %v7640 = vadd.f32 %v7483, %v7484
  %v7641 = vadd.f32 %v7640, %v7485
  %v7642 = vadd.f32 %v7641, %v7486
  %7643 = vadd.xlane.f32.xlu0 %v7642
  %v7644 = vpop.xlane.xlu0 %7643
  %v7645 = vadd.f32 %v7487, %v7488
  %v7646 = vadd.f32 %v7645, %v7489
  %v7647 = vadd.f32 %v7646, %v7490
  %7648 = vadd.xlane.f32.xlu0 %v7647
  %v7649 = vpop.xlane.xlu0 %7648
  %v7650 = vadd.f32 %v7491, %v7492
  %v7651 = vadd.f32 %v7650, %v7493
  %v7652 = vadd.f32 %v7651, %v7494
  %7653 = vadd.xlane.f32.xlu0 %v7652
  %v7654 = vpop.xlane.xlu0 %7653
  %v7655 = vadd.f32 %v7335, %v7499
  %v7656 = vadd.f32 %v7336, %v7504
  %v7657 = vadd.f32 %v7337, %v7509
  %v7658 = vadd.f32 %v7338, %v7514
  %v7659 = vadd.f32 %v7339, %v7519
  %v7660 = vadd.f32 %v7340, %v7524
  %v7661 = vadd.f32 %v7341, %v7529
  %v7662 = vadd.f32 %v7342, %v7534
  %v7663 = vadd.f32 %v7343, %v7539
  %v7664 = vadd.f32 %v7344, %v7544
  %v7665 = vadd.f32 %v7345, %v7549
  %v7666 = vadd.f32 %v7346, %v7554
  %v7667 = vadd.f32 %v7347, %v7559
  %v7668 = vadd.f32 %v7348, %v7564
  %v7669 = vadd.f32 %v7349, %v7569
  %v7670 = vadd.f32 %v7350, %v7574
  %v7671 = vadd.f32 %v7351, %v7579
  %v7672 = vadd.f32 %v7352, %v7584
  %v7673 = vadd.f32 %v7353, %v7589
  %v7674 = vadd.f32 %v7354, %v7594
  %v7675 = vadd.f32 %v7355, %v7599
  %v7676 = vadd.f32 %v7356, %v7604
  %v7677 = vadd.f32 %v7357, %v7609
  %v7678 = vadd.f32 %v7358, %v7614
  %v7679 = vadd.f32 %v7359, %v7619
  %v7680 = vadd.f32 %v7360, %v7624
  %v7681 = vadd.f32 %v7361, %v7629
  %v7682 = vadd.f32 %v7362, %v7634
  %v7683 = vadd.f32 %v7363, %v7639
  %v7684 = vadd.f32 %v7364, %v7644
  %v7685 = vadd.f32 %v7365, %v7649
  %v7686 = vadd.f32 %v7366, %v7654
  %7687 = vst.msk [vmem:[#allocation4] sm:$0xff] %vm7270, %v7655
  %7688 = vst.msk [vmem:[#allocation4 + $0x8] sm:$0xff] %vm7270, %v7656
  %7689 = vst.msk [vmem:[#allocation4 + $0x10] sm:$0xff] %vm7270, %v7657
  %7690 = vst.msk [vmem:[#allocation4 + $0x18] sm:$0xff] %vm7270, %v7658
  %7691 = vst.msk [vmem:[#allocation4 + $0x20] sm:$0xff] %vm7270, %v7659
  %7692 = vst.msk [vmem:[#allocation4 + $0x28] sm:$0xff] %vm7270, %v7660
  %7693 = vst.msk [vmem:[#allocation4 + $0x30] sm:$0xff] %vm7270, %v7661
  %7694 = vst.msk [vmem:[#allocation4 + $0x38] sm:$0xff] %vm7270, %v7662
  %7695 = vst.msk [vmem:[#allocation4 + $0x40] sm:$0xff] %vm7270, %v7663
  %7696 = vst.msk [vmem:[#allocation4 + $0x48] sm:$0xff] %vm7270, %v7664
  %7697 = vst.msk [vmem:[#allocation4 + $0x50] sm:$0xff] %vm7270, %v7665
  %7698 = vst.msk [vmem:[#allocation4 + $0x58] sm:$0xff] %vm7270, %v7666
  %7699 = vst.msk [vmem:[#allocation4 + $0x60] sm:$0xff] %vm7270, %v7667
  %7700 = vst.msk [vmem:[#allocation4 + $0x68] sm:$0xff] %vm7270, %v7668
  %7701 = vst.msk [vmem:[#allocation4 + $0x70] sm:$0xff] %vm7270, %v7669
  %7702 = vst.msk [vmem:[#allocation4 + $0x78] sm:$0xff] %vm7270, %v7670
  %7703 = vst.msk [vmem:[#allocation4 + $0x80] sm:$0xff] %vm7270, %v7671
  %7704 = vst.msk [vmem:[#allocation4 + $0x88] sm:$0xff] %vm7270, %v7672
  %7705 = vst.msk [vmem:[#allocation4 + $0x90] sm:$0xff] %vm7270, %v7673
  %7706 = vst.msk [vmem:[#allocation4 + $0x98] sm:$0xff] %vm7270, %v7674
  %7707 = vst.msk [vmem:[#allocation4 + $0xa0] sm:$0xff] %vm7270, %v7675
  %7708 = vst.msk [vmem:[#allocation4 + $0xa8] sm:$0xff] %vm7270, %v7676
  %7709 = vst.msk [vmem:[#allocation4 + $0xb0] sm:$0xff] %vm7270, %v7677
  %7710 = vst.msk [vmem:[#allocation4 + $0xb8] sm:$0xff] %vm7270, %v7678
  %7711 = vst.msk [vmem:[#allocation4 + $0xc0] sm:$0xff] %vm7270, %v7679
  %7712 = vst.msk [vmem:[#allocation4 + $0xc8] sm:$0xff] %vm7270, %v7680
  %7713 = vst.msk [vmem:[#allocation4 + $0xd0] sm:$0xff] %vm7270, %v7681
  %7714 = vst.msk [vmem:[#allocation4 + $0xd8] sm:$0xff] %vm7270, %v7682
  %7715 = vst.msk [vmem:[#allocation4 + $0xe0] sm:$0xff] %vm7270, %v7683
  %7716 = vst.msk [vmem:[#allocation4 + $0xe8] sm:$0xff] %vm7270, %v7684
  %7717 = vst.msk [vmem:[#allocation4 + $0xf0] sm:$0xff] %vm7270, %v7685
  %7718 = vst.msk [vmem:[#allocation4 + $0xf8] sm:$0xff] %vm7270, %v7686
  %v7719 = vld [vmem:[#allocation5] sm:$0xff]
  %v7720 = vld [vmem:[#allocation5 + $0x8] sm:$0xff]
  %v7721 = vld [vmem:[#allocation5 + $0x10] sm:$0xff]
  %v7722 = vld [vmem:[#allocation5 + $0x18] sm:$0xff]
  %v7723 = vld [vmem:[#allocation5 + $0x20] sm:$0xff]
  %v7724 = vld [vmem:[#allocation5 + $0x28] sm:$0xff]
  %v7725 = vld [vmem:[#allocation5 + $0x30] sm:$0xff]
  %v7726 = vld [vmem:[#allocation5 + $0x38] sm:$0xff]
  %v7727 = vld [vmem:[#allocation5 + $0x40] sm:$0xff]
  %v7728 = vld [vmem:[#allocation5 + $0x48] sm:$0xff]
  %v7729 = vld [vmem:[#allocation5 + $0x50] sm:$0xff]
  %v7730 = vld [vmem:[#allocation5 + $0x58] sm:$0xff]
  %v7731 = vld [vmem:[#allocation5 + $0x60] sm:$0xff]
  %v7732 = vld [vmem:[#allocation5 + $0x68] sm:$0xff]
  %v7733 = vld [vmem:[#allocation5 + $0x70] sm:$0xff]
  %v7734 = vld [vmem:[#allocation5 + $0x78] sm:$0xff]
  %v7735 = vld [vmem:[#allocation5 + $0x80] sm:$0xff]
  %v7736 = vld [vmem:[#allocation5 + $0x88] sm:$0xff]
  %v7737 = vld [vmem:[#allocation5 + $0x90] sm:$0xff]
  %v7738 = vld [vmem:[#allocation5 + $0x98] sm:$0xff]
  %v7739 = vld [vmem:[#allocation5 + $0xa0] sm:$0xff]
  %v7740 = vld [vmem:[#allocation5 + $0xa8] sm:$0xff]
  %v7741 = vld [vmem:[#allocation5 + $0xb0] sm:$0xff]
  %v7742 = vld [vmem:[#allocation5 + $0xb8] sm:$0xff]
  %v7743 = vld [vmem:[#allocation5 + $0xc0] sm:$0xff]
  %v7744 = vld [vmem:[#allocation5 + $0xc8] sm:$0xff]
  %v7745 = vld [vmem:[#allocation5 + $0xd0] sm:$0xff]
  %v7746 = vld [vmem:[#allocation5 + $0xd8] sm:$0xff]
  %v7747 = vld [vmem:[#allocation5 + $0xe0] sm:$0xff]
  %v7748 = vld [vmem:[#allocation5 + $0xe8] sm:$0xff]
  %v7749 = vld [vmem:[#allocation5 + $0xf0] sm:$0xff]
  %v7750 = vld [vmem:[#allocation5 + $0xf8] sm:$0xff]
  %v7751 = vadd.f32 %v5766, %v5767
  %v7752 = vadd.f32 %v7751, %v5768
  %v7753 = vadd.f32 %v7752, %v5769
  %7754 = vadd.xlane.f32.xlu0 %v7753
  %v7755 = vpop.xlane.xlu0 %7754
  %v7756 = vadd.f32 %v5770, %v5771
  %v7757 = vadd.f32 %v7756, %v5772
  %v7758 = vadd.f32 %v7757, %v5773
  %7759 = vadd.xlane.f32.xlu0 %v7758
  %v7760 = vpop.xlane.xlu0 %7759
  %v7761 = vadd.f32 %v5774, %v5775
  %v7762 = vadd.f32 %v7761, %v5776
  %v7763 = vadd.f32 %v7762, %v5777
  %7764 = vadd.xlane.f32.xlu0 %v7763
  %v7765 = vpop.xlane.xlu0 %7764
  %v7766 = vadd.f32 %v5778, %v5779
  %v7767 = vadd.f32 %v7766, %v5780
  %v7768 = vadd.f32 %v7767, %v5781
  %7769 = vadd.xlane.f32.xlu0 %v7768
  %v7770 = vpop.xlane.xlu0 %7769
  %v7771 = vadd.f32 %v5782, %v5783
  %v7772 = vadd.f32 %v7771, %v5784
  %v7773 = vadd.f32 %v7772, %v5785
  %7774 = vadd.xlane.f32.xlu0 %v7773
  %v7775 = vpop.xlane.xlu0 %7774
  %v7776 = vadd.f32 %v5786, %v5787
  %v7777 = vadd.f32 %v7776, %v5788
  %v7778 = vadd.f32 %v7777, %v5789
  %7779 = vadd.xlane.f32.xlu0 %v7778
  %v7780 = vpop.xlane.xlu0 %7779
  %v7781 = vadd.f32 %v5790, %v5791
  %v7782 = vadd.f32 %v7781, %v5792
  %v7783 = vadd.f32 %v7782, %v5793
  %7784 = vadd.xlane.f32.xlu0 %v7783
  %v7785 = vpop.xlane.xlu0 %7784
  %v7786 = vadd.f32 %v5794, %v5795
  %v7787 = vadd.f32 %v7786, %v5796
  %v7788 = vadd.f32 %v7787, %v5797
  %7789 = vadd.xlane.f32.xlu0 %v7788
  %v7790 = vpop.xlane.xlu0 %7789
  %v7791 = vadd.f32 %v5798, %v5799
  %v7792 = vadd.f32 %v7791, %v5800
  %v7793 = vadd.f32 %v7792, %v5801
  %7794 = vadd.xlane.f32.xlu0 %v7793
  %v7795 = vpop.xlane.xlu0 %7794
  %v7796 = vadd.f32 %v5802, %v5803
  %v7797 = vadd.f32 %v7796, %v5804
  %v7798 = vadd.f32 %v7797, %v5805
  %7799 = vadd.xlane.f32.xlu0 %v7798
  %v7800 = vpop.xlane.xlu0 %7799
  %v7801 = vadd.f32 %v5806, %v5807
  %v7802 = vadd.f32 %v7801, %v5808
  %v7803 = vadd.f32 %v7802, %v5809
  %7804 = vadd.xlane.f32.xlu0 %v7803
  %v7805 = vpop.xlane.xlu0 %7804
  %v7806 = vadd.f32 %v5810, %v5811
  %v7807 = vadd.f32 %v7806, %v5812
  %v7808 = vadd.f32 %v7807, %v5813
  %7809 = vadd.xlane.f32.xlu0 %v7808
  %v7810 = vpop.xlane.xlu0 %7809
  %v7811 = vadd.f32 %v5814, %v5815
  %v7812 = vadd.f32 %v7811, %v5816
  %v7813 = vadd.f32 %v7812, %v5817
  %7814 = vadd.xlane.f32.xlu0 %v7813
  %v7815 = vpop.xlane.xlu0 %7814
  %v7816 = vadd.f32 %v5818, %v5819
  %v7817 = vadd.f32 %v7816, %v5820
  %v7818 = vadd.f32 %v7817, %v5821
  %7819 = vadd.xlane.f32.xlu0 %v7818
  %v7820 = vpop.xlane.xlu0 %7819
  %v7821 = vadd.f32 %v5822, %v5823
  %v7822 = vadd.f32 %v7821, %v5824
  %v7823 = vadd.f32 %v7822, %v5825
  %7824 = vadd.xlane.f32.xlu0 %v7823
  %v7825 = vpop.xlane.xlu0 %7824
  %v7826 = vadd.f32 %v5826, %v5827
  %v7827 = vadd.f32 %v7826, %v5828
  %v7828 = vadd.f32 %v7827, %v5829
  %7829 = vadd.xlane.f32.xlu0 %v7828
  %v7830 = vpop.xlane.xlu0 %7829
  %v7831 = vadd.f32 %v5830, %v5831
  %v7832 = vadd.f32 %v7831, %v5832
  %v7833 = vadd.f32 %v7832, %v5833
  %7834 = vadd.xlane.f32.xlu0 %v7833
  %v7835 = vpop.xlane.xlu0 %7834
  %v7836 = vadd.f32 %v5834, %v5835
  %v7837 = vadd.f32 %v7836, %v5836
  %v7838 = vadd.f32 %v7837, %v5837
  %7839 = vadd.xlane.f32.xlu0 %v7838
  %v7840 = vpop.xlane.xlu0 %7839
  %v7841 = vadd.f32 %v5838, %v5839
  %v7842 = vadd.f32 %v7841, %v5840
  %v7843 = vadd.f32 %v7842, %v5841
  %7844 = vadd.xlane.f32.xlu0 %v7843
  %v7845 = vpop.xlane.xlu0 %7844
  %v7846 = vadd.f32 %v5842, %v5843
  %v7847 = vadd.f32 %v7846, %v5844
  %v7848 = vadd.f32 %v7847, %v5845
  %7849 = vadd.xlane.f32.xlu0 %v7848
  %v7850 = vpop.xlane.xlu0 %7849
  %v7851 = vadd.f32 %v5846, %v5847
  %v7852 = vadd.f32 %v7851, %v5848
  %v7853 = vadd.f32 %v7852, %v5849
  %7854 = vadd.xlane.f32.xlu0 %v7853
  %v7855 = vpop.xlane.xlu0 %7854
  %v7856 = vadd.f32 %v5850, %v5851
  %v7857 = vadd.f32 %v7856, %v5852
  %v7858 = vadd.f32 %v7857, %v5853
  %7859 = vadd.xlane.f32.xlu0 %v7858
  %v7860 = vpop.xlane.xlu0 %7859
  %v7861 = vadd.f32 %v5854, %v5855
  %v7862 = vadd.f32 %v7861, %v5856
  %v7863 = vadd.f32 %v7862, %v5857
  %7864 = vadd.xlane.f32.xlu0 %v7863
  %v7865 = vpop.xlane.xlu0 %7864
  %v7866 = vadd.f32 %v5858, %v5859
  %v7867 = vadd.f32 %v7866, %v5860
  %v7868 = vadd.f32 %v7867, %v5861
  %7869 = vadd.xlane.f32.xlu0 %v7868
  %v7870 = vpop.xlane.xlu0 %7869
  %v7871 = vadd.f32 %v5862, %v5863
  %v7872 = vadd.f32 %v7871, %v5864
  %v7873 = vadd.f32 %v7872, %v5865
  %7874 = vadd.xlane.f32.xlu0 %v7873
  %v7875 = vpop.xlane.xlu0 %7874
  %v7876 = vadd.f32 %v5866, %v5867
  %v7877 = vadd.f32 %v7876, %v5868
  %v7878 = vadd.f32 %v7877, %v5869
  %7879 = vadd.xlane.f32.xlu0 %v7878
  %v7880 = vpop.xlane.xlu0 %7879
  %v7881 = vadd.f32 %v5870, %v5871
  %v7882 = vadd.f32 %v7881, %v5872
  %v7883 = vadd.f32 %v7882, %v5873
  %7884 = vadd.xlane.f32.xlu0 %v7883
  %v7885 = vpop.xlane.xlu0 %7884
  %v7886 = vadd.f32 %v5874, %v5875
  %v7887 = vadd.f32 %v7886, %v5876
  %v7888 = vadd.f32 %v7887, %v5877
  %7889 = vadd.xlane.f32.xlu0 %v7888
  %v7890 = vpop.xlane.xlu0 %7889
  %v7891 = vadd.f32 %v5878, %v5879
  %v7892 = vadd.f32 %v7891, %v5880
  %v7893 = vadd.f32 %v7892, %v5881
  %7894 = vadd.xlane.f32.xlu0 %v7893
  %v7895 = vpop.xlane.xlu0 %7894
  %v7896 = vadd.f32 %v5882, %v5883
  %v7897 = vadd.f32 %v7896, %v5884
  %v7898 = vadd.f32 %v7897, %v5885
  %7899 = vadd.xlane.f32.xlu0 %v7898
  %v7900 = vpop.xlane.xlu0 %7899
  %v7901 = vadd.f32 %v5886, %v5887
  %v7902 = vadd.f32 %v7901, %v5888
  %v7903 = vadd.f32 %v7902, %v5889
  %7904 = vadd.xlane.f32.xlu0 %v7903
  %v7905 = vpop.xlane.xlu0 %7904
  %v7906 = vadd.f32 %v5890, %v5891
  %v7907 = vadd.f32 %v7906, %v5892
  %v7908 = vadd.f32 %v7907, %v5893
  %7909 = vadd.xlane.f32.xlu0 %v7908
  %v7910 = vpop.xlane.xlu0 %7909
  %v7911 = vadd.f32 %v7719, %v7755
  %v7912 = vadd.f32 %v7720, %v7760
  %v7913 = vadd.f32 %v7721, %v7765
  %v7914 = vadd.f32 %v7722, %v7770
  %v7915 = vadd.f32 %v7723, %v7775
  %v7916 = vadd.f32 %v7724, %v7780
  %v7917 = vadd.f32 %v7725, %v7785
  %v7918 = vadd.f32 %v7726, %v7790
  %v7919 = vadd.f32 %v7727, %v7795
  %v7920 = vadd.f32 %v7728, %v7800
  %v7921 = vadd.f32 %v7729, %v7805
  %v7922 = vadd.f32 %v7730, %v7810
  %v7923 = vadd.f32 %v7731, %v7815
  %v7924 = vadd.f32 %v7732, %v7820
  %v7925 = vadd.f32 %v7733, %v7825
  %v7926 = vadd.f32 %v7734, %v7830
  %v7927 = vadd.f32 %v7735, %v7835
  %v7928 = vadd.f32 %v7736, %v7840
  %v7929 = vadd.f32 %v7737, %v7845
  %v7930 = vadd.f32 %v7738, %v7850
  %v7931 = vadd.f32 %v7739, %v7855
  %v7932 = vadd.f32 %v7740, %v7860
  %v7933 = vadd.f32 %v7741, %v7865
  %v7934 = vadd.f32 %v7742, %v7870
  %v7935 = vadd.f32 %v7743, %v7875
  %v7936 = vadd.f32 %v7744, %v7880
  %v7937 = vadd.f32 %v7745, %v7885
  %v7938 = vadd.f32 %v7746, %v7890
  %v7939 = vadd.f32 %v7747, %v7895
  %v7940 = vadd.f32 %v7748, %v7900
  %v7941 = vadd.f32 %v7749, %v7905
  %v7942 = vadd.f32 %v7750, %v7910
  %7943 = vst.msk [vmem:[#allocation5] sm:$0xff] %vm7270, %v7911
  %7944 = vst.msk [vmem:[#allocation5 + $0x8] sm:$0xff] %vm7270, %v7912
  %7945 = vst.msk [vmem:[#allocation5 + $0x10] sm:$0xff] %vm7270, %v7913
  %7946 = vst.msk [vmem:[#allocation5 + $0x18] sm:$0xff] %vm7270, %v7914
  %7947 = vst.msk [vmem:[#allocation5 + $0x20] sm:$0xff] %vm7270, %v7915
  %7948 = vst.msk [vmem:[#allocation5 + $0x28] sm:$0xff] %vm7270, %v7916
  %7949 = vst.msk [vmem:[#allocation5 + $0x30] sm:$0xff] %vm7270, %v7917
  %7950 = vst.msk [vmem:[#allocation5 + $0x38] sm:$0xff] %vm7270, %v7918
  %7951 = vst.msk [vmem:[#allocation5 + $0x40] sm:$0xff] %vm7270, %v7919
  %7952 = vst.msk [vmem:[#allocation5 + $0x48] sm:$0xff] %vm7270, %v7920
  %7953 = vst.msk [vmem:[#allocation5 + $0x50] sm:$0xff] %vm7270, %v7921
  %7954 = vst.msk [vmem:[#allocation5 + $0x58] sm:$0xff] %vm7270, %v7922
  %7955 = vst.msk [vmem:[#allocation5 + $0x60] sm:$0xff] %vm7270, %v7923
  %7956 = vst.msk [vmem:[#allocation5 + $0x68] sm:$0xff] %vm7270, %v7924
  %7957 = vst.msk [vmem:[#allocation5 + $0x70] sm:$0xff] %vm7270, %v7925
  %7958 = vst.msk [vmem:[#allocation5 + $0x78] sm:$0xff] %vm7270, %v7926
  %7959 = vst.msk [vmem:[#allocation5 + $0x80] sm:$0xff] %vm7270, %v7927
  %7960 = vst.msk [vmem:[#allocation5 + $0x88] sm:$0xff] %vm7270, %v7928
  %7961 = vst.msk [vmem:[#allocation5 + $0x90] sm:$0xff] %vm7270, %v7929
  %7962 = vst.msk [vmem:[#allocation5 + $0x98] sm:$0xff] %vm7270, %v7930
  %7963 = vst.msk [vmem:[#allocation5 + $0xa0] sm:$0xff] %vm7270, %v7931
  %7964 = vst.msk [vmem:[#allocation5 + $0xa8] sm:$0xff] %vm7270, %v7932
  %7965 = vst.msk [vmem:[#allocation5 + $0xb0] sm:$0xff] %vm7270, %v7933
  %7966 = vst.msk [vmem:[#allocation5 + $0xb8] sm:$0xff] %vm7270, %v7934
  %7967 = vst.msk [vmem:[#allocation5 + $0xc0] sm:$0xff] %vm7270, %v7935
  %7968 = vst.msk [vmem:[#allocation5 + $0xc8] sm:$0xff] %vm7270, %v7936
  %7969 = vst.msk [vmem:[#allocation5 + $0xd0] sm:$0xff] %vm7270, %v7937
  %7970 = vst.msk [vmem:[#allocation5 + $0xd8] sm:$0xff] %vm7270, %v7938
  %7971 = vst.msk [vmem:[#allocation5 + $0xe0] sm:$0xff] %vm7270, %v7939
  %7972 = vst.msk [vmem:[#allocation5 + $0xe8] sm:$0xff] %vm7270, %v7940
  %7973 = vst.msk [vmem:[#allocation5 + $0xf0] sm:$0xff] %vm7270, %v7941
  %7974 = vst.msk [vmem:[#allocation5 + $0xf8] sm:$0xff] %vm7270, %v7942
  // Predicated region
  $region22: #{tpu_custom_call.1} parent=0 // pred_check
    %p7975 = pneg %p17
  $region23: #{tpu_custom_call.1} parent=0 // pred_check_branch
    %7977 = sbr.rel (%p7975) target = $region25
  $region24: #{tpu_custom_call.1} parent=0 // pred_region
    %v7978 = vld [vmem:[#allocation2] sm:$0xff]
    %v7979 = vld [vmem:[#allocation2 + $0x8] sm:$0xff]
    %v7980 = vld [vmem:[#allocation2 + $0x10] sm:$0xff]
    %v7981 = vld [vmem:[#allocation2 + $0x18] sm:$0xff]
    %v7982 = vld [vmem:[#allocation2 + $0x20] sm:$0xff]
    %v7983 = vld [vmem:[#allocation2 + $0x28] sm:$0xff]
    %v7984 = vld [vmem:[#allocation2 + $0x30] sm:$0xff]
    %v7985 = vld [vmem:[#allocation2 + $0x38] sm:$0xff]
    %v7986 = vld [vmem:[#allocation2 + $0x40] sm:$0xff]
    %v7987 = vld [vmem:[#allocation2 + $0x48] sm:$0xff]
    %v7988 = vld [vmem:[#allocation2 + $0x50] sm:$0xff]
    %v7989 = vld [vmem:[#allocation2 + $0x58] sm:$0xff]
    %v7990 = vld [vmem:[#allocation2 + $0x60] sm:$0xff]
    %v7991 = vld [vmem:[#allocation2 + $0x68] sm:$0xff]
    %v7992 = vld [vmem:[#allocation2 + $0x70] sm:$0xff]
    %v7993 = vld [vmem:[#allocation2 + $0x78] sm:$0xff]
    %v7994 = vld [vmem:[#allocation2 + $0x80] sm:$0xff]
    %v7995 = vld [vmem:[#allocation2 + $0x88] sm:$0xff]
    %v7996 = vld [vmem:[#allocation2 + $0x90] sm:$0xff]
    %v7997 = vld [vmem:[#allocation2 + $0x98] sm:$0xff]
    %v7998 = vld [vmem:[#allocation2 + $0xa0] sm:$0xff]
    %v7999 = vld [vmem:[#allocation2 + $0xa8] sm:$0xff]
    %v8000 = vld [vmem:[#allocation2 + $0xb0] sm:$0xff]
    %v8001 = vld [vmem:[#allocation2 + $0xb8] sm:$0xff]
    %v8002 = vld [vmem:[#allocation2 + $0xc0] sm:$0xff]
    %v8003 = vld [vmem:[#allocation2 + $0xc8] sm:$0xff]
    %v8004 = vld [vmem:[#allocation2 + $0xd0] sm:$0xff]
    %v8005 = vld [vmem:[#allocation2 + $0xd8] sm:$0xff]
    %v8006 = vld [vmem:[#allocation2 + $0xe0] sm:$0xff]
    %v8007 = vld [vmem:[#allocation2 + $0xe8] sm:$0xff]
    %v8008 = vld [vmem:[#allocation2 + $0xf0] sm:$0xff]
    %v8009 = vld [vmem:[#allocation2 + $0xf8] sm:$0xff]
    %v8010 = vld [vmem:[#allocation3] sm:$0xff]
    %v8011 = vld [vmem:[#allocation3 + $0x8] sm:$0xff]
    %v8012 = vld [vmem:[#allocation3 + $0x10] sm:$0xff]
    %v8013 = vld [vmem:[#allocation3 + $0x18] sm:$0xff]
    %v8014 = vld [vmem:[#allocation3 + $0x20] sm:$0xff]
    %v8015 = vld [vmem:[#allocation3 + $0x28] sm:$0xff]
    %v8016 = vld [vmem:[#allocation3 + $0x30] sm:$0xff]
    %v8017 = vld [vmem:[#allocation3 + $0x38] sm:$0xff]
    %v8018 = vld [vmem:[#allocation3 + $0x40] sm:$0xff]
    %v8019 = vld [vmem:[#allocation3 + $0x48] sm:$0xff]
    %v8020 = vld [vmem:[#allocation3 + $0x50] sm:$0xff]
    %v8021 = vld [vmem:[#allocation3 + $0x58] sm:$0xff]
    %v8022 = vld [vmem:[#allocation3 + $0x60] sm:$0xff]
    %v8023 = vld [vmem:[#allocation3 + $0x68] sm:$0xff]
    %v8024 = vld [vmem:[#allocation3 + $0x70] sm:$0xff]
    %v8025 = vld [vmem:[#allocation3 + $0x78] sm:$0xff]
    %v8026 = vld [vmem:[#allocation3 + $0x80] sm:$0xff]
    %v8027 = vld [vmem:[#allocation3 + $0x88] sm:$0xff]
    %v8028 = vld [vmem:[#allocation3 + $0x90] sm:$0xff]
    %v8029 = vld [vmem:[#allocation3 + $0x98] sm:$0xff]
    %v8030 = vld [vmem:[#allocation3 + $0xa0] sm:$0xff]
    %v8031 = vld [vmem:[#allocation3 + $0xa8] sm:$0xff]
    %v8032 = vld [vmem:[#allocation3 + $0xb0] sm:$0xff]
    %v8033 = vld [vmem:[#allocation3 + $0xb8] sm:$0xff]
    %v8034 = vld [vmem:[#allocation3 + $0xc0] sm:$0xff]
    %v8035 = vld [vmem:[#allocation3 + $0xc8] sm:$0xff]
    %v8036 = vld [vmem:[#allocation3 + $0xd0] sm:$0xff]
    %v8037 = vld [vmem:[#allocation3 + $0xd8] sm:$0xff]
    %v8038 = vld [vmem:[#allocation3 + $0xe0] sm:$0xff]
    %v8039 = vld [vmem:[#allocation3 + $0xe8] sm:$0xff]
    %v8040 = vld [vmem:[#allocation3 + $0xf0] sm:$0xff]
    %v8041 = vld [vmem:[#allocation3 + $0xf8] sm:$0xff]
    %v8042 = vld [vmem:[#allocation4] sm:$0xff]
    %v8043 = vld [vmem:[#allocation4 + $0x8] sm:$0xff]
    %v8044 = vld [vmem:[#allocation4 + $0x10] sm:$0xff]
    %v8045 = vld [vmem:[#allocation4 + $0x18] sm:$0xff]
    %v8046 = vld [vmem:[#allocation4 + $0x20] sm:$0xff]
    %v8047 = vld [vmem:[#allocation4 + $0x28] sm:$0xff]
    %v8048 = vld [vmem:[#allocation4 + $0x30] sm:$0xff]
    %v8049 = vld [vmem:[#allocation4 + $0x38] sm:$0xff]
    %v8050 = vld [vmem:[#allocation4 + $0x40] sm:$0xff]
    %v8051 = vld [vmem:[#allocation4 + $0x48] sm:$0xff]
    %v8052 = vld [vmem:[#allocation4 + $0x50] sm:$0xff]
    %v8053 = vld [vmem:[#allocation4 + $0x58] sm:$0xff]
    %v8054 = vld [vmem:[#allocation4 + $0x60] sm:$0xff]
    %v8055 = vld [vmem:[#allocation4 + $0x68] sm:$0xff]
    %v8056 = vld [vmem:[#allocation4 + $0x70] sm:$0xff]
    %v8057 = vld [vmem:[#allocation4 + $0x78] sm:$0xff]
    %v8058 = vld [vmem:[#allocation4 + $0x80] sm:$0xff]
    %v8059 = vld [vmem:[#allocation4 + $0x88] sm:$0xff]
    %v8060 = vld [vmem:[#allocation4 + $0x90] sm:$0xff]
    %v8061 = vld [vmem:[#allocation4 + $0x98] sm:$0xff]
    %v8062 = vld [vmem:[#allocation4 + $0xa0] sm:$0xff]
    %v8063 = vld [vmem:[#allocation4 + $0xa8] sm:$0xff]
    %v8064 = vld [vmem:[#allocation4 + $0xb0] sm:$0xff]
    %v8065 = vld [vmem:[#allocation4 + $0xb8] sm:$0xff]
    %v8066 = vld [vmem:[#allocation4 + $0xc0] sm:$0xff]
    %v8067 = vld [vmem:[#allocation4 + $0xc8] sm:$0xff]
    %v8068 = vld [vmem:[#allocation4 + $0xd0] sm:$0xff]
    %v8069 = vld [vmem:[#allocation4 + $0xd8] sm:$0xff]
    %v8070 = vld [vmem:[#allocation4 + $0xe0] sm:$0xff]
    %v8071 = vld [vmem:[#allocation4 + $0xe8] sm:$0xff]
    %v8072 = vld [vmem:[#allocation4 + $0xf0] sm:$0xff]
    %v8073 = vld [vmem:[#allocation4 + $0xf8] sm:$0xff]
    %v8074 = vld [vmem:[#allocation5] sm:$0xff]
    %v8075 = vld [vmem:[#allocation5 + $0x8] sm:$0xff]
    %v8076 = vld [vmem:[#allocation5 + $0x10] sm:$0xff]
    %v8077 = vld [vmem:[#allocation5 + $0x18] sm:$0xff]
    %v8078 = vld [vmem:[#allocation5 + $0x20] sm:$0xff]
    %v8079 = vld [vmem:[#allocation5 + $0x28] sm:$0xff]
    %v8080 = vld [vmem:[#allocation5 + $0x30] sm:$0xff]
    %v8081 = vld [vmem:[#allocation5 + $0x38] sm:$0xff]
    %v8082 = vld [vmem:[#allocation5 + $0x40] sm:$0xff]
    %v8083 = vld [vmem:[#allocation5 + $0x48] sm:$0xff]
    %v8084 = vld [vmem:[#allocation5 + $0x50] sm:$0xff]
    %v8085 = vld [vmem:[#allocation5 + $0x58] sm:$0xff]
    %v8086 = vld [vmem:[#allocation5 + $0x60] sm:$0xff]
    %v8087 = vld [vmem:[#allocation5 + $0x68] sm:$0xff]
    %v8088 = vld [vmem:[#allocation5 + $0x70] sm:$0xff]
    %v8089 = vld [vmem:[#allocation5 + $0x78] sm:$0xff]
    %v8090 = vld [vmem:[#allocation5 + $0x80] sm:$0xff]
    %v8091 = vld [vmem:[#allocation5 + $0x88] sm:$0xff]
    %v8092 = vld [vmem:[#allocation5 + $0x90] sm:$0xff]
    %v8093 = vld [vmem:[#allocation5 + $0x98] sm:$0xff]
    %v8094 = vld [vmem:[#allocation5 + $0xa0] sm:$0xff]
    %v8095 = vld [vmem:[#allocation5 + $0xa8] sm:$0xff]
    %v8096 = vld [vmem:[#allocation5 + $0xb0] sm:$0xff]
    %v8097 = vld [vmem:[#allocation5 + $0xb8] sm:$0xff]
    %v8098 = vld [vmem:[#allocation5 + $0xc0] sm:$0xff]
    %v8099 = vld [vmem:[#allocation5 + $0xc8] sm:$0xff]
    %v8100 = vld [vmem:[#allocation5 + $0xd0] sm:$0xff]
    %v8101 = vld [vmem:[#allocation5 + $0xd8] sm:$0xff]
    %v8102 = vld [vmem:[#allocation5 + $0xe0] sm:$0xff]
    %v8103 = vld [vmem:[#allocation5 + $0xe8] sm:$0xff]
    %v8104 = vld [vmem:[#allocation5 + $0xf0] sm:$0xff]
    %v8105 = vld [vmem:[#allocation5 + $0xf8] sm:$0xff]
    %v8106 = vlog2.pop %v8010
    %v8107 = vmul.f32 %v8106, 0.6931472
    %v8108 = vlog2.pop %v8011
    %v8109 = vmul.f32 %v8108, 0.6931472
    %v8110 = vlog2.pop %v8012
    %v8111 = vmul.f32 %v8110, 0.6931472
    %v8112 = vlog2.pop %v8013
    %v8113 = vmul.f32 %v8112, 0.6931472
    %v8114 = vlog2.pop %v8014
    %v8115 = vmul.f32 %v8114, 0.6931472
    %v8116 = vlog2.pop %v8015
    %v8117 = vmul.f32 %v8116, 0.6931472
    %v8118 = vlog2.pop %v8016
    %v8119 = vmul.f32 %v8118, 0.6931472
    %v8120 = vlog2.pop %v8017
    %v8121 = vmul.f32 %v8120, 0.6931472
    %v8122 = vlog2.pop %v8018
    %v8123 = vmul.f32 %v8122, 0.6931472
    %v8124 = vlog2.pop %v8019
    %v8125 = vmul.f32 %v8124, 0.6931472
    %v8126 = vlog2.pop %v8020
    %v8127 = vmul.f32 %v8126, 0.6931472
    %v8128 = vlog2.pop %v8021
    %v8129 = vmul.f32 %v8128, 0.6931472
    %v8130 = vlog2.pop %v8022
    %v8131 = vmul.f32 %v8130, 0.6931472
    %v8132 = vlog2.pop %v8023
    %v8133 = vmul.f32 %v8132, 0.6931472
    %v8134 = vlog2.pop %v8024
    %v8135 = vmul.f32 %v8134, 0.6931472
    %v8136 = vlog2.pop %v8025
    %v8137 = vmul.f32 %v8136, 0.6931472
    %v8138 = vlog2.pop %v8026
    %v8139 = vmul.f32 %v8138, 0.6931472
    %v8140 = vlog2.pop %v8027
    %v8141 = vmul.f32 %v8140, 0.6931472
    %v8142 = vlog2.pop %v8028
    %v8143 = vmul.f32 %v8142, 0.6931472
    %v8144 = vlog2.pop %v8029
    %v8145 = vmul.f32 %v8144, 0.6931472
    %v8146 = vlog2.pop %v8030
    %v8147 = vmul.f32 %v8146, 0.6931472
    %v8148 = vlog2.pop %v8031
    %v8149 = vmul.f32 %v8148, 0.6931472
    %v8150 = vlog2.pop %v8032
    %v8151 = vmul.f32 %v8150, 0.6931472
    %v8152 = vlog2.pop %v8033
    %v8153 = vmul.f32 %v8152, 0.6931472
    %v8154 = vlog2.pop %v8034
    %v8155 = vmul.f32 %v8154, 0.6931472
    %v8156 = vlog2.pop %v8035
    %v8157 = vmul.f32 %v8156, 0.6931472
    %v8158 = vlog2.pop %v8036
    %v8159 = vmul.f32 %v8158, 0.6931472
    %v8160 = vlog2.pop %v8037
    %v8161 = vmul.f32 %v8160, 0.6931472
    %v8162 = vlog2.pop %v8038
    %v8163 = vmul.f32 %v8162, 0.6931472
    %v8164 = vlog2.pop %v8039
    %v8165 = vmul.f32 %v8164, 0.6931472
    %v8166 = vlog2.pop %v8040
    %v8167 = vmul.f32 %v8166, 0.6931472
    %v8168 = vlog2.pop %v8041
    %v8169 = vmul.f32 %v8168, 0.6931472
    %v8170 = vadd.f32 %v7978, %v8107
    %v8171 = vadd.f32 %v7979, %v8109
    %v8172 = vadd.f32 %v7980, %v8111
    %v8173 = vadd.f32 %v7981, %v8113
    %v8174 = vadd.f32 %v7982, %v8115
    %v8175 = vadd.f32 %v7983, %v8117
    %v8176 = vadd.f32 %v7984, %v8119
    %v8177 = vadd.f32 %v7985, %v8121
    %v8178 = vadd.f32 %v7986, %v8123
    %v8179 = vadd.f32 %v7987, %v8125
    %v8180 = vadd.f32 %v7988, %v8127
    %v8181 = vadd.f32 %v7989, %v8129
    %v8182 = vadd.f32 %v7990, %v8131
    %v8183 = vadd.f32 %v7991, %v8133
    %v8184 = vadd.f32 %v7992, %v8135
    %v8185 = vadd.f32 %v7993, %v8137
    %v8186 = vadd.f32 %v7994, %v8139
    %v8187 = vadd.f32 %v7995, %v8141
    %v8188 = vadd.f32 %v7996, %v8143
    %v8189 = vadd.f32 %v7997, %v8145
    %v8190 = vadd.f32 %v7998, %v8147
    %v8191 = vadd.f32 %v7999, %v8149
    %v8192 = vadd.f32 %v8000, %v8151
    %v8193 = vadd.f32 %v8001, %v8153
    %v8194 = vadd.f32 %v8002, %v8155
    %v8195 = vadd.f32 %v8003, %v8157
    %v8196 = vadd.f32 %v8004, %v8159
    %v8197 = vadd.f32 %v8005, %v8161
    %v8198 = vadd.f32 %v8006, %v8163
    %v8199 = vadd.f32 %v8007, %v8165
    %v8200 = vadd.f32 %v8008, %v8167
    %v8201 = vadd.f32 %v8009, %v8169
    %v8202 = vmul.f32 %v8074, %v8170
    %v8203 = vmul.f32 %v8075, %v8171
    %v8204 = vmul.f32 %v8076, %v8172
    %v8205 = vmul.f32 %v8077, %v8173
    %v8206 = vmul.f32 %v8078, %v8174
    %v8207 = vmul.f32 %v8079, %v8175
    %v8208 = vmul.f32 %v8080, %v8176
    %v8209 = vmul.f32 %v8081, %v8177
    %v8210 = vmul.f32 %v8082, %v8178
    %v8211 = vmul.f32 %v8083, %v8179
    %v8212 = vmul.f32 %v8084, %v8180
    %v8213 = vmul.f32 %v8085, %v8181
    %v8214 = vmul.f32 %v8086, %v8182
    %v8215 = vmul.f32 %v8087, %v8183
    %v8216 = vmul.f32 %v8088, %v8184
    %v8217 = vmul.f32 %v8089, %v8185
    %v8218 = vmul.f32 %v8090, %v8186
    %v8219 = vmul.f32 %v8091, %v8187
    %v8220 = vmul.f32 %v8092, %v8188
    %v8221 = vmul.f32 %v8093, %v8189
    %v8222 = vmul.f32 %v8094, %v8190
    %v8223 = vmul.f32 %v8095, %v8191
    %v8224 = vmul.f32 %v8096, %v8192
    %v8225 = vmul.f32 %v8097, %v8193
    %v8226 = vmul.f32 %v8098, %v8194
    %v8227 = vmul.f32 %v8099, %v8195
    %v8228 = vmul.f32 %v8100, %v8196
    %v8229 = vmul.f32 %v8101, %v8197
    %v8230 = vmul.f32 %v8102, %v8198
    %v8231 = vmul.f32 %v8103, %v8199
    %v8232 = vmul.f32 %v8104, %v8200
    %v8233 = vmul.f32 %v8105, %v8201
    %v8234 = vsub.f32 %v8042, %v8202
    %v8235 = vsub.f32 %v8043, %v8203
    %v8236 = vsub.f32 %v8044, %v8204
    %v8237 = vsub.f32 %v8045, %v8205
    %v8238 = vsub.f32 %v8046, %v8206
    %v8239 = vsub.f32 %v8047, %v8207
    %v8240 = vsub.f32 %v8048, %v8208
    %v8241 = vsub.f32 %v8049, %v8209
    %v8242 = vsub.f32 %v8050, %v8210
    %v8243 = vsub.f32 %v8051, %v8211
    %v8244 = vsub.f32 %v8052, %v8212
    %v8245 = vsub.f32 %v8053, %v8213
    %v8246 = vsub.f32 %v8054, %v8214
    %v8247 = vsub.f32 %v8055, %v8215
    %v8248 = vsub.f32 %v8056, %v8216
    %v8249 = vsub.f32 %v8057, %v8217
    %v8250 = vsub.f32 %v8058, %v8218
    %v8251 = vsub.f32 %v8059, %v8219
    %v8252 = vsub.f32 %v8060, %v8220
    %v8253 = vsub.f32 %v8061, %v8221
    %v8254 = vsub.f32 %v8062, %v8222
    %v8255 = vsub.f32 %v8063, %v8223
    %v8256 = vsub.f32 %v8064, %v8224
    %v8257 = vsub.f32 %v8065, %v8225
    %v8258 = vsub.f32 %v8066, %v8226
    %v8259 = vsub.f32 %v8067, %v8227
    %v8260 = vsub.f32 %v8068, %v8228
    %v8261 = vsub.f32 %v8069, %v8229
    %v8262 = vsub.f32 %v8070, %v8230
    %v8263 = vsub.f32 %v8071, %v8231
    %v8264 = vsub.f32 %v8072, %v8232
    %v8265 = vsub.f32 %v8073, %v8233
    %v8266 = vrcp.pop %v8074
    %v8267 = vmul.f32 %v8074, %v8266
    %v8268 = vsub.f32 1.0, %v8267
    %v8269 = vmul.f32 %v8266, %v8268
    %v8270 = vadd.f32 %v8266, %v8269
    %vm8271 = vweird.f32 %v8074
    %vm8272 = vweird.f32 %v8266
    %vm8273 = vmor %vm8271, %vm8272
    %v8274 = vsel %vm8273, %v8266, %v8270
    %v8275 = vand.u32 2147483647, %v8074
    %vm8276 = vcmp.eq.f32.partialorder %v8275, 8.507059e+37
    %v8277 = vand.u32 %v8074, 2147483648
    %v8278 = vor.u32 1.1754944e-38, %v8277
    %v8279 = vsel %vm8276, %v8278, %v8274
    %v8280 = vmul.f32 %v8234, %v8279
    %v8281 = vrcp.pop %v8075
    %v8282 = vmul.f32 %v8075, %v8281
    %v8283 = vsub.f32 1.0, %v8282
    %v8284 = vmul.f32 %v8281, %v8283
    %v8285 = vadd.f32 %v8281, %v8284
    %vm8286 = vweird.f32 %v8075
    %vm8287 = vweird.f32 %v8281
    %vm8288 = vmor %vm8286, %vm8287
    %v8289 = vsel %vm8288, %v8281, %v8285
    %v8290 = vand.u32 2147483647, %v8075
    %vm8291 = vcmp.eq.f32.partialorder %v8290, 8.507059e+37
    %v8292 = vand.u32 %v8075, 2147483648
    %v8293 = vor.u32 1.1754944e-38, %v8292
    %v8294 = vsel %vm8291, %v8293, %v8289
    %v8295 = vmul.f32 %v8235, %v8294
    %v8296 = vrcp.pop %v8076
    %v8297 = vmul.f32 %v8076, %v8296
    %v8298 = vsub.f32 1.0, %v8297
    %v8299 = vmul.f32 %v8296, %v8298
    %v8300 = vadd.f32 %v8296, %v8299
    %vm8301 = vweird.f32 %v8076
    %vm8302 = vweird.f32 %v8296
    %vm8303 = vmor %vm8301, %vm8302
    %v8304 = vsel %vm8303, %v8296, %v8300
    %v8305 = vand.u32 2147483647, %v8076
    %vm8306 = vcmp.eq.f32.partialorder %v8305, 8.507059e+37
    %v8307 = vand.u32 %v8076, 2147483648
    %v8308 = vor.u32 1.1754944e-38, %v8307
    %v8309 = vsel %vm8306, %v8308, %v8304
    %v8310 = vmul.f32 %v8236, %v8309
    %v8311 = vrcp.pop %v8077
    %v8312 = vmul.f32 %v8077, %v8311
    %v8313 = vsub.f32 1.0, %v8312
    %v8314 = vmul.f32 %v8311, %v8313
    %v8315 = vadd.f32 %v8311, %v8314
    %vm8316 = vweird.f32 %v8077
    %vm8317 = vweird.f32 %v8311
    %vm8318 = vmor %vm8316, %vm8317
    %v8319 = vsel %vm8318, %v8311, %v8315
    %v8320 = vand.u32 2147483647, %v8077
    %vm8321 = vcmp.eq.f32.partialorder %v8320, 8.507059e+37
    %v8322 = vand.u32 %v8077, 2147483648
    %v8323 = vor.u32 1.1754944e-38, %v8322
    %v8324 = vsel %vm8321, %v8323, %v8319
    %v8325 = vmul.f32 %v8237, %v8324
    %v8326 = vrcp.pop %v8078
    %v8327 = vmul.f32 %v8078, %v8326
    %v8328 = vsub.f32 1.0, %v8327
    %v8329 = vmul.f32 %v8326, %v8328
    %v8330 = vadd.f32 %v8326, %v8329
    %vm8331 = vweird.f32 %v8078
    %vm8332 = vweird.f32 %v8326
    %vm8333 = vmor %vm8331, %vm8332
    %v8334 = vsel %vm8333, %v8326, %v8330
    %v8335 = vand.u32 2147483647, %v8078
    %vm8336 = vcmp.eq.f32.partialorder %v8335, 8.507059e+37
    %v8337 = vand.u32 %v8078, 2147483648
    %v8338 = vor.u32 1.1754944e-38, %v8337
    %v8339 = vsel %vm8336, %v8338, %v8334
    %v8340 = vmul.f32 %v8238, %v8339
    %v8341 = vrcp.pop %v8079
    %v8342 = vmul.f32 %v8079, %v8341
    %v8343 = vsub.f32 1.0, %v8342
    %v8344 = vmul.f32 %v8341, %v8343
    %v8345 = vadd.f32 %v8341, %v8344
    %vm8346 = vweird.f32 %v8079
    %vm8347 = vweird.f32 %v8341
    %vm8348 = vmor %vm8346, %vm8347
    %v8349 = vsel %vm8348, %v8341, %v8345
    %v8350 = vand.u32 2147483647, %v8079
    %vm8351 = vcmp.eq.f32.partialorder %v8350, 8.507059e+37
    %v8352 = vand.u32 %v8079, 2147483648
    %v8353 = vor.u32 1.1754944e-38, %v8352
    %v8354 = vsel %vm8351, %v8353, %v8349
    %v8355 = vmul.f32 %v8239, %v8354
    %v8356 = vrcp.pop %v8080
    %v8357 = vmul.f32 %v8080, %v8356
    %v8358 = vsub.f32 1.0, %v8357
    %v8359 = vmul.f32 %v8356, %v8358
    %v8360 = vadd.f32 %v8356, %v8359
    %vm8361 = vweird.f32 %v8080
    %vm8362 = vweird.f32 %v8356
    %vm8363 = vmor %vm8361, %vm8362
    %v8364 = vsel %vm8363, %v8356, %v8360
    %v8365 = vand.u32 2147483647, %v8080
    %vm8366 = vcmp.eq.f32.partialorder %v8365, 8.507059e+37
    %v8367 = vand.u32 %v8080, 2147483648
    %v8368 = vor.u32 1.1754944e-38, %v8367
    %v8369 = vsel %vm8366, %v8368, %v8364
    %v8370 = vmul.f32 %v8240, %v8369
    %v8371 = vrcp.pop %v8081
    %v8372 = vmul.f32 %v8081, %v8371
    %v8373 = vsub.f32 1.0, %v8372
    %v8374 = vmul.f32 %v8371, %v8373
    %v8375 = vadd.f32 %v8371, %v8374
    %vm8376 = vweird.f32 %v8081
    %vm8377 = vweird.f32 %v8371
    %vm8378 = vmor %vm8376, %vm8377
    %v8379 = vsel %vm8378, %v8371, %v8375
    %v8380 = vand.u32 2147483647, %v8081
    %vm8381 = vcmp.eq.f32.partialorder %v8380, 8.507059e+37
    %v8382 = vand.u32 %v8081, 2147483648
    %v8383 = vor.u32 1.1754944e-38, %v8382
    %v8384 = vsel %vm8381, %v8383, %v8379
    %v8385 = vmul.f32 %v8241, %v8384
    %v8386 = vrcp.pop %v8082
    %v8387 = vmul.f32 %v8082, %v8386
    %v8388 = vsub.f32 1.0, %v8387
    %v8389 = vmul.f32 %v8386, %v8388
    %v8390 = vadd.f32 %v8386, %v8389
    %vm8391 = vweird.f32 %v8082
    %vm8392 = vweird.f32 %v8386
    %vm8393 = vmor %vm8391, %vm8392
    %v8394 = vsel %vm8393, %v8386, %v8390
    %v8395 = vand.u32 2147483647, %v8082
    %vm8396 = vcmp.eq.f32.partialorder %v8395, 8.507059e+37
    %v8397 = vand.u32 %v8082, 2147483648
    %v8398 = vor.u32 1.1754944e-38, %v8397
    %v8399 = vsel %vm8396, %v8398, %v8394
    %v8400 = vmul.f32 %v8242, %v8399
    %v8401 = vrcp.pop %v8083
    %v8402 = vmul.f32 %v8083, %v8401
    %v8403 = vsub.f32 1.0, %v8402
    %v8404 = vmul.f32 %v8401, %v8403
    %v8405 = vadd.f32 %v8401, %v8404
    %vm8406 = vweird.f32 %v8083
    %vm8407 = vweird.f32 %v8401
    %vm8408 = vmor %vm8406, %vm8407
    %v8409 = vsel %vm8408, %v8401, %v8405
    %v8410 = vand.u32 2147483647, %v8083
    %vm8411 = vcmp.eq.f32.partialorder %v8410, 8.507059e+37
    %v8412 = vand.u32 %v8083, 2147483648
    %v8413 = vor.u32 1.1754944e-38, %v8412
    %v8414 = vsel %vm8411, %v8413, %v8409
    %v8415 = vmul.f32 %v8243, %v8414
    %v8416 = vrcp.pop %v8084
    %v8417 = vmul.f32 %v8084, %v8416
    %v8418 = vsub.f32 1.0, %v8417
    %v8419 = vmul.f32 %v8416, %v8418
    %v8420 = vadd.f32 %v8416, %v8419
    %vm8421 = vweird.f32 %v8084
    %vm8422 = vweird.f32 %v8416
    %vm8423 = vmor %vm8421, %vm8422
    %v8424 = vsel %vm8423, %v8416, %v8420
    %v8425 = vand.u32 2147483647, %v8084
    %vm8426 = vcmp.eq.f32.partialorder %v8425, 8.507059e+37
    %v8427 = vand.u32 %v8084, 2147483648
    %v8428 = vor.u32 1.1754944e-38, %v8427
    %v8429 = vsel %vm8426, %v8428, %v8424
    %v8430 = vmul.f32 %v8244, %v8429
    %v8431 = vrcp.pop %v8085
    %v8432 = vmul.f32 %v8085, %v8431
    %v8433 = vsub.f32 1.0, %v8432
    %v8434 = vmul.f32 %v8431, %v8433
    %v8435 = vadd.f32 %v8431, %v8434
    %vm8436 = vweird.f32 %v8085
    %vm8437 = vweird.f32 %v8431
    %vm8438 = vmor %vm8436, %vm8437
    %v8439 = vsel %vm8438, %v8431, %v8435
    %v8440 = vand.u32 2147483647, %v8085
    %vm8441 = vcmp.eq.f32.partialorder %v8440, 8.507059e+37
    %v8442 = vand.u32 %v8085, 2147483648
    %v8443 = vor.u32 1.1754944e-38, %v8442
    %v8444 = vsel %vm8441, %v8443, %v8439
    %v8445 = vmul.f32 %v8245, %v8444
    %v8446 = vrcp.pop %v8086
    %v8447 = vmul.f32 %v8086, %v8446
    %v8448 = vsub.f32 1.0, %v8447
    %v8449 = vmul.f32 %v8446, %v8448
    %v8450 = vadd.f32 %v8446, %v8449
    %vm8451 = vweird.f32 %v8086
    %vm8452 = vweird.f32 %v8446
    %vm8453 = vmor %vm8451, %vm8452
    %v8454 = vsel %vm8453, %v8446, %v8450
    %v8455 = vand.u32 2147483647, %v8086
    %vm8456 = vcmp.eq.f32.partialorder %v8455, 8.507059e+37
    %v8457 = vand.u32 %v8086, 2147483648
    %v8458 = vor.u32 1.1754944e-38, %v8457
    %v8459 = vsel %vm8456, %v8458, %v8454
    %v8460 = vmul.f32 %v8246, %v8459
    %v8461 = vrcp.pop %v8087
    %v8462 = vmul.f32 %v8087, %v8461
    %v8463 = vsub.f32 1.0, %v8462
    %v8464 = vmul.f32 %v8461, %v8463
    %v8465 = vadd.f32 %v8461, %v8464
    %vm8466 = vweird.f32 %v8087
    %vm8467 = vweird.f32 %v8461
    %vm8468 = vmor %vm8466, %vm8467
    %v8469 = vsel %vm8468, %v8461, %v8465
    %v8470 = vand.u32 2147483647, %v8087
    %vm8471 = vcmp.eq.f32.partialorder %v8470, 8.507059e+37
    %v8472 = vand.u32 %v8087, 2147483648
    %v8473 = vor.u32 1.1754944e-38, %v8472
    %v8474 = vsel %vm8471, %v8473, %v8469
    %v8475 = vmul.f32 %v8247, %v8474
    %v8476 = vrcp.pop %v8088
    %v8477 = vmul.f32 %v8088, %v8476
    %v8478 = vsub.f32 1.0, %v8477
    %v8479 = vmul.f32 %v8476, %v8478
    %v8480 = vadd.f32 %v8476, %v8479
    %vm8481 = vweird.f32 %v8088
    %vm8482 = vweird.f32 %v8476
    %vm8483 = vmor %vm8481, %vm8482
    %v8484 = vsel %vm8483, %v8476, %v8480
    %v8485 = vand.u32 2147483647, %v8088
    %vm8486 = vcmp.eq.f32.partialorder %v8485, 8.507059e+37
    %v8487 = vand.u32 %v8088, 2147483648
    %v8488 = vor.u32 1.1754944e-38, %v8487
    %v8489 = vsel %vm8486, %v8488, %v8484
    %v8490 = vmul.f32 %v8248, %v8489
    %v8491 = vrcp.pop %v8089
    %v8492 = vmul.f32 %v8089, %v8491
    %v8493 = vsub.f32 1.0, %v8492
    %v8494 = vmul.f32 %v8491, %v8493
    %v8495 = vadd.f32 %v8491, %v8494
    %vm8496 = vweird.f32 %v8089
    %vm8497 = vweird.f32 %v8491
    %vm8498 = vmor %vm8496, %vm8497
    %v8499 = vsel %vm8498, %v8491, %v8495
    %v8500 = vand.u32 2147483647, %v8089
    %vm8501 = vcmp.eq.f32.partialorder %v8500, 8.507059e+37
    %v8502 = vand.u32 %v8089, 2147483648
    %v8503 = vor.u32 1.1754944e-38, %v8502
    %v8504 = vsel %vm8501, %v8503, %v8499
    %v8505 = vmul.f32 %v8249, %v8504
    %v8506 = vrcp.pop %v8090
    %v8507 = vmul.f32 %v8090, %v8506
    %v8508 = vsub.f32 1.0, %v8507
    %v8509 = vmul.f32 %v8506, %v8508
    %v8510 = vadd.f32 %v8506, %v8509
    %vm8511 = vweird.f32 %v8090
    %vm8512 = vweird.f32 %v8506
    %vm8513 = vmor %vm8511, %vm8512
    %v8514 = vsel %vm8513, %v8506, %v8510
    %v8515 = vand.u32 2147483647, %v8090
    %vm8516 = vcmp.eq.f32.partialorder %v8515, 8.507059e+37
    %v8517 = vand.u32 %v8090, 2147483648
    %v8518 = vor.u32 1.1754944e-38, %v8517
    %v8519 = vsel %vm8516, %v8518, %v8514
    %v8520 = vmul.f32 %v8250, %v8519
    %v8521 = vrcp.pop %v8091
    %v8522 = vmul.f32 %v8091, %v8521
    %v8523 = vsub.f32 1.0, %v8522
    %v8524 = vmul.f32 %v8521, %v8523
    %v8525 = vadd.f32 %v8521, %v8524
    %vm8526 = vweird.f32 %v8091
    %vm8527 = vweird.f32 %v8521
    %vm8528 = vmor %vm8526, %vm8527
    %v8529 = vsel %vm8528, %v8521, %v8525
    %v8530 = vand.u32 2147483647, %v8091
    %vm8531 = vcmp.eq.f32.partialorder %v8530, 8.507059e+37
    %v8532 = vand.u32 %v8091, 2147483648
    %v8533 = vor.u32 1.1754944e-38, %v8532
    %v8534 = vsel %vm8531, %v8533, %v8529
    %v8535 = vmul.f32 %v8251, %v8534
    %v8536 = vrcp.pop %v8092
    %v8537 = vmul.f32 %v8092, %v8536
    %v8538 = vsub.f32 1.0, %v8537
    %v8539 = vmul.f32 %v8536, %v8538
    %v8540 = vadd.f32 %v8536, %v8539
    %vm8541 = vweird.f32 %v8092
    %vm8542 = vweird.f32 %v8536
    %vm8543 = vmor %vm8541, %vm8542
    %v8544 = vsel %vm8543, %v8536, %v8540
    %v8545 = vand.u32 2147483647, %v8092
    %vm8546 = vcmp.eq.f32.partialorder %v8545, 8.507059e+37
    %v8547 = vand.u32 %v8092, 2147483648
    %v8548 = vor.u32 1.1754944e-38, %v8547
    %v8549 = vsel %vm8546, %v8548, %v8544
    %v8550 = vmul.f32 %v8252, %v8549
    %v8551 = vrcp.pop %v8093
    %v8552 = vmul.f32 %v8093, %v8551
    %v8553 = vsub.f32 1.0, %v8552
    %v8554 = vmul.f32 %v8551, %v8553
    %v8555 = vadd.f32 %v8551, %v8554
    %vm8556 = vweird.f32 %v8093
    %vm8557 = vweird.f32 %v8551
    %vm8558 = vmor %vm8556, %vm8557
    %v8559 = vsel %vm8558, %v8551, %v8555
    %v8560 = vand.u32 2147483647, %v8093
    %vm8561 = vcmp.eq.f32.partialorder %v8560, 8.507059e+37
    %v8562 = vand.u32 %v8093, 2147483648
    %v8563 = vor.u32 1.1754944e-38, %v8562
    %v8564 = vsel %vm8561, %v8563, %v8559
    %v8565 = vmul.f32 %v8253, %v8564
    %v8566 = vrcp.pop %v8094
    %v8567 = vmul.f32 %v8094, %v8566
    %v8568 = vsub.f32 1.0, %v8567
    %v8569 = vmul.f32 %v8566, %v8568
    %v8570 = vadd.f32 %v8566, %v8569
    %vm8571 = vweird.f32 %v8094
    %vm8572 = vweird.f32 %v8566
    %vm8573 = vmor %vm8571, %vm8572
    %v8574 = vsel %vm8573, %v8566, %v8570
    %v8575 = vand.u32 2147483647, %v8094
    %vm8576 = vcmp.eq.f32.partialorder %v8575, 8.507059e+37
    %v8577 = vand.u32 %v8094, 2147483648
    %v8578 = vor.u32 1.1754944e-38, %v8577
    %v8579 = vsel %vm8576, %v8578, %v8574
    %v8580 = vmul.f32 %v8254, %v8579
    %v8581 = vrcp.pop %v8095
    %v8582 = vmul.f32 %v8095, %v8581
    %v8583 = vsub.f32 1.0, %v8582
    %v8584 = vmul.f32 %v8581, %v8583
    %v8585 = vadd.f32 %v8581, %v8584
    %vm8586 = vweird.f32 %v8095
    %vm8587 = vweird.f32 %v8581
    %vm8588 = vmor %vm8586, %vm8587
    %v8589 = vsel %vm8588, %v8581, %v8585
    %v8590 = vand.u32 2147483647, %v8095
    %vm8591 = vcmp.eq.f32.partialorder %v8590, 8.507059e+37
    %v8592 = vand.u32 %v8095, 2147483648
    %v8593 = vor.u32 1.1754944e-38, %v8592
    %v8594 = vsel %vm8591, %v8593, %v8589
    %v8595 = vmul.f32 %v8255, %v8594
    %v8596 = vrcp.pop %v8096
    %v8597 = vmul.f32 %v8096, %v8596
    %v8598 = vsub.f32 1.0, %v8597
    %v8599 = vmul.f32 %v8596, %v8598
    %v8600 = vadd.f32 %v8596, %v8599
    %vm8601 = vweird.f32 %v8096
    %vm8602 = vweird.f32 %v8596
    %vm8603 = vmor %vm8601, %vm8602
    %v8604 = vsel %vm8603, %v8596, %v8600
    %v8605 = vand.u32 2147483647, %v8096
    %vm8606 = vcmp.eq.f32.partialorder %v8605, 8.507059e+37
    %v8607 = vand.u32 %v8096, 2147483648
    %v8608 = vor.u32 1.1754944e-38, %v8607
    %v8609 = vsel %vm8606, %v8608, %v8604
    %v8610 = vmul.f32 %v8256, %v8609
    %v8611 = vrcp.pop %v8097
    %v8612 = vmul.f32 %v8097, %v8611
    %v8613 = vsub.f32 1.0, %v8612
    %v8614 = vmul.f32 %v8611, %v8613
    %v8615 = vadd.f32 %v8611, %v8614
    %vm8616 = vweird.f32 %v8097
    %vm8617 = vweird.f32 %v8611
    %vm8618 = vmor %vm8616, %vm8617
    %v8619 = vsel %vm8618, %v8611, %v8615
    %v8620 = vand.u32 2147483647, %v8097
    %vm8621 = vcmp.eq.f32.partialorder %v8620, 8.507059e+37
    %v8622 = vand.u32 %v8097, 2147483648
    %v8623 = vor.u32 1.1754944e-38, %v8622
    %v8624 = vsel %vm8621, %v8623, %v8619
    %v8625 = vmul.f32 %v8257, %v8624
    %v8626 = vrcp.pop %v8098
    %v8627 = vmul.f32 %v8098, %v8626
    %v8628 = vsub.f32 1.0, %v8627
    %v8629 = vmul.f32 %v8626, %v8628
    %v8630 = vadd.f32 %v8626, %v8629
    %vm8631 = vweird.f32 %v8098
    %vm8632 = vweird.f32 %v8626
    %vm8633 = vmor %vm8631, %vm8632
    %v8634 = vsel %vm8633, %v8626, %v8630
    %v8635 = vand.u32 2147483647, %v8098
    %vm8636 = vcmp.eq.f32.partialorder %v8635, 8.507059e+37
    %v8637 = vand.u32 %v8098, 2147483648
    %v8638 = vor.u32 1.1754944e-38, %v8637
    %v8639 = vsel %vm8636, %v8638, %v8634
    %v8640 = vmul.f32 %v8258, %v8639
    %v8641 = vrcp.pop %v8099
    %v8642 = vmul.f32 %v8099, %v8641
    %v8643 = vsub.f32 1.0, %v8642
    %v8644 = vmul.f32 %v8641, %v8643
    %v8645 = vadd.f32 %v8641, %v8644
    %vm8646 = vweird.f32 %v8099
    %vm8647 = vweird.f32 %v8641
    %vm8648 = vmor %vm8646, %vm8647
    %v8649 = vsel %vm8648, %v8641, %v8645
    %v8650 = vand.u32 2147483647, %v8099
    %vm8651 = vcmp.eq.f32.partialorder %v8650, 8.507059e+37
    %v8652 = vand.u32 %v8099, 2147483648
    %v8653 = vor.u32 1.1754944e-38, %v8652
    %v8654 = vsel %vm8651, %v8653, %v8649
    %v8655 = vmul.f32 %v8259, %v8654
    %v8656 = vrcp.pop %v8100
    %v8657 = vmul.f32 %v8100, %v8656
    %v8658 = vsub.f32 1.0, %v8657
    %v8659 = vmul.f32 %v8656, %v8658
    %v8660 = vadd.f32 %v8656, %v8659
    %vm8661 = vweird.f32 %v8100
    %vm8662 = vweird.f32 %v8656
    %vm8663 = vmor %vm8661, %vm8662
    %v8664 = vsel %vm8663, %v8656, %v8660
    %v8665 = vand.u32 2147483647, %v8100
    %vm8666 = vcmp.eq.f32.partialorder %v8665, 8.507059e+37
    %v8667 = vand.u32 %v8100, 2147483648
    %v8668 = vor.u32 1.1754944e-38, %v8667
    %v8669 = vsel %vm8666, %v8668, %v8664
    %v8670 = vmul.f32 %v8260, %v8669
    %v8671 = vrcp.pop %v8101
    %v8672 = vmul.f32 %v8101, %v8671
    %v8673 = vsub.f32 1.0, %v8672
    %v8674 = vmul.f32 %v8671, %v8673
    %v8675 = vadd.f32 %v8671, %v8674
    %vm8676 = vweird.f32 %v8101
    %vm8677 = vweird.f32 %v8671
    %vm8678 = vmor %vm8676, %vm8677
    %v8679 = vsel %vm8678, %v8671, %v8675
    %v8680 = vand.u32 2147483647, %v8101
    %vm8681 = vcmp.eq.f32.partialorder %v8680, 8.507059e+37
    %v8682 = vand.u32 %v8101, 2147483648
    %v8683 = vor.u32 1.1754944e-38, %v8682
    %v8684 = vsel %vm8681, %v8683, %v8679
    %v8685 = vmul.f32 %v8261, %v8684
    %v8686 = vrcp.pop %v8102
    %v8687 = vmul.f32 %v8102, %v8686
    %v8688 = vsub.f32 1.0, %v8687
    %v8689 = vmul.f32 %v8686, %v8688
    %v8690 = vadd.f32 %v8686, %v8689
    %vm8691 = vweird.f32 %v8102
    %vm8692 = vweird.f32 %v8686
    %vm8693 = vmor %vm8691, %vm8692
    %v8694 = vsel %vm8693, %v8686, %v8690
    %v8695 = vand.u32 2147483647, %v8102
    %vm8696 = vcmp.eq.f32.partialorder %v8695, 8.507059e+37
    %v8697 = vand.u32 %v8102, 2147483648
    %v8698 = vor.u32 1.1754944e-38, %v8697
    %v8699 = vsel %vm8696, %v8698, %v8694
    %v8700 = vmul.f32 %v8262, %v8699
    %v8701 = vrcp.pop %v8103
    %v8702 = vmul.f32 %v8103, %v8701
    %v8703 = vsub.f32 1.0, %v8702
    %v8704 = vmul.f32 %v8701, %v8703
    %v8705 = vadd.f32 %v8701, %v8704
    %vm8706 = vweird.f32 %v8103
    %vm8707 = vweird.f32 %v8701
    %vm8708 = vmor %vm8706, %vm8707
    %v8709 = vsel %vm8708, %v8701, %v8705
    %v8710 = vand.u32 2147483647, %v8103
    %vm8711 = vcmp.eq.f32.partialorder %v8710, 8.507059e+37
    %v8712 = vand.u32 %v8103, 2147483648
    %v8713 = vor.u32 1.1754944e-38, %v8712
    %v8714 = vsel %vm8711, %v8713, %v8709
    %v8715 = vmul.f32 %v8263, %v8714
    %v8716 = vrcp.pop %v8104
    %v8717 = vmul.f32 %v8104, %v8716
    %v8718 = vsub.f32 1.0, %v8717
    %v8719 = vmul.f32 %v8716, %v8718
    %v8720 = vadd.f32 %v8716, %v8719
    %vm8721 = vweird.f32 %v8104
    %vm8722 = vweird.f32 %v8716
    %vm8723 = vmor %vm8721, %vm8722
    %v8724 = vsel %vm8723, %v8716, %v8720
    %v8725 = vand.u32 2147483647, %v8104
    %vm8726 = vcmp.eq.f32.partialorder %v8725, 8.507059e+37
    %v8727 = vand.u32 %v8104, 2147483648
    %v8728 = vor.u32 1.1754944e-38, %v8727
    %v8729 = vsel %vm8726, %v8728, %v8724
    %v8730 = vmul.f32 %v8264, %v8729
    %v8731 = vrcp.pop %v8105
    %v8732 = vmul.f32 %v8105, %v8731
    %v8733 = vsub.f32 1.0, %v8732
    %v8734 = vmul.f32 %v8731, %v8733
    %v8735 = vadd.f32 %v8731, %v8734
    %vm8736 = vweird.f32 %v8105
    %vm8737 = vweird.f32 %v8731
    %vm8738 = vmor %vm8736, %vm8737
    %v8739 = vsel %vm8738, %v8731, %v8735
    %v8740 = vand.u32 2147483647, %v8105
    %vm8741 = vcmp.eq.f32.partialorder %v8740, 8.507059e+37
    %v8742 = vand.u32 %v8105, 2147483648
    %v8743 = vor.u32 1.1754944e-38, %v8742
    %v8744 = vsel %vm8741, %v8743, %v8739
    %v8745 = vmul.f32 %v8265, %v8744
    %v8746 = vmul.f32 %v8280, -1.0
    %v8747 = vmul.f32 %v8295, -1.0
    %v8748 = vmul.f32 %v8310, -1.0
    %v8749 = vmul.f32 %v8325, -1.0
    %v8750 = vmul.f32 %v8340, -1.0
    %v8751 = vmul.f32 %v8355, -1.0
    %v8752 = vmul.f32 %v8370, -1.0
    %v8753 = vmul.f32 %v8385, -1.0
    %v8754 = vmul.f32 %v8400, -1.0
    %v8755 = vmul.f32 %v8415, -1.0
    %v8756 = vmul.f32 %v8430, -1.0
    %v8757 = vmul.f32 %v8445, -1.0
    %v8758 = vmul.f32 %v8460, -1.0
    %v8759 = vmul.f32 %v8475, -1.0
    %v8760 = vmul.f32 %v8490, -1.0
    %v8761 = vmul.f32 %v8505, -1.0
    %v8762 = vmul.f32 %v8520, -1.0
    %v8763 = vmul.f32 %v8535, -1.0
    %v8764 = vmul.f32 %v8550, -1.0
    %v8765 = vmul.f32 %v8565, -1.0
    %v8766 = vmul.f32 %v8580, -1.0
    %v8767 = vmul.f32 %v8595, -1.0
    %v8768 = vmul.f32 %v8610, -1.0
    %v8769 = vmul.f32 %v8625, -1.0
    %v8770 = vmul.f32 %v8640, -1.0
    %v8771 = vmul.f32 %v8655, -1.0
    %v8772 = vmul.f32 %v8670, -1.0
    %v8773 = vmul.f32 %v8685, -1.0
    %v8774 = vmul.f32 %v8700, -1.0
    %v8775 = vmul.f32 %v8715, -1.0
    %v8776 = vmul.f32 %v8730, -1.0
    %v8777 = vmul.f32 %v8745, -1.0
    %vm8778 = vcmp.lt.s32.totalorder %v4946, 16
    %vm8779 = vcmp.lt.s32.totalorder %v4947, 16
    %vm8780 = vcmp.lt.s32.totalorder %v4948, 16
    %vm8781 = vcmp.lt.s32.totalorder %v4949, 16
    %vm8782 = vcmp.lt.s32.totalorder %v4950, 16
    %vm8783 = vcmp.lt.s32.totalorder %v4951, 16
    %vm8784 = vcmp.lt.s32.totalorder %v4952, 16
    %vm8785 = vcmp.lt.s32.totalorder %v4953, 16
    %vm8786 = vcmp.lt.s32.totalorder %v4954, 16
    %vm8787 = vcmp.lt.s32.totalorder %v4955, 16
    %vm8788 = vcmp.lt.s32.totalorder %v4956, 16
    %vm8789 = vcmp.lt.s32.totalorder %v4957, 16
    %vm8790 = vcmp.lt.s32.totalorder %v4958, 16
    %vm8791 = vcmp.lt.s32.totalorder %v4959, 16
    %vm8792 = vcmp.lt.s32.totalorder %v4960, 16
    %vm8793 = vcmp.lt.s32.totalorder %v4961, 16
    %vm8794 = vcmp.lt.s32.totalorder %v4962, 16
    %vm8795 = vcmp.lt.s32.totalorder %v4963, 16
    %vm8796 = vcmp.lt.s32.totalorder %v4964, 16
    %vm8797 = vcmp.lt.s32.totalorder %v4965, 16
    %vm8798 = vcmp.lt.s32.totalorder %v4966, 16
    %vm8799 = vcmp.lt.s32.totalorder %v4967, 16
    %vm8800 = vcmp.lt.s32.totalorder %v4968, 16
    %vm8801 = vcmp.lt.s32.totalorder %v4969, 16
    %vm8802 = vcmp.lt.s32.totalorder %v4970, 16
    %vm8803 = vcmp.lt.s32.totalorder %v4971, 16
    %vm8804 = vcmp.lt.s32.totalorder %v4972, 16
    %vm8805 = vcmp.lt.s32.totalorder %v4973, 16
    %vm8806 = vcmp.lt.s32.totalorder %v4974, 16
    %vm8807 = vcmp.lt.s32.totalorder %v4975, 16
    %vm8808 = vcmp.lt.s32.totalorder %v4976, 16
    %vm8809 = vcmp.lt.s32.totalorder %v4977, 16
    %v8810 = vsel %vm8778, %v8746, 0.0
    %v8811 = vsel %vm8779, %v8747, 0.0
    %v8812 = vsel %vm8780, %v8748, 0.0
    %v8813 = vsel %vm8781, %v8749, 0.0
    %v8814 = vsel %vm8782, %v8750, 0.0
    %v8815 = vsel %vm8783, %v8751, 0.0
    %v8816 = vsel %vm8784, %v8752, 0.0
    %v8817 = vsel %vm8785, %v8753, 0.0
    %v8818 = vsel %vm8786, %v8754, 0.0
    %v8819 = vsel %vm8787, %v8755, 0.0
    %v8820 = vsel %vm8788, %v8756, 0.0
    %v8821 = vsel %vm8789, %v8757, 0.0
    %v8822 = vsel %vm8790, %v8758, 0.0
    %v8823 = vsel %vm8791, %v8759, 0.0
    %v8824 = vsel %vm8792, %v8760, 0.0
    %v8825 = vsel %vm8793, %v8761, 0.0
    %v8826 = vsel %vm8794, %v8762, 0.0
    %v8827 = vsel %vm8795, %v8763, 0.0
    %v8828 = vsel %vm8796, %v8764, 0.0
    %v8829 = vsel %vm8797, %v8765, 0.0
    %v8830 = vsel %vm8798, %v8766, 0.0
    %v8831 = vsel %vm8799, %v8767, 0.0
    %v8832 = vsel %vm8800, %v8768, 0.0
    %v8833 = vsel %vm8801, %v8769, 0.0
    %v8834 = vsel %vm8802, %v8770, 0.0
    %v8835 = vsel %vm8803, %v8771, 0.0
    %v8836 = vsel %vm8804, %v8772, 0.0
    %v8837 = vsel %vm8805, %v8773, 0.0
    %v8838 = vsel %vm8806, %v8774, 0.0
    %v8839 = vsel %vm8807, %v8775, 0.0
    %v8840 = vsel %vm8808, %v8776, 0.0
    %v8841 = vsel %vm8809, %v8777, 0.0
    %8842 = vst.msk [vmem:[%s4] sm:$0xff] %vm7270, %v8810
    %8843 = vst.msk [vmem:[%s4 + $0x8] sm:$0xff] %vm7270, %v8811
    %8844 = vst.msk [vmem:[%s4 + $0x10] sm:$0xff] %vm7270, %v8812
    %8845 = vst.msk [vmem:[%s4 + $0x18] sm:$0xff] %vm7270, %v8813
    %8846 = vst.msk [vmem:[%s4 + $0x20] sm:$0xff] %vm7270, %v8814
    %8847 = vst.msk [vmem:[%s4 + $0x28] sm:$0xff] %vm7270, %v8815
    %8848 = vst.msk [vmem:[%s4 + $0x30] sm:$0xff] %vm7270, %v8816
    %8849 = vst.msk [vmem:[%s4 + $0x38] sm:$0xff] %vm7270, %v8817
    %8850 = vst.msk [vmem:[%s4 + $0x40] sm:$0xff] %vm7270, %v8818
    %8851 = vst.msk [vmem:[%s4 + $0x48] sm:$0xff] %vm7270, %v8819
    %8852 = vst.msk [vmem:[%s4 + $0x50] sm:$0xff] %vm7270, %v8820
    %8853 = vst.msk [vmem:[%s4 + $0x58] sm:$0xff] %vm7270, %v8821
    %8854 = vst.msk [vmem:[%s4 + $0x60] sm:$0xff] %vm7270, %v8822
    %8855 = vst.msk [vmem:[%s4 + $0x68] sm:$0xff] %vm7270, %v8823
    %8856 = vst.msk [vmem:[%s4 + $0x70] sm:$0xff] %vm7270, %v8824
    %8857 = vst.msk [vmem:[%s4 + $0x78] sm:$0xff] %vm7270, %v8825
    %8858 = vst.msk [vmem:[%s4 + $0x80] sm:$0xff] %vm7270, %v8826
    %8859 = vst.msk [vmem:[%s4 + $0x88] sm:$0xff] %vm7270, %v8827
    %8860 = vst.msk [vmem:[%s4 + $0x90] sm:$0xff] %vm7270, %v8828
    %8861 = vst.msk [vmem:[%s4 + $0x98] sm:$0xff] %vm7270, %v8829
    %8862 = vst.msk [vmem:[%s4 + $0xa0] sm:$0xff] %vm7270, %v8830
    %8863 = vst.msk [vmem:[%s4 + $0xa8] sm:$0xff] %vm7270, %v8831
    %8864 = vst.msk [vmem:[%s4 + $0xb0] sm:$0xff] %vm7270, %v8832
    %8865 = vst.msk [vmem:[%s4 + $0xb8] sm:$0xff] %vm7270, %v8833
    %8866 = vst.msk [vmem:[%s4 + $0xc0] sm:$0xff] %vm7270, %v8834
    %8867 = vst.msk [vmem:[%s4 + $0xc8] sm:$0xff] %vm7270, %v8835
    %8868 = vst.msk [vmem:[%s4 + $0xd0] sm:$0xff] %vm7270, %v8836
    %8869 = vst.msk [vmem:[%s4 + $0xd8] sm:$0xff] %vm7270, %v8837
    %8870 = vst.msk [vmem:[%s4 + $0xe0] sm:$0xff] %vm7270, %v8838
    %8871 = vst.msk [vmem:[%s4 + $0xe8] sm:$0xff] %vm7270, %v8839
    %8872 = vst.msk [vmem:[%s4 + $0xf0] sm:$0xff] %vm7270, %v8840
    %8873 = vst.msk [vmem:[%s4 + $0xf8] sm:$0xff] %vm7270, %v8841
  $region25: #{tpu_custom_call.1} parent=0 // pred_fallthru
    _
  // Predicated region
  $region26: #{tpu_custom_call.1} parent=0 // pred_check
    _
  $region27: #{tpu_custom_call.1} parent=0 // pred_check_branch
    %8875 = sbr.rel (0) target = $region29
  $region28: #{tpu_custom_call.1} parent=0 // pred_region
    _
  $region29: #{tpu_custom_call.1} parent=0 // pred_fallthru
    _
  // Predicated region
  $region30: #{tpu_custom_call.1} parent=0 // pred_check
    _
  $region31: #{tpu_custom_call.1} parent=0 // pred_check_branch
    %8877 = sbr.rel (0) target = $region33
  $region32: #{tpu_custom_call.1} parent=0 // pred_region
    _
  $region33: #{tpu_custom_call.1} parent=0 // pred_fallthru
    _

</llo_original>
